<compile_context>
chip_gen: v6e
topology: v6e:2x2x1
jax: 0.10.0
libtpu: 0.0.40
codegen_flags: <defaults>
</compile_context>

<pallas_src>
import jax
import jax.numpy as jnp
from jax import lax
from jax.experimental import pallas as pl
from jax.experimental.pallas import tpu as pltpu


# --------------------------------------------------------------------------- config

CFG = dict(
    in_channels=8, out_channels=1, channels=32, kernel_size=7,
    upsample_scales=(4, 2), upsample_kernel_sizes=(8, 4),
    source_network_params=dict(resblock_kernel_size=3,
                               resblock_dilations=[(1,), (1, 2)],
                               use_additional_convs=True),
    filter_network_params=dict(resblock_kernel_sizes=(3, 5),
                               resblock_dilations=[(1, 3), (1, 3)],
                               use_additional_convs=False),
    share_upsamples=False, share_downsamples=False,
    lrelu_slope=0.1,
)


# --------------------------------------------------------------------------- in-kernel math

def _leaky(v, slope):
    return jnp.where(v >= 0, v, slope * v)


def _iota2(shape, dim):
    return lax.broadcasted_iota(jnp.int32, shape, dim)


def _conv1d(x2, w_flat, b_col, *, K, dil, B, T, in_slope=None):
    """'same'-padded stride-1 Conv1d on the batch-folded (Cin, B*T) layout.

    Builds the K dilated taps in VMEM per batch segment and contracts them with ONE
    (Cout, K*Cin) @ (K*Cin, B*T) MXU matmul (f32 accumulation).
    """
    if in_slope is not None:
        x2 = _leaky(x2, in_slope)
    Cin = x2.shape[0]
    P = (K - 1) // 2 * dil
    zP = jnp.zeros((Cin, P), jnp.float32) if P > 0 else None
    cols = []
    for b in range(B):
        xb = x2[:, b * T:(b + 1) * T]
        xp = jnp.concatenate([zP, xb, zP], axis=1) if P > 0 else xb
        cols.append(jnp.concatenate([xp[:, k * dil:k * dil + T] for k in range(K)], axis=0))
    xcol = jnp.concatenate(cols, axis=1)                                   # (K*Cin, B*T)
    return jnp.dot(w_flat, xcol, preferred_element_type=jnp.float32) + b_col


def _conv1d_strided(x2, w_flat, b_col, *, K, stride, pad, B, T, out_slope):
    """Strided Conv1d + fused output LeakyReLU (downsampling path).  Strided column
    selection is a one-hot matmul in VMEM (MXU has huge slack at these widths)."""
    Cin = x2.shape[0]
    T_out = (T + 2 * pad - K) // stride + 1
    L = T + 2 * pad - K + 1
    sel = (_iota2((L, T_out), 0) == stride * _iota2((L, T_out), 1)).astype(jnp.float32)
    zP = jnp.zeros((Cin, pad), jnp.float32)
    cols = []
    for b in range(B):
        xb = x2[:, b * T:(b + 1) * T]
        xp = jnp.concatenate([zP, xb, zP], axis=1)
        xcol = jnp.concatenate([xp[:, k:k + L] for k in range(K)], axis=0)   # (K*Cin, L)
        cols.append(jnp.dot(xcol, sel, preferred_element_type=jnp.float32))  # (K*Cin, T_out)
    xcol_all = jnp.concatenate(cols, axis=1)
    y = jnp.dot(w_flat, xcol_all, preferred_element_type=jnp.float32) + b_col
    return _leaky(y, out_slope), T_out


def _conv_transpose1d(x2, w_flat, b_col, *, K, stride, pad, outpad, B, T, in_slope):
    """PyTorch ConvTranspose1d(K, stride, padding=pad, output_padding=outpad) with the
    preceding LeakyReLU fused.  Zero-stuffing is a one-hot matmul, then a stride-1 conv with
    flipped taps contracted in one (Cout, K*Cin) matmul; interleave happens in-register."""
    Cin = x2.shape[0]
    x2 = _leaky(x2, in_slope)
    Lu = (T - 1) * stride + 1
    T_out = (T - 1) * stride - 2 * pad + K + outpad
    lpad = K - 1 - pad
    rpad = K - 1 - pad + outpad
    stuff = (_iota2((T, Lu), 1) == stride * _iota2((T, Lu), 0)).astype(jnp.float32)
    zl = jnp.zeros((Cin, lpad), jnp.float32) if lpad > 0 else None
    zr = jnp.zeros((Cin, rpad), jnp.float32) if rpad > 0 else None
    cols = []
    for b in range(B):
        xb = x2[:, b * T:(b + 1) * T]
        xu = jnp.dot(xb, stuff, preferred_element_type=jnp.float32)          # (Cin, Lu)
        segs = ([zl] if lpad > 0 else []) + [xu] + ([zr] if rpad > 0 else [])
        xp = jnp.concatenate(segs, axis=1)
        cols.append(jnp.concatenate([xp[:, k:k + T_out] for k in range(K)], axis=0))
    xcol = jnp.concatenate(cols, axis=1)                                      # (K*Cin, B*T_out)
    y = jnp.dot(w_flat, xcol, preferred_element_type=jnp.float32) + b_col
    return y, T_out


def _pitch_select(xb, idx_row, T):
    """Gather xb[:, idx[t]] (per-time indices, already clipped int32) via one-hot matmul."""
    sel = (_iota2((T, T), 0) == jnp.broadcast_to(idx_row, (T, T))).astype(jnp.float32)
    return jnp.dot(xb, sel, preferred_element_type=jnp.float32)


# --------------------------------------------------------------------------- the mega-kernel

def _make_kernel(cfg, treedef, n_leaves, B, T_in, T_full):
    N = len(cfg['upsample_scales'])
    scales = cfg['upsample_scales']
    kups = cfg['upsample_kernel_sizes']
    Kc = cfg['kernel_size']
    slope = cfg['lrelu_slope']
    snp = cfg['source_network_params']
    fnp = cfg['filter_network_params']

    def kernel(x_ref, c_ref, *rest):
        tree = jax.tree_util.tree_unflatten(treedef, rest[:n_leaves])
        out_c_ref, out_e_ref = rest[n_leaves:]
        prm = jax.tree_util.tree_map(lambda r: r[...], tree['params'])   # weights -> values
        gidx = jax.tree_util.tree_map(lambda r: r[...], tree['idx'])     # gather indices

        def to2d(ref):
            return jnp.concatenate([ref[b] for b in range(B)], axis=1)   # (C, B*T)

        # -------- stem --------------------------------------------------
        c2 = to2d(c_ref)                                                   # (in_ch, B*T_in)
        x2 = to2d(x_ref)                                                   # (1, B*T_full)
        c2 = _conv1d(c2, prm['input_conv']['w'], prm['input_conv']['b'],
                     K=Kc, dil=1, B=B, T=T_in)
        e2 = c2
        x2 = _conv1d(x2, prm['sn_emb']['w'], prm['sn_emb']['b'],
                     K=Kc, dil=1, B=B, T=T_full)

        # -------- source network: downsample path -----------------------
        embs = [(x2, T_full)]
        curT = T_full
        for di in range(N - 1):
            i = N - 1 - di
            pad = scales[i] - (1 if kups[i] % 2 == 0 else 0)
            x2, curT = _conv1d_strided(x2, prm['sn_down'][di]['w'], prm['sn_down'][di]['b'],
                                       K=kups[i], stride=scales[i], pad=pad,
                                       B=B, T=curT, out_slope=slope)
            embs.append((x2, curT))

        # -------- source network: upsample + adaptive residual blocks ---
        curT = T_in
        for i in range(N):
            s = scales[i]
            e2, curT = _conv_transpose1d(e2, prm['sn_up'][i]['w'], prm['sn_up'][i]['b'],
                                         K=kups[i], stride=s, pad=s // 2 + s % 2,
                                         outpad=s % 2, B=B, T=curT, in_slope=slope)
            e2 = e2 + embs[-i - 1][0]
            for lyr, (ipx, ifx) in zip(prm['sn_blocks'][i], gidx[i]):
                xt = _leaky(e2, slope)
                parts = []
                for b in range(B):
                    xb = xt[:, b * curT:(b + 1) * curT]
                    xP = _pitch_select(xb, ipx[b], curT)
                    xF = _pitch_select(xb, ifx[b], curT)
                    parts.append(jnp.concatenate([xb, xP, xF], axis=0))   # (3Ch, T)
                xcat = jnp.concatenate(parts, axis=1)                      # (3Ch, B*T)
                y = jnp.dot(lyr['w3'], xcat, preferred_element_type=jnp.float32) + lyr['b3']
                e2 = e2 + _conv1d(y, lyr['wA'], lyr['bA'],
                                  K=snp['resblock_kernel_size'], dil=1,
                                  B=B, T=curT, in_slope=slope)

        # sn output conv: LeakyReLU(default 0.01) prologue fused
        e_out = _conv1d(e2, prm['sn_out']['w'], prm['sn_out']['b'],
                        K=Kc, dil=1, B=B, T=curT, in_slope=0.01)            # (1, B*T_full)

        # -------- filter network: downsample path -----------------------
        embs = [(e2, curT)]
        f2, fT = e2, curT
        for di in range(N - 1):
            i = N - 1 - di
            pad = scales[i] - (1 if kups[i] % 2 == 0 else 0)
            f2, fT = _conv1d_strided(f2, prm['fn_down'][di]['w'], prm['fn_down'][di]['b'],
                                     K=kups[i], stride=scales[i], pad=pad,
                                     B=B, T=fT, out_slope=slope)
            embs.append((f2, fT))

        # -------- filter network: upsample + residual blocks ------------
        nb = len(fnp['resblock_kernel_sizes'])
        curT = T_in
        for i in range(N):
            s = scales[i]
            c2, curT = _conv_transpose1d(c2, prm['fn_up'][i]['w'], prm['fn_up'][i]['b'],
                                         K=kups[i], stride=s, pad=s // 2 + s % 2,
                                         outpad=s % 2, B=B, T=curT, in_slope=slope)
            c2 = c2 + embs[-i - 1][0]
            cs = None
            for j in range(nb):
                rb = c2
                for lyr, dil in zip(prm['fn_blocks'][i * nb + j], fnp['resblock_dilations'][j]):
                    rb = rb + _conv1d(rb, lyr['w'], lyr['b'],
                                      K=fnp['resblock_kernel_sizes'][j], dil=dil,
                                      B=B, T=curT, in_slope=slope)
                cs = rb if cs is None else cs + rb
            c2 = cs * (1.0 / nb)

        # fn output conv: LeakyReLU(0.01) prologue + Tanh epilogue fused
        c_out = jnp.tanh(_conv1d(c2, prm['fn_out']['w'], prm['fn_out']['b'],
                                 K=Kc, dil=1, B=B, T=curT, in_slope=0.01))

        out_c_ref[...] = c_out                                              # (1, B*T_full)
        out_e_ref[...] = e_out

    return kernel


# --------------------------------------------------------------------------- forward wrapper

def sifigan_forward(params, cfg, x, c, d):
    B, _, T_full = x.shape
    T_in = c.shape[2]
    N = len(cfg['upsample_scales'])
    snp = cfg['source_network_params']

    # Pitch-dependent gather indices: tiny XLA glue (round/clip on (B,1,T) arrays) feeding
    # int32 indices into the kernel, where the gather itself is a one-hot MXU matmul.
    idx_tree = []
    for i in range(N):
        T_i = d[i].shape[2]
        t = jnp.arange(T_i, dtype=jnp.float32)[None, None, :]
        per_dil = []
        for dil in snp['resblock_dilations'][i]:
            dd = d[i] * float(dil)
            idxP = jnp.clip(jnp.round(t - dd), 0, T_i - 1).astype(jnp.int32)   # (B,1,T_i)
            idxF = jnp.clip(jnp.round(t + dd), 0, T_i - 1).astype(jnp.int32)
            per_dil.append((idxP, idxF))
        idx_tree.append(per_dil)

    operands = dict(params=params, idx=idx_tree)
    leaves, treedef = jax.tree_util.tree_flatten(operands)
    kernel = _make_kernel(cfg, treedef, len(leaves), B, T_in, T_full)

    out_c2, out_e2 = pl.pallas_call(
        kernel,
        out_shape=(jax.ShapeDtypeStruct((1, B * T_full), jnp.float32),
                   jax.ShapeDtypeStruct((1, B * T_full), jnp.float32)),
        compiler_params=pltpu.CompilerParams(vmem_limit_bytes=32 * 1024 * 1024),
    )(x, c, *leaves)

    # lane-dense (1, B*T) kernel outputs -> module's (B, 1, T) layout (pure row-major reshape)
    return out_c2.reshape(B, 1, T_full), out_e2.reshape(B, 1, T_full)


# --------------------------------------------------------------------------- params

class ParamGen:
    def __init__(self, key):
        self.key = key

    def normal(self, shape, scale=0.01):
        self.key, sub = jax.random.split(self.key)
        return (scale * jax.random.normal(sub, shape)).astype(jnp.float32)


def init_params(key, cfg):
    """Raw PyTorch-shaped parameters (Conv1d: (Cout, Cin, K); ConvTranspose1d: (Cin, Cout, K))."""
    pg = ParamGen(key)
    C, K = cfg['channels'], cfg['kernel_size']
    N = len(cfg['upsample_scales'])
    p = {}
    p['input_conv'] = dict(w=pg.normal((C, cfg['in_channels'], K)), b=pg.normal((C,)))
    p['sn_emb'] = dict(w=pg.normal((C // 2 ** N, 1, K)), b=pg.normal((C // 2 ** N,)))
    p['sn_up'], p['fn_up'] = [], []
    for i in range(N):
        cin, cout = C // 2 ** i, C // 2 ** (i + 1)
        k = cfg['upsample_kernel_sizes'][i]
        p['sn_up'].append(dict(w=pg.normal((cin, cout, k)), b=pg.normal((cout,))))
        p['fn_up'].append(dict(w=pg.normal((cin, cout, k)), b=pg.normal((cout,))))
    p['sn_blocks'] = []
    sk = cfg['source_network_params']['resblock_kernel_size']
    for i in range(N):
        ch = C // 2 ** (i + 1)
        dils = cfg['source_network_params']['resblock_dilations'][i]
        p['sn_blocks'].append([dict(
            wC=pg.normal((ch, ch, 1)), bC=pg.normal((ch,)),
            wP=pg.normal((ch, ch, 1)), bP=pg.normal((ch,)),
            wF=pg.normal((ch, ch, 1)), bF=pg.normal((ch,)),
            wA=pg.normal((ch, ch, sk)), bA=pg.normal((ch,)),
        ) for _ in dils])
    p['fn_blocks'] = []
    fks = cfg['filter_network_params']['resblock_kernel_sizes']
    fds = cfg['filter_network_params']['resblock_dilations']
    for i in range(N):
        ch = C // 2 ** (i + 1)
        for j in range(len(fks)):
            p['fn_blocks'].append([dict(w=pg.normal((ch, ch, fks[j])), b=pg.normal((ch,)))
                                   for _ in fds[j]])
    ch = C // 2 ** N
    p['sn_out'] = dict(w=pg.normal((cfg['out_channels'], ch, K)), b=pg.normal((cfg['out_channels'],)))
    p['fn_out'] = dict(w=pg.normal((cfg['out_channels'], ch, K)), b=pg.normal((cfg['out_channels'],)))
    p['sn_down'], p['fn_down'] = [], []
    for i in reversed(range(N)):
        cin, cout = C // 2 ** (i + 1), C // 2 ** i
        k = cfg['upsample_kernel_sizes'][i]
        p['sn_down'].append(dict(w=pg.normal((cout, cin, k)), b=pg.normal((cout,))))
        p['fn_down'].append(dict(w=pg.normal((cout, cin, k)), b=pg.normal((cout,))))
    return p


def prepare_params(raw, cfg):
    """One-time re-layout of all weights into the kernel-ready (Cout, K*Cin) tap-major form."""
    N = len(cfg['upsample_scales'])

    def flat(w):                       # Conv1d (Cout, Cin, K) -> (Cout, K*Cin), tap-major
        Cout, Cin, K = w.shape
        return jnp.transpose(w, (0, 2, 1)).reshape(Cout, K * Cin)

    def flatT(w):                      # ConvTranspose1d (Cin, Cout, K) -> flipped-tap (Cout, K*Cin)
        Cin, Cout, K = w.shape
        wf = jnp.flip(w, axis=2)
        return jnp.transpose(wf, (1, 2, 0)).reshape(Cout, K * Cin)

    def bias(b):
        return b.reshape(-1, 1)

    p = {}
    p['input_conv'] = dict(w=flat(raw['input_conv']['w']), b=bias(raw['input_conv']['b']))
    p['sn_emb'] = dict(w=flat(raw['sn_emb']['w']), b=bias(raw['sn_emb']['b']))
    p['sn_up'] = [dict(w=flatT(d_['w']), b=bias(d_['b'])) for d_ in raw['sn_up']]
    p['fn_up'] = [dict(w=flatT(d_['w']), b=bias(d_['b'])) for d_ in raw['fn_up']]
    p['sn_blocks'] = []
    for blk in raw['sn_blocks']:
        layers = []
        for prm in blk:
            w3 = jnp.concatenate([prm['wC'][:, :, 0], prm['wP'][:, :, 0], prm['wF'][:, :, 0]],
                                 axis=1)                                    # (Ch, 3*Ch)
            b3 = (prm['bC'] + prm['bP'] + prm['bF']).reshape(-1, 1)
            layers.append(dict(w3=w3, b3=b3, wA=flat(prm['wA']), bA=bias(prm['bA'])))
        p['sn_blocks'].append(layers)
    p['fn_blocks'] = [[dict(w=flat(l['w']), b=bias(l['b'])) for l in blk]
                      for blk in raw['fn_blocks']]
    p['sn_out'] = dict(w=flat(raw['sn_out']['w']), b=bias(raw['sn_out']['b']))
    p['fn_out'] = dict(w=flat(raw['fn_out']['w']), b=bias(raw['fn_out']['b']))
    # only the first N-1 downsamples are ever used by the module's forward
    p['sn_down'] = [dict(w=flat(d_['w']), b=bias(d_['b'])) for d_ in raw['sn_down'][:N - 1]]
    p['fn_down'] = [dict(w=flat(d_['w']), b=bias(d_['b'])) for d_ in raw['fn_down'][:N - 1]]
    return p


# --------------------------------------------------------------------------- main

if __name__ == "__main__":
    key = jax.random.PRNGKey(0)
    kp, kx, kc, kd0, kd1 = jax.random.split(key, 5)
    cfg = CFG
    params = prepare_params(init_params(kp, cfg), cfg)

    B = 2
    T_in = 8
    up0, up1 = cfg['upsample_scales']
    T_full = T_in * up0 * up1                                    # 64

    x = jax.random.normal(kx, (B, 1, T_full), jnp.float32)       # sine signal
    c = jax.random.normal(kc, (B, cfg['in_channels'], T_in), jnp.float32)
    d = [1.0 + 3.0 * jax.random.uniform(kd0, (B, 1, T_in * up0), jnp.float32),
         1.0 + 3.0 * jax.random.uniform(kd1, (B, 1, T_full), jnp.float32)]

    fwd = jax.jit(lambda p, xx, cc, dd: sifigan_forward(p, cfg, xx, cc, dd))
    out_c, out_e = fwd(params, x, c, d)
    jax.block_until_ready((out_c, out_e))

    assert out_c.shape == (B, cfg['out_channels'], T_full)
    assert out_e.shape == (B, cfg['out_channels'], T_full)
    assert jnp.all(jnp.isfinite(out_c)) and jnp.all(jnp.isfinite(out_e))
    print("KERNEL_OK")
</pallas_src>

<mosaic_0001>
module attributes {stable_mosaic.version = 11 : i64} {
  func.func @kernel(%arg0: memref<2x1x64xf32, #tpu.memory_space<vmem>>, %arg1: memref<2x8x8xf32, #tpu.memory_space<vmem>>, %arg2: memref<2x1x32xi32, #tpu.memory_space<vmem>>, %arg3: memref<2x1x32xi32, #tpu.memory_space<vmem>>, %arg4: memref<2x1x64xi32, #tpu.memory_space<vmem>>, %arg5: memref<2x1x64xi32, #tpu.memory_space<vmem>>, %arg6: memref<2x1x64xi32, #tpu.memory_space<vmem>>, %arg7: memref<2x1x64xi32, #tpu.memory_space<vmem>>, %arg8: memref<16x1xf32, #tpu.memory_space<vmem>>, %arg9: memref<16x48xf32, #tpu.memory_space<vmem>>, %arg10: memref<16x1xf32, #tpu.memory_space<vmem>>, %arg11: memref<16x48xf32, #tpu.memory_space<vmem>>, %arg12: memref<16x1xf32, #tpu.memory_space<vmem>>, %arg13: memref<16x80xf32, #tpu.memory_space<vmem>>, %arg14: memref<16x1xf32, #tpu.memory_space<vmem>>, %arg15: memref<16x80xf32, #tpu.memory_space<vmem>>, %arg16: memref<8x1xf32, #tpu.memory_space<vmem>>, %arg17: memref<8x24xf32, #tpu.memory_space<vmem>>, %arg18: memref<8x1xf32, #tpu.memory_space<vmem>>, %arg19: memref<8x24xf32, #tpu.memory_space<vmem>>, %arg20: memref<8x1xf32, #tpu.memory_space<vmem>>, %arg21: memref<8x40xf32, #tpu.memory_space<vmem>>, %arg22: memref<8x1xf32, #tpu.memory_space<vmem>>, %arg23: memref<8x40xf32, #tpu.memory_space<vmem>>, %arg24: memref<16x1xf32, #tpu.memory_space<vmem>>, %arg25: memref<16x32xf32, #tpu.memory_space<vmem>>, %arg26: memref<1x1xf32, #tpu.memory_space<vmem>>, %arg27: memref<1x56xf32, #tpu.memory_space<vmem>>, %arg28: memref<16x1xf32, #tpu.memory_space<vmem>>, %arg29: memref<16x256xf32, #tpu.memory_space<vmem>>, %arg30: memref<8x1xf32, #tpu.memory_space<vmem>>, %arg31: memref<8x64xf32, #tpu.memory_space<vmem>>, %arg32: memref<32x1xf32, #tpu.memory_space<vmem>>, %arg33: memref<32x56xf32, #tpu.memory_space<vmem>>, %arg34: memref<16x1xf32, #tpu.memory_space<vmem>>, %arg35: memref<16x1xf32, #tpu.memory_space<vmem>>, %arg36: memref<16x48xf32, #tpu.memory_space<vmem>>, %arg37: memref<16x48xf32, #tpu.memory_space<vmem>>, %arg38: memref<8x1xf32, #tpu.memory_space<vmem>>, %arg39: memref<8x1xf32, #tpu.memory_space<vmem>>, %arg40: memref<8x24xf32, #tpu.memory_space<vmem>>, %arg41: memref<8x24xf32, #tpu.memory_space<vmem>>, %arg42: memref<8x1xf32, #tpu.memory_space<vmem>>, %arg43: memref<8x1xf32, #tpu.memory_space<vmem>>, %arg44: memref<8x24xf32, #tpu.memory_space<vmem>>, %arg45: memref<8x24xf32, #tpu.memory_space<vmem>>, %arg46: memref<16x1xf32, #tpu.memory_space<vmem>>, %arg47: memref<16x32xf32, #tpu.memory_space<vmem>>, %arg48: memref<8x1xf32, #tpu.memory_space<vmem>>, %arg49: memref<8x7xf32, #tpu.memory_space<vmem>>, %arg50: memref<1x1xf32, #tpu.memory_space<vmem>>, %arg51: memref<1x56xf32, #tpu.memory_space<vmem>>, %arg52: memref<16x1xf32, #tpu.memory_space<vmem>>, %arg53: memref<16x256xf32, #tpu.memory_space<vmem>>, %arg54: memref<8x1xf32, #tpu.memory_space<vmem>>, %arg55: memref<8x64xf32, #tpu.memory_space<vmem>>, %arg56: memref<1x128xf32, #tpu.memory_space<vmem>>, %arg57: memref<1x128xf32, #tpu.memory_space<vmem>>) attributes {dimension_semantics = [], scalar_prefetch = 0 : i64, scratch_operands = 0 : i64, tpu.core_type = #tpu.core_type<tc>} {
    %c0 = arith.constant 0 : index
    %c0_0 = arith.constant 0 : index
    %0 = vector.load %arg8[%c0, %c0_0] : memref<16x1xf32, #tpu.memory_space<vmem>>, vector<16x1xf32>
    %c0_1 = arith.constant 0 : index
    %c0_2 = arith.constant 0 : index
    %1 = vector.load %arg9[%c0_1, %c0_2] : memref<16x48xf32, #tpu.memory_space<vmem>>, vector<16x48xf32>
    %c0_3 = arith.constant 0 : index
    %c0_4 = arith.constant 0 : index
    %2 = vector.load %arg10[%c0_3, %c0_4] : memref<16x1xf32, #tpu.memory_space<vmem>>, vector<16x1xf32>
    %c0_5 = arith.constant 0 : index
    %c0_6 = arith.constant 0 : index
    %3 = vector.load %arg11[%c0_5, %c0_6] : memref<16x48xf32, #tpu.memory_space<vmem>>, vector<16x48xf32>
    %c0_7 = arith.constant 0 : index
    %c0_8 = arith.constant 0 : index
    %4 = vector.load %arg12[%c0_7, %c0_8] : memref<16x1xf32, #tpu.memory_space<vmem>>, vector<16x1xf32>
    %c0_9 = arith.constant 0 : index
    %c0_10 = arith.constant 0 : index
    %5 = vector.load %arg13[%c0_9, %c0_10] : memref<16x80xf32, #tpu.memory_space<vmem>>, vector<16x80xf32>
    %c0_11 = arith.constant 0 : index
    %c0_12 = arith.constant 0 : index
    %6 = vector.load %arg14[%c0_11, %c0_12] : memref<16x1xf32, #tpu.memory_space<vmem>>, vector<16x1xf32>
    %c0_13 = arith.constant 0 : index
    %c0_14 = arith.constant 0 : index
    %7 = vector.load %arg15[%c0_13, %c0_14] : memref<16x80xf32, #tpu.memory_space<vmem>>, vector<16x80xf32>
    %c0_15 = arith.constant 0 : index
    %c0_16 = arith.constant 0 : index
    %8 = vector.load %arg16[%c0_15, %c0_16] : memref<8x1xf32, #tpu.memory_space<vmem>>, vector<8x1xf32>
    %c0_17 = arith.constant 0 : index
    %c0_18 = arith.constant 0 : index
    %9 = vector.load %arg17[%c0_17, %c0_18] : memref<8x24xf32, #tpu.memory_space<vmem>>, vector<8x24xf32>
    %c0_19 = arith.constant 0 : index
    %c0_20 = arith.constant 0 : index
    %10 = vector.load %arg18[%c0_19, %c0_20] : memref<8x1xf32, #tpu.memory_space<vmem>>, vector<8x1xf32>
    %c0_21 = arith.constant 0 : index
    %c0_22 = arith.constant 0 : index
    %11 = vector.load %arg19[%c0_21, %c0_22] : memref<8x24xf32, #tpu.memory_space<vmem>>, vector<8x24xf32>
    %c0_23 = arith.constant 0 : index
    %c0_24 = arith.constant 0 : index
    %12 = vector.load %arg20[%c0_23, %c0_24] : memref<8x1xf32, #tpu.memory_space<vmem>>, vector<8x1xf32>
    %c0_25 = arith.constant 0 : index
    %c0_26 = arith.constant 0 : index
    %13 = vector.load %arg21[%c0_25, %c0_26] : memref<8x40xf32, #tpu.memory_space<vmem>>, vector<8x40xf32>
    %c0_27 = arith.constant 0 : index
    %c0_28 = arith.constant 0 : index
    %14 = vector.load %arg22[%c0_27, %c0_28] : memref<8x1xf32, #tpu.memory_space<vmem>>, vector<8x1xf32>
    %c0_29 = arith.constant 0 : index
    %c0_30 = arith.constant 0 : index
    %15 = vector.load %arg23[%c0_29, %c0_30] : memref<8x40xf32, #tpu.memory_space<vmem>>, vector<8x40xf32>
    %c0_31 = arith.constant 0 : index
    %c0_32 = arith.constant 0 : index
    %16 = vector.load %arg24[%c0_31, %c0_32] : memref<16x1xf32, #tpu.memory_space<vmem>>, vector<16x1xf32>
    %c0_33 = arith.constant 0 : index
    %c0_34 = arith.constant 0 : index
    %17 = vector.load %arg25[%c0_33, %c0_34] : memref<16x32xf32, #tpu.memory_space<vmem>>, vector<16x32xf32>
    %c0_35 = arith.constant 0 : index
    %c0_36 = arith.constant 0 : index
    %18 = vector.load %arg26[%c0_35, %c0_36] : memref<1x1xf32, #tpu.memory_space<vmem>>, vector<1x1xf32>
    %c0_37 = arith.constant 0 : index
    %c0_38 = arith.constant 0 : index
    %19 = vector.load %arg27[%c0_37, %c0_38] : memref<1x56xf32, #tpu.memory_space<vmem>>, vector<1x56xf32>
    %c0_39 = arith.constant 0 : index
    %c0_40 = arith.constant 0 : index
    %20 = vector.load %arg28[%c0_39, %c0_40] : memref<16x1xf32, #tpu.memory_space<vmem>>, vector<16x1xf32>
    %c0_41 = arith.constant 0 : index
    %c0_42 = arith.constant 0 : index
    %21 = vector.load %arg29[%c0_41, %c0_42] : memref<16x256xf32, #tpu.memory_space<vmem>>, vector<16x256xf32>
    %c0_43 = arith.constant 0 : index
    %c0_44 = arith.constant 0 : index
    %22 = vector.load %arg30[%c0_43, %c0_44] : memref<8x1xf32, #tpu.memory_space<vmem>>, vector<8x1xf32>
    %c0_45 = arith.constant 0 : index
    %c0_46 = arith.constant 0 : index
    %23 = vector.load %arg31[%c0_45, %c0_46] : memref<8x64xf32, #tpu.memory_space<vmem>>, vector<8x64xf32>
    %c0_47 = arith.constant 0 : index
    %c0_48 = arith.constant 0 : index
    %24 = vector.load %arg32[%c0_47, %c0_48] : memref<32x1xf32, #tpu.memory_space<vmem>>, vector<32x1xf32>
    %c0_49 = arith.constant 0 : index
    %c0_50 = arith.constant 0 : index
    %25 = vector.load %arg33[%c0_49, %c0_50] : memref<32x56xf32, #tpu.memory_space<vmem>>, vector<32x56xf32>
    %c0_51 = arith.constant 0 : index
    %c0_52 = arith.constant 0 : index
    %26 = vector.load %arg34[%c0_51, %c0_52] : memref<16x1xf32, #tpu.memory_space<vmem>>, vector<16x1xf32>
    %c0_53 = arith.constant 0 : index
    %c0_54 = arith.constant 0 : index
    %27 = vector.load %arg35[%c0_53, %c0_54] : memref<16x1xf32, #tpu.memory_space<vmem>>, vector<16x1xf32>
    %c0_55 = arith.constant 0 : index
    %c0_56 = arith.constant 0 : index
    %28 = vector.load %arg36[%c0_55, %c0_56] : memref<16x48xf32, #tpu.memory_space<vmem>>, vector<16x48xf32>
    %c0_57 = arith.constant 0 : index
    %c0_58 = arith.constant 0 : index
    %29 = vector.load %arg37[%c0_57, %c0_58] : memref<16x48xf32, #tpu.memory_space<vmem>>, vector<16x48xf32>
    %c0_59 = arith.constant 0 : index
    %c0_60 = arith.constant 0 : index
    %30 = vector.load %arg38[%c0_59, %c0_60] : memref<8x1xf32, #tpu.memory_space<vmem>>, vector<8x1xf32>
    %c0_61 = arith.constant 0 : index
    %c0_62 = arith.constant 0 : index
    %31 = vector.load %arg39[%c0_61, %c0_62] : memref<8x1xf32, #tpu.memory_space<vmem>>, vector<8x1xf32>
    %c0_63 = arith.constant 0 : index
    %c0_64 = arith.constant 0 : index
    %32 = vector.load %arg40[%c0_63, %c0_64] : memref<8x24xf32, #tpu.memory_space<vmem>>, vector<8x24xf32>
    %c0_65 = arith.constant 0 : index
    %c0_66 = arith.constant 0 : index
    %33 = vector.load %arg41[%c0_65, %c0_66] : memref<8x24xf32, #tpu.memory_space<vmem>>, vector<8x24xf32>
    %c0_67 = arith.constant 0 : index
    %c0_68 = arith.constant 0 : index
    %34 = vector.load %arg42[%c0_67, %c0_68] : memref<8x1xf32, #tpu.memory_space<vmem>>, vector<8x1xf32>
    %c0_69 = arith.constant 0 : index
    %c0_70 = arith.constant 0 : index
    %35 = vector.load %arg43[%c0_69, %c0_70] : memref<8x1xf32, #tpu.memory_space<vmem>>, vector<8x1xf32>
    %c0_71 = arith.constant 0 : index
    %c0_72 = arith.constant 0 : index
    %36 = vector.load %arg44[%c0_71, %c0_72] : memref<8x24xf32, #tpu.memory_space<vmem>>, vector<8x24xf32>
    %c0_73 = arith.constant 0 : index
    %c0_74 = arith.constant 0 : index
    %37 = vector.load %arg45[%c0_73, %c0_74] : memref<8x24xf32, #tpu.memory_space<vmem>>, vector<8x24xf32>
    %c0_75 = arith.constant 0 : index
    %c0_76 = arith.constant 0 : index
    %38 = vector.load %arg46[%c0_75, %c0_76] : memref<16x1xf32, #tpu.memory_space<vmem>>, vector<16x1xf32>
    %c0_77 = arith.constant 0 : index
    %c0_78 = arith.constant 0 : index
    %39 = vector.load %arg47[%c0_77, %c0_78] : memref<16x32xf32, #tpu.memory_space<vmem>>, vector<16x32xf32>
    %c0_79 = arith.constant 0 : index
    %c0_80 = arith.constant 0 : index
    %40 = vector.load %arg48[%c0_79, %c0_80] : memref<8x1xf32, #tpu.memory_space<vmem>>, vector<8x1xf32>
    %c0_81 = arith.constant 0 : index
    %c0_82 = arith.constant 0 : index
    %41 = vector.load %arg49[%c0_81, %c0_82] : memref<8x7xf32, #tpu.memory_space<vmem>>, vector<8x7xf32>
    %c0_83 = arith.constant 0 : index
    %c0_84 = arith.constant 0 : index
    %42 = vector.load %arg50[%c0_83, %c0_84] : memref<1x1xf32, #tpu.memory_space<vmem>>, vector<1x1xf32>
    %c0_85 = arith.constant 0 : index
    %c0_86 = arith.constant 0 : index
    %43 = vector.load %arg51[%c0_85, %c0_86] : memref<1x56xf32, #tpu.memory_space<vmem>>, vector<1x56xf32>
    %c0_87 = arith.constant 0 : index
    %c0_88 = arith.constant 0 : index
    %44 = vector.load %arg52[%c0_87, %c0_88] : memref<16x1xf32, #tpu.memory_space<vmem>>, vector<16x1xf32>
    %c0_89 = arith.constant 0 : index
    %c0_90 = arith.constant 0 : index
    %45 = vector.load %arg53[%c0_89, %c0_90] : memref<16x256xf32, #tpu.memory_space<vmem>>, vector<16x256xf32>
    %c0_91 = arith.constant 0 : index
    %c0_92 = arith.constant 0 : index
    %46 = vector.load %arg54[%c0_91, %c0_92] : memref<8x1xf32, #tpu.memory_space<vmem>>, vector<8x1xf32>
    %c0_93 = arith.constant 0 : index
    %c0_94 = arith.constant 0 : index
    %47 = vector.load %arg55[%c0_93, %c0_94] : memref<8x64xf32, #tpu.memory_space<vmem>>, vector<8x64xf32>
    %c0_95 = arith.constant 0 : index
    %c0_96 = arith.constant 0 : index
    %c0_97 = arith.constant 0 : index
    %48 = vector.load %arg2[%c0_95, %c0_96, %c0_97] : memref<2x1x32xi32, #tpu.memory_space<vmem>>, vector<2x1x32xi32>
    %c0_98 = arith.constant 0 : index
    %c0_99 = arith.constant 0 : index
    %c0_100 = arith.constant 0 : index
    %49 = vector.load %arg3[%c0_98, %c0_99, %c0_100] : memref<2x1x32xi32, #tpu.memory_space<vmem>>, vector<2x1x32xi32>
    %c0_101 = arith.constant 0 : index
    %c0_102 = arith.constant 0 : index
    %c0_103 = arith.constant 0 : index
    %50 = vector.load %arg4[%c0_101, %c0_102, %c0_103] : memref<2x1x64xi32, #tpu.memory_space<vmem>>, vector<2x1x64xi32>
    %c0_104 = arith.constant 0 : index
    %c0_105 = arith.constant 0 : index
    %c0_106 = arith.constant 0 : index
    %51 = vector.load %arg5[%c0_104, %c0_105, %c0_106] : memref<2x1x64xi32, #tpu.memory_space<vmem>>, vector<2x1x64xi32>
    %c0_107 = arith.constant 0 : index
    %c0_108 = arith.constant 0 : index
    %c0_109 = arith.constant 0 : index
    %52 = vector.load %arg6[%c0_107, %c0_108, %c0_109] : memref<2x1x64xi32, #tpu.memory_space<vmem>>, vector<2x1x64xi32>
    %c0_110 = arith.constant 0 : index
    %c0_111 = arith.constant 0 : index
    %c0_112 = arith.constant 0 : index
    %53 = vector.load %arg7[%c0_110, %c0_111, %c0_112] : memref<2x1x64xi32, #tpu.memory_space<vmem>>, vector<2x1x64xi32>
    %c0_113 = arith.constant 0 : index
    %c0_114 = arith.constant 0 : index
    %c0_115 = arith.constant 0 : index
    %54 = vector.load %arg1[%c0_113, %c0_114, %c0_115] : memref<2x8x8xf32, #tpu.memory_space<vmem>>, vector<1x8x8xf32>
    %55 = vector.shape_cast %54 : vector<1x8x8xf32> to vector<8x8xf32>
    %c1 = arith.constant 1 : index
    %c0_116 = arith.constant 0 : index
    %c0_117 = arith.constant 0 : index
    %56 = vector.load %arg1[%c1, %c0_116, %c0_117] : memref<2x8x8xf32, #tpu.memory_space<vmem>>, vector<1x8x8xf32>
    %57 = vector.shape_cast %56 : vector<1x8x8xf32> to vector<8x8xf32>
    %58 = tpu.concatenate %55, %57 in 1 : vector<8x8xf32>, vector<8x8xf32> -> vector<8x16xf32>
    %c0_118 = arith.constant 0 : index
    %c0_119 = arith.constant 0 : index
    %c0_120 = arith.constant 0 : index
    %59 = vector.load %arg0[%c0_118, %c0_119, %c0_120] : memref<2x1x64xf32, #tpu.memory_space<vmem>>, vector<1x1x64xf32>
    %60 = vector.shape_cast %59 : vector<1x1x64xf32> to vector<1x64xf32>
    %c1_121 = arith.constant 1 : index
    %c0_122 = arith.constant 0 : index
    %c0_123 = arith.constant 0 : index
    %61 = vector.load %arg0[%c1_121, %c0_122, %c0_123] : memref<2x1x64xf32, #tpu.memory_space<vmem>>, vector<1x1x64xf32>
    %62 = vector.shape_cast %61 : vector<1x1x64xf32> to vector<1x64xf32>
    %63 = tpu.concatenate %60, %62 in 1 : vector<1x64xf32>, vector<1x64xf32> -> vector<1x128xf32>
    %cst = arith.constant 0.000000e+00 : f32
    %64 = vector.broadcast %cst : f32 to vector<8x3xf32>
    %65 = vector.extract_strided_slice %58 {offsets = [0, 0], sizes = [8, 8], strides = [1, 1]} : vector<8x16xf32> to vector<8x8xf32>
    %66 = tpu.concatenate %64, %65, %64 in 1 : vector<8x3xf32>, vector<8x8xf32>, vector<8x3xf32> -> vector<8x14xf32>
    %67 = vector.extract_strided_slice %66 {offsets = [0, 0], sizes = [8, 8], strides = [1, 1]} : vector<8x14xf32> to vector<8x8xf32>
    %68 = vector.extract_strided_slice %66 {offsets = [0, 1], sizes = [8, 8], strides = [1, 1]} : vector<8x14xf32> to vector<8x8xf32>
    %69 = vector.extract_strided_slice %66 {offsets = [0, 2], sizes = [8, 8], strides = [1, 1]} : vector<8x14xf32> to vector<8x8xf32>
    %70 = vector.extract_strided_slice %66 {offsets = [0, 3], sizes = [8, 8], strides = [1, 1]} : vector<8x14xf32> to vector<8x8xf32>
    %71 = vector.extract_strided_slice %66 {offsets = [0, 4], sizes = [8, 8], strides = [1, 1]} : vector<8x14xf32> to vector<8x8xf32>
    %72 = vector.extract_strided_slice %66 {offsets = [0, 5], sizes = [8, 8], strides = [1, 1]} : vector<8x14xf32> to vector<8x8xf32>
    %73 = vector.extract_strided_slice %66 {offsets = [0, 6], sizes = [8, 8], strides = [1, 1]} : vector<8x14xf32> to vector<8x8xf32>
    %74 = tpu.concatenate %67, %68, %69, %70, %71, %72, %73 in 0 : vector<8x8xf32>, vector<8x8xf32>, vector<8x8xf32>, vector<8x8xf32>, vector<8x8xf32>, vector<8x8xf32>, vector<8x8xf32> -> vector<56x8xf32>
    %75 = vector.extract_strided_slice %58 {offsets = [0, 8], sizes = [8, 8], strides = [1, 1]} : vector<8x16xf32> to vector<8x8xf32>
    %76 = tpu.concatenate %64, %75, %64 in 1 : vector<8x3xf32>, vector<8x8xf32>, vector<8x3xf32> -> vector<8x14xf32>
    %77 = vector.extract_strided_slice %76 {offsets = [0, 0], sizes = [8, 8], strides = [1, 1]} : vector<8x14xf32> to vector<8x8xf32>
    %78 = vector.extract_strided_slice %76 {offsets = [0, 1], sizes = [8, 8], strides = [1, 1]} : vector<8x14xf32> to vector<8x8xf32>
    %79 = vector.extract_strided_slice %76 {offsets = [0, 2], sizes = [8, 8], strides = [1, 1]} : vector<8x14xf32> to vector<8x8xf32>
    %80 = vector.extract_strided_slice %76 {offsets = [0, 3], sizes = [8, 8], strides = [1, 1]} : vector<8x14xf32> to vector<8x8xf32>
    %81 = vector.extract_strided_slice %76 {offsets = [0, 4], sizes = [8, 8], strides = [1, 1]} : vector<8x14xf32> to vector<8x8xf32>
    %82 = vector.extract_strided_slice %76 {offsets = [0, 5], sizes = [8, 8], strides = [1, 1]} : vector<8x14xf32> to vector<8x8xf32>
    %83 = vector.extract_strided_slice %76 {offsets = [0, 6], sizes = [8, 8], strides = [1, 1]} : vector<8x14xf32> to vector<8x8xf32>
    %84 = tpu.concatenate %77, %78, %79, %80, %81, %82, %83 in 0 : vector<8x8xf32>, vector<8x8xf32>, vector<8x8xf32>, vector<8x8xf32>, vector<8x8xf32>, vector<8x8xf32>, vector<8x8xf32> -> vector<56x8xf32>
    %85 = tpu.concatenate %74, %84 in 1 : vector<56x8xf32>, vector<56x8xf32> -> vector<56x16xf32>
    %cst_124 = arith.constant dense<0.000000e+00> : vector<32x16xf32>
    %86 = tpu.matmul %25, %85, %cst_124 {dimension_numbers = #tpu.dot_dimension_numbers<[1], [0], [0], [1], [0, 0, 1, 1], [], []>} : vector<32x56xf32>, vector<56x16xf32>, vector<32x16xf32> -> vector<32x16xf32>
    %87 = vector.broadcast %24 : vector<32x1xf32> to vector<32x16xf32>
    %88 = arith.addf %86, %87 : vector<32x16xf32>
    %cst_125 = arith.constant 0.000000e+00 : f32
    %89 = vector.broadcast %cst_125 : f32 to vector<1x3xf32>
    %90 = vector.extract_strided_slice %63 {offsets = [0, 0], sizes = [1, 64], strides = [1, 1]} : vector<1x128xf32> to vector<1x64xf32>
    %91 = tpu.concatenate %89, %90, %89 in 1 : vector<1x3xf32>, vector<1x64xf32>, vector<1x3xf32> -> vector<1x70xf32>
    %92 = vector.extract_strided_slice %91 {offsets = [0, 0], sizes = [1, 64], strides = [1, 1]} : vector<1x70xf32> to vector<1x64xf32>
    %93 = vector.extract_strided_slice %91 {offsets = [0, 1], sizes = [1, 64], strides = [1, 1]} : vector<1x70xf32> to vector<1x64xf32>
    %94 = vector.extract_strided_slice %91 {offsets = [0, 2], sizes = [1, 64], strides = [1, 1]} : vector<1x70xf32> to vector<1x64xf32>
    %95 = vector.extract_strided_slice %91 {offsets = [0, 3], sizes = [1, 64], strides = [1, 1]} : vector<1x70xf32> to vector<1x64xf32>
    %96 = vector.extract_strided_slice %91 {offsets = [0, 4], sizes = [1, 64], strides = [1, 1]} : vector<1x70xf32> to vector<1x64xf32>
    %97 = vector.extract_strided_slice %91 {offsets = [0, 5], sizes = [1, 64], strides = [1, 1]} : vector<1x70xf32> to vector<1x64xf32>
    %98 = vector.extract_strided_slice %91 {offsets = [0, 6], sizes = [1, 64], strides = [1, 1]} : vector<1x70xf32> to vector<1x64xf32>
    %99 = tpu.concatenate %92, %93, %94, %95, %96, %97, %98 in 0 : vector<1x64xf32>, vector<1x64xf32>, vector<1x64xf32>, vector<1x64xf32>, vector<1x64xf32>, vector<1x64xf32>, vector<1x64xf32> -> vector<7x64xf32>
    %100 = vector.extract_strided_slice %63 {offsets = [0, 64], sizes = [1, 64], strides = [1, 1]} : vector<1x128xf32> to vector<1x64xf32>
    %101 = tpu.concatenate %89, %100, %89 in 1 : vector<1x3xf32>, vector<1x64xf32>, vector<1x3xf32> -> vector<1x70xf32>
    %102 = vector.extract_strided_slice %101 {offsets = [0, 0], sizes = [1, 64], strides = [1, 1]} : vector<1x70xf32> to vector<1x64xf32>
    %103 = vector.extract_strided_slice %101 {offsets = [0, 1], sizes = [1, 64], strides = [1, 1]} : vector<1x70xf32> to vector<1x64xf32>
    %104 = vector.extract_strided_slice %101 {offsets = [0, 2], sizes = [1, 64], strides = [1, 1]} : vector<1x70xf32> to vector<1x64xf32>
    %105 = vector.extract_strided_slice %101 {offsets = [0, 3], sizes = [1, 64], strides = [1, 1]} : vector<1x70xf32> to vector<1x64xf32>
    %106 = vector.extract_strided_slice %101 {offsets = [0, 4], sizes = [1, 64], strides = [1, 1]} : vector<1x70xf32> to vector<1x64xf32>
    %107 = vector.extract_strided_slice %101 {offsets = [0, 5], sizes = [1, 64], strides = [1, 1]} : vector<1x70xf32> to vector<1x64xf32>
    %108 = vector.extract_strided_slice %101 {offsets = [0, 6], sizes = [1, 64], strides = [1, 1]} : vector<1x70xf32> to vector<1x64xf32>
    %109 = tpu.concatenate %102, %103, %104, %105, %106, %107, %108 in 0 : vector<1x64xf32>, vector<1x64xf32>, vector<1x64xf32>, vector<1x64xf32>, vector<1x64xf32>, vector<1x64xf32>, vector<1x64xf32> -> vector<7x64xf32>
    %110 = tpu.concatenate %99, %109 in 1 : vector<7x64xf32>, vector<7x64xf32> -> vector<7x128xf32>
    %cst_126 = arith.constant dense<0.000000e+00> : vector<8x128xf32>
    %111 = tpu.matmul %41, %110, %cst_126 {dimension_numbers = #tpu.dot_dimension_numbers<[1], [0], [0], [1], [0, 0, 1, 1], [], []>} : vector<8x7xf32>, vector<7x128xf32>, vector<8x128xf32> -> vector<8x128xf32>
    %112 = vector.broadcast %40 : vector<8x1xf32> to vector<8x128xf32>
    %113 = arith.addf %111, %112 : vector<8x128xf32>
    %114 = tpu.iota {dimensions = array<i32: 0>} : vector<63x32xi32>
    %115 = tpu.iota {dimensions = array<i32: 1>} : vector<63x32xi32>
    %c2_i32 = arith.constant 2 : i32
    %116 = vector.broadcast %c2_i32 : i32 to vector<63x32xi32>
    %117 = arith.muli %116, %115 : vector<63x32xi32>
    %118 = arith.cmpi eq, %114, %117 : vector<63x32xi32>
    %119 = arith.extui %118 : vector<63x32xi1> to vector<63x32xi32>
    %120 = arith.sitofp %119 : vector<63x32xi32> to vector<63x32xf32>
    %cst_127 = arith.constant 0.000000e+00 : f32
    %121 = vector.broadcast %cst_127 : f32 to vector<8x1xf32>
    %122 = vector.extract_strided_slice %113 {offsets = [0, 0], sizes = [8, 64], strides = [1, 1]} : vector<8x128xf32> to vector<8x64xf32>
    %123 = tpu.concatenate %121, %122, %121 in 1 : vector<8x1xf32>, vector<8x64xf32>, vector<8x1xf32> -> vector<8x66xf32>
    %124 = vector.extract_strided_slice %123 {offsets = [0, 0], sizes = [8, 63], strides = [1, 1]} : vector<8x66xf32> to vector<8x63xf32>
    %125 = vector.extract_strided_slice %123 {offsets = [0, 1], sizes = [8, 63], strides = [1, 1]} : vector<8x66xf32> to vector<8x63xf32>
    %126 = vector.extract_strided_slice %123 {offsets = [0, 2], sizes = [8, 63], strides = [1, 1]} : vector<8x66xf32> to vector<8x63xf32>
    %127 = vector.extract_strided_slice %123 {offsets = [0, 3], sizes = [8, 63], strides = [1, 1]} : vector<8x66xf32> to vector<8x63xf32>
    %128 = tpu.concatenate %124, %125, %126, %127 in 0 : vector<8x63xf32>, vector<8x63xf32>, vector<8x63xf32>, vector<8x63xf32> -> vector<32x63xf32>
    %cst_128 = arith.constant dense<0.000000e+00> : vector<32x32xf32>
    %129 = tpu.matmul %128, %120, %cst_128 {dimension_numbers = #tpu.dot_dimension_numbers<[1], [0], [0], [1], [0, 0, 1, 1], [], []>} : vector<32x63xf32>, vector<63x32xf32>, vector<32x32xf32> -> vector<32x32xf32>
    %130 = vector.extract_strided_slice %113 {offsets = [0, 64], sizes = [8, 64], strides = [1, 1]} : vector<8x128xf32> to vector<8x64xf32>
    %131 = tpu.concatenate %121, %130, %121 in 1 : vector<8x1xf32>, vector<8x64xf32>, vector<8x1xf32> -> vector<8x66xf32>
    %132 = vector.extract_strided_slice %131 {offsets = [0, 0], sizes = [8, 63], strides = [1, 1]} : vector<8x66xf32> to vector<8x63xf32>
    %133 = vector.extract_strided_slice %131 {offsets = [0, 1], sizes = [8, 63], strides = [1, 1]} : vector<8x66xf32> to vector<8x63xf32>
    %134 = vector.extract_strided_slice %131 {offsets = [0, 2], sizes = [8, 63], strides = [1, 1]} : vector<8x66xf32> to vector<8x63xf32>
    %135 = vector.extract_strided_slice %131 {offsets = [0, 3], sizes = [8, 63], strides = [1, 1]} : vector<8x66xf32> to vector<8x63xf32>
    %136 = tpu.concatenate %132, %133, %134, %135 in 0 : vector<8x63xf32>, vector<8x63xf32>, vector<8x63xf32>, vector<8x63xf32> -> vector<32x63xf32>
    %cst_129 = arith.constant dense<0.000000e+00> : vector<32x32xf32>
    %137 = tpu.matmul %136, %120, %cst_129 {dimension_numbers = #tpu.dot_dimension_numbers<[1], [0], [0], [1], [0, 0, 1, 1], [], []>} : vector<32x63xf32>, vector<63x32xf32>, vector<32x32xf32> -> vector<32x32xf32>
    %138 = tpu.concatenate %129, %137 in 1 : vector<32x32xf32>, vector<32x32xf32> -> vector<32x64xf32>
    %cst_130 = arith.constant dense<0.000000e+00> : vector<16x64xf32>
    %139 = tpu.matmul %39, %138, %cst_130 {dimension_numbers = #tpu.dot_dimension_numbers<[1], [0], [0], [1], [0, 0, 1, 1], [], []>} : vector<16x32xf32>, vector<32x64xf32>, vector<16x64xf32> -> vector<16x64xf32>
    %140 = vector.broadcast %38 : vector<16x1xf32> to vector<16x64xf32>
    %141 = arith.addf %139, %140 : vector<16x64xf32>
    %cst_131 = arith.constant 0.000000e+00 : f32
    %142 = vector.broadcast %cst_131 : f32 to vector<16x64xf32>
    %143 = arith.cmpf oge, %141, %142 : vector<16x64xf32>
    %cst_132 = arith.constant 1.000000e-01 : f32
    %144 = vector.broadcast %cst_132 : f32 to vector<16x64xf32>
    %145 = arith.mulf %144, %141 : vector<16x64xf32>
    %146 = arith.select %143, %141, %145 : vector<16x64xi1>, vector<16x64xf32>
    %cst_133 = arith.constant 0.000000e+00 : f32
    %147 = vector.broadcast %cst_133 : f32 to vector<32x16xf32>
    %148 = arith.cmpf oge, %88, %147 : vector<32x16xf32>
    %cst_134 = arith.constant 1.000000e-01 : f32
    %149 = vector.broadcast %cst_134 : f32 to vector<32x16xf32>
    %150 = arith.mulf %149, %88 : vector<32x16xf32>
    %151 = arith.select %148, %88, %150 : vector<32x16xi1>, vector<32x16xf32>
    %152 = tpu.iota {dimensions = array<i32: 1>} : vector<8x29xi32>
    %153 = tpu.iota {dimensions = array<i32: 0>} : vector<8x29xi32>
    %c4_i32 = arith.constant 4 : i32
    %154 = vector.broadcast %c4_i32 : i32 to vector<8x29xi32>
    %155 = arith.muli %154, %153 : vector<8x29xi32>
    %156 = arith.cmpi eq, %152, %155 : vector<8x29xi32>
    %157 = arith.extui %156 : vector<8x29xi1> to vector<8x29xi32>
    %158 = arith.sitofp %157 : vector<8x29xi32> to vector<8x29xf32>
    %cst_135 = arith.constant 0.000000e+00 : f32
    %159 = vector.broadcast %cst_135 : f32 to vector<32x5xf32>
    %cst_136 = arith.constant 0.000000e+00 : f32
    %160 = vector.broadcast %cst_136 : f32 to vector<32x5xf32>
    %161 = vector.extract_strided_slice %151 {offsets = [0, 0], sizes = [32, 8], strides = [1, 1]} : vector<32x16xf32> to vector<32x8xf32>
    %cst_137 = arith.constant dense<0.000000e+00> : vector<32x29xf32>
    %162 = tpu.matmul %161, %158, %cst_137 {dimension_numbers = #tpu.dot_dimension_numbers<[1], [0], [0], [1], [0, 0, 1, 1], [], []>} : vector<32x8xf32>, vector<8x29xf32>, vector<32x29xf32> -> vector<32x29xf32>
    %163 = tpu.concatenate %159, %162, %160 in 1 : vector<32x5xf32>, vector<32x29xf32>, vector<32x5xf32> -> vector<32x39xf32>
    %164 = vector.extract_strided_slice %163 {offsets = [0, 0], sizes = [32, 32], strides = [1, 1]} : vector<32x39xf32> to vector<32x32xf32>
    %165 = vector.extract_strided_slice %163 {offsets = [0, 1], sizes = [32, 32], strides = [1, 1]} : vector<32x39xf32> to vector<32x32xf32>
    %166 = vector.extract_strided_slice %163 {offsets = [0, 2], sizes = [32, 32], strides = [1, 1]} : vector<32x39xf32> to vector<32x32xf32>
    %167 = vector.extract_strided_slice %163 {offsets = [0, 3], sizes = [32, 32], strides = [1, 1]} : vector<32x39xf32> to vector<32x32xf32>
    %168 = vector.extract_strided_slice %163 {offsets = [0, 4], sizes = [32, 32], strides = [1, 1]} : vector<32x39xf32> to vector<32x32xf32>
    %169 = vector.extract_strided_slice %163 {offsets = [0, 5], sizes = [32, 32], strides = [1, 1]} : vector<32x39xf32> to vector<32x32xf32>
    %170 = vector.extract_strided_slice %163 {offsets = [0, 6], sizes = [32, 32], strides = [1, 1]} : vector<32x39xf32> to vector<32x32xf32>
    %171 = vector.extract_strided_slice %163 {offsets = [0, 7], sizes = [32, 32], strides = [1, 1]} : vector<32x39xf32> to vector<32x32xf32>
    %172 = tpu.concatenate %164, %165, %166, %167, %168, %169, %170, %171 in 0 : vector<32x32xf32>, vector<32x32xf32>, vector<32x32xf32>, vector<32x32xf32>, vector<32x32xf32>, vector<32x32xf32>, vector<32x32xf32>, vector<32x32xf32> -> vector<256x32xf32>
    %173 = vector.extract_strided_slice %151 {offsets = [0, 8], sizes = [32, 8], strides = [1, 1]} : vector<32x16xf32> to vector<32x8xf32>
    %cst_138 = arith.constant dense<0.000000e+00> : vector<32x29xf32>
    %174 = tpu.matmul %173, %158, %cst_138 {dimension_numbers = #tpu.dot_dimension_numbers<[1], [0], [0], [1], [0, 0, 1, 1], [], []>} : vector<32x8xf32>, vector<8x29xf32>, vector<32x29xf32> -> vector<32x29xf32>
    %175 = tpu.concatenate %159, %174, %160 in 1 : vector<32x5xf32>, vector<32x29xf32>, vector<32x5xf32> -> vector<32x39xf32>
    %176 = vector.extract_strided_slice %175 {offsets = [0, 0], sizes = [32, 32], strides = [1, 1]} : vector<32x39xf32> to vector<32x32xf32>
    %177 = vector.extract_strided_slice %175 {offsets = [0, 1], sizes = [32, 32], strides = [1, 1]} : vector<32x39xf32> to vector<32x32xf32>
    %178 = vector.extract_strided_slice %175 {offsets = [0, 2], sizes = [32, 32], strides = [1, 1]} : vector<32x39xf32> to vector<32x32xf32>
    %179 = vector.extract_strided_slice %175 {offsets = [0, 3], sizes = [32, 32], strides = [1, 1]} : vector<32x39xf32> to vector<32x32xf32>
    %180 = vector.extract_strided_slice %175 {offsets = [0, 4], sizes = [32, 32], strides = [1, 1]} : vector<32x39xf32> to vector<32x32xf32>
    %181 = vector.extract_strided_slice %175 {offsets = [0, 5], sizes = [32, 32], strides = [1, 1]} : vector<32x39xf32> to vector<32x32xf32>
    %182 = vector.extract_strided_slice %175 {offsets = [0, 6], sizes = [32, 32], strides = [1, 1]} : vector<32x39xf32> to vector<32x32xf32>
    %183 = vector.extract_strided_slice %175 {offsets = [0, 7], sizes = [32, 32], strides = [1, 1]} : vector<32x39xf32> to vector<32x32xf32>
    %184 = tpu.concatenate %176, %177, %178, %179, %180, %181, %182, %183 in 0 : vector<32x32xf32>, vector<32x32xf32>, vector<32x32xf32>, vector<32x32xf32>, vector<32x32xf32>, vector<32x32xf32>, vector<32x32xf32>, vector<32x32xf32> -> vector<256x32xf32>
    %185 = tpu.concatenate %172, %184 in 1 : vector<256x32xf32>, vector<256x32xf32> -> vector<256x64xf32>
    %cst_139 = arith.constant dense<0.000000e+00> : vector<16x64xf32>
    %186 = tpu.matmul %45, %185, %cst_139 {dimension_numbers = #tpu.dot_dimension_numbers<[1], [0], [0], [1], [0, 0, 1, 1], [], []>} : vector<16x256xf32>, vector<256x64xf32>, vector<16x64xf32> -> vector<16x64xf32>
    %187 = vector.broadcast %44 : vector<16x1xf32> to vector<16x64xf32>
    %188 = arith.addf %186, %187 : vector<16x64xf32>
    %189 = arith.addf %188, %146 : vector<16x64xf32>
    %cst_140 = arith.constant 0.000000e+00 : f32
    %190 = vector.broadcast %cst_140 : f32 to vector<16x64xf32>
    %191 = arith.cmpf oge, %189, %190 : vector<16x64xf32>
    %cst_141 = arith.constant 1.000000e-01 : f32
    %192 = vector.broadcast %cst_141 : f32 to vector<16x64xf32>
    %193 = arith.mulf %192, %189 : vector<16x64xf32>
    %194 = arith.select %191, %189, %193 : vector<16x64xi1>, vector<16x64xf32>
    %195 = vector.extract_strided_slice %194 {offsets = [0, 0], sizes = [16, 32], strides = [1, 1]} : vector<16x64xf32> to vector<16x32xf32>
    %196 = vector.extract_strided_slice %48 {offsets = [0, 0, 0], sizes = [1, 1, 32], strides = [1, 1, 1]} : vector<2x1x32xi32> to vector<1x1x32xi32>
    %197 = vector.shape_cast %196 : vector<1x1x32xi32> to vector<1x32xi32>
    %198 = tpu.iota {dimensions = array<i32: 0>} : vector<32x32xi32>
    %199 = vector.shape_cast %197 : vector<1x32xi32> to vector<1x32xi32>
    %200 = vector.broadcast %199 : vector<1x32xi32> to vector<32x32xi32>
    %201 = arith.cmpi eq, %198, %200 : vector<32x32xi32>
    %202 = arith.extui %201 : vector<32x32xi1> to vector<32x32xi32>
    %203 = arith.sitofp %202 : vector<32x32xi32> to vector<32x32xf32>
    %cst_142 = arith.constant dense<0.000000e+00> : vector<16x32xf32>
    %204 = tpu.matmul %195, %203, %cst_142 {dimension_numbers = #tpu.dot_dimension_numbers<[1], [0], [0], [1], [0, 0, 1, 1], [], []>} : vector<16x32xf32>, vector<32x32xf32>, vector<16x32xf32> -> vector<16x32xf32>
    %205 = vector.extract_strided_slice %49 {offsets = [0, 0, 0], sizes = [1, 1, 32], strides = [1, 1, 1]} : vector<2x1x32xi32> to vector<1x1x32xi32>
    %206 = vector.shape_cast %205 : vector<1x1x32xi32> to vector<1x32xi32>
    %207 = tpu.iota {dimensions = array<i32: 0>} : vector<32x32xi32>
    %208 = vector.shape_cast %206 : vector<1x32xi32> to vector<1x32xi32>
    %209 = vector.broadcast %208 : vector<1x32xi32> to vector<32x32xi32>
    %210 = arith.cmpi eq, %207, %209 : vector<32x32xi32>
    %211 = arith.extui %210 : vector<32x32xi1> to vector<32x32xi32>
    %212 = arith.sitofp %211 : vector<32x32xi32> to vector<32x32xf32>
    %cst_143 = arith.constant dense<0.000000e+00> : vector<16x32xf32>
    %213 = tpu.matmul %195, %212, %cst_143 {dimension_numbers = #tpu.dot_dimension_numbers<[1], [0], [0], [1], [0, 0, 1, 1], [], []>} : vector<16x32xf32>, vector<32x32xf32>, vector<16x32xf32> -> vector<16x32xf32>
    %214 = tpu.concatenate %195, %204, %213 in 0 : vector<16x32xf32>, vector<16x32xf32>, vector<16x32xf32> -> vector<48x32xf32>
    %215 = vector.extract_strided_slice %194 {offsets = [0, 32], sizes = [16, 32], strides = [1, 1]} : vector<16x64xf32> to vector<16x32xf32>
    %216 = vector.extract_strided_slice %48 {offsets = [1, 0, 0], sizes = [1, 1, 32], strides = [1, 1, 1]} : vector<2x1x32xi32> to vector<1x1x32xi32>
    %217 = vector.shape_cast %216 : vector<1x1x32xi32> to vector<1x32xi32>
    %218 = tpu.iota {dimensions = array<i32: 0>} : vector<32x32xi32>
    %219 = vector.shape_cast %217 : vector<1x32xi32> to vector<1x32xi32>
    %220 = vector.broadcast %219 : vector<1x32xi32> to vector<32x32xi32>
    %221 = arith.cmpi eq, %218, %220 : vector<32x32xi32>
    %222 = arith.extui %221 : vector<32x32xi1> to vector<32x32xi32>
    %223 = arith.sitofp %222 : vector<32x32xi32> to vector<32x32xf32>
    %cst_144 = arith.constant dense<0.000000e+00> : vector<16x32xf32>
    %224 = tpu.matmul %215, %223, %cst_144 {dimension_numbers = #tpu.dot_dimension_numbers<[1], [0], [0], [1], [0, 0, 1, 1], [], []>} : vector<16x32xf32>, vector<32x32xf32>, vector<16x32xf32> -> vector<16x32xf32>
    %225 = vector.extract_strided_slice %49 {offsets = [1, 0, 0], sizes = [1, 1, 32], strides = [1, 1, 1]} : vector<2x1x32xi32> to vector<1x1x32xi32>
    %226 = vector.shape_cast %225 : vector<1x1x32xi32> to vector<1x32xi32>
    %227 = tpu.iota {dimensions = array<i32: 0>} : vector<32x32xi32>
    %228 = vector.shape_cast %226 : vector<1x32xi32> to vector<1x32xi32>
    %229 = vector.broadcast %228 : vector<1x32xi32> to vector<32x32xi32>
    %230 = arith.cmpi eq, %227, %229 : vector<32x32xi32>
    %231 = arith.extui %230 : vector<32x32xi1> to vector<32x32xi32>
    %232 = arith.sitofp %231 : vector<32x32xi32> to vector<32x32xf32>
    %cst_145 = arith.constant dense<0.000000e+00> : vector<16x32xf32>
    %233 = tpu.matmul %215, %232, %cst_145 {dimension_numbers = #tpu.dot_dimension_numbers<[1], [0], [0], [1], [0, 0, 1, 1], [], []>} : vector<16x32xf32>, vector<32x32xf32>, vector<16x32xf32> -> vector<16x32xf32>
    %234 = tpu.concatenate %215, %224, %233 in 0 : vector<16x32xf32>, vector<16x32xf32>, vector<16x32xf32> -> vector<48x32xf32>
    %235 = tpu.concatenate %214, %234 in 1 : vector<48x32xf32>, vector<48x32xf32> -> vector<48x64xf32>
    %cst_146 = arith.constant dense<0.000000e+00> : vector<16x64xf32>
    %236 = tpu.matmul %28, %235, %cst_146 {dimension_numbers = #tpu.dot_dimension_numbers<[1], [0], [0], [1], [0, 0, 1, 1], [], []>} : vector<16x48xf32>, vector<48x64xf32>, vector<16x64xf32> -> vector<16x64xf32>
    %237 = vector.broadcast %26 : vector<16x1xf32> to vector<16x64xf32>
    %238 = arith.addf %236, %237 : vector<16x64xf32>
    %cst_147 = arith.constant 0.000000e+00 : f32
    %239 = vector.broadcast %cst_147 : f32 to vector<16x64xf32>
    %240 = arith.cmpf oge, %238, %239 : vector<16x64xf32>
    %cst_148 = arith.constant 1.000000e-01 : f32
    %241 = vector.broadcast %cst_148 : f32 to vector<16x64xf32>
    %242 = arith.mulf %241, %238 : vector<16x64xf32>
    %243 = arith.select %240, %238, %242 : vector<16x64xi1>, vector<16x64xf32>
    %cst_149 = arith.constant 0.000000e+00 : f32
    %244 = vector.broadcast %cst_149 : f32 to vector<16x1xf32>
    %245 = vector.extract_strided_slice %243 {offsets = [0, 0], sizes = [16, 32], strides = [1, 1]} : vector<16x64xf32> to vector<16x32xf32>
    %246 = tpu.concatenate %244, %245, %244 in 1 : vector<16x1xf32>, vector<16x32xf32>, vector<16x1xf32> -> vector<16x34xf32>
    %247 = vector.extract_strided_slice %246 {offsets = [0, 0], sizes = [16, 32], strides = [1, 1]} : vector<16x34xf32> to vector<16x32xf32>
    %248 = vector.extract_strided_slice %246 {offsets = [0, 1], sizes = [16, 32], strides = [1, 1]} : vector<16x34xf32> to vector<16x32xf32>
    %249 = vector.extract_strided_slice %246 {offsets = [0, 2], sizes = [16, 32], strides = [1, 1]} : vector<16x34xf32> to vector<16x32xf32>
    %250 = tpu.concatenate %247, %248, %249 in 0 : vector<16x32xf32>, vector<16x32xf32>, vector<16x32xf32> -> vector<48x32xf32>
    %251 = vector.extract_strided_slice %243 {offsets = [0, 32], sizes = [16, 32], strides = [1, 1]} : vector<16x64xf32> to vector<16x32xf32>
    %252 = tpu.concatenate %244, %251, %244 in 1 : vector<16x1xf32>, vector<16x32xf32>, vector<16x1xf32> -> vector<16x34xf32>
    %253 = vector.extract_strided_slice %252 {offsets = [0, 0], sizes = [16, 32], strides = [1, 1]} : vector<16x34xf32> to vector<16x32xf32>
    %254 = vector.extract_strided_slice %252 {offsets = [0, 1], sizes = [16, 32], strides = [1, 1]} : vector<16x34xf32> to vector<16x32xf32>
    %255 = vector.extract_strided_slice %252 {offsets = [0, 2], sizes = [16, 32], strides = [1, 1]} : vector<16x34xf32> to vector<16x32xf32>
    %256 = tpu.concatenate %253, %254, %255 in 0 : vector<16x32xf32>, vector<16x32xf32>, vector<16x32xf32> -> vector<48x32xf32>
    %257 = tpu.concatenate %250, %256 in 1 : vector<48x32xf32>, vector<48x32xf32> -> vector<48x64xf32>
    %cst_150 = arith.constant dense<0.000000e+00> : vector<16x64xf32>
    %258 = tpu.matmul %29, %257, %cst_150 {dimension_numbers = #tpu.dot_dimension_numbers<[1], [0], [0], [1], [0, 0, 1, 1], [], []>} : vector<16x48xf32>, vector<48x64xf32>, vector<16x64xf32> -> vector<16x64xf32>
    %259 = vector.broadcast %27 : vector<16x1xf32> to vector<16x64xf32>
    %260 = arith.addf %258, %259 : vector<16x64xf32>
    %261 = arith.addf %189, %260 : vector<16x64xf32>
    %cst_151 = arith.constant 0.000000e+00 : f32
    %262 = vector.broadcast %cst_151 : f32 to vector<16x64xf32>
    %263 = arith.cmpf oge, %261, %262 : vector<16x64xf32>
    %cst_152 = arith.constant 1.000000e-01 : f32
    %264 = vector.broadcast %cst_152 : f32 to vector<16x64xf32>
    %265 = arith.mulf %264, %261 : vector<16x64xf32>
    %266 = arith.select %263, %261, %265 : vector<16x64xi1>, vector<16x64xf32>
    %267 = tpu.iota {dimensions = array<i32: 1>} : vector<32x63xi32>
    %268 = tpu.iota {dimensions = array<i32: 0>} : vector<32x63xi32>
    %c2_i32_153 = arith.constant 2 : i32
    %269 = vector.broadcast %c2_i32_153 : i32 to vector<32x63xi32>
    %270 = arith.muli %269, %268 : vector<32x63xi32>
    %271 = arith.cmpi eq, %267, %270 : vector<32x63xi32>
    %272 = arith.extui %271 : vector<32x63xi1> to vector<32x63xi32>
    %273 = arith.sitofp %272 : vector<32x63xi32> to vector<32x63xf32>
    %cst_154 = arith.constant 0.000000e+00 : f32
    %274 = vector.broadcast %cst_154 : f32 to vector<16x2xf32>
    %cst_155 = arith.constant 0.000000e+00 : f32
    %275 = vector.broadcast %cst_155 : f32 to vector<16x2xf32>
    %276 = vector.extract_strided_slice %266 {offsets = [0, 0], sizes = [16, 32], strides = [1, 1]} : vector<16x64xf32> to vector<16x32xf32>
    %cst_156 = arith.constant dense<0.000000e+00> : vector<16x63xf32>
    %277 = tpu.matmul %276, %273, %cst_156 {dimension_numbers = #tpu.dot_dimension_numbers<[1], [0], [0], [1], [0, 0, 1, 1], [], []>} : vector<16x32xf32>, vector<32x63xf32>, vector<16x63xf32> -> vector<16x63xf32>
    %278 = tpu.concatenate %274, %277, %275 in 1 : vector<16x2xf32>, vector<16x63xf32>, vector<16x2xf32> -> vector<16x67xf32>
    %279 = vector.extract_strided_slice %278 {offsets = [0, 0], sizes = [16, 64], strides = [1, 1]} : vector<16x67xf32> to vector<16x64xf32>
    %280 = vector.extract_strided_slice %278 {offsets = [0, 1], sizes = [16, 64], strides = [1, 1]} : vector<16x67xf32> to vector<16x64xf32>
    %281 = vector.extract_strided_slice %278 {offsets = [0, 2], sizes = [16, 64], strides = [1, 1]} : vector<16x67xf32> to vector<16x64xf32>
    %282 = vector.extract_strided_slice %278 {offsets = [0, 3], sizes = [16, 64], strides = [1, 1]} : vector<16x67xf32> to vector<16x64xf32>
    %283 = tpu.concatenate %279, %280, %281, %282 in 0 : vector<16x64xf32>, vector<16x64xf32>, vector<16x64xf32>, vector<16x64xf32> -> vector<64x64xf32>
    %284 = vector.extract_strided_slice %266 {offsets = [0, 32], sizes = [16, 32], strides = [1, 1]} : vector<16x64xf32> to vector<16x32xf32>
    %cst_157 = arith.constant dense<0.000000e+00> : vector<16x63xf32>
    %285 = tpu.matmul %284, %273, %cst_157 {dimension_numbers = #tpu.dot_dimension_numbers<[1], [0], [0], [1], [0, 0, 1, 1], [], []>} : vector<16x32xf32>, vector<32x63xf32>, vector<16x63xf32> -> vector<16x63xf32>
    %286 = tpu.concatenate %274, %285, %275 in 1 : vector<16x2xf32>, vector<16x63xf32>, vector<16x2xf32> -> vector<16x67xf32>
    %287 = vector.extract_strided_slice %286 {offsets = [0, 0], sizes = [16, 64], strides = [1, 1]} : vector<16x67xf32> to vector<16x64xf32>
    %288 = vector.extract_strided_slice %286 {offsets = [0, 1], sizes = [16, 64], strides = [1, 1]} : vector<16x67xf32> to vector<16x64xf32>
    %289 = vector.extract_strided_slice %286 {offsets = [0, 2], sizes = [16, 64], strides = [1, 1]} : vector<16x67xf32> to vector<16x64xf32>
    %290 = vector.extract_strided_slice %286 {offsets = [0, 3], sizes = [16, 64], strides = [1, 1]} : vector<16x67xf32> to vector<16x64xf32>
    %291 = tpu.concatenate %287, %288, %289, %290 in 0 : vector<16x64xf32>, vector<16x64xf32>, vector<16x64xf32>, vector<16x64xf32> -> vector<64x64xf32>
    %292 = tpu.concatenate %283, %291 in 1 : vector<64x64xf32>, vector<64x64xf32> -> vector<64x128xf32>
    %cst_158 = arith.constant dense<0.000000e+00> : vector<8x128xf32>
    %293 = tpu.matmul %47, %292, %cst_158 {dimension_numbers = #tpu.dot_dimension_numbers<[1], [0], [0], [1], [0, 0, 1, 1], [], []>} : vector<8x64xf32>, vector<64x128xf32>, vector<8x128xf32> -> vector<8x128xf32>
    %294 = vector.broadcast %46 : vector<8x1xf32> to vector<8x128xf32>
    %295 = arith.addf %293, %294 : vector<8x128xf32>
    %296 = arith.addf %295, %113 : vector<8x128xf32>
    %cst_159 = arith.constant 0.000000e+00 : f32
    %297 = vector.broadcast %cst_159 : f32 to vector<8x128xf32>
    %298 = arith.cmpf oge, %296, %297 : vector<8x128xf32>
    %cst_160 = arith.constant 1.000000e-01 : f32
    %299 = vector.broadcast %cst_160 : f32 to vector<8x128xf32>
    %300 = arith.mulf %299, %296 : vector<8x128xf32>
    %301 = arith.select %298, %296, %300 : vector<8x128xi1>, vector<8x128xf32>
    %302 = vector.extract_strided_slice %301 {offsets = [0, 0], sizes = [8, 64], strides = [1, 1]} : vector<8x128xf32> to vector<8x64xf32>
    %303 = vector.extract_strided_slice %50 {offsets = [0, 0, 0], sizes = [1, 1, 64], strides = [1, 1, 1]} : vector<2x1x64xi32> to vector<1x1x64xi32>
    %304 = vector.shape_cast %303 : vector<1x1x64xi32> to vector<1x64xi32>
    %305 = tpu.iota {dimensions = array<i32: 0>} : vector<64x64xi32>
    %306 = vector.shape_cast %304 : vector<1x64xi32> to vector<1x64xi32>
    %307 = vector.broadcast %306 : vector<1x64xi32> to vector<64x64xi32>
    %308 = arith.cmpi eq, %305, %307 : vector<64x64xi32>
    %309 = arith.extui %308 : vector<64x64xi1> to vector<64x64xi32>
    %310 = arith.sitofp %309 : vector<64x64xi32> to vector<64x64xf32>
    %cst_161 = arith.constant dense<0.000000e+00> : vector<8x64xf32>
    %311 = tpu.matmul %302, %310, %cst_161 {dimension_numbers = #tpu.dot_dimension_numbers<[1], [0], [0], [1], [0, 0, 1, 1], [], []>} : vector<8x64xf32>, vector<64x64xf32>, vector<8x64xf32> -> vector<8x64xf32>
    %312 = vector.extract_strided_slice %51 {offsets = [0, 0, 0], sizes = [1, 1, 64], strides = [1, 1, 1]} : vector<2x1x64xi32> to vector<1x1x64xi32>
    %313 = vector.shape_cast %312 : vector<1x1x64xi32> to vector<1x64xi32>
    %314 = tpu.iota {dimensions = array<i32: 0>} : vector<64x64xi32>
    %315 = vector.shape_cast %313 : vector<1x64xi32> to vector<1x64xi32>
    %316 = vector.broadcast %315 : vector<1x64xi32> to vector<64x64xi32>
    %317 = arith.cmpi eq, %314, %316 : vector<64x64xi32>
    %318 = arith.extui %317 : vector<64x64xi1> to vector<64x64xi32>
    %319 = arith.sitofp %318 : vector<64x64xi32> to vector<64x64xf32>
    %cst_162 = arith.constant dense<0.000000e+00> : vector<8x64xf32>
    %320 = tpu.matmul %302, %319, %cst_162 {dimension_numbers = #tpu.dot_dimension_numbers<[1], [0], [0], [1], [0, 0, 1, 1], [], []>} : vector<8x64xf32>, vector<64x64xf32>, vector<8x64xf32> -> vector<8x64xf32>
    %321 = tpu.concatenate %302, %311, %320 in 0 : vector<8x64xf32>, vector<8x64xf32>, vector<8x64xf32> -> vector<24x64xf32>
    %322 = vector.extract_strided_slice %301 {offsets = [0, 64], sizes = [8, 64], strides = [1, 1]} : vector<8x128xf32> to vector<8x64xf32>
    %323 = vector.extract_strided_slice %50 {offsets = [1, 0, 0], sizes = [1, 1, 64], strides = [1, 1, 1]} : vector<2x1x64xi32> to vector<1x1x64xi32>
    %324 = vector.shape_cast %323 : vector<1x1x64xi32> to vector<1x64xi32>
    %325 = tpu.iota {dimensions = array<i32: 0>} : vector<64x64xi32>
    %326 = vector.shape_cast %324 : vector<1x64xi32> to vector<1x64xi32>
    %327 = vector.broadcast %326 : vector<1x64xi32> to vector<64x64xi32>
    %328 = arith.cmpi eq, %325, %327 : vector<64x64xi32>
    %329 = arith.extui %328 : vector<64x64xi1> to vector<64x64xi32>
    %330 = arith.sitofp %329 : vector<64x64xi32> to vector<64x64xf32>
    %cst_163 = arith.constant dense<0.000000e+00> : vector<8x64xf32>
    %331 = tpu.matmul %322, %330, %cst_163 {dimension_numbers = #tpu.dot_dimension_numbers<[1], [0], [0], [1], [0, 0, 1, 1], [], []>} : vector<8x64xf32>, vector<64x64xf32>, vector<8x64xf32> -> vector<8x64xf32>
    %332 = vector.extract_strided_slice %51 {offsets = [1, 0, 0], sizes = [1, 1, 64], strides = [1, 1, 1]} : vector<2x1x64xi32> to vector<1x1x64xi32>
    %333 = vector.shape_cast %332 : vector<1x1x64xi32> to vector<1x64xi32>
    %334 = tpu.iota {dimensions = array<i32: 0>} : vector<64x64xi32>
    %335 = vector.shape_cast %333 : vector<1x64xi32> to vector<1x64xi32>
    %336 = vector.broadcast %335 : vector<1x64xi32> to vector<64x64xi32>
    %337 = arith.cmpi eq, %334, %336 : vector<64x64xi32>
    %338 = arith.extui %337 : vector<64x64xi1> to vector<64x64xi32>
    %339 = arith.sitofp %338 : vector<64x64xi32> to vector<64x64xf32>
    %cst_164 = arith.constant dense<0.000000e+00> : vector<8x64xf32>
    %340 = tpu.matmul %322, %339, %cst_164 {dimension_numbers = #tpu.dot_dimension_numbers<[1], [0], [0], [1], [0, 0, 1, 1], [], []>} : vector<8x64xf32>, vector<64x64xf32>, vector<8x64xf32> -> vector<8x64xf32>
    %341 = tpu.concatenate %322, %331, %340 in 0 : vector<8x64xf32>, vector<8x64xf32>, vector<8x64xf32> -> vector<24x64xf32>
    %342 = tpu.concatenate %321, %341 in 1 : vector<24x64xf32>, vector<24x64xf32> -> vector<24x128xf32>
    %cst_165 = arith.constant dense<0.000000e+00> : vector<8x128xf32>
    %343 = tpu.matmul %32, %342, %cst_165 {dimension_numbers = #tpu.dot_dimension_numbers<[1], [0], [0], [1], [0, 0, 1, 1], [], []>} : vector<8x24xf32>, vector<24x128xf32>, vector<8x128xf32> -> vector<8x128xf32>
    %344 = vector.broadcast %30 : vector<8x1xf32> to vector<8x128xf32>
    %345 = arith.addf %343, %344 : vector<8x128xf32>
    %cst_166 = arith.constant 0.000000e+00 : f32
    %346 = vector.broadcast %cst_166 : f32 to vector<8x128xf32>
    %347 = arith.cmpf oge, %345, %346 : vector<8x128xf32>
    %cst_167 = arith.constant 1.000000e-01 : f32
    %348 = vector.broadcast %cst_167 : f32 to vector<8x128xf32>
    %349 = arith.mulf %348, %345 : vector<8x128xf32>
    %350 = arith.select %347, %345, %349 : vector<8x128xi1>, vector<8x128xf32>
    %cst_168 = arith.constant 0.000000e+00 : f32
    %351 = vector.broadcast %cst_168 : f32 to vector<8x1xf32>
    %352 = vector.extract_strided_slice %350 {offsets = [0, 0], sizes = [8, 64], strides = [1, 1]} : vector<8x128xf32> to vector<8x64xf32>
    %353 = tpu.concatenate %351, %352, %351 in 1 : vector<8x1xf32>, vector<8x64xf32>, vector<8x1xf32> -> vector<8x66xf32>
    %354 = vector.extract_strided_slice %353 {offsets = [0, 0], sizes = [8, 64], strides = [1, 1]} : vector<8x66xf32> to vector<8x64xf32>
    %355 = vector.extract_strided_slice %353 {offsets = [0, 1], sizes = [8, 64], strides = [1, 1]} : vector<8x66xf32> to vector<8x64xf32>
    %356 = vector.extract_strided_slice %353 {offsets = [0, 2], sizes = [8, 64], strides = [1, 1]} : vector<8x66xf32> to vector<8x64xf32>
    %357 = tpu.concatenate %354, %355, %356 in 0 : vector<8x64xf32>, vector<8x64xf32>, vector<8x64xf32> -> vector<24x64xf32>
    %358 = vector.extract_strided_slice %350 {offsets = [0, 64], sizes = [8, 64], strides = [1, 1]} : vector<8x128xf32> to vector<8x64xf32>
    %359 = tpu.concatenate %351, %358, %351 in 1 : vector<8x1xf32>, vector<8x64xf32>, vector<8x1xf32> -> vector<8x66xf32>
    %360 = vector.extract_strided_slice %359 {offsets = [0, 0], sizes = [8, 64], strides = [1, 1]} : vector<8x66xf32> to vector<8x64xf32>
    %361 = vector.extract_strided_slice %359 {offsets = [0, 1], sizes = [8, 64], strides = [1, 1]} : vector<8x66xf32> to vector<8x64xf32>
    %362 = vector.extract_strided_slice %359 {offsets = [0, 2], sizes = [8, 64], strides = [1, 1]} : vector<8x66xf32> to vector<8x64xf32>
    %363 = tpu.concatenate %360, %361, %362 in 0 : vector<8x64xf32>, vector<8x64xf32>, vector<8x64xf32> -> vector<24x64xf32>
    %364 = tpu.concatenate %357, %363 in 1 : vector<24x64xf32>, vector<24x64xf32> -> vector<24x128xf32>
    %cst_169 = arith.constant dense<0.000000e+00> : vector<8x128xf32>
    %365 = tpu.matmul %33, %364, %cst_169 {dimension_numbers = #tpu.dot_dimension_numbers<[1], [0], [0], [1], [0, 0, 1, 1], [], []>} : vector<8x24xf32>, vector<24x128xf32>, vector<8x128xf32> -> vector<8x128xf32>
    %366 = vector.broadcast %31 : vector<8x1xf32> to vector<8x128xf32>
    %367 = arith.addf %365, %366 : vector<8x128xf32>
    %368 = arith.addf %296, %367 : vector<8x128xf32>
    %cst_170 = arith.constant 0.000000e+00 : f32
    %369 = vector.broadcast %cst_170 : f32 to vector<8x128xf32>
    %370 = arith.cmpf oge, %368, %369 : vector<8x128xf32>
    %cst_171 = arith.constant 1.000000e-01 : f32
    %371 = vector.broadcast %cst_171 : f32 to vector<8x128xf32>
    %372 = arith.mulf %371, %368 : vector<8x128xf32>
    %373 = arith.select %370, %368, %372 : vector<8x128xi1>, vector<8x128xf32>
    %374 = vector.extract_strided_slice %373 {offsets = [0, 0], sizes = [8, 64], strides = [1, 1]} : vector<8x128xf32> to vector<8x64xf32>
    %375 = vector.extract_strided_slice %52 {offsets = [0, 0, 0], sizes = [1, 1, 64], strides = [1, 1, 1]} : vector<2x1x64xi32> to vector<1x1x64xi32>
    %376 = vector.shape_cast %375 : vector<1x1x64xi32> to vector<1x64xi32>
    %377 = tpu.iota {dimensions = array<i32: 0>} : vector<64x64xi32>
    %378 = vector.shape_cast %376 : vector<1x64xi32> to vector<1x64xi32>
    %379 = vector.broadcast %378 : vector<1x64xi32> to vector<64x64xi32>
    %380 = arith.cmpi eq, %377, %379 : vector<64x64xi32>
    %381 = arith.extui %380 : vector<64x64xi1> to vector<64x64xi32>
    %382 = arith.sitofp %381 : vector<64x64xi32> to vector<64x64xf32>
    %cst_172 = arith.constant dense<0.000000e+00> : vector<8x64xf32>
    %383 = tpu.matmul %374, %382, %cst_172 {dimension_numbers = #tpu.dot_dimension_numbers<[1], [0], [0], [1], [0, 0, 1, 1], [], []>} : vector<8x64xf32>, vector<64x64xf32>, vector<8x64xf32> -> vector<8x64xf32>
    %384 = vector.extract_strided_slice %53 {offsets = [0, 0, 0], sizes = [1, 1, 64], strides = [1, 1, 1]} : vector<2x1x64xi32> to vector<1x1x64xi32>
    %385 = vector.shape_cast %384 : vector<1x1x64xi32> to vector<1x64xi32>
    %386 = tpu.iota {dimensions = array<i32: 0>} : vector<64x64xi32>
    %387 = vector.shape_cast %385 : vector<1x64xi32> to vector<1x64xi32>
    %388 = vector.broadcast %387 : vector<1x64xi32> to vector<64x64xi32>
    %389 = arith.cmpi eq, %386, %388 : vector<64x64xi32>
    %390 = arith.extui %389 : vector<64x64xi1> to vector<64x64xi32>
    %391 = arith.sitofp %390 : vector<64x64xi32> to vector<64x64xf32>
    %cst_173 = arith.constant dense<0.000000e+00> : vector<8x64xf32>
    %392 = tpu.matmul %374, %391, %cst_173 {dimension_numbers = #tpu.dot_dimension_numbers<[1], [0], [0], [1], [0, 0, 1, 1], [], []>} : vector<8x64xf32>, vector<64x64xf32>, vector<8x64xf32> -> vector<8x64xf32>
    %393 = tpu.concatenate %374, %383, %392 in 0 : vector<8x64xf32>, vector<8x64xf32>, vector<8x64xf32> -> vector<24x64xf32>
    %394 = vector.extract_strided_slice %373 {offsets = [0, 64], sizes = [8, 64], strides = [1, 1]} : vector<8x128xf32> to vector<8x64xf32>
    %395 = vector.extract_strided_slice %52 {offsets = [1, 0, 0], sizes = [1, 1, 64], strides = [1, 1, 1]} : vector<2x1x64xi32> to vector<1x1x64xi32>
    %396 = vector.shape_cast %395 : vector<1x1x64xi32> to vector<1x64xi32>
    %397 = tpu.iota {dimensions = array<i32: 0>} : vector<64x64xi32>
    %398 = vector.shape_cast %396 : vector<1x64xi32> to vector<1x64xi32>
    %399 = vector.broadcast %398 : vector<1x64xi32> to vector<64x64xi32>
    %400 = arith.cmpi eq, %397, %399 : vector<64x64xi32>
    %401 = arith.extui %400 : vector<64x64xi1> to vector<64x64xi32>
    %402 = arith.sitofp %401 : vector<64x64xi32> to vector<64x64xf32>
    %cst_174 = arith.constant dense<0.000000e+00> : vector<8x64xf32>
    %403 = tpu.matmul %394, %402, %cst_174 {dimension_numbers = #tpu.dot_dimension_numbers<[1], [0], [0], [1], [0, 0, 1, 1], [], []>} : vector<8x64xf32>, vector<64x64xf32>, vector<8x64xf32> -> vector<8x64xf32>
    %404 = vector.extract_strided_slice %53 {offsets = [1, 0, 0], sizes = [1, 1, 64], strides = [1, 1, 1]} : vector<2x1x64xi32> to vector<1x1x64xi32>
    %405 = vector.shape_cast %404 : vector<1x1x64xi32> to vector<1x64xi32>
    %406 = tpu.iota {dimensions = array<i32: 0>} : vector<64x64xi32>
    %407 = vector.shape_cast %405 : vector<1x64xi32> to vector<1x64xi32>
    %408 = vector.broadcast %407 : vector<1x64xi32> to vector<64x64xi32>
    %409 = arith.cmpi eq, %406, %408 : vector<64x64xi32>
    %410 = arith.extui %409 : vector<64x64xi1> to vector<64x64xi32>
    %411 = arith.sitofp %410 : vector<64x64xi32> to vector<64x64xf32>
    %cst_175 = arith.constant dense<0.000000e+00> : vector<8x64xf32>
    %412 = tpu.matmul %394, %411, %cst_175 {dimension_numbers = #tpu.dot_dimension_numbers<[1], [0], [0], [1], [0, 0, 1, 1], [], []>} : vector<8x64xf32>, vector<64x64xf32>, vector<8x64xf32> -> vector<8x64xf32>
    %413 = tpu.concatenate %394, %403, %412 in 0 : vector<8x64xf32>, vector<8x64xf32>, vector<8x64xf32> -> vector<24x64xf32>
    %414 = tpu.concatenate %393, %413 in 1 : vector<24x64xf32>, vector<24x64xf32> -> vector<24x128xf32>
    %cst_176 = arith.constant dense<0.000000e+00> : vector<8x128xf32>
    %415 = tpu.matmul %36, %414, %cst_176 {dimension_numbers = #tpu.dot_dimension_numbers<[1], [0], [0], [1], [0, 0, 1, 1], [], []>} : vector<8x24xf32>, vector<24x128xf32>, vector<8x128xf32> -> vector<8x128xf32>
    %416 = vector.broadcast %34 : vector<8x1xf32> to vector<8x128xf32>
    %417 = arith.addf %415, %416 : vector<8x128xf32>
    %cst_177 = arith.constant 0.000000e+00 : f32
    %418 = vector.broadcast %cst_177 : f32 to vector<8x128xf32>
    %419 = arith.cmpf oge, %417, %418 : vector<8x128xf32>
    %cst_178 = arith.constant 1.000000e-01 : f32
    %420 = vector.broadcast %cst_178 : f32 to vector<8x128xf32>
    %421 = arith.mulf %420, %417 : vector<8x128xf32>
    %422 = arith.select %419, %417, %421 : vector<8x128xi1>, vector<8x128xf32>
    %cst_179 = arith.constant 0.000000e+00 : f32
    %423 = vector.broadcast %cst_179 : f32 to vector<8x1xf32>
    %424 = vector.extract_strided_slice %422 {offsets = [0, 0], sizes = [8, 64], strides = [1, 1]} : vector<8x128xf32> to vector<8x64xf32>
    %425 = tpu.concatenate %423, %424, %423 in 1 : vector<8x1xf32>, vector<8x64xf32>, vector<8x1xf32> -> vector<8x66xf32>
    %426 = vector.extract_strided_slice %425 {offsets = [0, 0], sizes = [8, 64], strides = [1, 1]} : vector<8x66xf32> to vector<8x64xf32>
    %427 = vector.extract_strided_slice %425 {offsets = [0, 1], sizes = [8, 64], strides = [1, 1]} : vector<8x66xf32> to vector<8x64xf32>
    %428 = vector.extract_strided_slice %425 {offsets = [0, 2], sizes = [8, 64], strides = [1, 1]} : vector<8x66xf32> to vector<8x64xf32>
    %429 = tpu.concatenate %426, %427, %428 in 0 : vector<8x64xf32>, vector<8x64xf32>, vector<8x64xf32> -> vector<24x64xf32>
    %430 = vector.extract_strided_slice %422 {offsets = [0, 64], sizes = [8, 64], strides = [1, 1]} : vector<8x128xf32> to vector<8x64xf32>
    %431 = tpu.concatenate %423, %430, %423 in 1 : vector<8x1xf32>, vector<8x64xf32>, vector<8x1xf32> -> vector<8x66xf32>
    %432 = vector.extract_strided_slice %431 {offsets = [0, 0], sizes = [8, 64], strides = [1, 1]} : vector<8x66xf32> to vector<8x64xf32>
    %433 = vector.extract_strided_slice %431 {offsets = [0, 1], sizes = [8, 64], strides = [1, 1]} : vector<8x66xf32> to vector<8x64xf32>
    %434 = vector.extract_strided_slice %431 {offsets = [0, 2], sizes = [8, 64], strides = [1, 1]} : vector<8x66xf32> to vector<8x64xf32>
    %435 = tpu.concatenate %432, %433, %434 in 0 : vector<8x64xf32>, vector<8x64xf32>, vector<8x64xf32> -> vector<24x64xf32>
    %436 = tpu.concatenate %429, %435 in 1 : vector<24x64xf32>, vector<24x64xf32> -> vector<24x128xf32>
    %cst_180 = arith.constant dense<0.000000e+00> : vector<8x128xf32>
    %437 = tpu.matmul %37, %436, %cst_180 {dimension_numbers = #tpu.dot_dimension_numbers<[1], [0], [0], [1], [0, 0, 1, 1], [], []>} : vector<8x24xf32>, vector<24x128xf32>, vector<8x128xf32> -> vector<8x128xf32>
    %438 = vector.broadcast %35 : vector<8x1xf32> to vector<8x128xf32>
    %439 = arith.addf %437, %438 : vector<8x128xf32>
    %440 = arith.addf %368, %439 : vector<8x128xf32>
    %cst_181 = arith.constant 0.000000e+00 : f32
    %441 = vector.broadcast %cst_181 : f32 to vector<8x128xf32>
    %442 = arith.cmpf oge, %440, %441 : vector<8x128xf32>
    %cst_182 = arith.constant 0.00999999977 : f32
    %443 = vector.broadcast %cst_182 : f32 to vector<8x128xf32>
    %444 = arith.mulf %443, %440 : vector<8x128xf32>
    %445 = arith.select %442, %440, %444 : vector<8x128xi1>, vector<8x128xf32>
    %cst_183 = arith.constant 0.000000e+00 : f32
    %446 = vector.broadcast %cst_183 : f32 to vector<8x3xf32>
    %447 = vector.extract_strided_slice %445 {offsets = [0, 0], sizes = [8, 64], strides = [1, 1]} : vector<8x128xf32> to vector<8x64xf32>
    %448 = tpu.concatenate %446, %447, %446 in 1 : vector<8x3xf32>, vector<8x64xf32>, vector<8x3xf32> -> vector<8x70xf32>
    %449 = vector.extract_strided_slice %448 {offsets = [0, 0], sizes = [8, 64], strides = [1, 1]} : vector<8x70xf32> to vector<8x64xf32>
    %450 = vector.extract_strided_slice %448 {offsets = [0, 1], sizes = [8, 64], strides = [1, 1]} : vector<8x70xf32> to vector<8x64xf32>
    %451 = vector.extract_strided_slice %448 {offsets = [0, 2], sizes = [8, 64], strides = [1, 1]} : vector<8x70xf32> to vector<8x64xf32>
    %452 = vector.extract_strided_slice %448 {offsets = [0, 3], sizes = [8, 64], strides = [1, 1]} : vector<8x70xf32> to vector<8x64xf32>
    %453 = vector.extract_strided_slice %448 {offsets = [0, 4], sizes = [8, 64], strides = [1, 1]} : vector<8x70xf32> to vector<8x64xf32>
    %454 = vector.extract_strided_slice %448 {offsets = [0, 5], sizes = [8, 64], strides = [1, 1]} : vector<8x70xf32> to vector<8x64xf32>
    %455 = vector.extract_strided_slice %448 {offsets = [0, 6], sizes = [8, 64], strides = [1, 1]} : vector<8x70xf32> to vector<8x64xf32>
    %456 = tpu.concatenate %449, %450, %451, %452, %453, %454, %455 in 0 : vector<8x64xf32>, vector<8x64xf32>, vector<8x64xf32>, vector<8x64xf32>, vector<8x64xf32>, vector<8x64xf32>, vector<8x64xf32> -> vector<56x64xf32>
    %457 = vector.extract_strided_slice %445 {offsets = [0, 64], sizes = [8, 64], strides = [1, 1]} : vector<8x128xf32> to vector<8x64xf32>
    %458 = tpu.concatenate %446, %457, %446 in 1 : vector<8x3xf32>, vector<8x64xf32>, vector<8x3xf32> -> vector<8x70xf32>
    %459 = vector.extract_strided_slice %458 {offsets = [0, 0], sizes = [8, 64], strides = [1, 1]} : vector<8x70xf32> to vector<8x64xf32>
    %460 = vector.extract_strided_slice %458 {offsets = [0, 1], sizes = [8, 64], strides = [1, 1]} : vector<8x70xf32> to vector<8x64xf32>
    %461 = vector.extract_strided_slice %458 {offsets = [0, 2], sizes = [8, 64], strides = [1, 1]} : vector<8x70xf32> to vector<8x64xf32>
    %462 = vector.extract_strided_slice %458 {offsets = [0, 3], sizes = [8, 64], strides = [1, 1]} : vector<8x70xf32> to vector<8x64xf32>
    %463 = vector.extract_strided_slice %458 {offsets = [0, 4], sizes = [8, 64], strides = [1, 1]} : vector<8x70xf32> to vector<8x64xf32>
    %464 = vector.extract_strided_slice %458 {offsets = [0, 5], sizes = [8, 64], strides = [1, 1]} : vector<8x70xf32> to vector<8x64xf32>
    %465 = vector.extract_strided_slice %458 {offsets = [0, 6], sizes = [8, 64], strides = [1, 1]} : vector<8x70xf32> to vector<8x64xf32>
    %466 = tpu.concatenate %459, %460, %461, %462, %463, %464, %465 in 0 : vector<8x64xf32>, vector<8x64xf32>, vector<8x64xf32>, vector<8x64xf32>, vector<8x64xf32>, vector<8x64xf32>, vector<8x64xf32> -> vector<56x64xf32>
    %467 = tpu.concatenate %456, %466 in 1 : vector<56x64xf32>, vector<56x64xf32> -> vector<56x128xf32>
    %cst_184 = arith.constant dense<0.000000e+00> : vector<1x128xf32>
    %468 = tpu.matmul %43, %467, %cst_184 {dimension_numbers = #tpu.dot_dimension_numbers<[1], [0], [0], [1], [0, 0, 1, 1], [], []>} : vector<1x56xf32>, vector<56x128xf32>, vector<1x128xf32> -> vector<1x128xf32>
    %469 = vector.broadcast %42 : vector<1x1xf32> to vector<1x128xf32>
    %470 = arith.addf %468, %469 : vector<1x128xf32>
    %471 = tpu.iota {dimensions = array<i32: 0>} : vector<63x32xi32>
    %472 = tpu.iota {dimensions = array<i32: 1>} : vector<63x32xi32>
    %c2_i32_185 = arith.constant 2 : i32
    %473 = vector.broadcast %c2_i32_185 : i32 to vector<63x32xi32>
    %474 = arith.muli %473, %472 : vector<63x32xi32>
    %475 = arith.cmpi eq, %471, %474 : vector<63x32xi32>
    %476 = arith.extui %475 : vector<63x32xi1> to vector<63x32xi32>
    %477 = arith.sitofp %476 : vector<63x32xi32> to vector<63x32xf32>
    %cst_186 = arith.constant 0.000000e+00 : f32
    %478 = vector.broadcast %cst_186 : f32 to vector<8x1xf32>
    %479 = vector.extract_strided_slice %440 {offsets = [0, 0], sizes = [8, 64], strides = [1, 1]} : vector<8x128xf32> to vector<8x64xf32>
    %480 = tpu.concatenate %478, %479, %478 in 1 : vector<8x1xf32>, vector<8x64xf32>, vector<8x1xf32> -> vector<8x66xf32>
    %481 = vector.extract_strided_slice %480 {offsets = [0, 0], sizes = [8, 63], strides = [1, 1]} : vector<8x66xf32> to vector<8x63xf32>
    %482 = vector.extract_strided_slice %480 {offsets = [0, 1], sizes = [8, 63], strides = [1, 1]} : vector<8x66xf32> to vector<8x63xf32>
    %483 = vector.extract_strided_slice %480 {offsets = [0, 2], sizes = [8, 63], strides = [1, 1]} : vector<8x66xf32> to vector<8x63xf32>
    %484 = vector.extract_strided_slice %480 {offsets = [0, 3], sizes = [8, 63], strides = [1, 1]} : vector<8x66xf32> to vector<8x63xf32>
    %485 = tpu.concatenate %481, %482, %483, %484 in 0 : vector<8x63xf32>, vector<8x63xf32>, vector<8x63xf32>, vector<8x63xf32> -> vector<32x63xf32>
    %cst_187 = arith.constant dense<0.000000e+00> : vector<32x32xf32>
    %486 = tpu.matmul %485, %477, %cst_187 {dimension_numbers = #tpu.dot_dimension_numbers<[1], [0], [0], [1], [0, 0, 1, 1], [], []>} : vector<32x63xf32>, vector<63x32xf32>, vector<32x32xf32> -> vector<32x32xf32>
    %487 = vector.extract_strided_slice %440 {offsets = [0, 64], sizes = [8, 64], strides = [1, 1]} : vector<8x128xf32> to vector<8x64xf32>
    %488 = tpu.concatenate %478, %487, %478 in 1 : vector<8x1xf32>, vector<8x64xf32>, vector<8x1xf32> -> vector<8x66xf32>
    %489 = vector.extract_strided_slice %488 {offsets = [0, 0], sizes = [8, 63], strides = [1, 1]} : vector<8x66xf32> to vector<8x63xf32>
    %490 = vector.extract_strided_slice %488 {offsets = [0, 1], sizes = [8, 63], strides = [1, 1]} : vector<8x66xf32> to vector<8x63xf32>
    %491 = vector.extract_strided_slice %488 {offsets = [0, 2], sizes = [8, 63], strides = [1, 1]} : vector<8x66xf32> to vector<8x63xf32>
    %492 = vector.extract_strided_slice %488 {offsets = [0, 3], sizes = [8, 63], strides = [1, 1]} : vector<8x66xf32> to vector<8x63xf32>
    %493 = tpu.concatenate %489, %490, %491, %492 in 0 : vector<8x63xf32>, vector<8x63xf32>, vector<8x63xf32>, vector<8x63xf32> -> vector<32x63xf32>
    %cst_188 = arith.constant dense<0.000000e+00> : vector<32x32xf32>
    %494 = tpu.matmul %493, %477, %cst_188 {dimension_numbers = #tpu.dot_dimension_numbers<[1], [0], [0], [1], [0, 0, 1, 1], [], []>} : vector<32x63xf32>, vector<63x32xf32>, vector<32x32xf32> -> vector<32x32xf32>
    %495 = tpu.concatenate %486, %494 in 1 : vector<32x32xf32>, vector<32x32xf32> -> vector<32x64xf32>
    %cst_189 = arith.constant dense<0.000000e+00> : vector<16x64xf32>
    %496 = tpu.matmul %17, %495, %cst_189 {dimension_numbers = #tpu.dot_dimension_numbers<[1], [0], [0], [1], [0, 0, 1, 1], [], []>} : vector<16x32xf32>, vector<32x64xf32>, vector<16x64xf32> -> vector<16x64xf32>
    %497 = vector.broadcast %16 : vector<16x1xf32> to vector<16x64xf32>
    %498 = arith.addf %496, %497 : vector<16x64xf32>
    %cst_190 = arith.constant 0.000000e+00 : f32
    %499 = vector.broadcast %cst_190 : f32 to vector<16x64xf32>
    %500 = arith.cmpf oge, %498, %499 : vector<16x64xf32>
    %cst_191 = arith.constant 1.000000e-01 : f32
    %501 = vector.broadcast %cst_191 : f32 to vector<16x64xf32>
    %502 = arith.mulf %501, %498 : vector<16x64xf32>
    %503 = arith.select %500, %498, %502 : vector<16x64xi1>, vector<16x64xf32>
    %cst_192 = arith.constant 0.000000e+00 : f32
    %504 = vector.broadcast %cst_192 : f32 to vector<32x16xf32>
    %505 = arith.cmpf oge, %88, %504 : vector<32x16xf32>
    %cst_193 = arith.constant 1.000000e-01 : f32
    %506 = vector.broadcast %cst_193 : f32 to vector<32x16xf32>
    %507 = arith.mulf %506, %88 : vector<32x16xf32>
    %508 = arith.select %505, %88, %507 : vector<32x16xi1>, vector<32x16xf32>
    %509 = tpu.iota {dimensions = array<i32: 1>} : vector<8x29xi32>
    %510 = tpu.iota {dimensions = array<i32: 0>} : vector<8x29xi32>
    %c4_i32_194 = arith.constant 4 : i32
    %511 = vector.broadcast %c4_i32_194 : i32 to vector<8x29xi32>
    %512 = arith.muli %511, %510 : vector<8x29xi32>
    %513 = arith.cmpi eq, %509, %512 : vector<8x29xi32>
    %514 = arith.extui %513 : vector<8x29xi1> to vector<8x29xi32>
    %515 = arith.sitofp %514 : vector<8x29xi32> to vector<8x29xf32>
    %cst_195 = arith.constant 0.000000e+00 : f32
    %516 = vector.broadcast %cst_195 : f32 to vector<32x5xf32>
    %cst_196 = arith.constant 0.000000e+00 : f32
    %517 = vector.broadcast %cst_196 : f32 to vector<32x5xf32>
    %518 = vector.extract_strided_slice %508 {offsets = [0, 0], sizes = [32, 8], strides = [1, 1]} : vector<32x16xf32> to vector<32x8xf32>
    %cst_197 = arith.constant dense<0.000000e+00> : vector<32x29xf32>
    %519 = tpu.matmul %518, %515, %cst_197 {dimension_numbers = #tpu.dot_dimension_numbers<[1], [0], [0], [1], [0, 0, 1, 1], [], []>} : vector<32x8xf32>, vector<8x29xf32>, vector<32x29xf32> -> vector<32x29xf32>
    %520 = tpu.concatenate %516, %519, %517 in 1 : vector<32x5xf32>, vector<32x29xf32>, vector<32x5xf32> -> vector<32x39xf32>
    %521 = vector.extract_strided_slice %520 {offsets = [0, 0], sizes = [32, 32], strides = [1, 1]} : vector<32x39xf32> to vector<32x32xf32>
    %522 = vector.extract_strided_slice %520 {offsets = [0, 1], sizes = [32, 32], strides = [1, 1]} : vector<32x39xf32> to vector<32x32xf32>
    %523 = vector.extract_strided_slice %520 {offsets = [0, 2], sizes = [32, 32], strides = [1, 1]} : vector<32x39xf32> to vector<32x32xf32>
    %524 = vector.extract_strided_slice %520 {offsets = [0, 3], sizes = [32, 32], strides = [1, 1]} : vector<32x39xf32> to vector<32x32xf32>
    %525 = vector.extract_strided_slice %520 {offsets = [0, 4], sizes = [32, 32], strides = [1, 1]} : vector<32x39xf32> to vector<32x32xf32>
    %526 = vector.extract_strided_slice %520 {offsets = [0, 5], sizes = [32, 32], strides = [1, 1]} : vector<32x39xf32> to vector<32x32xf32>
    %527 = vector.extract_strided_slice %520 {offsets = [0, 6], sizes = [32, 32], strides = [1, 1]} : vector<32x39xf32> to vector<32x32xf32>
    %528 = vector.extract_strided_slice %520 {offsets = [0, 7], sizes = [32, 32], strides = [1, 1]} : vector<32x39xf32> to vector<32x32xf32>
    %529 = tpu.concatenate %521, %522, %523, %524, %525, %526, %527, %528 in 0 : vector<32x32xf32>, vector<32x32xf32>, vector<32x32xf32>, vector<32x32xf32>, vector<32x32xf32>, vector<32x32xf32>, vector<32x32xf32>, vector<32x32xf32> -> vector<256x32xf32>
    %530 = vector.extract_strided_slice %508 {offsets = [0, 8], sizes = [32, 8], strides = [1, 1]} : vector<32x16xf32> to vector<32x8xf32>
    %cst_198 = arith.constant dense<0.000000e+00> : vector<32x29xf32>
    %531 = tpu.matmul %530, %515, %cst_198 {dimension_numbers = #tpu.dot_dimension_numbers<[1], [0], [0], [1], [0, 0, 1, 1], [], []>} : vector<32x8xf32>, vector<8x29xf32>, vector<32x29xf32> -> vector<32x29xf32>
    %532 = tpu.concatenate %516, %531, %517 in 1 : vector<32x5xf32>, vector<32x29xf32>, vector<32x5xf32> -> vector<32x39xf32>
    %533 = vector.extract_strided_slice %532 {offsets = [0, 0], sizes = [32, 32], strides = [1, 1]} : vector<32x39xf32> to vector<32x32xf32>
    %534 = vector.extract_strided_slice %532 {offsets = [0, 1], sizes = [32, 32], strides = [1, 1]} : vector<32x39xf32> to vector<32x32xf32>
    %535 = vector.extract_strided_slice %532 {offsets = [0, 2], sizes = [32, 32], strides = [1, 1]} : vector<32x39xf32> to vector<32x32xf32>
    %536 = vector.extract_strided_slice %532 {offsets = [0, 3], sizes = [32, 32], strides = [1, 1]} : vector<32x39xf32> to vector<32x32xf32>
    %537 = vector.extract_strided_slice %532 {offsets = [0, 4], sizes = [32, 32], strides = [1, 1]} : vector<32x39xf32> to vector<32x32xf32>
    %538 = vector.extract_strided_slice %532 {offsets = [0, 5], sizes = [32, 32], strides = [1, 1]} : vector<32x39xf32> to vector<32x32xf32>
    %539 = vector.extract_strided_slice %532 {offsets = [0, 6], sizes = [32, 32], strides = [1, 1]} : vector<32x39xf32> to vector<32x32xf32>
    %540 = vector.extract_strided_slice %532 {offsets = [0, 7], sizes = [32, 32], strides = [1, 1]} : vector<32x39xf32> to vector<32x32xf32>
    %541 = tpu.concatenate %533, %534, %535, %536, %537, %538, %539, %540 in 0 : vector<32x32xf32>, vector<32x32xf32>, vector<32x32xf32>, vector<32x32xf32>, vector<32x32xf32>, vector<32x32xf32>, vector<32x32xf32>, vector<32x32xf32> -> vector<256x32xf32>
    %542 = tpu.concatenate %529, %541 in 1 : vector<256x32xf32>, vector<256x32xf32> -> vector<256x64xf32>
    %cst_199 = arith.constant dense<0.000000e+00> : vector<16x64xf32>
    %543 = tpu.matmul %21, %542, %cst_199 {dimension_numbers = #tpu.dot_dimension_numbers<[1], [0], [0], [1], [0, 0, 1, 1], [], []>} : vector<16x256xf32>, vector<256x64xf32>, vector<16x64xf32> -> vector<16x64xf32>
    %544 = vector.broadcast %20 : vector<16x1xf32> to vector<16x64xf32>
    %545 = arith.addf %543, %544 : vector<16x64xf32>
    %546 = arith.addf %545, %503 : vector<16x64xf32>
    %cst_200 = arith.constant 0.000000e+00 : f32
    %547 = vector.broadcast %cst_200 : f32 to vector<16x64xf32>
    %548 = arith.cmpf oge, %546, %547 : vector<16x64xf32>
    %cst_201 = arith.constant 1.000000e-01 : f32
    %549 = vector.broadcast %cst_201 : f32 to vector<16x64xf32>
    %550 = arith.mulf %549, %546 : vector<16x64xf32>
    %551 = arith.select %548, %546, %550 : vector<16x64xi1>, vector<16x64xf32>
    %cst_202 = arith.constant 0.000000e+00 : f32
    %552 = vector.broadcast %cst_202 : f32 to vector<16x1xf32>
    %553 = vector.extract_strided_slice %551 {offsets = [0, 0], sizes = [16, 32], strides = [1, 1]} : vector<16x64xf32> to vector<16x32xf32>
    %554 = tpu.concatenate %552, %553, %552 in 1 : vector<16x1xf32>, vector<16x32xf32>, vector<16x1xf32> -> vector<16x34xf32>
    %555 = vector.extract_strided_slice %554 {offsets = [0, 0], sizes = [16, 32], strides = [1, 1]} : vector<16x34xf32> to vector<16x32xf32>
    %556 = vector.extract_strided_slice %554 {offsets = [0, 1], sizes = [16, 32], strides = [1, 1]} : vector<16x34xf32> to vector<16x32xf32>
    %557 = vector.extract_strided_slice %554 {offsets = [0, 2], sizes = [16, 32], strides = [1, 1]} : vector<16x34xf32> to vector<16x32xf32>
    %558 = tpu.concatenate %555, %556, %557 in 0 : vector<16x32xf32>, vector<16x32xf32>, vector<16x32xf32> -> vector<48x32xf32>
    %559 = vector.extract_strided_slice %551 {offsets = [0, 32], sizes = [16, 32], strides = [1, 1]} : vector<16x64xf32> to vector<16x32xf32>
    %560 = tpu.concatenate %552, %559, %552 in 1 : vector<16x1xf32>, vector<16x32xf32>, vector<16x1xf32> -> vector<16x34xf32>
    %561 = vector.extract_strided_slice %560 {offsets = [0, 0], sizes = [16, 32], strides = [1, 1]} : vector<16x34xf32> to vector<16x32xf32>
    %562 = vector.extract_strided_slice %560 {offsets = [0, 1], sizes = [16, 32], strides = [1, 1]} : vector<16x34xf32> to vector<16x32xf32>
    %563 = vector.extract_strided_slice %560 {offsets = [0, 2], sizes = [16, 32], strides = [1, 1]} : vector<16x34xf32> to vector<16x32xf32>
    %564 = tpu.concatenate %561, %562, %563 in 0 : vector<16x32xf32>, vector<16x32xf32>, vector<16x32xf32> -> vector<48x32xf32>
    %565 = tpu.concatenate %558, %564 in 1 : vector<48x32xf32>, vector<48x32xf32> -> vector<48x64xf32>
    %cst_203 = arith.constant dense<0.000000e+00> : vector<16x64xf32>
    %566 = tpu.matmul %1, %565, %cst_203 {dimension_numbers = #tpu.dot_dimension_numbers<[1], [0], [0], [1], [0, 0, 1, 1], [], []>} : vector<16x48xf32>, vector<48x64xf32>, vector<16x64xf32> -> vector<16x64xf32>
    %567 = vector.broadcast %0 : vector<16x1xf32> to vector<16x64xf32>
    %568 = arith.addf %566, %567 : vector<16x64xf32>
    %569 = arith.addf %546, %568 : vector<16x64xf32>
    %cst_204 = arith.constant 0.000000e+00 : f32
    %570 = vector.broadcast %cst_204 : f32 to vector<16x64xf32>
    %571 = arith.cmpf oge, %569, %570 : vector<16x64xf32>
    %cst_205 = arith.constant 1.000000e-01 : f32
    %572 = vector.broadcast %cst_205 : f32 to vector<16x64xf32>
    %573 = arith.mulf %572, %569 : vector<16x64xf32>
    %574 = arith.select %571, %569, %573 : vector<16x64xi1>, vector<16x64xf32>
    %cst_206 = arith.constant 0.000000e+00 : f32
    %575 = vector.broadcast %cst_206 : f32 to vector<16x3xf32>
    %576 = vector.extract_strided_slice %574 {offsets = [0, 0], sizes = [16, 32], strides = [1, 1]} : vector<16x64xf32> to vector<16x32xf32>
    %577 = tpu.concatenate %575, %576, %575 in 1 : vector<16x3xf32>, vector<16x32xf32>, vector<16x3xf32> -> vector<16x38xf32>
    %578 = vector.extract_strided_slice %577 {offsets = [0, 0], sizes = [16, 32], strides = [1, 1]} : vector<16x38xf32> to vector<16x32xf32>
    %579 = vector.extract_strided_slice %577 {offsets = [0, 3], sizes = [16, 32], strides = [1, 1]} : vector<16x38xf32> to vector<16x32xf32>
    %580 = vector.extract_strided_slice %577 {offsets = [0, 6], sizes = [16, 32], strides = [1, 1]} : vector<16x38xf32> to vector<16x32xf32>
    %581 = tpu.concatenate %578, %579, %580 in 0 : vector<16x32xf32>, vector<16x32xf32>, vector<16x32xf32> -> vector<48x32xf32>
    %582 = vector.extract_strided_slice %574 {offsets = [0, 32], sizes = [16, 32], strides = [1, 1]} : vector<16x64xf32> to vector<16x32xf32>
    %583 = tpu.concatenate %575, %582, %575 in 1 : vector<16x3xf32>, vector<16x32xf32>, vector<16x3xf32> -> vector<16x38xf32>
    %584 = vector.extract_strided_slice %583 {offsets = [0, 0], sizes = [16, 32], strides = [1, 1]} : vector<16x38xf32> to vector<16x32xf32>
    %585 = vector.extract_strided_slice %583 {offsets = [0, 3], sizes = [16, 32], strides = [1, 1]} : vector<16x38xf32> to vector<16x32xf32>
    %586 = vector.extract_strided_slice %583 {offsets = [0, 6], sizes = [16, 32], strides = [1, 1]} : vector<16x38xf32> to vector<16x32xf32>
    %587 = tpu.concatenate %584, %585, %586 in 0 : vector<16x32xf32>, vector<16x32xf32>, vector<16x32xf32> -> vector<48x32xf32>
    %588 = tpu.concatenate %581, %587 in 1 : vector<48x32xf32>, vector<48x32xf32> -> vector<48x64xf32>
    %cst_207 = arith.constant dense<0.000000e+00> : vector<16x64xf32>
    %589 = tpu.matmul %3, %588, %cst_207 {dimension_numbers = #tpu.dot_dimension_numbers<[1], [0], [0], [1], [0, 0, 1, 1], [], []>} : vector<16x48xf32>, vector<48x64xf32>, vector<16x64xf32> -> vector<16x64xf32>
    %590 = vector.broadcast %2 : vector<16x1xf32> to vector<16x64xf32>
    %591 = arith.addf %589, %590 : vector<16x64xf32>
    %592 = arith.addf %569, %591 : vector<16x64xf32>
    %cst_208 = arith.constant 0.000000e+00 : f32
    %593 = vector.broadcast %cst_208 : f32 to vector<16x64xf32>
    %594 = arith.cmpf oge, %546, %593 : vector<16x64xf32>
    %cst_209 = arith.constant 1.000000e-01 : f32
    %595 = vector.broadcast %cst_209 : f32 to vector<16x64xf32>
    %596 = arith.mulf %595, %546 : vector<16x64xf32>
    %597 = arith.select %594, %546, %596 : vector<16x64xi1>, vector<16x64xf32>
    %cst_210 = arith.constant 0.000000e+00 : f32
    %598 = vector.broadcast %cst_210 : f32 to vector<16x2xf32>
    %599 = vector.extract_strided_slice %597 {offsets = [0, 0], sizes = [16, 32], strides = [1, 1]} : vector<16x64xf32> to vector<16x32xf32>
    %600 = tpu.concatenate %598, %599, %598 in 1 : vector<16x2xf32>, vector<16x32xf32>, vector<16x2xf32> -> vector<16x36xf32>
    %601 = vector.extract_strided_slice %600 {offsets = [0, 0], sizes = [16, 32], strides = [1, 1]} : vector<16x36xf32> to vector<16x32xf32>
    %602 = vector.extract_strided_slice %600 {offsets = [0, 1], sizes = [16, 32], strides = [1, 1]} : vector<16x36xf32> to vector<16x32xf32>
    %603 = vector.extract_strided_slice %600 {offsets = [0, 2], sizes = [16, 32], strides = [1, 1]} : vector<16x36xf32> to vector<16x32xf32>
    %604 = vector.extract_strided_slice %600 {offsets = [0, 3], sizes = [16, 32], strides = [1, 1]} : vector<16x36xf32> to vector<16x32xf32>
    %605 = vector.extract_strided_slice %600 {offsets = [0, 4], sizes = [16, 32], strides = [1, 1]} : vector<16x36xf32> to vector<16x32xf32>
    %606 = tpu.concatenate %601, %602, %603, %604, %605 in 0 : vector<16x32xf32>, vector<16x32xf32>, vector<16x32xf32>, vector<16x32xf32>, vector<16x32xf32> -> vector<80x32xf32>
    %607 = vector.extract_strided_slice %597 {offsets = [0, 32], sizes = [16, 32], strides = [1, 1]} : vector<16x64xf32> to vector<16x32xf32>
    %608 = tpu.concatenate %598, %607, %598 in 1 : vector<16x2xf32>, vector<16x32xf32>, vector<16x2xf32> -> vector<16x36xf32>
    %609 = vector.extract_strided_slice %608 {offsets = [0, 0], sizes = [16, 32], strides = [1, 1]} : vector<16x36xf32> to vector<16x32xf32>
    %610 = vector.extract_strided_slice %608 {offsets = [0, 1], sizes = [16, 32], strides = [1, 1]} : vector<16x36xf32> to vector<16x32xf32>
    %611 = vector.extract_strided_slice %608 {offsets = [0, 2], sizes = [16, 32], strides = [1, 1]} : vector<16x36xf32> to vector<16x32xf32>
    %612 = vector.extract_strided_slice %608 {offsets = [0, 3], sizes = [16, 32], strides = [1, 1]} : vector<16x36xf32> to vector<16x32xf32>
    %613 = vector.extract_strided_slice %608 {offsets = [0, 4], sizes = [16, 32], strides = [1, 1]} : vector<16x36xf32> to vector<16x32xf32>
    %614 = tpu.concatenate %609, %610, %611, %612, %613 in 0 : vector<16x32xf32>, vector<16x32xf32>, vector<16x32xf32>, vector<16x32xf32>, vector<16x32xf32> -> vector<80x32xf32>
    %615 = tpu.concatenate %606, %614 in 1 : vector<80x32xf32>, vector<80x32xf32> -> vector<80x64xf32>
    %cst_211 = arith.constant dense<0.000000e+00> : vector<16x64xf32>
    %616 = tpu.matmul %5, %615, %cst_211 {dimension_numbers = #tpu.dot_dimension_numbers<[1], [0], [0], [1], [0, 0, 1, 1], [], []>} : vector<16x80xf32>, vector<80x64xf32>, vector<16x64xf32> -> vector<16x64xf32>
    %617 = vector.broadcast %4 : vector<16x1xf32> to vector<16x64xf32>
    %618 = arith.addf %616, %617 : vector<16x64xf32>
    %619 = arith.addf %546, %618 : vector<16x64xf32>
    %cst_212 = arith.constant 0.000000e+00 : f32
    %620 = vector.broadcast %cst_212 : f32 to vector<16x64xf32>
    %621 = arith.cmpf oge, %619, %620 : vector<16x64xf32>
    %cst_213 = arith.constant 1.000000e-01 : f32
    %622 = vector.broadcast %cst_213 : f32 to vector<16x64xf32>
    %623 = arith.mulf %622, %619 : vector<16x64xf32>
    %624 = arith.select %621, %619, %623 : vector<16x64xi1>, vector<16x64xf32>
    %cst_214 = arith.constant 0.000000e+00 : f32
    %625 = vector.broadcast %cst_214 : f32 to vector<16x6xf32>
    %626 = vector.extract_strided_slice %624 {offsets = [0, 0], sizes = [16, 32], strides = [1, 1]} : vector<16x64xf32> to vector<16x32xf32>
    %627 = tpu.concatenate %625, %626, %625 in 1 : vector<16x6xf32>, vector<16x32xf32>, vector<16x6xf32> -> vector<16x44xf32>
    %628 = vector.extract_strided_slice %627 {offsets = [0, 0], sizes = [16, 32], strides = [1, 1]} : vector<16x44xf32> to vector<16x32xf32>
    %629 = vector.extract_strided_slice %627 {offsets = [0, 3], sizes = [16, 32], strides = [1, 1]} : vector<16x44xf32> to vector<16x32xf32>
    %630 = vector.extract_strided_slice %627 {offsets = [0, 6], sizes = [16, 32], strides = [1, 1]} : vector<16x44xf32> to vector<16x32xf32>
    %631 = vector.extract_strided_slice %627 {offsets = [0, 9], sizes = [16, 32], strides = [1, 1]} : vector<16x44xf32> to vector<16x32xf32>
    %632 = vector.extract_strided_slice %627 {offsets = [0, 12], sizes = [16, 32], strides = [1, 1]} : vector<16x44xf32> to vector<16x32xf32>
    %633 = tpu.concatenate %628, %629, %630, %631, %632 in 0 : vector<16x32xf32>, vector<16x32xf32>, vector<16x32xf32>, vector<16x32xf32>, vector<16x32xf32> -> vector<80x32xf32>
    %634 = vector.extract_strided_slice %624 {offsets = [0, 32], sizes = [16, 32], strides = [1, 1]} : vector<16x64xf32> to vector<16x32xf32>
    %635 = tpu.concatenate %625, %634, %625 in 1 : vector<16x6xf32>, vector<16x32xf32>, vector<16x6xf32> -> vector<16x44xf32>
    %636 = vector.extract_strided_slice %635 {offsets = [0, 0], sizes = [16, 32], strides = [1, 1]} : vector<16x44xf32> to vector<16x32xf32>
    %637 = vector.extract_strided_slice %635 {offsets = [0, 3], sizes = [16, 32], strides = [1, 1]} : vector<16x44xf32> to vector<16x32xf32>
    %638 = vector.extract_strided_slice %635 {offsets = [0, 6], sizes = [16, 32], strides = [1, 1]} : vector<16x44xf32> to vector<16x32xf32>
    %639 = vector.extract_strided_slice %635 {offsets = [0, 9], sizes = [16, 32], strides = [1, 1]} : vector<16x44xf32> to vector<16x32xf32>
    %640 = vector.extract_strided_slice %635 {offsets = [0, 12], sizes = [16, 32], strides = [1, 1]} : vector<16x44xf32> to vector<16x32xf32>
    %641 = tpu.concatenate %636, %637, %638, %639, %640 in 0 : vector<16x32xf32>, vector<16x32xf32>, vector<16x32xf32>, vector<16x32xf32>, vector<16x32xf32> -> vector<80x32xf32>
    %642 = tpu.concatenate %633, %641 in 1 : vector<80x32xf32>, vector<80x32xf32> -> vector<80x64xf32>
    %cst_215 = arith.constant dense<0.000000e+00> : vector<16x64xf32>
    %643 = tpu.matmul %7, %642, %cst_215 {dimension_numbers = #tpu.dot_dimension_numbers<[1], [0], [0], [1], [0, 0, 1, 1], [], []>} : vector<16x80xf32>, vector<80x64xf32>, vector<16x64xf32> -> vector<16x64xf32>
    %644 = vector.broadcast %6 : vector<16x1xf32> to vector<16x64xf32>
    %645 = arith.addf %643, %644 : vector<16x64xf32>
    %646 = arith.addf %619, %645 : vector<16x64xf32>
    %647 = arith.addf %592, %646 : vector<16x64xf32>
    %cst_216 = arith.constant 5.000000e-01 : f32
    %648 = vector.broadcast %cst_216 : f32 to vector<16x64xf32>
    %649 = arith.mulf %647, %648 : vector<16x64xf32>
    %cst_217 = arith.constant 0.000000e+00 : f32
    %650 = vector.broadcast %cst_217 : f32 to vector<16x64xf32>
    %651 = arith.cmpf oge, %649, %650 : vector<16x64xf32>
    %cst_218 = arith.constant 1.000000e-01 : f32
    %652 = vector.broadcast %cst_218 : f32 to vector<16x64xf32>
    %653 = arith.mulf %652, %649 : vector<16x64xf32>
    %654 = arith.select %651, %649, %653 : vector<16x64xi1>, vector<16x64xf32>
    %655 = tpu.iota {dimensions = array<i32: 1>} : vector<32x63xi32>
    %656 = tpu.iota {dimensions = array<i32: 0>} : vector<32x63xi32>
    %c2_i32_219 = arith.constant 2 : i32
    %657 = vector.broadcast %c2_i32_219 : i32 to vector<32x63xi32>
    %658 = arith.muli %657, %656 : vector<32x63xi32>
    %659 = arith.cmpi eq, %655, %658 : vector<32x63xi32>
    %660 = arith.extui %659 : vector<32x63xi1> to vector<32x63xi32>
    %661 = arith.sitofp %660 : vector<32x63xi32> to vector<32x63xf32>
    %cst_220 = arith.constant 0.000000e+00 : f32
    %662 = vector.broadcast %cst_220 : f32 to vector<16x2xf32>
    %cst_221 = arith.constant 0.000000e+00 : f32
    %663 = vector.broadcast %cst_221 : f32 to vector<16x2xf32>
    %664 = vector.extract_strided_slice %654 {offsets = [0, 0], sizes = [16, 32], strides = [1, 1]} : vector<16x64xf32> to vector<16x32xf32>
    %cst_222 = arith.constant dense<0.000000e+00> : vector<16x63xf32>
    %665 = tpu.matmul %664, %661, %cst_222 {dimension_numbers = #tpu.dot_dimension_numbers<[1], [0], [0], [1], [0, 0, 1, 1], [], []>} : vector<16x32xf32>, vector<32x63xf32>, vector<16x63xf32> -> vector<16x63xf32>
    %666 = tpu.concatenate %662, %665, %663 in 1 : vector<16x2xf32>, vector<16x63xf32>, vector<16x2xf32> -> vector<16x67xf32>
    %667 = vector.extract_strided_slice %666 {offsets = [0, 0], sizes = [16, 64], strides = [1, 1]} : vector<16x67xf32> to vector<16x64xf32>
    %668 = vector.extract_strided_slice %666 {offsets = [0, 1], sizes = [16, 64], strides = [1, 1]} : vector<16x67xf32> to vector<16x64xf32>
    %669 = vector.extract_strided_slice %666 {offsets = [0, 2], sizes = [16, 64], strides = [1, 1]} : vector<16x67xf32> to vector<16x64xf32>
    %670 = vector.extract_strided_slice %666 {offsets = [0, 3], sizes = [16, 64], strides = [1, 1]} : vector<16x67xf32> to vector<16x64xf32>
    %671 = tpu.concatenate %667, %668, %669, %670 in 0 : vector<16x64xf32>, vector<16x64xf32>, vector<16x64xf32>, vector<16x64xf32> -> vector<64x64xf32>
    %672 = vector.extract_strided_slice %654 {offsets = [0, 32], sizes = [16, 32], strides = [1, 1]} : vector<16x64xf32> to vector<16x32xf32>
    %cst_223 = arith.constant dense<0.000000e+00> : vector<16x63xf32>
    %673 = tpu.matmul %672, %661, %cst_223 {dimension_numbers = #tpu.dot_dimension_numbers<[1], [0], [0], [1], [0, 0, 1, 1], [], []>} : vector<16x32xf32>, vector<32x63xf32>, vector<16x63xf32> -> vector<16x63xf32>
    %674 = tpu.concatenate %662, %673, %663 in 1 : vector<16x2xf32>, vector<16x63xf32>, vector<16x2xf32> -> vector<16x67xf32>
    %675 = vector.extract_strided_slice %674 {offsets = [0, 0], sizes = [16, 64], strides = [1, 1]} : vector<16x67xf32> to vector<16x64xf32>
    %676 = vector.extract_strided_slice %674 {offsets = [0, 1], sizes = [16, 64], strides = [1, 1]} : vector<16x67xf32> to vector<16x64xf32>
    %677 = vector.extract_strided_slice %674 {offsets = [0, 2], sizes = [16, 64], strides = [1, 1]} : vector<16x67xf32> to vector<16x64xf32>
    %678 = vector.extract_strided_slice %674 {offsets = [0, 3], sizes = [16, 64], strides = [1, 1]} : vector<16x67xf32> to vector<16x64xf32>
    %679 = tpu.concatenate %675, %676, %677, %678 in 0 : vector<16x64xf32>, vector<16x64xf32>, vector<16x64xf32>, vector<16x64xf32> -> vector<64x64xf32>
    %680 = tpu.concatenate %671, %679 in 1 : vector<64x64xf32>, vector<64x64xf32> -> vector<64x128xf32>
    %cst_224 = arith.constant dense<0.000000e+00> : vector<8x128xf32>
    %681 = tpu.matmul %23, %680, %cst_224 {dimension_numbers = #tpu.dot_dimension_numbers<[1], [0], [0], [1], [0, 0, 1, 1], [], []>} : vector<8x64xf32>, vector<64x128xf32>, vector<8x128xf32> -> vector<8x128xf32>
    %682 = vector.broadcast %22 : vector<8x1xf32> to vector<8x128xf32>
    %683 = arith.addf %681, %682 : vector<8x128xf32>
    %684 = arith.addf %683, %440 : vector<8x128xf32>
    %cst_225 = arith.constant 0.000000e+00 : f32
    %685 = vector.broadcast %cst_225 : f32 to vector<8x128xf32>
    %686 = arith.cmpf oge, %684, %685 : vector<8x128xf32>
    %cst_226 = arith.constant 1.000000e-01 : f32
    %687 = vector.broadcast %cst_226 : f32 to vector<8x128xf32>
    %688 = arith.mulf %687, %684 : vector<8x128xf32>
    %689 = arith.select %686, %684, %688 : vector<8x128xi1>, vector<8x128xf32>
    %cst_227 = arith.constant 0.000000e+00 : f32
    %690 = vector.broadcast %cst_227 : f32 to vector<8x1xf32>
    %691 = vector.extract_strided_slice %689 {offsets = [0, 0], sizes = [8, 64], strides = [1, 1]} : vector<8x128xf32> to vector<8x64xf32>
    %692 = tpu.concatenate %690, %691, %690 in 1 : vector<8x1xf32>, vector<8x64xf32>, vector<8x1xf32> -> vector<8x66xf32>
    %693 = vector.extract_strided_slice %692 {offsets = [0, 0], sizes = [8, 64], strides = [1, 1]} : vector<8x66xf32> to vector<8x64xf32>
    %694 = vector.extract_strided_slice %692 {offsets = [0, 1], sizes = [8, 64], strides = [1, 1]} : vector<8x66xf32> to vector<8x64xf32>
    %695 = vector.extract_strided_slice %692 {offsets = [0, 2], sizes = [8, 64], strides = [1, 1]} : vector<8x66xf32> to vector<8x64xf32>
    %696 = tpu.concatenate %693, %694, %695 in 0 : vector<8x64xf32>, vector<8x64xf32>, vector<8x64xf32> -> vector<24x64xf32>
    %697 = vector.extract_strided_slice %689 {offsets = [0, 64], sizes = [8, 64], strides = [1, 1]} : vector<8x128xf32> to vector<8x64xf32>
    %698 = tpu.concatenate %690, %697, %690 in 1 : vector<8x1xf32>, vector<8x64xf32>, vector<8x1xf32> -> vector<8x66xf32>
    %699 = vector.extract_strided_slice %698 {offsets = [0, 0], sizes = [8, 64], strides = [1, 1]} : vector<8x66xf32> to vector<8x64xf32>
    %700 = vector.extract_strided_slice %698 {offsets = [0, 1], sizes = [8, 64], strides = [1, 1]} : vector<8x66xf32> to vector<8x64xf32>
    %701 = vector.extract_strided_slice %698 {offsets = [0, 2], sizes = [8, 64], strides = [1, 1]} : vector<8x66xf32> to vector<8x64xf32>
    %702 = tpu.concatenate %699, %700, %701 in 0 : vector<8x64xf32>, vector<8x64xf32>, vector<8x64xf32> -> vector<24x64xf32>
    %703 = tpu.concatenate %696, %702 in 1 : vector<24x64xf32>, vector<24x64xf32> -> vector<24x128xf32>
    %cst_228 = arith.constant dense<0.000000e+00> : vector<8x128xf32>
    %704 = tpu.matmul %9, %703, %cst_228 {dimension_numbers = #tpu.dot_dimension_numbers<[1], [0], [0], [1], [0, 0, 1, 1], [], []>} : vector<8x24xf32>, vector<24x128xf32>, vector<8x128xf32> -> vector<8x128xf32>
    %705 = vector.broadcast %8 : vector<8x1xf32> to vector<8x128xf32>
    %706 = arith.addf %704, %705 : vector<8x128xf32>
    %707 = arith.addf %684, %706 : vector<8x128xf32>
    %cst_229 = arith.constant 0.000000e+00 : f32
    %708 = vector.broadcast %cst_229 : f32 to vector<8x128xf32>
    %709 = arith.cmpf oge, %707, %708 : vector<8x128xf32>
    %cst_230 = arith.constant 1.000000e-01 : f32
    %710 = vector.broadcast %cst_230 : f32 to vector<8x128xf32>
    %711 = arith.mulf %710, %707 : vector<8x128xf32>
    %712 = arith.select %709, %707, %711 : vector<8x128xi1>, vector<8x128xf32>
    %cst_231 = arith.constant 0.000000e+00 : f32
    %713 = vector.broadcast %cst_231 : f32 to vector<8x3xf32>
    %714 = vector.extract_strided_slice %712 {offsets = [0, 0], sizes = [8, 64], strides = [1, 1]} : vector<8x128xf32> to vector<8x64xf32>
    %715 = tpu.concatenate %713, %714, %713 in 1 : vector<8x3xf32>, vector<8x64xf32>, vector<8x3xf32> -> vector<8x70xf32>
    %716 = vector.extract_strided_slice %715 {offsets = [0, 0], sizes = [8, 64], strides = [1, 1]} : vector<8x70xf32> to vector<8x64xf32>
    %717 = vector.extract_strided_slice %715 {offsets = [0, 3], sizes = [8, 64], strides = [1, 1]} : vector<8x70xf32> to vector<8x64xf32>
    %718 = vector.extract_strided_slice %715 {offsets = [0, 6], sizes = [8, 64], strides = [1, 1]} : vector<8x70xf32> to vector<8x64xf32>
    %719 = tpu.concatenate %716, %717, %718 in 0 : vector<8x64xf32>, vector<8x64xf32>, vector<8x64xf32> -> vector<24x64xf32>
    %720 = vector.extract_strided_slice %712 {offsets = [0, 64], sizes = [8, 64], strides = [1, 1]} : vector<8x128xf32> to vector<8x64xf32>
    %721 = tpu.concatenate %713, %720, %713 in 1 : vector<8x3xf32>, vector<8x64xf32>, vector<8x3xf32> -> vector<8x70xf32>
    %722 = vector.extract_strided_slice %721 {offsets = [0, 0], sizes = [8, 64], strides = [1, 1]} : vector<8x70xf32> to vector<8x64xf32>
    %723 = vector.extract_strided_slice %721 {offsets = [0, 3], sizes = [8, 64], strides = [1, 1]} : vector<8x70xf32> to vector<8x64xf32>
    %724 = vector.extract_strided_slice %721 {offsets = [0, 6], sizes = [8, 64], strides = [1, 1]} : vector<8x70xf32> to vector<8x64xf32>
    %725 = tpu.concatenate %722, %723, %724 in 0 : vector<8x64xf32>, vector<8x64xf32>, vector<8x64xf32> -> vector<24x64xf32>
    %726 = tpu.concatenate %719, %725 in 1 : vector<24x64xf32>, vector<24x64xf32> -> vector<24x128xf32>
    %cst_232 = arith.constant dense<0.000000e+00> : vector<8x128xf32>
    %727 = tpu.matmul %11, %726, %cst_232 {dimension_numbers = #tpu.dot_dimension_numbers<[1], [0], [0], [1], [0, 0, 1, 1], [], []>} : vector<8x24xf32>, vector<24x128xf32>, vector<8x128xf32> -> vector<8x128xf32>
    %728 = vector.broadcast %10 : vector<8x1xf32> to vector<8x128xf32>
    %729 = arith.addf %727, %728 : vector<8x128xf32>
    %730 = arith.addf %707, %729 : vector<8x128xf32>
    %cst_233 = arith.constant 0.000000e+00 : f32
    %731 = vector.broadcast %cst_233 : f32 to vector<8x128xf32>
    %732 = arith.cmpf oge, %684, %731 : vector<8x128xf32>
    %cst_234 = arith.constant 1.000000e-01 : f32
    %733 = vector.broadcast %cst_234 : f32 to vector<8x128xf32>
    %734 = arith.mulf %733, %684 : vector<8x128xf32>
    %735 = arith.select %732, %684, %734 : vector<8x128xi1>, vector<8x128xf32>
    %cst_235 = arith.constant 0.000000e+00 : f32
    %736 = vector.broadcast %cst_235 : f32 to vector<8x2xf32>
    %737 = vector.extract_strided_slice %735 {offsets = [0, 0], sizes = [8, 64], strides = [1, 1]} : vector<8x128xf32> to vector<8x64xf32>
    %738 = tpu.concatenate %736, %737, %736 in 1 : vector<8x2xf32>, vector<8x64xf32>, vector<8x2xf32> -> vector<8x68xf32>
    %739 = vector.extract_strided_slice %738 {offsets = [0, 0], sizes = [8, 64], strides = [1, 1]} : vector<8x68xf32> to vector<8x64xf32>
    %740 = vector.extract_strided_slice %738 {offsets = [0, 1], sizes = [8, 64], strides = [1, 1]} : vector<8x68xf32> to vector<8x64xf32>
    %741 = vector.extract_strided_slice %738 {offsets = [0, 2], sizes = [8, 64], strides = [1, 1]} : vector<8x68xf32> to vector<8x64xf32>
    %742 = vector.extract_strided_slice %738 {offsets = [0, 3], sizes = [8, 64], strides = [1, 1]} : vector<8x68xf32> to vector<8x64xf32>
    %743 = vector.extract_strided_slice %738 {offsets = [0, 4], sizes = [8, 64], strides = [1, 1]} : vector<8x68xf32> to vector<8x64xf32>
    %744 = tpu.concatenate %739, %740, %741, %742, %743 in 0 : vector<8x64xf32>, vector<8x64xf32>, vector<8x64xf32>, vector<8x64xf32>, vector<8x64xf32> -> vector<40x64xf32>
    %745 = vector.extract_strided_slice %735 {offsets = [0, 64], sizes = [8, 64], strides = [1, 1]} : vector<8x128xf32> to vector<8x64xf32>
    %746 = tpu.concatenate %736, %745, %736 in 1 : vector<8x2xf32>, vector<8x64xf32>, vector<8x2xf32> -> vector<8x68xf32>
    %747 = vector.extract_strided_slice %746 {offsets = [0, 0], sizes = [8, 64], strides = [1, 1]} : vector<8x68xf32> to vector<8x64xf32>
    %748 = vector.extract_strided_slice %746 {offsets = [0, 1], sizes = [8, 64], strides = [1, 1]} : vector<8x68xf32> to vector<8x64xf32>
    %749 = vector.extract_strided_slice %746 {offsets = [0, 2], sizes = [8, 64], strides = [1, 1]} : vector<8x68xf32> to vector<8x64xf32>
    %750 = vector.extract_strided_slice %746 {offsets = [0, 3], sizes = [8, 64], strides = [1, 1]} : vector<8x68xf32> to vector<8x64xf32>
    %751 = vector.extract_strided_slice %746 {offsets = [0, 4], sizes = [8, 64], strides = [1, 1]} : vector<8x68xf32> to vector<8x64xf32>
    %752 = tpu.concatenate %747, %748, %749, %750, %751 in 0 : vector<8x64xf32>, vector<8x64xf32>, vector<8x64xf32>, vector<8x64xf32>, vector<8x64xf32> -> vector<40x64xf32>
    %753 = tpu.concatenate %744, %752 in 1 : vector<40x64xf32>, vector<40x64xf32> -> vector<40x128xf32>
    %cst_236 = arith.constant dense<0.000000e+00> : vector<8x128xf32>
    %754 = tpu.matmul %13, %753, %cst_236 {dimension_numbers = #tpu.dot_dimension_numbers<[1], [0], [0], [1], [0, 0, 1, 1], [], []>} : vector<8x40xf32>, vector<40x128xf32>, vector<8x128xf32> -> vector<8x128xf32>
    %755 = vector.broadcast %12 : vector<8x1xf32> to vector<8x128xf32>
    %756 = arith.addf %754, %755 : vector<8x128xf32>
    %757 = arith.addf %684, %756 : vector<8x128xf32>
    %cst_237 = arith.constant 0.000000e+00 : f32
    %758 = vector.broadcast %cst_237 : f32 to vector<8x128xf32>
    %759 = arith.cmpf oge, %757, %758 : vector<8x128xf32>
    %cst_238 = arith.constant 1.000000e-01 : f32
    %760 = vector.broadcast %cst_238 : f32 to vector<8x128xf32>
    %761 = arith.mulf %760, %757 : vector<8x128xf32>
    %762 = arith.select %759, %757, %761 : vector<8x128xi1>, vector<8x128xf32>
    %cst_239 = arith.constant 0.000000e+00 : f32
    %763 = vector.broadcast %cst_239 : f32 to vector<8x6xf32>
    %764 = vector.extract_strided_slice %762 {offsets = [0, 0], sizes = [8, 64], strides = [1, 1]} : vector<8x128xf32> to vector<8x64xf32>
    %765 = tpu.concatenate %763, %764, %763 in 1 : vector<8x6xf32>, vector<8x64xf32>, vector<8x6xf32> -> vector<8x76xf32>
    %766 = vector.extract_strided_slice %765 {offsets = [0, 0], sizes = [8, 64], strides = [1, 1]} : vector<8x76xf32> to vector<8x64xf32>
    %767 = vector.extract_strided_slice %765 {offsets = [0, 3], sizes = [8, 64], strides = [1, 1]} : vector<8x76xf32> to vector<8x64xf32>
    %768 = vector.extract_strided_slice %765 {offsets = [0, 6], sizes = [8, 64], strides = [1, 1]} : vector<8x76xf32> to vector<8x64xf32>
    %769 = vector.extract_strided_slice %765 {offsets = [0, 9], sizes = [8, 64], strides = [1, 1]} : vector<8x76xf32> to vector<8x64xf32>
    %770 = vector.extract_strided_slice %765 {offsets = [0, 12], sizes = [8, 64], strides = [1, 1]} : vector<8x76xf32> to vector<8x64xf32>
    %771 = tpu.concatenate %766, %767, %768, %769, %770 in 0 : vector<8x64xf32>, vector<8x64xf32>, vector<8x64xf32>, vector<8x64xf32>, vector<8x64xf32> -> vector<40x64xf32>
    %772 = vector.extract_strided_slice %762 {offsets = [0, 64], sizes = [8, 64], strides = [1, 1]} : vector<8x128xf32> to vector<8x64xf32>
    %773 = tpu.concatenate %763, %772, %763 in 1 : vector<8x6xf32>, vector<8x64xf32>, vector<8x6xf32> -> vector<8x76xf32>
    %774 = vector.extract_strided_slice %773 {offsets = [0, 0], sizes = [8, 64], strides = [1, 1]} : vector<8x76xf32> to vector<8x64xf32>
    %775 = vector.extract_strided_slice %773 {offsets = [0, 3], sizes = [8, 64], strides = [1, 1]} : vector<8x76xf32> to vector<8x64xf32>
    %776 = vector.extract_strided_slice %773 {offsets = [0, 6], sizes = [8, 64], strides = [1, 1]} : vector<8x76xf32> to vector<8x64xf32>
    %777 = vector.extract_strided_slice %773 {offsets = [0, 9], sizes = [8, 64], strides = [1, 1]} : vector<8x76xf32> to vector<8x64xf32>
    %778 = vector.extract_strided_slice %773 {offsets = [0, 12], sizes = [8, 64], strides = [1, 1]} : vector<8x76xf32> to vector<8x64xf32>
    %779 = tpu.concatenate %774, %775, %776, %777, %778 in 0 : vector<8x64xf32>, vector<8x64xf32>, vector<8x64xf32>, vector<8x64xf32>, vector<8x64xf32> -> vector<40x64xf32>
    %780 = tpu.concatenate %771, %779 in 1 : vector<40x64xf32>, vector<40x64xf32> -> vector<40x128xf32>
    %cst_240 = arith.constant dense<0.000000e+00> : vector<8x128xf32>
    %781 = tpu.matmul %15, %780, %cst_240 {dimension_numbers = #tpu.dot_dimension_numbers<[1], [0], [0], [1], [0, 0, 1, 1], [], []>} : vector<8x40xf32>, vector<40x128xf32>, vector<8x128xf32> -> vector<8x128xf32>
    %782 = vector.broadcast %14 : vector<8x1xf32> to vector<8x128xf32>
    %783 = arith.addf %781, %782 : vector<8x128xf32>
    %784 = arith.addf %757, %783 : vector<8x128xf32>
    %785 = arith.addf %730, %784 : vector<8x128xf32>
    %cst_241 = arith.constant 5.000000e-01 : f32
    %786 = vector.broadcast %cst_241 : f32 to vector<8x128xf32>
    %787 = arith.mulf %785, %786 : vector<8x128xf32>
    %cst_242 = arith.constant 0.000000e+00 : f32
    %788 = vector.broadcast %cst_242 : f32 to vector<8x128xf32>
    %789 = arith.cmpf oge, %787, %788 : vector<8x128xf32>
    %cst_243 = arith.constant 0.00999999977 : f32
    %790 = vector.broadcast %cst_243 : f32 to vector<8x128xf32>
    %791 = arith.mulf %790, %787 : vector<8x128xf32>
    %792 = arith.select %789, %787, %791 : vector<8x128xi1>, vector<8x128xf32>
    %cst_244 = arith.constant 0.000000e+00 : f32
    %793 = vector.broadcast %cst_244 : f32 to vector<8x3xf32>
    %794 = vector.extract_strided_slice %792 {offsets = [0, 0], sizes = [8, 64], strides = [1, 1]} : vector<8x128xf32> to vector<8x64xf32>
    %795 = tpu.concatenate %793, %794, %793 in 1 : vector<8x3xf32>, vector<8x64xf32>, vector<8x3xf32> -> vector<8x70xf32>
    %796 = vector.extract_strided_slice %795 {offsets = [0, 0], sizes = [8, 64], strides = [1, 1]} : vector<8x70xf32> to vector<8x64xf32>
    %797 = vector.extract_strided_slice %795 {offsets = [0, 1], sizes = [8, 64], strides = [1, 1]} : vector<8x70xf32> to vector<8x64xf32>
    %798 = vector.extract_strided_slice %795 {offsets = [0, 2], sizes = [8, 64], strides = [1, 1]} : vector<8x70xf32> to vector<8x64xf32>
    %799 = vector.extract_strided_slice %795 {offsets = [0, 3], sizes = [8, 64], strides = [1, 1]} : vector<8x70xf32> to vector<8x64xf32>
    %800 = vector.extract_strided_slice %795 {offsets = [0, 4], sizes = [8, 64], strides = [1, 1]} : vector<8x70xf32> to vector<8x64xf32>
    %801 = vector.extract_strided_slice %795 {offsets = [0, 5], sizes = [8, 64], strides = [1, 1]} : vector<8x70xf32> to vector<8x64xf32>
    %802 = vector.extract_strided_slice %795 {offsets = [0, 6], sizes = [8, 64], strides = [1, 1]} : vector<8x70xf32> to vector<8x64xf32>
    %803 = tpu.concatenate %796, %797, %798, %799, %800, %801, %802 in 0 : vector<8x64xf32>, vector<8x64xf32>, vector<8x64xf32>, vector<8x64xf32>, vector<8x64xf32>, vector<8x64xf32>, vector<8x64xf32> -> vector<56x64xf32>
    %804 = vector.extract_strided_slice %792 {offsets = [0, 64], sizes = [8, 64], strides = [1, 1]} : vector<8x128xf32> to vector<8x64xf32>
    %805 = tpu.concatenate %793, %804, %793 in 1 : vector<8x3xf32>, vector<8x64xf32>, vector<8x3xf32> -> vector<8x70xf32>
    %806 = vector.extract_strided_slice %805 {offsets = [0, 0], sizes = [8, 64], strides = [1, 1]} : vector<8x70xf32> to vector<8x64xf32>
    %807 = vector.extract_strided_slice %805 {offsets = [0, 1], sizes = [8, 64], strides = [1, 1]} : vector<8x70xf32> to vector<8x64xf32>
    %808 = vector.extract_strided_slice %805 {offsets = [0, 2], sizes = [8, 64], strides = [1, 1]} : vector<8x70xf32> to vector<8x64xf32>
    %809 = vector.extract_strided_slice %805 {offsets = [0, 3], sizes = [8, 64], strides = [1, 1]} : vector<8x70xf32> to vector<8x64xf32>
    %810 = vector.extract_strided_slice %805 {offsets = [0, 4], sizes = [8, 64], strides = [1, 1]} : vector<8x70xf32> to vector<8x64xf32>
    %811 = vector.extract_strided_slice %805 {offsets = [0, 5], sizes = [8, 64], strides = [1, 1]} : vector<8x70xf32> to vector<8x64xf32>
    %812 = vector.extract_strided_slice %805 {offsets = [0, 6], sizes = [8, 64], strides = [1, 1]} : vector<8x70xf32> to vector<8x64xf32>
    %813 = tpu.concatenate %806, %807, %808, %809, %810, %811, %812 in 0 : vector<8x64xf32>, vector<8x64xf32>, vector<8x64xf32>, vector<8x64xf32>, vector<8x64xf32>, vector<8x64xf32>, vector<8x64xf32> -> vector<56x64xf32>
    %814 = tpu.concatenate %803, %813 in 1 : vector<56x64xf32>, vector<56x64xf32> -> vector<56x128xf32>
    %cst_245 = arith.constant dense<0.000000e+00> : vector<1x128xf32>
    %815 = tpu.matmul %19, %814, %cst_245 {dimension_numbers = #tpu.dot_dimension_numbers<[1], [0], [0], [1], [0, 0, 1, 1], [], []>} : vector<1x56xf32>, vector<56x128xf32>, vector<1x128xf32> -> vector<1x128xf32>
    %816 = vector.broadcast %18 : vector<1x1xf32> to vector<1x128xf32>
    %817 = arith.addf %815, %816 : vector<1x128xf32>
    %818 = math.tanh %817 : vector<1x128xf32>
    %c0_246 = arith.constant 0 : index
    %c0_247 = arith.constant 0 : index
    %819 = vector.load %arg56[%c0_246, %c0_247] : memref<1x128xf32, #tpu.memory_space<vmem>>, vector<1x128xf32>
    tpu.vector_store %arg56[%c0_246, %c0_247], %818 {strides = array<i32>} : memref<1x128xf32, #tpu.memory_space<vmem>>, vector<1x128xf32>,
    %c0_248 = arith.constant 0 : index
    %c0_249 = arith.constant 0 : index
    %820 = vector.load %arg57[%c0_248, %c0_249] : memref<1x128xf32, #tpu.memory_space<vmem>>, vector<1x128xf32>
    tpu.vector_store %arg57[%c0_248, %c0_249], %470 {strides = array<i32>} : memref<1x128xf32, #tpu.memory_space<vmem>>, vector<1x128xf32>,
    return
  }
}

</mosaic_0001>

<llo_original>
// kernel: _lambda_.1
$region0: #{_lambda_.1}
  #allocation0 [shape = 'u32[]', space=smem, size = 0x4, offset = 0x4, fixed_abs, tag = 'smem constant byte address 0x4 - core index']
  #allocation1 [shape = 'u32[144,128]{1,0:T(1,128)}', space=vmem, size = 0x12000, scoped, tag = 'internal scratch']
  #allocation2 [shape = 'f32[1,1]{1,0:T(1,128)S(1)}', space=vmem, size = 0x200, scoped, tag = 'scoped memory for _lambda_.1']
  #allocation3 [shape = 'f32[1,1]{1,0:T(1,128)S(1)}', space=vmem, size = 0x200, scoped, tag = 'scoped memory for _lambda_.1']
  %s0 = inlined_call_operand.smem [shape: u32[58], index: -1, kind: input, shape index: {}]
  %s1 = sld [smem:[%s0]]
  %s2 = scalar_lea.smem %s0, 1
  %s3 = sld [smem:[%s2]]
  %s4 = scalar_lea.smem %s0, 2
  %s5 = sld [smem:[%s4]]
  %s6 = scalar_lea.smem %s0, 3
  %s7 = sld [smem:[%s6]]
  %s8 = scalar_lea.smem %s0, 4
  %s9 = sld [smem:[%s8]]
  %s10 = scalar_lea.smem %s0, 5
  %s11 = sld [smem:[%s10]]
  %s12 = scalar_lea.smem %s0, 6
  %s13 = sld [smem:[%s12]]
  %s14 = scalar_lea.smem %s0, 7
  %s15 = sld [smem:[%s14]]
  %s16 = scalar_lea.smem %s0, 8
  %s17 = sld [smem:[%s16]]
  %s18 = scalar_lea.smem %s0, 9
  %s19 = sld [smem:[%s18]]
  %s20 = scalar_lea.smem %s0, 10
  %s21 = sld [smem:[%s20]]
  %s22 = scalar_lea.smem %s0, 11
  %s23 = sld [smem:[%s22]]
  %s24 = scalar_lea.smem %s0, 12
  %s25 = sld [smem:[%s24]]
  %s26 = scalar_lea.smem %s0, 13
  %s27 = sld [smem:[%s26]]
  %s28 = scalar_lea.smem %s0, 14
  %s29 = sld [smem:[%s28]]
  %s30 = scalar_lea.smem %s0, 15
  %s31 = sld [smem:[%s30]]
  %s32 = scalar_lea.smem %s0, 16
  %s33 = sld [smem:[%s32]]
  %s34 = scalar_lea.smem %s0, 17
  %s35 = sld [smem:[%s34]]
  %s36 = scalar_lea.smem %s0, 18
  %s37 = sld [smem:[%s36]]
  %s38 = scalar_lea.smem %s0, 19
  %s39 = sld [smem:[%s38]]
  %s40 = scalar_lea.smem %s0, 20
  %s41 = sld [smem:[%s40]]
  %s42 = scalar_lea.smem %s0, 21
  %s43 = sld [smem:[%s42]]
  %s44 = scalar_lea.smem %s0, 22
  %s45 = sld [smem:[%s44]]
  %s46 = scalar_lea.smem %s0, 23
  %s47 = sld [smem:[%s46]]
  %s48 = scalar_lea.smem %s0, 24
  %s49 = sld [smem:[%s48]]
  %s50 = scalar_lea.smem %s0, 25
  %s51 = sld [smem:[%s50]]
  %s52 = scalar_lea.smem %s0, 26
  %s53 = sld [smem:[%s52]]
  %s54 = scalar_lea.smem %s0, 27
  %s55 = sld [smem:[%s54]]
  %s56 = scalar_lea.smem %s0, 28
  %s57 = sld [smem:[%s56]]
  %s58 = scalar_lea.smem %s0, 29
  %s59 = sld [smem:[%s58]]
  %s60 = scalar_lea.smem %s0, 30
  %s61 = sld [smem:[%s60]]
  %s62 = scalar_lea.smem %s0, 31
  %s63 = sld [smem:[%s62]]
  %s64 = scalar_lea.smem %s0, 32
  %s65 = sld [smem:[%s64]]
  %s66 = scalar_lea.smem %s0, 33
  %s67 = sld [smem:[%s66]]
  %s68 = scalar_lea.smem %s0, 34
  %s69 = sld [smem:[%s68]]
  %s70 = scalar_lea.smem %s0, 35
  %s71 = sld [smem:[%s70]]
  %s72 = scalar_lea.smem %s0, 36
  %s73 = sld [smem:[%s72]]
  %s74 = scalar_lea.smem %s0, 37
  %s75 = sld [smem:[%s74]]
  %s76 = scalar_lea.smem %s0, 38
  %s77 = sld [smem:[%s76]]
  %s78 = scalar_lea.smem %s0, 39
  %s79 = sld [smem:[%s78]]
  %s80 = scalar_lea.smem %s0, 40
  %s81 = sld [smem:[%s80]]
  %s82 = scalar_lea.smem %s0, 41
  %s83 = sld [smem:[%s82]]
  %s84 = scalar_lea.smem %s0, 42
  %s85 = sld [smem:[%s84]]
  %s86 = scalar_lea.smem %s0, 43
  %s87 = sld [smem:[%s86]]
  %s88 = scalar_lea.smem %s0, 44
  %s89 = sld [smem:[%s88]]
  %s90 = scalar_lea.smem %s0, 45
  %s91 = sld [smem:[%s90]]
  %s92 = scalar_lea.smem %s0, 46
  %s93 = sld [smem:[%s92]]
  %s94 = scalar_lea.smem %s0, 47
  %s95 = sld [smem:[%s94]]
  %s96 = scalar_lea.smem %s0, 48
  %s97 = sld [smem:[%s96]]
  %s98 = scalar_lea.smem %s0, 49
  %s99 = sld [smem:[%s98]]
  %s100 = scalar_lea.smem %s0, 50
  %s101 = sld [smem:[%s100]]
  %s102 = scalar_lea.smem %s0, 51
  %s103 = sld [smem:[%s102]]
  %s104 = scalar_lea.smem %s0, 52
  %s105 = sld [smem:[%s104]]
  %s106 = scalar_lea.smem %s0, 53
  %s107 = sld [smem:[%s106]]
  %s108 = scalar_lea.smem %s0, 54
  %s109 = sld [smem:[%s108]]
  %s110 = scalar_lea.smem %s0, 55
  %s111 = sld [smem:[%s110]]
  %s112 = scalar_lea.smem %s0, 56
  %s113 = sld [smem:[%s112]]
  %s114 = scalar_lea.smem %s0, 57
  %s115 = sld [smem:[%s114]]
  %116 = xla_tuple %s113, %s115
  %s117 = sld [smem:[#allocation0]]
  $region250: #{_lambda_.1} parent=0
    _
  %s119 = ssub.s32 1, %s117
  %s120 = scalar_select 0, %s119, %s117
  %v121 = vstv %s53
  %122 = vst [vmem:[#allocation2] sm:$0x1] %v121
  %v123 = vstv %s101
  %124 = vst [vmem:[#allocation3] sm:$0x1] %v123
  $region1: #{_lambda_.1} parent=0
    #allocation4 [shape = 'u8[512]{0}', space=vmem, size = 0x400, scoped, tag = 'input window, operand 27, single buffered']
    #allocation5 [shape = 's32[1]{0}', space=sflag, size = 0x4, scoped, tag = 'scoped memory for _lambda_.1']
    #allocation6 [shape = 'u8[512]{0}', space=vmem, size = 0x400, scoped, tag = 'input window, operand 51, single buffered']
    #allocation7 [shape = 's32[1]{0}', space=sflag, size = 0x4, scoped, tag = 'scoped memory for _lambda_.1']
    %125 = vsyncpa [#allocation5], 0
    %126 = vsyncpa [#allocation7], 0
    // Predicated region
    $region2: #{_lambda_.1} parent=1 // pred_check
      _
    $region3: #{_lambda_.1} parent=1 // pred_check_branch
      %128 = sbr.rel (0) target = $region5
    $region4: #{_lambda_.1} parent=1 // pred_region
      _
    $region5: #{_lambda_.1} parent=1 // pred_fallthru
      _
    // Predicated region
    $region6: #{_lambda_.1} parent=1 // pred_check
      _
    $region7: #{_lambda_.1} parent=1 // pred_check_branch
      %130 = sbr.rel (0) target = $region9
    $region8: #{_lambda_.1} parent=1 // pred_region
      _
    $region9: #{_lambda_.1} parent=1 // pred_fallthru
      _
    // Predicated region
    $region10: #{_lambda_.1} parent=1 // pred_check
      _
    $region11: #{_lambda_.1} parent=1 // pred_check_branch
      %132 = sbr.rel (0) target = $region13
    $region12: #{_lambda_.1} parent=1 // pred_region
      _
    $region13: #{_lambda_.1} parent=1 // pred_fallthru
      _
    // Predicated region
    $region14: #{_lambda_.1} parent=1 // pred_check
      _
    $region15: #{_lambda_.1} parent=1 // pred_check_branch
      %134 = sbr.rel (0) target = $region17
    $region16: #{_lambda_.1} parent=1 // pred_region
      _
    $region17: #{_lambda_.1} parent=1 // pred_fallthru
      _
    // Predicated region
    $region18: #{_lambda_.1} parent=1 // pred_check
      _
    $region19: #{_lambda_.1} parent=1 // pred_check_branch
      %136 = sbr.rel (0) target = $region21
    $region20: #{_lambda_.1} parent=1 // pred_region
      _
    $region21: #{_lambda_.1} parent=1 // pred_fallthru
      _
    // Predicated region
    $region22: #{_lambda_.1} parent=1 // pred_check
      _
    $region23: #{_lambda_.1} parent=1 // pred_check_branch
      %138 = sbr.rel (0) target = $region25
    $region24: #{_lambda_.1} parent=1 // pred_region
      _
    $region25: #{_lambda_.1} parent=1 // pred_fallthru
      _
    // Predicated region
    $region26: #{_lambda_.1} parent=1 // pred_check
      _
    $region27: #{_lambda_.1} parent=1 // pred_check_branch
      %140 = sbr.rel (0) target = $region29
    $region28: #{_lambda_.1} parent=1 // pred_region
      _
    $region29: #{_lambda_.1} parent=1 // pred_fallthru
      _
    // Predicated region
    $region30: #{_lambda_.1} parent=1 // pred_check
      _
    $region31: #{_lambda_.1} parent=1 // pred_check_branch
      %142 = sbr.rel (0) target = $region33
    $region32: #{_lambda_.1} parent=1 // pred_region
      _
    $region33: #{_lambda_.1} parent=1 // pred_fallthru
      _
    // Predicated region
    $region34: #{_lambda_.1} parent=1 // pred_check
      _
    $region35: #{_lambda_.1} parent=1 // pred_check_branch
      %144 = sbr.rel (0) target = $region37
    $region36: #{_lambda_.1} parent=1 // pred_region
      _
    $region37: #{_lambda_.1} parent=1 // pred_fallthru
      _
    // Predicated region
    $region38: #{_lambda_.1} parent=1 // pred_check
      _
    $region39: #{_lambda_.1} parent=1 // pred_check_branch
      %146 = sbr.rel (0) target = $region41
    $region40: #{_lambda_.1} parent=1 // pred_region
      _
    $region41: #{_lambda_.1} parent=1 // pred_fallthru
      _
    // Predicated region
    $region42: #{_lambda_.1} parent=1 // pred_check
      _
    $region43: #{_lambda_.1} parent=1 // pred_check_branch
      %148 = sbr.rel (0) target = $region45
    $region44: #{_lambda_.1} parent=1 // pred_region
      _
    $region45: #{_lambda_.1} parent=1 // pred_fallthru
      _
    // Predicated region
    $region46: #{_lambda_.1} parent=1 // pred_check
      _
    $region47: #{_lambda_.1} parent=1 // pred_check_branch
      %150 = sbr.rel (0) target = $region49
    $region48: #{_lambda_.1} parent=1 // pred_region
      _
    $region49: #{_lambda_.1} parent=1 // pred_fallthru
      _
    // Predicated region
    $region50: #{_lambda_.1} parent=1 // pred_check
      _
    $region51: #{_lambda_.1} parent=1 // pred_check_branch
      %152 = sbr.rel (0) target = $region53
    $region52: #{_lambda_.1} parent=1 // pred_region
      _
    $region53: #{_lambda_.1} parent=1 // pred_fallthru
      _
    // Predicated region
    $region54: #{_lambda_.1} parent=1 // pred_check
      _
    $region55: #{_lambda_.1} parent=1 // pred_check_branch
      %154 = sbr.rel (0) target = $region57
    $region56: #{_lambda_.1} parent=1 // pred_region
      _
    $region57: #{_lambda_.1} parent=1 // pred_fallthru
      _
    // Predicated region
    $region58: #{_lambda_.1} parent=1 // pred_check
      _
    $region59: #{_lambda_.1} parent=1 // pred_check_branch
      %156 = sbr.rel (0) target = $region61
    $region60: #{_lambda_.1} parent=1 // pred_region
      _
    $region61: #{_lambda_.1} parent=1 // pred_fallthru
      _
    // Predicated region
    $region62: #{_lambda_.1} parent=1 // pred_check
      _
    $region63: #{_lambda_.1} parent=1 // pred_check_branch
      %158 = sbr.rel (0) target = $region65
    $region64: #{_lambda_.1} parent=1 // pred_region
      _
    $region65: #{_lambda_.1} parent=1 // pred_fallthru
      _
    // Predicated region
    $region66: #{_lambda_.1} parent=1 // pred_check
      _
    $region67: #{_lambda_.1} parent=1 // pred_check_branch
      %160 = sbr.rel (0) target = $region69
    $region68: #{_lambda_.1} parent=1 // pred_region
      _
    $region69: #{_lambda_.1} parent=1 // pred_fallthru
      _
    // Predicated region
    $region70: #{_lambda_.1} parent=1 // pred_check
      _
    $region71: #{_lambda_.1} parent=1 // pred_check_branch
      %162 = sbr.rel (0) target = $region73
    $region72: #{_lambda_.1} parent=1 // pred_region
      _
    $region73: #{_lambda_.1} parent=1 // pred_fallthru
      _
    // Predicated region
    $region74: #{_lambda_.1} parent=1 // pred_check
      _
    $region75: #{_lambda_.1} parent=1 // pred_check_branch
      %164 = sbr.rel (0) target = $region77
    $region76: #{_lambda_.1} parent=1 // pred_region
      _
    $region77: #{_lambda_.1} parent=1 // pred_fallthru
      _
    // Predicated region
    $region78: #{_lambda_.1} parent=1 // pred_check
      _
    $region79: #{_lambda_.1} parent=1 // pred_check_branch
      %166 = sbr.rel (0) target = $region81
    $region80: #{_lambda_.1} parent=1 // pred_region
      _
    $region81: #{_lambda_.1} parent=1 // pred_fallthru
      _
    // Predicated region
    $region82: #{_lambda_.1} parent=1 // pred_check
      _
    $region83: #{_lambda_.1} parent=1 // pred_check_branch
      %168 = sbr.rel (0) target = $region85
    $region84: #{_lambda_.1} parent=1 // pred_region
      _
    $region85: #{_lambda_.1} parent=1 // pred_fallthru
      _
    // Predicated region
    $region86: #{_lambda_.1} parent=1 // pred_check
      _
    $region87: #{_lambda_.1} parent=1 // pred_check_branch
      %170 = sbr.rel (0) target = $region89
    $region88: #{_lambda_.1} parent=1 // pred_region
      _
    $region89: #{_lambda_.1} parent=1 // pred_fallthru
      _
    // Predicated region
    $region90: #{_lambda_.1} parent=1 // pred_check
      _
    $region91: #{_lambda_.1} parent=1 // pred_check_branch
      %172 = sbr.rel (0) target = $region93
    $region92: #{_lambda_.1} parent=1 // pred_region
      _
    $region93: #{_lambda_.1} parent=1 // pred_fallthru
      _
    // Predicated region
    $region94: #{_lambda_.1} parent=1 // pred_check
      _
    $region95: #{_lambda_.1} parent=1 // pred_check_branch
      %174 = sbr.rel (0) target = $region97
    $region96: #{_lambda_.1} parent=1 // pred_region
      _
    $region97: #{_lambda_.1} parent=1 // pred_fallthru
      _
    // Predicated region
    $region98: #{_lambda_.1} parent=1 // pred_check
      _
    $region99: #{_lambda_.1} parent=1 // pred_check_branch
      %176 = sbr.rel (0) target = $region101
    $region100: #{_lambda_.1} parent=1 // pred_region
      _
    $region101: #{_lambda_.1} parent=1 // pred_fallthru
      _
    // Predicated region
    $region102: #{_lambda_.1} parent=1 // pred_check
      _
    $region103: #{_lambda_.1} parent=1 // pred_check_branch
      %178 = sbr.rel (0) target = $region105
    $region104: #{_lambda_.1} parent=1 // pred_region
      _
    $region105: #{_lambda_.1} parent=1 // pred_fallthru
      _
    // Predicated region
    $region106: #{_lambda_.1} parent=1 // pred_check
      _
    $region107: #{_lambda_.1} parent=1 // pred_check_branch
      %180 = sbr.rel (0) target = $region109
    $region108: #{_lambda_.1} parent=1 // pred_region
      _
    $region109: #{_lambda_.1} parent=1 // pred_fallthru
      _
    // Predicated region
    $region110: #{_lambda_.1} parent=1 // pred_check
      _
    $region111: #{_lambda_.1} parent=1 // pred_check_branch
      %182 = sbr.rel (0) target = $region113
    $region112: #{_lambda_.1} parent=1 // pred_region
      %s184 = ssub.s32 16, 16
      %185 = vsyncadd [#allocation5], %s184
      %s187 = sshll.u32 [#allocation4], 4
      %s188 = int_to_ptr.vmem [resolvable:$true] %s187
      %190 = dma.hbm_to_vmem [thread:$0]  %s55, 16, %s188, [#allocation5]
    $region113: #{_lambda_.1} parent=1 // pred_fallthru
      _
    // Predicated region
    $region114: #{_lambda_.1} parent=1 // pred_check
      _
    $region115: #{_lambda_.1} parent=1 // pred_check_branch
      %192 = sbr.rel (0) target = $region117
    $region116: #{_lambda_.1} parent=1 // pred_region
      _
    $region117: #{_lambda_.1} parent=1 // pred_fallthru
      _
    // Predicated region
    $region118: #{_lambda_.1} parent=1 // pred_check
      _
    $region119: #{_lambda_.1} parent=1 // pred_check_branch
      %194 = sbr.rel (0) target = $region121
    $region120: #{_lambda_.1} parent=1 // pred_region
      _
    $region121: #{_lambda_.1} parent=1 // pred_fallthru
      _
    // Predicated region
    $region122: #{_lambda_.1} parent=1 // pred_check
      _
    $region123: #{_lambda_.1} parent=1 // pred_check_branch
      %196 = sbr.rel (0) target = $region125
    $region124: #{_lambda_.1} parent=1 // pred_region
      _
    $region125: #{_lambda_.1} parent=1 // pred_fallthru
      _
    // Predicated region
    $region126: #{_lambda_.1} parent=1 // pred_check
      _
    $region127: #{_lambda_.1} parent=1 // pred_check_branch
      %198 = sbr.rel (0) target = $region129
    $region128: #{_lambda_.1} parent=1 // pred_region
      _
    $region129: #{_lambda_.1} parent=1 // pred_fallthru
      _
    // Predicated region
    $region130: #{_lambda_.1} parent=1 // pred_check
      _
    $region131: #{_lambda_.1} parent=1 // pred_check_branch
      %200 = sbr.rel (0) target = $region133
    $region132: #{_lambda_.1} parent=1 // pred_region
      _
    $region133: #{_lambda_.1} parent=1 // pred_fallthru
      _
    // Predicated region
    $region134: #{_lambda_.1} parent=1 // pred_check
      _
    $region135: #{_lambda_.1} parent=1 // pred_check_branch
      %202 = sbr.rel (0) target = $region137
    $region136: #{_lambda_.1} parent=1 // pred_region
      _
    $region137: #{_lambda_.1} parent=1 // pred_fallthru
      _
    // Predicated region
    $region138: #{_lambda_.1} parent=1 // pred_check
      _
    $region139: #{_lambda_.1} parent=1 // pred_check_branch
      %204 = sbr.rel (0) target = $region141
    $region140: #{_lambda_.1} parent=1 // pred_region
      _
    $region141: #{_lambda_.1} parent=1 // pred_fallthru
      _
    // Predicated region
    $region142: #{_lambda_.1} parent=1 // pred_check
      _
    $region143: #{_lambda_.1} parent=1 // pred_check_branch
      %206 = sbr.rel (0) target = $region145
    $region144: #{_lambda_.1} parent=1 // pred_region
      _
    $region145: #{_lambda_.1} parent=1 // pred_fallthru
      _
    // Predicated region
    $region146: #{_lambda_.1} parent=1 // pred_check
      _
    $region147: #{_lambda_.1} parent=1 // pred_check_branch
      %208 = sbr.rel (0) target = $region149
    $region148: #{_lambda_.1} parent=1 // pred_region
      _
    $region149: #{_lambda_.1} parent=1 // pred_fallthru
      _
    // Predicated region
    $region150: #{_lambda_.1} parent=1 // pred_check
      _
    $region151: #{_lambda_.1} parent=1 // pred_check_branch
      %210 = sbr.rel (0) target = $region153
    $region152: #{_lambda_.1} parent=1 // pred_region
      _
    $region153: #{_lambda_.1} parent=1 // pred_fallthru
      _
    // Predicated region
    $region154: #{_lambda_.1} parent=1 // pred_check
      _
    $region155: #{_lambda_.1} parent=1 // pred_check_branch
      %212 = sbr.rel (0) target = $region157
    $region156: #{_lambda_.1} parent=1 // pred_region
      _
    $region157: #{_lambda_.1} parent=1 // pred_fallthru
      _
    // Predicated region
    $region158: #{_lambda_.1} parent=1 // pred_check
      _
    $region159: #{_lambda_.1} parent=1 // pred_check_branch
      %214 = sbr.rel (0) target = $region161
    $region160: #{_lambda_.1} parent=1 // pred_region
      _
    $region161: #{_lambda_.1} parent=1 // pred_fallthru
      _
    // Predicated region
    $region162: #{_lambda_.1} parent=1 // pred_check
      _
    $region163: #{_lambda_.1} parent=1 // pred_check_branch
      %216 = sbr.rel (0) target = $region165
    $region164: #{_lambda_.1} parent=1 // pred_region
      _
    $region165: #{_lambda_.1} parent=1 // pred_fallthru
      _
    // Predicated region
    $region166: #{_lambda_.1} parent=1 // pred_check
      _
    $region167: #{_lambda_.1} parent=1 // pred_check_branch
      %218 = sbr.rel (0) target = $region169
    $region168: #{_lambda_.1} parent=1 // pred_region
      _
    $region169: #{_lambda_.1} parent=1 // pred_fallthru
      _
    // Predicated region
    $region170: #{_lambda_.1} parent=1 // pred_check
      _
    $region171: #{_lambda_.1} parent=1 // pred_check_branch
      %220 = sbr.rel (0) target = $region173
    $region172: #{_lambda_.1} parent=1 // pred_region
      _
    $region173: #{_lambda_.1} parent=1 // pred_fallthru
      _
    // Predicated region
    $region174: #{_lambda_.1} parent=1 // pred_check
      _
    $region175: #{_lambda_.1} parent=1 // pred_check_branch
      %222 = sbr.rel (0) target = $region177
    $region176: #{_lambda_.1} parent=1 // pred_region
      _
    $region177: #{_lambda_.1} parent=1 // pred_fallthru
      _
    // Predicated region
    $region178: #{_lambda_.1} parent=1 // pred_check
      _
    $region179: #{_lambda_.1} parent=1 // pred_check_branch
      %224 = sbr.rel (0) target = $region181
    $region180: #{_lambda_.1} parent=1 // pred_region
      _
    $region181: #{_lambda_.1} parent=1 // pred_fallthru
      _
    // Predicated region
    $region182: #{_lambda_.1} parent=1 // pred_check
      _
    $region183: #{_lambda_.1} parent=1 // pred_check_branch
      %226 = sbr.rel (0) target = $region185
    $region184: #{_lambda_.1} parent=1 // pred_region
      _
    $region185: #{_lambda_.1} parent=1 // pred_fallthru
      _
    // Predicated region
    $region186: #{_lambda_.1} parent=1 // pred_check
      _
    $region187: #{_lambda_.1} parent=1 // pred_check_branch
      %228 = sbr.rel (0) target = $region189
    $region188: #{_lambda_.1} parent=1 // pred_region
      _
    $region189: #{_lambda_.1} parent=1 // pred_fallthru
      _
    // Predicated region
    $region190: #{_lambda_.1} parent=1 // pred_check
      _
    $region191: #{_lambda_.1} parent=1 // pred_check_branch
      %230 = sbr.rel (0) target = $region193
    $region192: #{_lambda_.1} parent=1 // pred_region
      _
    $region193: #{_lambda_.1} parent=1 // pred_fallthru
      _
    // Predicated region
    $region194: #{_lambda_.1} parent=1 // pred_check
      _
    $region195: #{_lambda_.1} parent=1 // pred_check_branch
      %232 = sbr.rel (0) target = $region197
    $region196: #{_lambda_.1} parent=1 // pred_region
      _
    $region197: #{_lambda_.1} parent=1 // pred_fallthru
      _
    // Predicated region
    $region198: #{_lambda_.1} parent=1 // pred_check
      _
    $region199: #{_lambda_.1} parent=1 // pred_check_branch
      %234 = sbr.rel (0) target = $region201
    $region200: #{_lambda_.1} parent=1 // pred_region
      _
    $region201: #{_lambda_.1} parent=1 // pred_fallthru
      _
    // Predicated region
    $region202: #{_lambda_.1} parent=1 // pred_check
      _
    $region203: #{_lambda_.1} parent=1 // pred_check_branch
      %236 = sbr.rel (0) target = $region205
    $region204: #{_lambda_.1} parent=1 // pred_region
      _
    $region205: #{_lambda_.1} parent=1 // pred_fallthru
      _
    // Predicated region
    $region206: #{_lambda_.1} parent=1 // pred_check
      _
    $region207: #{_lambda_.1} parent=1 // pred_check_branch
      %238 = sbr.rel (0) target = $region209
    $region208: #{_lambda_.1} parent=1 // pred_region
      %s240 = ssub.s32 16, 16
      %241 = vsyncadd [#allocation7], %s240
      %s243 = sshll.u32 [#allocation6], 4
      %s244 = int_to_ptr.vmem [resolvable:$true] %s243
      %246 = dma.hbm_to_vmem [thread:$0]  %s103, 16, %s244, [#allocation7]
    $region209: #{_lambda_.1} parent=1 // pred_fallthru
      _
    // Predicated region
    $region210: #{_lambda_.1} parent=1 // pred_check
      _
    $region211: #{_lambda_.1} parent=1 // pred_check_branch
      %248 = sbr.rel (0) target = $region213
    $region212: #{_lambda_.1} parent=1 // pred_region
      _
    $region213: #{_lambda_.1} parent=1 // pred_fallthru
      _
    // Predicated region
    $region214: #{_lambda_.1} parent=1 // pred_check
      _
    $region215: #{_lambda_.1} parent=1 // pred_check_branch
      %250 = sbr.rel (0) target = $region217
    $region216: #{_lambda_.1} parent=1 // pred_region
      _
    $region217: #{_lambda_.1} parent=1 // pred_fallthru
      _
    // Predicated region
    $region218: #{_lambda_.1} parent=1 // pred_check
      _
    $region219: #{_lambda_.1} parent=1 // pred_check_branch
      %252 = sbr.rel (0) target = $region221
    $region220: #{_lambda_.1} parent=1 // pred_region
      _
    $region221: #{_lambda_.1} parent=1 // pred_fallthru
      _
    // Predicated region
    $region222: #{_lambda_.1} parent=1 // pred_check
      _
    $region223: #{_lambda_.1} parent=1 // pred_check_branch
      %254 = sbr.rel (0) target = $region225
    $region224: #{_lambda_.1} parent=1 // pred_region
      _
    $region225: #{_lambda_.1} parent=1 // pred_fallthru
      _
    // Predicated region
    $region226: #{_lambda_.1} parent=1 // pred_check
      _
    $region227: #{_lambda_.1} parent=1 // pred_check_branch
      %256 = sbr.rel (0) target = $region229
    $region228: #{_lambda_.1} parent=1 // pred_region
      %257 = dma.done [#allocation5], 16
    $region229: #{_lambda_.1} parent=1 // pred_fallthru
      _
    // Predicated region
    $region230: #{_lambda_.1} parent=1 // pred_check
      _
    $region231: #{_lambda_.1} parent=1 // pred_check_branch
      %259 = sbr.rel (0) target = $region233
    $region232: #{_lambda_.1} parent=1 // pred_region
      %260 = dma.done [#allocation7], 16
    $region233: #{_lambda_.1} parent=1 // pred_fallthru
      _
    %v261 = vld [vmem:[%s17] sm:$0xff]
    %v262 = vld [vmem:[%s17 + $0x8] sm:$0xff]
    %v263 = vld [vmem:[%s19] sm:$0xff]
    %v264 = vld [vmem:[%s19 + $0x8] sm:$0xff]
    %v265 = vld [vmem:[%s21] sm:$0xff]
    %v266 = vld [vmem:[%s21 + $0x8] sm:$0xff]
    %v267 = vld [vmem:[%s23] sm:$0xff]
    %v268 = vld [vmem:[%s23 + $0x8] sm:$0xff]
    %v269 = vld [vmem:[%s25] sm:$0xff]
    %v270 = vld [vmem:[%s25 + $0x8] sm:$0xff]
    %v271 = vld [vmem:[%s27] sm:$0xff]
    %v272 = vld [vmem:[%s27 + $0x8] sm:$0xff]
    %v273 = vld [vmem:[%s29] sm:$0xff]
    %v274 = vld [vmem:[%s29 + $0x8] sm:$0xff]
    %v275 = vld [vmem:[%s31] sm:$0xff]
    %v276 = vld [vmem:[%s31 + $0x8] sm:$0xff]
    %v277 = vld [vmem:[%s33] sm:$0xff]
    %v278 = vld [vmem:[%s35] sm:$0xff]
    %v279 = vld [vmem:[%s37] sm:$0xff]
    %v280 = vld [vmem:[%s39] sm:$0xff]
    %v281 = vld [vmem:[%s41] sm:$0xff]
    %v282 = vld [vmem:[%s43] sm:$0xff]
    %v283 = vld [vmem:[%s45] sm:$0xff]
    %v284 = vld [vmem:[%s47] sm:$0xff]
    %v285 = vld [vmem:[%s49] sm:$0xff]
    %v286 = vld [vmem:[%s49 + $0x8] sm:$0xff]
    %v287 = vld [vmem:[%s51] sm:$0xff]
    %v288 = vld [vmem:[%s51 + $0x8] sm:$0xff]
    %v289 = vld [vmem:[#allocation2] sm:$0x1]
    %v290 = vld [vmem:[#allocation4] sm:$0x1]
    %v291 = vld [vmem:[%s57] sm:$0xff]
    %v292 = vld [vmem:[%s57 + $0x8] sm:$0xff]
    %v293 = vld [vmem:[%s59] sm:$0xff]
    %v294 = vld [vmem:[%s59 + $0x8] sm:$0xff]
    %v295 = vld [vmem:[%s59 + $0x10] sm:$0xff]
    %v296 = vld [vmem:[%s59 + $0x18] sm:$0xff]
    %v297 = vld [vmem:[%s61] sm:$0xff]
    %v298 = vld [vmem:[%s63] sm:$0xff]
    %v299 = vld [vmem:[%s65] sm:$0xff]
    %v300 = vld [vmem:[%s65 + $0x8] sm:$0xff]
    %v301 = vld [vmem:[%s65 + $0x10] sm:$0xff]
    %v302 = vld [vmem:[%s65 + $0x18] sm:$0xff]
    %v303 = vld [vmem:[%s67] sm:$0xff]
    %v304 = vld [vmem:[%s67 + $0x8] sm:$0xff]
    %v305 = vld [vmem:[%s67 + $0x10] sm:$0xff]
    %v306 = vld [vmem:[%s67 + $0x18] sm:$0xff]
    %v307 = vld [vmem:[%s69] sm:$0xff]
    %v308 = vld [vmem:[%s69 + $0x8] sm:$0xff]
    %v309 = vld [vmem:[%s71] sm:$0xff]
    %v310 = vld [vmem:[%s71 + $0x8] sm:$0xff]
    %v311 = vld [vmem:[%s73] sm:$0xff]
    %v312 = vld [vmem:[%s73 + $0x8] sm:$0xff]
    %v313 = vld [vmem:[%s75] sm:$0xff]
    %v314 = vld [vmem:[%s75 + $0x8] sm:$0xff]
    %v315 = vld [vmem:[%s77] sm:$0xff]
    %v316 = vld [vmem:[%s79] sm:$0xff]
    %v317 = vld [vmem:[%s81] sm:$0xff]
    %v318 = vld [vmem:[%s83] sm:$0xff]
    %v319 = vld [vmem:[%s85] sm:$0xff]
    %v320 = vld [vmem:[%s87] sm:$0xff]
    %v321 = vld [vmem:[%s89] sm:$0xff]
    %v322 = vld [vmem:[%s91] sm:$0xff]
    %v323 = vld [vmem:[%s93] sm:$0xff]
    %v324 = vld [vmem:[%s93 + $0x8] sm:$0xff]
    %v325 = vld [vmem:[%s95] sm:$0xff]
    %v326 = vld [vmem:[%s95 + $0x8] sm:$0xff]
    %v327 = vld [vmem:[%s97] sm:$0xff]
    %v328 = vld [vmem:[%s99] sm:$0xff]
    %v329 = vld [vmem:[#allocation3] sm:$0x1]
    %v330 = vld [vmem:[#allocation6] sm:$0x1]
    %v331 = vld [vmem:[%s105] sm:$0xff]
    %v332 = vld [vmem:[%s105 + $0x8] sm:$0xff]
    %v333 = vld [vmem:[%s107] sm:$0xff]
    %v334 = vld [vmem:[%s107 + $0x8] sm:$0xff]
    %v335 = vld [vmem:[%s107 + $0x10] sm:$0xff]
    %v336 = vld [vmem:[%s107 + $0x18] sm:$0xff]
    %v337 = vld [vmem:[%s109] sm:$0xff]
    %v338 = vld [vmem:[%s111] sm:$0xff]
    %v339 = vld [vmem:[%s5] sm:$0x1]
    %v340 = vld [vmem:[%s5 + $0x1] sm:$0x1]
    %v341 = vld [vmem:[%s7] sm:$0x1]
    %v342 = vld [vmem:[%s7 + $0x1] sm:$0x1]
    %v343 = vld [vmem:[%s9] sm:$0x1]
    %v344 = vld [vmem:[%s9 + $0x1] sm:$0x1]
    %v345 = vld [vmem:[%s11] sm:$0x1]
    %v346 = vld [vmem:[%s11 + $0x1] sm:$0x1]
    %v347 = vld [vmem:[%s13] sm:$0x1]
    %v348 = vld [vmem:[%s13 + $0x1] sm:$0x1]
    %v349 = vld [vmem:[%s15] sm:$0x1]
    %v350 = vld [vmem:[%s15 + $0x1] sm:$0x1]
    %v351 = vld [vmem:[%s3] sm:$0xff]
    %s352 = scalar_lea.vmem %s3, 8
    %v353 = vld [vmem:[%s352] sm:$0xff]
    %355 = vrot.lane.b32.xlu0 %v353, 8
    %v356 = vpop.permute.xlu0 %355
    %vm358 = vcmask 64512
    %v359 = vsel %vm358, %v351, %v356
    %v360 = vld [vmem:[%s1] sm:$0x1]
    %s361 = scalar_lea.vmem %s1, 1
    %v362 = vld [vmem:[%s361] sm:$0x1]
    %v364 = vlaneseq
    %v365 = vshrl.u32 %v364, 7
    %v366 = vsub.s32 0, %v365
    %v367 = vrot.slane %v362, %v366
    %368 = vrot.lane.b32.xlu0 %v367, 64
    %v369 = vpop.permute.xlu0 %368
    %vm371 = vcmask 523264
    %v372 = vsel %vm371, %v360, %v369
    %374 = vrot.lane.b32.xlu0 %v359, 3
    %v375 = vpop.permute.xlu0 %374
    %vm377 = vcmask 23552
    %v378 = vsel %vm377, 0.0, %v375
    %vm379 = vcmask 89088
    %v380 = vsel %vm379, %v378, 0.0
    %382 = vrot.lane.b32.xlu0 %v380, 127
    %v383 = vpop.permute.xlu0 %382
    %385 = vrot.lane.b32.xlu0 %v380, 126
    %v386 = vpop.permute.xlu0 %385
    %388 = vrot.lane.b32.xlu0 %v380, 125
    %v389 = vpop.permute.xlu0 %388
    %391 = vrot.lane.b32.xlu0 %v380, 124
    %v392 = vpop.permute.xlu0 %391
    %394 = vrot.lane.b32.xlu0 %v380, 123
    %v395 = vpop.permute.xlu0 %394
    %397 = vrot.lane.b32.xlu0 %v380, 122
    %v398 = vpop.permute.xlu0 %397
    %400 = vrot.lane.b32.xlu0 %v359, 123
    %v401 = vpop.permute.xlu0 %400
    %v403 = vsel %vm377, 0.0, %v401
    %v404 = vsel %vm379, %v403, 0.0
    %406 = vrot.lane.b32.xlu0 %v404, 127
    %v407 = vpop.permute.xlu0 %406
    %408 = vrot.lane.b32.xlu0 %v404, 126
    %v409 = vpop.permute.xlu0 %408
    %410 = vrot.lane.b32.xlu0 %v404, 125
    %v411 = vpop.permute.xlu0 %410
    %412 = vrot.lane.b32.xlu0 %v404, 124
    %v413 = vpop.permute.xlu0 %412
    %414 = vrot.lane.b32.xlu0 %v404, 123
    %v415 = vpop.permute.xlu0 %414
    %416 = vrot.lane.b32.xlu0 %v404, 122
    %v417 = vpop.permute.xlu0 %416
    %418 = vrot.lane.b32.xlu0 %v404, 8
    %v419 = vpop.permute.xlu0 %418
    %420 = vrot.lane.b32.xlu0 %v407, 8
    %v421 = vpop.permute.xlu0 %420
    %422 = vrot.lane.b32.xlu0 %v409, 8
    %v423 = vpop.permute.xlu0 %422
    %424 = vrot.lane.b32.xlu0 %v411, 8
    %v425 = vpop.permute.xlu0 %424
    %426 = vrot.lane.b32.xlu0 %v413, 8
    %v427 = vpop.permute.xlu0 %426
    %428 = vrot.lane.b32.xlu0 %v415, 8
    %v429 = vpop.permute.xlu0 %428
    %430 = vrot.lane.b32.xlu0 %v417, 8
    %v431 = vpop.permute.xlu0 %430
    %v439 = vsel %vm358, %v380, %v419
    %v440 = vsel %vm358, %v383, %v421
    %v441 = vsel %vm358, %v386, %v423
    %v442 = vsel %vm358, %v389, %v425
    %v443 = vsel %vm358, %v392, %v427
    %v444 = vsel %vm358, %v395, %v429
    %v445 = vsel %vm358, %v398, %v431
    %447 = vset.pattern.permute.xlu0 0
    %448 = vperm.xlu0 %447, %v299
    %v449 = vpop.permute.xlu0 %448
    %452 = vset.pattern.permute.xlu0 0
    %453 = vperm.xlu0 %452, %v300
    %v454 = vpop.permute.xlu0 %453
    %457 = vset.pattern.permute.xlu0 0
    %458 = vperm.xlu0 %457, %v301
    %v459 = vpop.permute.xlu0 %458
    %462 = vset.pattern.permute.xlu0 0
    %463 = vperm.xlu0 %462, %v302
    %v464 = vpop.permute.xlu0 %463
    %vm466 = vcmask 457728
    %v468 = vsel %vm466, %v303, 0
    %v471 = vsel %vm466, %v304, 0
    %v474 = vsel %vm466, %v305, 0
    %v477 = vsel %vm466, %v306, 0
    %479 = vmatprep.subr.mxu0 0.0
    %480 = vmatpush1.msra.mxu0 0.0
    %481 = vmatprep.subr.mxu0 0.0
    %482 = vmatpush1.msra.mxu0 0.0
    %483 = vmatprep.subr.mxu0 0.0
    %484 = vmatpush1.msra.mxu0 0.0
    %485 = vmatprep.subr.mxu0 0.0
    %486 = vmatpush1.msra.mxu0 0.0
    %487 = vmatprep.subr.mxu0 0.0
    %488 = vmatpush1.msra.mxu0 0.0
    %489 = vmatprep.subr.mxu0 0.0
    %490 = vmatpush1.msra.mxu0 0.0
    %491 = vmatprep.subr.mxu0 0.0
    %492 = vmatpush1.msra.mxu0 0.0
    %493 = vmatprep.subr.mxu0 0.0
    %494 = vmatpush1.msra.mxu0 0.0
    %495 = vmatprep.subr.mxu0 0.0
    %496 = vmatpush1.msra.mxu0 0.0
    %497 = vmatprep.subr.mxu0 0.0
    %498 = vmatpush1.msra.mxu0 %v445
    %499 = vmatprep.subr.mxu0 0.0
    %500 = vmatpush1.msra.mxu0 %v444
    %501 = vmatprep.subr.mxu0 0.0
    %502 = vmatpush1.msra.mxu0 %v443
    %503 = vmatprep.subr.mxu0 0.0
    %504 = vmatpush1.msra.mxu0 %v442
    %505 = vmatprep.subr.mxu0 0.0
    %506 = vmatpush1.msra.mxu0 %v441
    %507 = vmatprep.subr.mxu0 0.0
    %508 = vmatpush1.msra.mxu0 %v440
    %509 = vmatprep.subr.mxu0 0.0
    %510 = vmatpush1.msra.mxu0 %v439
    %511 = vmatprep.subr.mxu0 0.0
    %512 = vmatpush2.msra.mxu0 0.0
    %513 = vmatprep.subr.mxu0 0.0
    %514 = vmatpush2.msra.mxu0 0.0
    %515 = vmatprep.subr.mxu0 0.0
    %516 = vmatpush2.msra.mxu0 0.0
    %517 = vmatprep.subr.mxu0 0.0
    %518 = vmatpush2.msra.mxu0 0.0
    %519 = vmatprep.subr.mxu0 0.0
    %520 = vmatpush2.msra.mxu0 0.0
    %521 = vmatprep.subr.mxu0 0.0
    %522 = vmatpush2.msra.mxu0 0.0
    %523 = vmatprep.subr.mxu0 0.0
    %524 = vmatpush2.msra.mxu0 0.0
    %525 = vmatprep.subr.mxu0 0.0
    %526 = vmatpush2.msra.mxu0 0.0
    %527 = vmatprep.subr.mxu0 0.0
    %528 = vmatpush2.msra.mxu0 0.0
    %529 = vmatprep.subr.mxu0 0.0
    %530 = vmatpush2.msra.mxu0 0.0
    %531 = vmatprep.subr.mxu0 0.0
    %532 = vmatpush2.msra.mxu0 0.0
    %533 = vmatprep.subr.mxu0 0.0
    %534 = vmatpush2.msra.mxu0 0.0
    %535 = vmatprep.subr.mxu0 0.0
    %536 = vmatpush2.msra.mxu0 0.0
    %537 = vmatprep.subr.mxu0 0.0
    %538 = vmatpush2.msra.mxu0 0.0
    %539 = vmatprep.subr.mxu0 0.0
    %540 = vmatpush2.msra.mxu0 0.0
    %541 = vmatprep.subr.mxu0 0.0
    %542 = vmatpush2.msra.mxu0 0.0
    %543 = vmatprep.mubr.f32.mxu0 0.0
    %544 = vmatmul.mubr.f32.gmra.mxu0 %v468
    %v545 = vpop.f32.mrf.mxu0
    %v546 = vadd.f32 %v449, %v545
    %v547 = vpop.f32.mrf.mxu0
    %548 = vmatprep.mubr.f32.mxu0 0.0
    %549 = vmatmul.mubr.f32.gmra.mxu0 %v471
    %v550 = vpop.f32.mrf.mxu0
    %v551 = vadd.f32 %v454, %v550
    %v552 = vpop.f32.mrf.mxu0
    %553 = vmatprep.mubr.f32.mxu0 0.0
    %554 = vmatmul.mubr.f32.gmra.mxu0 %v474
    %v555 = vpop.f32.mrf.mxu0
    %v556 = vadd.f32 %v459, %v555
    %v557 = vpop.f32.mrf.mxu0
    %558 = vmatprep.mubr.f32.mxu0 0.0
    %559 = vmatmul.mubr.f32.gmra.mxu0 %v477
    %v560 = vpop.f32.mrf.mxu0
    %v561 = vadd.f32 %v464, %v560
    %v562 = vpop.f32.mrf.mxu0
    %563 = vdwg.mxu0
    %565 = vrot.lane.b32.xlu0 %v372, 3
    %v566 = vpop.permute.xlu0 %565
    %v568 = vsel %vm377, 0.0, %v566
    %vm569 = vcmask 547840
    %v570 = vsel %vm569, %v568, 0.0
    %v572 = vrot.slane %v570, 7
    %573 = vrot.lane.b32.xlu0 %v572, 127
    %v574 = vpop.permute.xlu0 %573
    %v576 = vrot.slane %v570, 6
    %577 = vrot.lane.b32.xlu0 %v576, 126
    %v578 = vpop.permute.xlu0 %577
    %v580 = vrot.slane %v570, 5
    %581 = vrot.lane.b32.xlu0 %v580, 125
    %v582 = vpop.permute.xlu0 %581
    %v584 = vrot.slane %v570, 4
    %585 = vrot.lane.b32.xlu0 %v584, 124
    %v586 = vpop.permute.xlu0 %585
    %v588 = vrot.slane %v570, 3
    %589 = vrot.lane.b32.xlu0 %v588, 123
    %v590 = vpop.permute.xlu0 %589
    %v592 = vrot.slane %v570, 2
    %593 = vrot.lane.b32.xlu0 %v592, 122
    %v594 = vpop.permute.xlu0 %593
    %vm596 = vcmask 1040384
    %v597 = vsel %vm596, %v570, %v574
    %vm598 = vcmask 1041408
    %v599 = vsel %vm598, %v597, %v578
    %vm600 = vcmask 1042432
    %v601 = vsel %vm600, %v599, %v582
    %vm602 = vcmask 1043456
    %v603 = vsel %vm602, %v601, %v586
    %vm604 = vcmask 1044480
    %v605 = vsel %vm604, %v603, %v590
    %vm606 = vcmask 1045504
    %v607 = vsel %vm606, %v605, %v594
    %608 = vrot.lane.b32.xlu0 %v372, 67
    %v609 = vpop.permute.xlu0 %608
    %v611 = vsel %vm377, 0.0, %v609
    %v612 = vsel %vm569, %v611, 0.0
    %v614 = vrot.slane %v612, 7
    %615 = vrot.lane.b32.xlu0 %v614, 127
    %v616 = vpop.permute.xlu0 %615
    %v618 = vrot.slane %v612, 6
    %619 = vrot.lane.b32.xlu0 %v618, 126
    %v620 = vpop.permute.xlu0 %619
    %v622 = vrot.slane %v612, 5
    %623 = vrot.lane.b32.xlu0 %v622, 125
    %v624 = vpop.permute.xlu0 %623
    %v626 = vrot.slane %v612, 4
    %627 = vrot.lane.b32.xlu0 %v626, 124
    %v628 = vpop.permute.xlu0 %627
    %v630 = vrot.slane %v612, 3
    %631 = vrot.lane.b32.xlu0 %v630, 123
    %v632 = vpop.permute.xlu0 %631
    %v634 = vrot.slane %v612, 2
    %635 = vrot.lane.b32.xlu0 %v634, 122
    %v636 = vpop.permute.xlu0 %635
    %v638 = vsel %vm596, %v612, %v616
    %v639 = vsel %vm598, %v638, %v620
    %v640 = vsel %vm600, %v639, %v624
    %v641 = vsel %vm602, %v640, %v628
    %v642 = vsel %vm604, %v641, %v632
    %v643 = vsel %vm606, %v642, %v636
    %645 = vrot.lane.b32.xlu0 %v643, 64
    %v646 = vpop.permute.xlu0 %645
    %v648 = vsel %vm371, %v607, %v646
    %650 = vset.pattern.permute.xlu0 0
    %651 = vperm.xlu0 %650, %v327
    %v652 = vpop.permute.xlu0 %651
    %vm654 = vcmask 56320
    %v656 = vsel %vm654, %v328, 0
    %vm658 = vcmask 1046528
    %v660 = vsel %vm658, %v648, 0
    %662 = vmatprep.subr.mxu0 0.0
    %663 = vmatpush1.msra.mxu0 0.0
    %664 = vmatprep.subr.mxu0 0.0
    %665 = vmatpush1.msra.mxu0 0.0
    %666 = vmatprep.subr.mxu0 0.0
    %667 = vmatpush1.msra.mxu0 0.0
    %668 = vmatprep.subr.mxu0 0.0
    %669 = vmatpush1.msra.mxu0 0.0
    %670 = vmatprep.subr.mxu0 0.0
    %671 = vmatpush1.msra.mxu0 0.0
    %672 = vmatprep.subr.mxu0 0.0
    %673 = vmatpush1.msra.mxu0 0.0
    %674 = vmatprep.subr.mxu0 0.0
    %675 = vmatpush1.msra.mxu0 0.0
    %676 = vmatprep.subr.mxu0 0.0
    %677 = vmatpush1.msra.mxu0 0.0
    %678 = vmatprep.subr.mxu0 0.0
    %679 = vmatpush1.msra.mxu0 0.0
    %680 = vmatprep.subr.mxu0 0.0
    %681 = vmatpush1.msra.mxu0 0.0
    %682 = vmatprep.subr.mxu0 0.0
    %683 = vmatpush1.msra.mxu0 0.0
    %684 = vmatprep.subr.mxu0 0.0
    %685 = vmatpush1.msra.mxu0 0.0
    %686 = vmatprep.subr.mxu0 0.0
    %687 = vmatpush1.msra.mxu0 0.0
    %688 = vmatprep.subr.mxu0 0.0
    %689 = vmatpush1.msra.mxu0 0.0
    %690 = vmatprep.subr.mxu0 0.0
    %691 = vmatpush1.msra.mxu0 0.0
    %692 = vmatprep.subr.mxu0 0.0
    %693 = vmatpush1.msra.mxu0 %v660
    %694 = vmatprep.subr.mxu0 0.0
    %695 = vmatpush2.msra.mxu0 0.0
    %696 = vmatprep.subr.mxu0 0.0
    %697 = vmatpush2.msra.mxu0 0.0
    %698 = vmatprep.subr.mxu0 0.0
    %699 = vmatpush2.msra.mxu0 0.0
    %700 = vmatprep.subr.mxu0 0.0
    %701 = vmatpush2.msra.mxu0 0.0
    %702 = vmatprep.subr.mxu0 0.0
    %703 = vmatpush2.msra.mxu0 0.0
    %704 = vmatprep.subr.mxu0 0.0
    %705 = vmatpush2.msra.mxu0 0.0
    %706 = vmatprep.subr.mxu0 0.0
    %707 = vmatpush2.msra.mxu0 0.0
    %708 = vmatprep.subr.mxu0 0.0
    %709 = vmatpush2.msra.mxu0 0.0
    %710 = vmatprep.subr.mxu0 0.0
    %711 = vmatpush2.msra.mxu0 0.0
    %712 = vmatprep.subr.mxu0 0.0
    %713 = vmatpush2.msra.mxu0 0.0
    %714 = vmatprep.subr.mxu0 0.0
    %715 = vmatpush2.msra.mxu0 0.0
    %716 = vmatprep.subr.mxu0 0.0
    %717 = vmatpush2.msra.mxu0 0.0
    %718 = vmatprep.subr.mxu0 0.0
    %719 = vmatpush2.msra.mxu0 0.0
    %720 = vmatprep.subr.mxu0 0.0
    %721 = vmatpush2.msra.mxu0 0.0
    %722 = vmatprep.subr.mxu0 0.0
    %723 = vmatpush2.msra.mxu0 0.0
    %724 = vmatprep.subr.mxu0 0.0
    %725 = vmatpush2.msra.mxu0 0.0
    %726 = vmatprep.mubr.f32.mxu0 0.0
    %727 = vmatmul.mubr.f32.gmra.mxu0 %v656
    %v728 = vpop.f32.mrf.mxu0
    %v729 = vadd.f32 %v652, %v728
    %v730 = vpop.f32.mrf.mxu0
    %731 = vdwg.mxu0
    %v732 = vlaneseq
    %v733 = vshrl.u32 %v732, 7
    %v734 = vadd.s32 %v733, 8
    %v735 = vadd.s32 %v733, 16
    %v736 = vadd.s32 %v733, 24
    %v737 = vadd.s32 %v733, 32
    %v738 = vadd.s32 %v733, 40
    %v739 = vadd.s32 %v733, 48
    %v740 = vadd.s32 %v733, 56
    %v741 = vlaneseq
    %v742 = vand.u32 %v741, 127
    %v743 = vmul.u32 %v742, 2
    %vm744 = vcmp.eq.s32.totalorder %v733, %v743
    %vm745 = vcmp.eq.s32.totalorder %v734, %v743
    %vm746 = vcmp.eq.s32.totalorder %v735, %v743
    %vm747 = vcmp.eq.s32.totalorder %v736, %v743
    %vm748 = vcmp.eq.s32.totalorder %v737, %v743
    %vm749 = vcmp.eq.s32.totalorder %v738, %v743
    %vm750 = vcmp.eq.s32.totalorder %v739, %v743
    %vm751 = vcmp.eq.s32.totalorder %v740, %v743
    %v752 = vsel %vm744, 1, 0
    %v753 = vsel %vm745, 1, 0
    %v754 = vsel %vm746, 1, 0
    %v755 = vsel %vm747, 1, 0
    %v756 = vsel %vm748, 1, 0
    %v757 = vsel %vm749, 1, 0
    %v758 = vsel %vm750, 1, 0
    %v759 = vsel %vm751, 1, 0
    %v760 = vcvt.s32.f32 %v752
    %v761 = vcvt.s32.f32 %v753
    %v762 = vcvt.s32.f32 %v754
    %v763 = vcvt.s32.f32 %v755
    %v764 = vcvt.s32.f32 %v756
    %v765 = vcvt.s32.f32 %v757
    %v766 = vcvt.s32.f32 %v758
    %v767 = vcvt.s32.f32 %v759
    %769 = vrot.lane.b32.xlu0 %v729, 1
    %v770 = vpop.permute.xlu0 %769
    %vm772 = vcmask 7168
    %v773 = vsel %vm772, 0.0, %v770
    %vm774 = vcmask 531456
    %v775 = vsel %vm774, %v773, 0.0
    %777 = vrot.lane.b32.xlu0 %v775, 127
    %v778 = vpop.permute.xlu0 %777
    %779 = vrot.lane.b32.xlu0 %v775, 126
    %v780 = vpop.permute.xlu0 %779
    %781 = vrot.lane.b32.xlu0 %v775, 125
    %v782 = vpop.permute.xlu0 %781
    %vm783 = vcmask 515072
    %v784 = vsel %vm783, %v775, 0
    %v786 = vsel %vm783, %v778, 0
    %v788 = vsel %vm783, %v780, 0
    %v790 = vsel %vm783, %v782, 0
    %v793 = vsel %vm658, %v767, 0
    %795 = vmatprep.subr.mxu0 0.0
    %796 = vmatpush1.msra.mxu0 0.0
    %797 = vmatprep.subr.mxu0 0.0
    %798 = vmatpush1.msra.mxu0 0.0
    %799 = vmatprep.subr.mxu0 0.0
    %800 = vmatpush1.msra.mxu0 0.0
    %801 = vmatprep.subr.mxu0 0.0
    %802 = vmatpush1.msra.mxu0 0.0
    %803 = vmatprep.subr.mxu0 0.0
    %804 = vmatpush1.msra.mxu0 0.0
    %805 = vmatprep.subr.mxu0 0.0
    %806 = vmatpush1.msra.mxu0 0.0
    %807 = vmatprep.subr.mxu0 0.0
    %808 = vmatpush1.msra.mxu0 0.0
    %809 = vmatprep.subr.mxu0 0.0
    %810 = vmatpush1.msra.mxu0 0.0
    %811 = vmatprep.subr.mxu0 0.0
    %812 = vmatpush1.msra.mxu0 %v793
    %813 = vmatprep.subr.mxu0 0.0
    %814 = vmatpush1.msra.mxu0 %v766
    %815 = vmatprep.subr.mxu0 0.0
    %816 = vmatpush1.msra.mxu0 %v765
    %817 = vmatprep.subr.mxu0 0.0
    %818 = vmatpush1.msra.mxu0 %v764
    %819 = vmatprep.subr.mxu0 0.0
    %820 = vmatpush1.msra.mxu0 %v763
    %821 = vmatprep.subr.mxu0 0.0
    %822 = vmatpush1.msra.mxu0 %v762
    %823 = vmatprep.subr.mxu0 0.0
    %824 = vmatpush1.msra.mxu0 %v761
    %825 = vmatprep.subr.mxu0 0.0
    %826 = vmatpush1.msra.mxu0 %v760
    %827 = vmatprep.subr.mxu0 0.0
    %828 = vmatpush2.msra.mxu0 0.0
    %829 = vmatprep.subr.mxu0 0.0
    %830 = vmatpush2.msra.mxu0 0.0
    %831 = vmatprep.subr.mxu0 0.0
    %832 = vmatpush2.msra.mxu0 0.0
    %833 = vmatprep.subr.mxu0 0.0
    %834 = vmatpush2.msra.mxu0 0.0
    %835 = vmatprep.subr.mxu0 0.0
    %836 = vmatpush2.msra.mxu0 0.0
    %837 = vmatprep.subr.mxu0 0.0
    %838 = vmatpush2.msra.mxu0 0.0
    %839 = vmatprep.subr.mxu0 0.0
    %840 = vmatpush2.msra.mxu0 0.0
    %841 = vmatprep.subr.mxu0 0.0
    %842 = vmatpush2.msra.mxu0 0.0
    %843 = vmatprep.subr.mxu0 0.0
    %844 = vmatpush2.msra.mxu0 0.0
    %845 = vmatprep.subr.mxu0 0.0
    %846 = vmatpush2.msra.mxu0 0.0
    %847 = vmatprep.subr.mxu0 0.0
    %848 = vmatpush2.msra.mxu0 0.0
    %849 = vmatprep.subr.mxu0 0.0
    %850 = vmatpush2.msra.mxu0 0.0
    %851 = vmatprep.subr.mxu0 0.0
    %852 = vmatpush2.msra.mxu0 0.0
    %853 = vmatprep.subr.mxu0 0.0
    %854 = vmatpush2.msra.mxu0 0.0
    %855 = vmatprep.subr.mxu0 0.0
    %856 = vmatpush2.msra.mxu0 0.0
    %857 = vmatprep.subr.mxu0 0.0
    %858 = vmatpush2.msra.mxu0 0.0
    %859 = vmatprep.mubr.f32.mxu0 0.0
    %860 = vmatmul.mubr.f32.gmra.mxu0 %v784
    %v861 = vpop.f32.mrf.mxu0
    %v862 = vadd.f32 0.0, %v861
    %v863 = vpop.f32.mrf.mxu0
    %864 = vmatprep.mubr.f32.mxu0 0.0
    %865 = vmatmul.mubr.f32.gmra.mxu0 %v786
    %v866 = vpop.f32.mrf.mxu0
    %v867 = vadd.f32 0.0, %v866
    %v868 = vpop.f32.mrf.mxu0
    %869 = vmatprep.mubr.f32.mxu0 0.0
    %870 = vmatmul.mubr.f32.gmra.mxu0 %v788
    %v871 = vpop.f32.mrf.mxu0
    %v872 = vadd.f32 0.0, %v871
    %v873 = vpop.f32.mrf.mxu0
    %874 = vmatprep.mubr.f32.mxu0 0.0
    %875 = vmatmul.mubr.f32.gmra.mxu0 %v790
    %v876 = vpop.f32.mrf.mxu0
    %v877 = vadd.f32 0.0, %v876
    %v878 = vpop.f32.mrf.mxu0
    %879 = vdwg.mxu0
    %880 = vrot.lane.b32.xlu0 %v729, 65
    %v881 = vpop.permute.xlu0 %880
    %v883 = vsel %vm772, 0.0, %v881
    %v884 = vsel %vm774, %v883, 0.0
    %886 = vrot.lane.b32.xlu0 %v884, 127
    %v887 = vpop.permute.xlu0 %886
    %888 = vrot.lane.b32.xlu0 %v884, 126
    %v889 = vpop.permute.xlu0 %888
    %890 = vrot.lane.b32.xlu0 %v884, 125
    %v891 = vpop.permute.xlu0 %890
    %v892 = vsel %vm783, %v884, 0
    %v894 = vsel %vm783, %v887, 0
    %v896 = vsel %vm783, %v889, 0
    %v898 = vsel %vm783, %v891, 0
    %900 = vmatprep.subr.mxu0 0.0
    %901 = vmatpush1.msra.mxu0 0.0
    %902 = vmatprep.subr.mxu0 0.0
    %903 = vmatpush1.msra.mxu0 0.0
    %904 = vmatprep.subr.mxu0 0.0
    %905 = vmatpush1.msra.mxu0 0.0
    %906 = vmatprep.subr.mxu0 0.0
    %907 = vmatpush1.msra.mxu0 0.0
    %908 = vmatprep.subr.mxu0 0.0
    %909 = vmatpush1.msra.mxu0 0.0
    %910 = vmatprep.subr.mxu0 0.0
    %911 = vmatpush1.msra.mxu0 0.0
    %912 = vmatprep.subr.mxu0 0.0
    %913 = vmatpush1.msra.mxu0 0.0
    %914 = vmatprep.subr.mxu0 0.0
    %915 = vmatpush1.msra.mxu0 0.0
    %916 = vmatprep.subr.mxu0 0.0
    %917 = vmatpush1.msra.mxu0 %v793
    %918 = vmatprep.subr.mxu0 0.0
    %919 = vmatpush1.msra.mxu0 %v766
    %920 = vmatprep.subr.mxu0 0.0
    %921 = vmatpush1.msra.mxu0 %v765
    %922 = vmatprep.subr.mxu0 0.0
    %923 = vmatpush1.msra.mxu0 %v764
    %924 = vmatprep.subr.mxu0 0.0
    %925 = vmatpush1.msra.mxu0 %v763
    %926 = vmatprep.subr.mxu0 0.0
    %927 = vmatpush1.msra.mxu0 %v762
    %928 = vmatprep.subr.mxu0 0.0
    %929 = vmatpush1.msra.mxu0 %v761
    %930 = vmatprep.subr.mxu0 0.0
    %931 = vmatpush1.msra.mxu0 %v760
    %932 = vmatprep.subr.mxu0 0.0
    %933 = vmatpush2.msra.mxu0 0.0
    %934 = vmatprep.subr.mxu0 0.0
    %935 = vmatpush2.msra.mxu0 0.0
    %936 = vmatprep.subr.mxu0 0.0
    %937 = vmatpush2.msra.mxu0 0.0
    %938 = vmatprep.subr.mxu0 0.0
    %939 = vmatpush2.msra.mxu0 0.0
    %940 = vmatprep.subr.mxu0 0.0
    %941 = vmatpush2.msra.mxu0 0.0
    %942 = vmatprep.subr.mxu0 0.0
    %943 = vmatpush2.msra.mxu0 0.0
    %944 = vmatprep.subr.mxu0 0.0
    %945 = vmatpush2.msra.mxu0 0.0
    %946 = vmatprep.subr.mxu0 0.0
    %947 = vmatpush2.msra.mxu0 0.0
    %948 = vmatprep.subr.mxu0 0.0
    %949 = vmatpush2.msra.mxu0 0.0
    %950 = vmatprep.subr.mxu0 0.0
    %951 = vmatpush2.msra.mxu0 0.0
    %952 = vmatprep.subr.mxu0 0.0
    %953 = vmatpush2.msra.mxu0 0.0
    %954 = vmatprep.subr.mxu0 0.0
    %955 = vmatpush2.msra.mxu0 0.0
    %956 = vmatprep.subr.mxu0 0.0
    %957 = vmatpush2.msra.mxu0 0.0
    %958 = vmatprep.subr.mxu0 0.0
    %959 = vmatpush2.msra.mxu0 0.0
    %960 = vmatprep.subr.mxu0 0.0
    %961 = vmatpush2.msra.mxu0 0.0
    %962 = vmatprep.subr.mxu0 0.0
    %963 = vmatpush2.msra.mxu0 0.0
    %964 = vmatprep.mubr.f32.mxu0 0.0
    %965 = vmatmul.mubr.f32.gmra.mxu0 %v892
    %v966 = vpop.f32.mrf.mxu0
    %v967 = vadd.f32 0.0, %v966
    %v968 = vpop.f32.mrf.mxu0
    %969 = vmatprep.mubr.f32.mxu0 0.0
    %970 = vmatmul.mubr.f32.gmra.mxu0 %v894
    %v971 = vpop.f32.mrf.mxu0
    %v972 = vadd.f32 0.0, %v971
    %v973 = vpop.f32.mrf.mxu0
    %974 = vmatprep.mubr.f32.mxu0 0.0
    %975 = vmatmul.mubr.f32.gmra.mxu0 %v896
    %v976 = vpop.f32.mrf.mxu0
    %v977 = vadd.f32 0.0, %v976
    %v978 = vpop.f32.mrf.mxu0
    %979 = vmatprep.mubr.f32.mxu0 0.0
    %980 = vmatmul.mubr.f32.gmra.mxu0 %v898
    %v981 = vpop.f32.mrf.mxu0
    %v982 = vadd.f32 0.0, %v981
    %v983 = vpop.f32.mrf.mxu0
    %984 = vdwg.mxu0
    %989 = vrot.lane.b32.xlu0 %v967, 32
    %v990 = vpop.permute.xlu0 %989
    %991 = vrot.lane.b32.xlu0 %v972, 32
    %v992 = vpop.permute.xlu0 %991
    %993 = vrot.lane.b32.xlu0 %v977, 32
    %v994 = vpop.permute.xlu0 %993
    %995 = vrot.lane.b32.xlu0 %v982, 32
    %v996 = vpop.permute.xlu0 %995
    %vm1001 = vcmask 261120
    %v1002 = vsel %vm1001, %v862, %v990
    %v1003 = vsel %vm1001, %v867, %v992
    %v1004 = vsel %vm1001, %v872, %v994
    %v1005 = vsel %vm1001, %v877, %v996
    %1007 = vset.pattern.permute.xlu0 0
    %1008 = vperm.xlu0 %1007, %v323
    %v1009 = vpop.permute.xlu0 %1008
    %1012 = vset.pattern.permute.xlu0 0
    %1013 = vperm.xlu0 %1012, %v324
    %v1014 = vpop.permute.xlu0 %1013
    %v1017 = vsel %vm1001, %v325, 0
    %v1020 = vsel %vm1001, %v326, 0
    %1022 = vmatprep.subr.mxu0 0.0
    %1023 = vmatpush1.msra.mxu0 0.0
    %1024 = vmatprep.subr.mxu0 0.0
    %1025 = vmatpush1.msra.mxu0 0.0
    %1026 = vmatprep.subr.mxu0 0.0
    %1027 = vmatpush1.msra.mxu0 0.0
    %1028 = vmatprep.subr.mxu0 0.0
    %1029 = vmatpush1.msra.mxu0 0.0
    %1030 = vmatprep.subr.mxu0 0.0
    %1031 = vmatpush1.msra.mxu0 0.0
    %1032 = vmatprep.subr.mxu0 0.0
    %1033 = vmatpush1.msra.mxu0 0.0
    %1034 = vmatprep.subr.mxu0 0.0
    %1035 = vmatpush1.msra.mxu0 0.0
    %1036 = vmatprep.subr.mxu0 0.0
    %1037 = vmatpush1.msra.mxu0 0.0
    %1038 = vmatprep.subr.mxu0 0.0
    %1039 = vmatpush1.msra.mxu0 0.0
    %1040 = vmatprep.subr.mxu0 0.0
    %1041 = vmatpush1.msra.mxu0 0.0
    %1042 = vmatprep.subr.mxu0 0.0
    %1043 = vmatpush1.msra.mxu0 0.0
    %1044 = vmatprep.subr.mxu0 0.0
    %1045 = vmatpush1.msra.mxu0 0.0
    %1046 = vmatprep.subr.mxu0 0.0
    %1047 = vmatpush1.msra.mxu0 %v1005
    %1048 = vmatprep.subr.mxu0 0.0
    %1049 = vmatpush1.msra.mxu0 %v1004
    %1050 = vmatprep.subr.mxu0 0.0
    %1051 = vmatpush1.msra.mxu0 %v1003
    %1052 = vmatprep.subr.mxu0 0.0
    %1053 = vmatpush1.msra.mxu0 %v1002
    %1054 = vmatprep.subr.mxu0 0.0
    %1055 = vmatpush2.msra.mxu0 0.0
    %1056 = vmatprep.subr.mxu0 0.0
    %1057 = vmatpush2.msra.mxu0 0.0
    %1058 = vmatprep.subr.mxu0 0.0
    %1059 = vmatpush2.msra.mxu0 0.0
    %1060 = vmatprep.subr.mxu0 0.0
    %1061 = vmatpush2.msra.mxu0 0.0
    %1062 = vmatprep.subr.mxu0 0.0
    %1063 = vmatpush2.msra.mxu0 0.0
    %1064 = vmatprep.subr.mxu0 0.0
    %1065 = vmatpush2.msra.mxu0 0.0
    %1066 = vmatprep.subr.mxu0 0.0
    %1067 = vmatpush2.msra.mxu0 0.0
    %1068 = vmatprep.subr.mxu0 0.0
    %1069 = vmatpush2.msra.mxu0 0.0
    %1070 = vmatprep.subr.mxu0 0.0
    %1071 = vmatpush2.msra.mxu0 0.0
    %1072 = vmatprep.subr.mxu0 0.0
    %1073 = vmatpush2.msra.mxu0 0.0
    %1074 = vmatprep.subr.mxu0 0.0
    %1075 = vmatpush2.msra.mxu0 0.0
    %1076 = vmatprep.subr.mxu0 0.0
    %1077 = vmatpush2.msra.mxu0 0.0
    %1078 = vmatprep.subr.mxu0 0.0
    %1079 = vmatpush2.msra.mxu0 0.0
    %1080 = vmatprep.subr.mxu0 0.0
    %1081 = vmatpush2.msra.mxu0 0.0
    %1082 = vmatprep.subr.mxu0 0.0
    %1083 = vmatpush2.msra.mxu0 0.0
    %1084 = vmatprep.subr.mxu0 0.0
    %1085 = vmatpush2.msra.mxu0 0.0
    %1086 = vmatprep.mubr.f32.mxu0 0.0
    %1087 = vmatmul.mubr.f32.gmra.mxu0 %v1017
    %v1088 = vpop.f32.mrf.mxu0
    %v1089 = vadd.f32 %v1009, %v1088
    %v1090 = vpop.f32.mrf.mxu0
    %1091 = vmatprep.mubr.f32.mxu0 0.0
    %1092 = vmatmul.mubr.f32.gmra.mxu0 %v1020
    %v1093 = vpop.f32.mrf.mxu0
    %v1094 = vadd.f32 %v1014, %v1093
    %v1095 = vpop.f32.mrf.mxu0
    %1096 = vdwg.mxu0
    %vm1097 = vcmp.ge.f32.partialorder %v1089, 0.0
    %vm1098 = vcmp.ge.f32.partialorder %v1094, 0.0
    %v1099 = vmul.f32 %v1089, 0.1
    %v1100 = vmul.f32 %v1094, 0.1
    %v1101 = vsel %vm1097, %v1089, %v1099
    %v1102 = vsel %vm1098, %v1094, %v1100
    %vm1103 = vcmp.ge.f32.partialorder %v546, 0.0
    %vm1104 = vcmp.ge.f32.partialorder %v551, 0.0
    %vm1105 = vcmp.ge.f32.partialorder %v556, 0.0
    %vm1106 = vcmp.ge.f32.partialorder %v561, 0.0
    %v1107 = vmul.f32 %v546, 0.1
    %v1108 = vmul.f32 %v551, 0.1
    %v1109 = vmul.f32 %v556, 0.1
    %v1110 = vmul.f32 %v561, 0.1
    %v1111 = vsel %vm1103, %v546, %v1107
    %v1112 = vsel %vm1104, %v551, %v1108
    %v1113 = vsel %vm1105, %v556, %v1109
    %v1114 = vsel %vm1106, %v561, %v1110
    %v1115 = vmul.u32 %v733, 4
    %vm1116 = vcmp.eq.s32.totalorder %v742, %v1115
    %v1117 = vsel %vm1116, 1, 0
    %v1118 = vcvt.s32.f32 %v1117
    %v1120 = vsel %vm358, %v1111, 0
    %v1123 = vsel %vm358, %v1112, 0
    %v1126 = vsel %vm358, %v1113, 0
    %v1129 = vsel %vm358, %v1114, 0
    %1131 = vmatprep.subr.mxu0 0.0
    %1132 = vmatpush1.msra.mxu0 0.0
    %1133 = vmatprep.subr.mxu0 0.0
    %1134 = vmatpush1.msra.mxu0 0.0
    %1135 = vmatprep.subr.mxu0 0.0
    %1136 = vmatpush1.msra.mxu0 0.0
    %1137 = vmatprep.subr.mxu0 0.0
    %1138 = vmatpush1.msra.mxu0 0.0
    %1139 = vmatprep.subr.mxu0 0.0
    %1140 = vmatpush1.msra.mxu0 0.0
    %1141 = vmatprep.subr.mxu0 0.0
    %1142 = vmatpush1.msra.mxu0 0.0
    %1143 = vmatprep.subr.mxu0 0.0
    %1144 = vmatpush1.msra.mxu0 0.0
    %1145 = vmatprep.subr.mxu0 0.0
    %1146 = vmatpush1.msra.mxu0 0.0
    %1147 = vmatprep.subr.mxu0 0.0
    %1148 = vmatpush1.msra.mxu0 0.0
    %1149 = vmatprep.subr.mxu0 0.0
    %1150 = vmatpush1.msra.mxu0 0.0
    %1151 = vmatprep.subr.mxu0 0.0
    %1152 = vmatpush1.msra.mxu0 0.0
    %1153 = vmatprep.subr.mxu0 0.0
    %1154 = vmatpush1.msra.mxu0 0.0
    %1155 = vmatprep.subr.mxu0 0.0
    %1156 = vmatpush1.msra.mxu0 0.0
    %1157 = vmatprep.subr.mxu0 0.0
    %1158 = vmatpush1.msra.mxu0 0.0
    %1159 = vmatprep.subr.mxu0 0.0
    %1160 = vmatpush1.msra.mxu0 0.0
    %1161 = vmatprep.subr.mxu0 0.0
    %1162 = vmatpush1.msra.mxu0 %v1118
    %1163 = vmatprep.subr.mxu0 0.0
    %1164 = vmatpush2.msra.mxu0 0.0
    %1165 = vmatprep.subr.mxu0 0.0
    %1166 = vmatpush2.msra.mxu0 0.0
    %1167 = vmatprep.subr.mxu0 0.0
    %1168 = vmatpush2.msra.mxu0 0.0
    %1169 = vmatprep.subr.mxu0 0.0
    %1170 = vmatpush2.msra.mxu0 0.0
    %1171 = vmatprep.subr.mxu0 0.0
    %1172 = vmatpush2.msra.mxu0 0.0
    %1173 = vmatprep.subr.mxu0 0.0
    %1174 = vmatpush2.msra.mxu0 0.0
    %1175 = vmatprep.subr.mxu0 0.0
    %1176 = vmatpush2.msra.mxu0 0.0
    %1177 = vmatprep.subr.mxu0 0.0
    %1178 = vmatpush2.msra.mxu0 0.0
    %1179 = vmatprep.subr.mxu0 0.0
    %1180 = vmatpush2.msra.mxu0 0.0
    %1181 = vmatprep.subr.mxu0 0.0
    %1182 = vmatpush2.msra.mxu0 0.0
    %1183 = vmatprep.subr.mxu0 0.0
    %1184 = vmatpush2.msra.mxu0 0.0
    %1185 = vmatprep.subr.mxu0 0.0
    %1186 = vmatpush2.msra.mxu0 0.0
    %1187 = vmatprep.subr.mxu0 0.0
    %1188 = vmatpush2.msra.mxu0 0.0
    %1189 = vmatprep.subr.mxu0 0.0
    %1190 = vmatpush2.msra.mxu0 0.0
    %1191 = vmatprep.subr.mxu0 0.0
    %1192 = vmatpush2.msra.mxu0 0.0
    %1193 = vmatprep.subr.mxu0 0.0
    %1194 = vmatpush2.msra.mxu0 0.0
    %1195 = vmatprep.mubr.f32.mxu0 0.0
    %1196 = vmatmul.mubr.f32.gmra.mxu0 %v1120
    %v1197 = vpop.f32.mrf.mxu0
    %v1198 = vadd.f32 0.0, %v1197
    %v1199 = vpop.f32.mrf.mxu0
    %1200 = vmatprep.mubr.f32.mxu0 0.0
    %1201 = vmatmul.mubr.f32.gmra.mxu0 %v1123
    %v1202 = vpop.f32.mrf.mxu0
    %v1203 = vadd.f32 0.0, %v1202
    %v1204 = vpop.f32.mrf.mxu0
    %1205 = vmatprep.mubr.f32.mxu0 0.0
    %1206 = vmatmul.mubr.f32.gmra.mxu0 %v1126
    %v1207 = vpop.f32.mrf.mxu0
    %v1208 = vadd.f32 0.0, %v1207
    %v1209 = vpop.f32.mrf.mxu0
    %1210 = vmatprep.mubr.f32.mxu0 0.0
    %1211 = vmatmul.mubr.f32.gmra.mxu0 %v1129
    %v1212 = vpop.f32.mrf.mxu0
    %v1213 = vadd.f32 0.0, %v1212
    %v1214 = vpop.f32.mrf.mxu0
    %1215 = vdwg.mxu0
    %1220 = vrot.lane.b32.xlu0 %v1198, 5
    %v1221 = vpop.permute.xlu0 %1220
    %1222 = vrot.lane.b32.xlu0 %v1203, 5
    %v1223 = vpop.permute.xlu0 %1222
    %1224 = vrot.lane.b32.xlu0 %v1208, 5
    %v1225 = vpop.permute.xlu0 %1224
    %1226 = vrot.lane.b32.xlu0 %v1213, 5
    %v1227 = vpop.permute.xlu0 %1226
    %vm1232 = vcmask 39936
    %v1233 = vsel %vm1232, 0.0, %v1221
    %v1234 = vsel %vm1232, 0.0, %v1223
    %v1235 = vsel %vm1232, 0.0, %v1225
    %v1236 = vsel %vm1232, 0.0, %v1227
    %vm1237 = vcmask 277504
    %v1238 = vsel %vm1237, %v1233, 0.0
    %v1239 = vsel %vm1237, %v1234, 0.0
    %v1240 = vsel %vm1237, %v1235, 0.0
    %v1241 = vsel %vm1237, %v1236, 0.0
    %1246 = vrot.lane.b32.xlu0 %v1238, 127
    %v1247 = vpop.permute.xlu0 %1246
    %1248 = vrot.lane.b32.xlu0 %v1239, 127
    %v1249 = vpop.permute.xlu0 %1248
    %1250 = vrot.lane.b32.xlu0 %v1240, 127
    %v1251 = vpop.permute.xlu0 %1250
    %1252 = vrot.lane.b32.xlu0 %v1241, 127
    %v1253 = vpop.permute.xlu0 %1252
    %1258 = vrot.lane.b32.xlu0 %v1238, 126
    %v1259 = vpop.permute.xlu0 %1258
    %1260 = vrot.lane.b32.xlu0 %v1239, 126
    %v1261 = vpop.permute.xlu0 %1260
    %1262 = vrot.lane.b32.xlu0 %v1240, 126
    %v1263 = vpop.permute.xlu0 %1262
    %1264 = vrot.lane.b32.xlu0 %v1241, 126
    %v1265 = vpop.permute.xlu0 %1264
    %1270 = vrot.lane.b32.xlu0 %v1238, 125
    %v1271 = vpop.permute.xlu0 %1270
    %1272 = vrot.lane.b32.xlu0 %v1239, 125
    %v1273 = vpop.permute.xlu0 %1272
    %1274 = vrot.lane.b32.xlu0 %v1240, 125
    %v1275 = vpop.permute.xlu0 %1274
    %1276 = vrot.lane.b32.xlu0 %v1241, 125
    %v1277 = vpop.permute.xlu0 %1276
    %1282 = vrot.lane.b32.xlu0 %v1238, 124
    %v1283 = vpop.permute.xlu0 %1282
    %1284 = vrot.lane.b32.xlu0 %v1239, 124
    %v1285 = vpop.permute.xlu0 %1284
    %1286 = vrot.lane.b32.xlu0 %v1240, 124
    %v1287 = vpop.permute.xlu0 %1286
    %1288 = vrot.lane.b32.xlu0 %v1241, 124
    %v1289 = vpop.permute.xlu0 %1288
    %1294 = vrot.lane.b32.xlu0 %v1238, 123
    %v1295 = vpop.permute.xlu0 %1294
    %1296 = vrot.lane.b32.xlu0 %v1239, 123
    %v1297 = vpop.permute.xlu0 %1296
    %1298 = vrot.lane.b32.xlu0 %v1240, 123
    %v1299 = vpop.permute.xlu0 %1298
    %1300 = vrot.lane.b32.xlu0 %v1241, 123
    %v1301 = vpop.permute.xlu0 %1300
    %1306 = vrot.lane.b32.xlu0 %v1238, 122
    %v1307 = vpop.permute.xlu0 %1306
    %1308 = vrot.lane.b32.xlu0 %v1239, 122
    %v1309 = vpop.permute.xlu0 %1308
    %1310 = vrot.lane.b32.xlu0 %v1240, 122
    %v1311 = vpop.permute.xlu0 %1310
    %1312 = vrot.lane.b32.xlu0 %v1241, 122
    %v1313 = vpop.permute.xlu0 %1312
    %1318 = vrot.lane.b32.xlu0 %v1238, 121
    %v1319 = vpop.permute.xlu0 %1318
    %1320 = vrot.lane.b32.xlu0 %v1239, 121
    %v1321 = vpop.permute.xlu0 %1320
    %1322 = vrot.lane.b32.xlu0 %v1240, 121
    %v1323 = vpop.permute.xlu0 %1322
    %1324 = vrot.lane.b32.xlu0 %v1241, 121
    %v1325 = vpop.permute.xlu0 %1324
    %1330 = vrot.lane.b32.xlu0 %v1111, 120
    %v1331 = vpop.permute.xlu0 %1330
    %1332 = vrot.lane.b32.xlu0 %v1112, 120
    %v1333 = vpop.permute.xlu0 %1332
    %1334 = vrot.lane.b32.xlu0 %v1113, 120
    %v1335 = vpop.permute.xlu0 %1334
    %1336 = vrot.lane.b32.xlu0 %v1114, 120
    %v1337 = vpop.permute.xlu0 %1336
    %v1338 = vsel %vm358, %v1331, 0
    %v1340 = vsel %vm358, %v1333, 0
    %v1342 = vsel %vm358, %v1335, 0
    %v1344 = vsel %vm358, %v1337, 0
    %1346 = vmatprep.subr.mxu0 0.0
    %1347 = vmatpush1.msra.mxu0 0.0
    %1348 = vmatprep.subr.mxu0 0.0
    %1349 = vmatpush1.msra.mxu0 0.0
    %1350 = vmatprep.subr.mxu0 0.0
    %1351 = vmatpush1.msra.mxu0 0.0
    %1352 = vmatprep.subr.mxu0 0.0
    %1353 = vmatpush1.msra.mxu0 0.0
    %1354 = vmatprep.subr.mxu0 0.0
    %1355 = vmatpush1.msra.mxu0 0.0
    %1356 = vmatprep.subr.mxu0 0.0
    %1357 = vmatpush1.msra.mxu0 0.0
    %1358 = vmatprep.subr.mxu0 0.0
    %1359 = vmatpush1.msra.mxu0 0.0
    %1360 = vmatprep.subr.mxu0 0.0
    %1361 = vmatpush1.msra.mxu0 0.0
    %1362 = vmatprep.subr.mxu0 0.0
    %1363 = vmatpush1.msra.mxu0 0.0
    %1364 = vmatprep.subr.mxu0 0.0
    %1365 = vmatpush1.msra.mxu0 0.0
    %1366 = vmatprep.subr.mxu0 0.0
    %1367 = vmatpush1.msra.mxu0 0.0
    %1368 = vmatprep.subr.mxu0 0.0
    %1369 = vmatpush1.msra.mxu0 0.0
    %1370 = vmatprep.subr.mxu0 0.0
    %1371 = vmatpush1.msra.mxu0 0.0
    %1372 = vmatprep.subr.mxu0 0.0
    %1373 = vmatpush1.msra.mxu0 0.0
    %1374 = vmatprep.subr.mxu0 0.0
    %1375 = vmatpush1.msra.mxu0 0.0
    %1376 = vmatprep.subr.mxu0 0.0
    %1377 = vmatpush1.msra.mxu0 %v1118
    %1378 = vmatprep.subr.mxu0 0.0
    %1379 = vmatpush2.msra.mxu0 0.0
    %1380 = vmatprep.subr.mxu0 0.0
    %1381 = vmatpush2.msra.mxu0 0.0
    %1382 = vmatprep.subr.mxu0 0.0
    %1383 = vmatpush2.msra.mxu0 0.0
    %1384 = vmatprep.subr.mxu0 0.0
    %1385 = vmatpush2.msra.mxu0 0.0
    %1386 = vmatprep.subr.mxu0 0.0
    %1387 = vmatpush2.msra.mxu0 0.0
    %1388 = vmatprep.subr.mxu0 0.0
    %1389 = vmatpush2.msra.mxu0 0.0
    %1390 = vmatprep.subr.mxu0 0.0
    %1391 = vmatpush2.msra.mxu0 0.0
    %1392 = vmatprep.subr.mxu0 0.0
    %1393 = vmatpush2.msra.mxu0 0.0
    %1394 = vmatprep.subr.mxu0 0.0
    %1395 = vmatpush2.msra.mxu0 0.0
    %1396 = vmatprep.subr.mxu0 0.0
    %1397 = vmatpush2.msra.mxu0 0.0
    %1398 = vmatprep.subr.mxu0 0.0
    %1399 = vmatpush2.msra.mxu0 0.0
    %1400 = vmatprep.subr.mxu0 0.0
    %1401 = vmatpush2.msra.mxu0 0.0
    %1402 = vmatprep.subr.mxu0 0.0
    %1403 = vmatpush2.msra.mxu0 0.0
    %1404 = vmatprep.subr.mxu0 0.0
    %1405 = vmatpush2.msra.mxu0 0.0
    %1406 = vmatprep.subr.mxu0 0.0
    %1407 = vmatpush2.msra.mxu0 0.0
    %1408 = vmatprep.subr.mxu0 0.0
    %1409 = vmatpush2.msra.mxu0 0.0
    %1410 = vmatprep.mubr.f32.mxu0 0.0
    %1411 = vmatmul.mubr.f32.gmra.mxu0 %v1338
    %v1412 = vpop.f32.mrf.mxu0
    %v1413 = vadd.f32 0.0, %v1412
    %v1414 = vpop.f32.mrf.mxu0
    %1415 = vmatprep.mubr.f32.mxu0 0.0
    %1416 = vmatmul.mubr.f32.gmra.mxu0 %v1340
    %v1417 = vpop.f32.mrf.mxu0
    %v1418 = vadd.f32 0.0, %v1417
    %v1419 = vpop.f32.mrf.mxu0
    %1420 = vmatprep.mubr.f32.mxu0 0.0
    %1421 = vmatmul.mubr.f32.gmra.mxu0 %v1342
    %v1422 = vpop.f32.mrf.mxu0
    %v1423 = vadd.f32 0.0, %v1422
    %v1424 = vpop.f32.mrf.mxu0
    %1425 = vmatprep.mubr.f32.mxu0 0.0
    %1426 = vmatmul.mubr.f32.gmra.mxu0 %v1344
    %v1427 = vpop.f32.mrf.mxu0
    %v1428 = vadd.f32 0.0, %v1427
    %v1429 = vpop.f32.mrf.mxu0
    %1430 = vdwg.mxu0
    %1435 = vrot.lane.b32.xlu0 %v1413, 5
    %v1436 = vpop.permute.xlu0 %1435
    %1437 = vrot.lane.b32.xlu0 %v1418, 5
    %v1438 = vpop.permute.xlu0 %1437
    %1439 = vrot.lane.b32.xlu0 %v1423, 5
    %v1440 = vpop.permute.xlu0 %1439
    %1441 = vrot.lane.b32.xlu0 %v1428, 5
    %v1442 = vpop.permute.xlu0 %1441
    %v1447 = vsel %vm1232, 0.0, %v1436
    %v1448 = vsel %vm1232, 0.0, %v1438
    %v1449 = vsel %vm1232, 0.0, %v1440
    %v1450 = vsel %vm1232, 0.0, %v1442
    %v1451 = vsel %vm1237, %v1447, 0.0
    %v1452 = vsel %vm1237, %v1448, 0.0
    %v1453 = vsel %vm1237, %v1449, 0.0
    %v1454 = vsel %vm1237, %v1450, 0.0
    %1459 = vrot.lane.b32.xlu0 %v1451, 127
    %v1460 = vpop.permute.xlu0 %1459
    %1461 = vrot.lane.b32.xlu0 %v1452, 127
    %v1462 = vpop.permute.xlu0 %1461
    %1463 = vrot.lane.b32.xlu0 %v1453, 127
    %v1464 = vpop.permute.xlu0 %1463
    %1465 = vrot.lane.b32.xlu0 %v1454, 127
    %v1466 = vpop.permute.xlu0 %1465
    %1467 = vrot.lane.b32.xlu0 %v1451, 126
    %v1468 = vpop.permute.xlu0 %1467
    %1469 = vrot.lane.b32.xlu0 %v1452, 126
    %v1470 = vpop.permute.xlu0 %1469
    %1471 = vrot.lane.b32.xlu0 %v1453, 126
    %v1472 = vpop.permute.xlu0 %1471
    %1473 = vrot.lane.b32.xlu0 %v1454, 126
    %v1474 = vpop.permute.xlu0 %1473
    %1475 = vrot.lane.b32.xlu0 %v1451, 125
    %v1476 = vpop.permute.xlu0 %1475
    %1477 = vrot.lane.b32.xlu0 %v1452, 125
    %v1478 = vpop.permute.xlu0 %1477
    %1479 = vrot.lane.b32.xlu0 %v1453, 125
    %v1480 = vpop.permute.xlu0 %1479
    %1481 = vrot.lane.b32.xlu0 %v1454, 125
    %v1482 = vpop.permute.xlu0 %1481
    %1483 = vrot.lane.b32.xlu0 %v1451, 124
    %v1484 = vpop.permute.xlu0 %1483
    %1485 = vrot.lane.b32.xlu0 %v1452, 124
    %v1486 = vpop.permute.xlu0 %1485
    %1487 = vrot.lane.b32.xlu0 %v1453, 124
    %v1488 = vpop.permute.xlu0 %1487
    %1489 = vrot.lane.b32.xlu0 %v1454, 124
    %v1490 = vpop.permute.xlu0 %1489
    %1491 = vrot.lane.b32.xlu0 %v1451, 123
    %v1492 = vpop.permute.xlu0 %1491
    %1493 = vrot.lane.b32.xlu0 %v1452, 123
    %v1494 = vpop.permute.xlu0 %1493
    %1495 = vrot.lane.b32.xlu0 %v1453, 123
    %v1496 = vpop.permute.xlu0 %1495
    %1497 = vrot.lane.b32.xlu0 %v1454, 123
    %v1498 = vpop.permute.xlu0 %1497
    %1499 = vrot.lane.b32.xlu0 %v1451, 122
    %v1500 = vpop.permute.xlu0 %1499
    %1501 = vrot.lane.b32.xlu0 %v1452, 122
    %v1502 = vpop.permute.xlu0 %1501
    %1503 = vrot.lane.b32.xlu0 %v1453, 122
    %v1504 = vpop.permute.xlu0 %1503
    %1505 = vrot.lane.b32.xlu0 %v1454, 122
    %v1506 = vpop.permute.xlu0 %1505
    %1507 = vrot.lane.b32.xlu0 %v1451, 121
    %v1508 = vpop.permute.xlu0 %1507
    %1509 = vrot.lane.b32.xlu0 %v1452, 121
    %v1510 = vpop.permute.xlu0 %1509
    %1511 = vrot.lane.b32.xlu0 %v1453, 121
    %v1512 = vpop.permute.xlu0 %1511
    %1513 = vrot.lane.b32.xlu0 %v1454, 121
    %v1514 = vpop.permute.xlu0 %1513
    %1515 = vrot.lane.b32.xlu0 %v1451, 32
    %v1516 = vpop.permute.xlu0 %1515
    %1517 = vrot.lane.b32.xlu0 %v1452, 32
    %v1518 = vpop.permute.xlu0 %1517
    %1519 = vrot.lane.b32.xlu0 %v1453, 32
    %v1520 = vpop.permute.xlu0 %1519
    %1521 = vrot.lane.b32.xlu0 %v1454, 32
    %v1522 = vpop.permute.xlu0 %1521
    %1523 = vrot.lane.b32.xlu0 %v1460, 32
    %v1524 = vpop.permute.xlu0 %1523
    %1525 = vrot.lane.b32.xlu0 %v1462, 32
    %v1526 = vpop.permute.xlu0 %1525
    %1527 = vrot.lane.b32.xlu0 %v1464, 32
    %v1528 = vpop.permute.xlu0 %1527
    %1529 = vrot.lane.b32.xlu0 %v1466, 32
    %v1530 = vpop.permute.xlu0 %1529
    %1531 = vrot.lane.b32.xlu0 %v1468, 32
    %v1532 = vpop.permute.xlu0 %1531
    %1533 = vrot.lane.b32.xlu0 %v1470, 32
    %v1534 = vpop.permute.xlu0 %1533
    %1535 = vrot.lane.b32.xlu0 %v1472, 32
    %v1536 = vpop.permute.xlu0 %1535
    %1537 = vrot.lane.b32.xlu0 %v1474, 32
    %v1538 = vpop.permute.xlu0 %1537
    %1539 = vrot.lane.b32.xlu0 %v1476, 32
    %v1540 = vpop.permute.xlu0 %1539
    %1541 = vrot.lane.b32.xlu0 %v1478, 32
    %v1542 = vpop.permute.xlu0 %1541
    %1543 = vrot.lane.b32.xlu0 %v1480, 32
    %v1544 = vpop.permute.xlu0 %1543
    %1545 = vrot.lane.b32.xlu0 %v1482, 32
    %v1546 = vpop.permute.xlu0 %1545
    %1547 = vrot.lane.b32.xlu0 %v1484, 32
    %v1548 = vpop.permute.xlu0 %1547
    %1549 = vrot.lane.b32.xlu0 %v1486, 32
    %v1550 = vpop.permute.xlu0 %1549
    %1551 = vrot.lane.b32.xlu0 %v1488, 32
    %v1552 = vpop.permute.xlu0 %1551
    %1553 = vrot.lane.b32.xlu0 %v1490, 32
    %v1554 = vpop.permute.xlu0 %1553
    %1555 = vrot.lane.b32.xlu0 %v1492, 32
    %v1556 = vpop.permute.xlu0 %1555
    %1557 = vrot.lane.b32.xlu0 %v1494, 32
    %v1558 = vpop.permute.xlu0 %1557
    %1559 = vrot.lane.b32.xlu0 %v1496, 32
    %v1560 = vpop.permute.xlu0 %1559
    %1561 = vrot.lane.b32.xlu0 %v1498, 32
    %v1562 = vpop.permute.xlu0 %1561
    %1563 = vrot.lane.b32.xlu0 %v1500, 32
    %v1564 = vpop.permute.xlu0 %1563
    %1565 = vrot.lane.b32.xlu0 %v1502, 32
    %v1566 = vpop.permute.xlu0 %1565
    %1567 = vrot.lane.b32.xlu0 %v1504, 32
    %v1568 = vpop.permute.xlu0 %1567
    %1569 = vrot.lane.b32.xlu0 %v1506, 32
    %v1570 = vpop.permute.xlu0 %1569
    %1571 = vrot.lane.b32.xlu0 %v1508, 32
    %v1572 = vpop.permute.xlu0 %1571
    %1573 = vrot.lane.b32.xlu0 %v1510, 32
    %v1574 = vpop.permute.xlu0 %1573
    %1575 = vrot.lane.b32.xlu0 %v1512, 32
    %v1576 = vpop.permute.xlu0 %1575
    %1577 = vrot.lane.b32.xlu0 %v1514, 32
    %v1578 = vpop.permute.xlu0 %1577
    %v1611 = vsel %vm1001, %v1238, %v1516
    %v1612 = vsel %vm1001, %v1239, %v1518
    %v1613 = vsel %vm1001, %v1240, %v1520
    %v1614 = vsel %vm1001, %v1241, %v1522
    %v1615 = vsel %vm1001, %v1247, %v1524
    %v1616 = vsel %vm1001, %v1249, %v1526
    %v1617 = vsel %vm1001, %v1251, %v1528
    %v1618 = vsel %vm1001, %v1253, %v1530
    %v1619 = vsel %vm1001, %v1259, %v1532
    %v1620 = vsel %vm1001, %v1261, %v1534
    %v1621 = vsel %vm1001, %v1263, %v1536
    %v1622 = vsel %vm1001, %v1265, %v1538
    %v1623 = vsel %vm1001, %v1271, %v1540
    %v1624 = vsel %vm1001, %v1273, %v1542
    %v1625 = vsel %vm1001, %v1275, %v1544
    %v1626 = vsel %vm1001, %v1277, %v1546
    %v1627 = vsel %vm1001, %v1283, %v1548
    %v1628 = vsel %vm1001, %v1285, %v1550
    %v1629 = vsel %vm1001, %v1287, %v1552
    %v1630 = vsel %vm1001, %v1289, %v1554
    %v1631 = vsel %vm1001, %v1295, %v1556
    %v1632 = vsel %vm1001, %v1297, %v1558
    %v1633 = vsel %vm1001, %v1299, %v1560
    %v1634 = vsel %vm1001, %v1301, %v1562
    %v1635 = vsel %vm1001, %v1307, %v1564
    %v1636 = vsel %vm1001, %v1309, %v1566
    %v1637 = vsel %vm1001, %v1311, %v1568
    %v1638 = vsel %vm1001, %v1313, %v1570
    %v1639 = vsel %vm1001, %v1319, %v1572
    %v1640 = vsel %vm1001, %v1321, %v1574
    %v1641 = vsel %vm1001, %v1323, %v1576
    %v1642 = vsel %vm1001, %v1325, %v1578
    %1644 = vset.pattern.permute.xlu0 0
    %1645 = vperm.xlu0 %1644, %v331
    %v1646 = vpop.permute.xlu0 %1645
    %1649 = vset.pattern.permute.xlu0 0
    %1650 = vperm.xlu0 %1649, %v332
    %v1651 = vpop.permute.xlu0 %1650
    %1653 = vmatprep.subr.mxu0 0.0
    %1654 = vmatpush1.msra.mxu0 %v1626
    %1655 = vmatprep.subr.mxu0 0.0
    %1656 = vmatpush1.msra.mxu0 %v1625
    %1657 = vmatprep.subr.mxu0 0.0
    %1658 = vmatpush1.msra.mxu0 %v1624
    %1659 = vmatprep.subr.mxu0 0.0
    %1660 = vmatpush1.msra.mxu0 %v1623
    %1661 = vmatprep.subr.mxu0 0.0
    %1662 = vmatpush1.msra.mxu0 %v1622
    %1663 = vmatprep.subr.mxu0 0.0
    %1664 = vmatpush1.msra.mxu0 %v1621
    %1665 = vmatprep.subr.mxu0 0.0
    %1666 = vmatpush1.msra.mxu0 %v1620
    %1667 = vmatprep.subr.mxu0 0.0
    %1668 = vmatpush1.msra.mxu0 %v1619
    %1669 = vmatprep.subr.mxu0 0.0
    %1670 = vmatpush1.msra.mxu0 %v1618
    %1671 = vmatprep.subr.mxu0 0.0
    %1672 = vmatpush1.msra.mxu0 %v1617
    %1673 = vmatprep.subr.mxu0 0.0
    %1674 = vmatpush1.msra.mxu0 %v1616
    %1675 = vmatprep.subr.mxu0 0.0
    %1676 = vmatpush1.msra.mxu0 %v1615
    %1677 = vmatprep.subr.mxu0 0.0
    %1678 = vmatpush1.msra.mxu0 %v1614
    %1679 = vmatprep.subr.mxu0 0.0
    %1680 = vmatpush1.msra.mxu0 %v1613
    %1681 = vmatprep.subr.mxu0 0.0
    %1682 = vmatpush1.msra.mxu0 %v1612
    %1683 = vmatprep.subr.mxu0 0.0
    %1684 = vmatpush1.msra.mxu0 %v1611
    %1685 = vmatprep.subr.mxu0 0.0
    %1686 = vmatpush2.msra.mxu0 %v1642
    %1687 = vmatprep.subr.mxu0 0.0
    %1688 = vmatpush2.msra.mxu0 %v1641
    %1689 = vmatprep.subr.mxu0 0.0
    %1690 = vmatpush2.msra.mxu0 %v1640
    %1691 = vmatprep.subr.mxu0 0.0
    %1692 = vmatpush2.msra.mxu0 %v1639
    %1693 = vmatprep.subr.mxu0 0.0
    %1694 = vmatpush2.msra.mxu0 %v1638
    %1695 = vmatprep.subr.mxu0 0.0
    %1696 = vmatpush2.msra.mxu0 %v1637
    %1697 = vmatprep.subr.mxu0 0.0
    %1698 = vmatpush2.msra.mxu0 %v1636
    %1699 = vmatprep.subr.mxu0 0.0
    %1700 = vmatpush2.msra.mxu0 %v1635
    %1701 = vmatprep.subr.mxu0 0.0
    %1702 = vmatpush2.msra.mxu0 %v1634
    %1703 = vmatprep.subr.mxu0 0.0
    %1704 = vmatpush2.msra.mxu0 %v1633
    %1705 = vmatprep.subr.mxu0 0.0
    %1706 = vmatpush2.msra.mxu0 %v1632
    %1707 = vmatprep.subr.mxu0 0.0
    %1708 = vmatpush2.msra.mxu0 %v1631
    %1709 = vmatprep.subr.mxu0 0.0
    %1710 = vmatpush2.msra.mxu0 %v1630
    %1711 = vmatprep.subr.mxu0 0.0
    %1712 = vmatpush2.msra.mxu0 %v1629
    %1713 = vmatprep.subr.mxu0 0.0
    %1714 = vmatpush2.msra.mxu0 %v1628
    %1715 = vmatprep.subr.mxu0 0.0
    %1716 = vmatpush2.msra.mxu0 %v1627
    %1717 = vmatprep.mubr.f32.mxu0 %v334
    %1718 = vmatmul.mubr.f32.gmra.mxu0 %v333
    %v1719 = vpop.f32.mrf.mxu0
    %v1720 = vadd.f32 %v1646, %v1719
    %v1721 = vpop.f32.mrf.mxu0
    %1722 = vmatprep.mubr.f32.mxu0 %v336
    %1723 = vmatmul.mubr.f32.gmra.mxu0 %v335
    %v1724 = vpop.f32.mrf.mxu0
    %v1725 = vadd.f32 %v1651, %v1724
    %v1726 = vpop.f32.mrf.mxu0
    %1727 = vdwg.mxu0
    %v1728 = vadd.f32 %v1720, %v1101
    %v1729 = vadd.f32 %v1725, %v1102
    %vm1730 = vcmp.ge.f32.partialorder %v1728, 0.0
    %vm1731 = vcmp.ge.f32.partialorder %v1729, 0.0
    %v1732 = vmul.f32 %v1728, 0.1
    %v1733 = vmul.f32 %v1729, 0.1
    %v1734 = vsel %vm1730, %v1728, %v1732
    %v1735 = vsel %vm1731, %v1729, %v1733
    %v1736 = vlaneseq
    %v1737 = vshrl.u32 %v1736, 7
    %v1738 = vsub.s32 0, %v1737
    %v1739 = vrot.slane %v339, %v1738
    %vm1740 = vcmp.eq.s32.totalorder %v733, %v1739
    %vm1741 = vcmp.eq.s32.totalorder %v734, %v1739
    %vm1742 = vcmp.eq.s32.totalorder %v735, %v1739
    %vm1743 = vcmp.eq.s32.totalorder %v736, %v1739
    %v1744 = vsel %vm1740, 1, 0
    %v1745 = vsel %vm1741, 1, 0
    %v1746 = vsel %vm1742, 1, 0
    %v1747 = vsel %vm1743, 1, 0
    %v1748 = vcvt.s32.f32 %v1744
    %v1749 = vcvt.s32.f32 %v1745
    %v1750 = vcvt.s32.f32 %v1746
    %v1751 = vcvt.s32.f32 %v1747
    %v1753 = vsel %vm1001, %v1734, 0
    %v1756 = vsel %vm1001, %v1735, 0
    %1758 = vmatprep.subr.mxu0 0.0
    %1759 = vmatpush1.msra.mxu0 0.0
    %1760 = vmatprep.subr.mxu0 0.0
    %1761 = vmatpush1.msra.mxu0 0.0
    %1762 = vmatprep.subr.mxu0 0.0
    %1763 = vmatpush1.msra.mxu0 0.0
    %1764 = vmatprep.subr.mxu0 0.0
    %1765 = vmatpush1.msra.mxu0 0.0
    %1766 = vmatprep.subr.mxu0 0.0
    %1767 = vmatpush1.msra.mxu0 0.0
    %1768 = vmatprep.subr.mxu0 0.0
    %1769 = vmatpush1.msra.mxu0 0.0
    %1770 = vmatprep.subr.mxu0 0.0
    %1771 = vmatpush1.msra.mxu0 0.0
    %1772 = vmatprep.subr.mxu0 0.0
    %1773 = vmatpush1.msra.mxu0 0.0
    %1774 = vmatprep.subr.mxu0 0.0
    %1775 = vmatpush1.msra.mxu0 0.0
    %1776 = vmatprep.subr.mxu0 0.0
    %1777 = vmatpush1.msra.mxu0 0.0
    %1778 = vmatprep.subr.mxu0 0.0
    %1779 = vmatpush1.msra.mxu0 0.0
    %1780 = vmatprep.subr.mxu0 0.0
    %1781 = vmatpush1.msra.mxu0 0.0
    %1782 = vmatprep.subr.mxu0 0.0
    %1783 = vmatpush1.msra.mxu0 %v1751
    %1784 = vmatprep.subr.mxu0 0.0
    %1785 = vmatpush1.msra.mxu0 %v1750
    %1786 = vmatprep.subr.mxu0 0.0
    %1787 = vmatpush1.msra.mxu0 %v1749
    %1788 = vmatprep.subr.mxu0 0.0
    %1789 = vmatpush1.msra.mxu0 %v1748
    %1790 = vmatprep.subr.mxu0 0.0
    %1791 = vmatpush2.msra.mxu0 0.0
    %1792 = vmatprep.subr.mxu0 0.0
    %1793 = vmatpush2.msra.mxu0 0.0
    %1794 = vmatprep.subr.mxu0 0.0
    %1795 = vmatpush2.msra.mxu0 0.0
    %1796 = vmatprep.subr.mxu0 0.0
    %1797 = vmatpush2.msra.mxu0 0.0
    %1798 = vmatprep.subr.mxu0 0.0
    %1799 = vmatpush2.msra.mxu0 0.0
    %1800 = vmatprep.subr.mxu0 0.0
    %1801 = vmatpush2.msra.mxu0 0.0
    %1802 = vmatprep.subr.mxu0 0.0
    %1803 = vmatpush2.msra.mxu0 0.0
    %1804 = vmatprep.subr.mxu0 0.0
    %1805 = vmatpush2.msra.mxu0 0.0
    %1806 = vmatprep.subr.mxu0 0.0
    %1807 = vmatpush2.msra.mxu0 0.0
    %1808 = vmatprep.subr.mxu0 0.0
    %1809 = vmatpush2.msra.mxu0 0.0
    %1810 = vmatprep.subr.mxu0 0.0
    %1811 = vmatpush2.msra.mxu0 0.0
    %1812 = vmatprep.subr.mxu0 0.0
    %1813 = vmatpush2.msra.mxu0 0.0
    %1814 = vmatprep.subr.mxu0 0.0
    %1815 = vmatpush2.msra.mxu0 0.0
    %1816 = vmatprep.subr.mxu0 0.0
    %1817 = vmatpush2.msra.mxu0 0.0
    %1818 = vmatprep.subr.mxu0 0.0
    %1819 = vmatpush2.msra.mxu0 0.0
    %1820 = vmatprep.subr.mxu0 0.0
    %1821 = vmatpush2.msra.mxu0 0.0
    %1822 = vmatprep.mubr.f32.mxu0 0.0
    %1823 = vmatmul.mubr.f32.gmra.mxu0 %v1753
    %v1824 = vpop.f32.mrf.mxu0
    %v1825 = vadd.f32 0.0, %v1824
    %v1826 = vpop.f32.mrf.mxu0
    %1827 = vmatprep.mubr.f32.mxu0 0.0
    %1828 = vmatmul.mubr.f32.gmra.mxu0 %v1756
    %v1829 = vpop.f32.mrf.mxu0
    %v1830 = vadd.f32 0.0, %v1829
    %v1831 = vpop.f32.mrf.mxu0
    %1832 = vdwg.mxu0
    %v1833 = vlaneseq
    %v1834 = vshrl.u32 %v1833, 7
    %v1835 = vsub.s32 0, %v1834
    %v1836 = vrot.slane %v341, %v1835
    %vm1837 = vcmp.eq.s32.totalorder %v733, %v1836
    %vm1838 = vcmp.eq.s32.totalorder %v734, %v1836
    %vm1839 = vcmp.eq.s32.totalorder %v735, %v1836
    %vm1840 = vcmp.eq.s32.totalorder %v736, %v1836
    %v1841 = vsel %vm1837, 1, 0
    %v1842 = vsel %vm1838, 1, 0
    %v1843 = vsel %vm1839, 1, 0
    %v1844 = vsel %vm1840, 1, 0
    %v1845 = vcvt.s32.f32 %v1841
    %v1846 = vcvt.s32.f32 %v1842
    %v1847 = vcvt.s32.f32 %v1843
    %v1848 = vcvt.s32.f32 %v1844
    %1849 = vmatprep.subr.mxu0 0.0
    %1850 = vmatpush1.msra.mxu0 0.0
    %1851 = vmatprep.subr.mxu0 0.0
    %1852 = vmatpush1.msra.mxu0 0.0
    %1853 = vmatprep.subr.mxu0 0.0
    %1854 = vmatpush1.msra.mxu0 0.0
    %1855 = vmatprep.subr.mxu0 0.0
    %1856 = vmatpush1.msra.mxu0 0.0
    %1857 = vmatprep.subr.mxu0 0.0
    %1858 = vmatpush1.msra.mxu0 0.0
    %1859 = vmatprep.subr.mxu0 0.0
    %1860 = vmatpush1.msra.mxu0 0.0
    %1861 = vmatprep.subr.mxu0 0.0
    %1862 = vmatpush1.msra.mxu0 0.0
    %1863 = vmatprep.subr.mxu0 0.0
    %1864 = vmatpush1.msra.mxu0 0.0
    %1865 = vmatprep.subr.mxu0 0.0
    %1866 = vmatpush1.msra.mxu0 0.0
    %1867 = vmatprep.subr.mxu0 0.0
    %1868 = vmatpush1.msra.mxu0 0.0
    %1869 = vmatprep.subr.mxu0 0.0
    %1870 = vmatpush1.msra.mxu0 0.0
    %1871 = vmatprep.subr.mxu0 0.0
    %1872 = vmatpush1.msra.mxu0 0.0
    %1873 = vmatprep.subr.mxu0 0.0
    %1874 = vmatpush1.msra.mxu0 %v1848
    %1875 = vmatprep.subr.mxu0 0.0
    %1876 = vmatpush1.msra.mxu0 %v1847
    %1877 = vmatprep.subr.mxu0 0.0
    %1878 = vmatpush1.msra.mxu0 %v1846
    %1879 = vmatprep.subr.mxu0 0.0
    %1880 = vmatpush1.msra.mxu0 %v1845
    %1881 = vmatprep.subr.mxu0 0.0
    %1882 = vmatpush2.msra.mxu0 0.0
    %1883 = vmatprep.subr.mxu0 0.0
    %1884 = vmatpush2.msra.mxu0 0.0
    %1885 = vmatprep.subr.mxu0 0.0
    %1886 = vmatpush2.msra.mxu0 0.0
    %1887 = vmatprep.subr.mxu0 0.0
    %1888 = vmatpush2.msra.mxu0 0.0
    %1889 = vmatprep.subr.mxu0 0.0
    %1890 = vmatpush2.msra.mxu0 0.0
    %1891 = vmatprep.subr.mxu0 0.0
    %1892 = vmatpush2.msra.mxu0 0.0
    %1893 = vmatprep.subr.mxu0 0.0
    %1894 = vmatpush2.msra.mxu0 0.0
    %1895 = vmatprep.subr.mxu0 0.0
    %1896 = vmatpush2.msra.mxu0 0.0
    %1897 = vmatprep.subr.mxu0 0.0
    %1898 = vmatpush2.msra.mxu0 0.0
    %1899 = vmatprep.subr.mxu0 0.0
    %1900 = vmatpush2.msra.mxu0 0.0
    %1901 = vmatprep.subr.mxu0 0.0
    %1902 = vmatpush2.msra.mxu0 0.0
    %1903 = vmatprep.subr.mxu0 0.0
    %1904 = vmatpush2.msra.mxu0 0.0
    %1905 = vmatprep.subr.mxu0 0.0
    %1906 = vmatpush2.msra.mxu0 0.0
    %1907 = vmatprep.subr.mxu0 0.0
    %1908 = vmatpush2.msra.mxu0 0.0
    %1909 = vmatprep.subr.mxu0 0.0
    %1910 = vmatpush2.msra.mxu0 0.0
    %1911 = vmatprep.subr.mxu0 0.0
    %1912 = vmatpush2.msra.mxu0 0.0
    %1913 = vmatprep.mubr.f32.mxu0 0.0
    %1914 = vmatmul.mubr.f32.gmra.mxu0 %v1753
    %v1915 = vpop.f32.mrf.mxu0
    %v1916 = vadd.f32 0.0, %v1915
    %v1917 = vpop.f32.mrf.mxu0
    %1918 = vmatprep.mubr.f32.mxu0 0.0
    %1919 = vmatmul.mubr.f32.gmra.mxu0 %v1756
    %v1920 = vpop.f32.mrf.mxu0
    %v1921 = vadd.f32 0.0, %v1920
    %v1922 = vpop.f32.mrf.mxu0
    %1923 = vdwg.mxu0
    %v1924 = vlaneseq
    %v1925 = vshrl.u32 %v1924, 7
    %v1926 = vsub.s32 0, %v1925
    %v1927 = vrot.slane %v340, %v1926
    %vm1928 = vcmp.eq.s32.totalorder %v733, %v1927
    %vm1929 = vcmp.eq.s32.totalorder %v734, %v1927
    %vm1930 = vcmp.eq.s32.totalorder %v735, %v1927
    %vm1931 = vcmp.eq.s32.totalorder %v736, %v1927
    %v1932 = vsel %vm1928, 1, 0
    %v1933 = vsel %vm1929, 1, 0
    %v1934 = vsel %vm1930, 1, 0
    %v1935 = vsel %vm1931, 1, 0
    %v1936 = vcvt.s32.f32 %v1932
    %v1937 = vcvt.s32.f32 %v1933
    %v1938 = vcvt.s32.f32 %v1934
    %v1939 = vcvt.s32.f32 %v1935
    %1940 = vrot.lane.b32.xlu0 %v1734, 96
    %v1941 = vpop.permute.xlu0 %1940
    %1942 = vrot.lane.b32.xlu0 %v1735, 96
    %v1943 = vpop.permute.xlu0 %1942
    %v1944 = vsel %vm1001, %v1941, 0
    %v1946 = vsel %vm1001, %v1943, 0
    %1948 = vmatprep.subr.mxu0 0.0
    %1949 = vmatpush1.msra.mxu0 0.0
    %1950 = vmatprep.subr.mxu0 0.0
    %1951 = vmatpush1.msra.mxu0 0.0
    %1952 = vmatprep.subr.mxu0 0.0
    %1953 = vmatpush1.msra.mxu0 0.0
    %1954 = vmatprep.subr.mxu0 0.0
    %1955 = vmatpush1.msra.mxu0 0.0
    %1956 = vmatprep.subr.mxu0 0.0
    %1957 = vmatpush1.msra.mxu0 0.0
    %1958 = vmatprep.subr.mxu0 0.0
    %1959 = vmatpush1.msra.mxu0 0.0
    %1960 = vmatprep.subr.mxu0 0.0
    %1961 = vmatpush1.msra.mxu0 0.0
    %1962 = vmatprep.subr.mxu0 0.0
    %1963 = vmatpush1.msra.mxu0 0.0
    %1964 = vmatprep.subr.mxu0 0.0
    %1965 = vmatpush1.msra.mxu0 0.0
    %1966 = vmatprep.subr.mxu0 0.0
    %1967 = vmatpush1.msra.mxu0 0.0
    %1968 = vmatprep.subr.mxu0 0.0
    %1969 = vmatpush1.msra.mxu0 0.0
    %1970 = vmatprep.subr.mxu0 0.0
    %1971 = vmatpush1.msra.mxu0 0.0
    %1972 = vmatprep.subr.mxu0 0.0
    %1973 = vmatpush1.msra.mxu0 %v1939
    %1974 = vmatprep.subr.mxu0 0.0
    %1975 = vmatpush1.msra.mxu0 %v1938
    %1976 = vmatprep.subr.mxu0 0.0
    %1977 = vmatpush1.msra.mxu0 %v1937
    %1978 = vmatprep.subr.mxu0 0.0
    %1979 = vmatpush1.msra.mxu0 %v1936
    %1980 = vmatprep.subr.mxu0 0.0
    %1981 = vmatpush2.msra.mxu0 0.0
    %1982 = vmatprep.subr.mxu0 0.0
    %1983 = vmatpush2.msra.mxu0 0.0
    %1984 = vmatprep.subr.mxu0 0.0
    %1985 = vmatpush2.msra.mxu0 0.0
    %1986 = vmatprep.subr.mxu0 0.0
    %1987 = vmatpush2.msra.mxu0 0.0
    %1988 = vmatprep.subr.mxu0 0.0
    %1989 = vmatpush2.msra.mxu0 0.0
    %1990 = vmatprep.subr.mxu0 0.0
    %1991 = vmatpush2.msra.mxu0 0.0
    %1992 = vmatprep.subr.mxu0 0.0
    %1993 = vmatpush2.msra.mxu0 0.0
    %1994 = vmatprep.subr.mxu0 0.0
    %1995 = vmatpush2.msra.mxu0 0.0
    %1996 = vmatprep.subr.mxu0 0.0
    %1997 = vmatpush2.msra.mxu0 0.0
    %1998 = vmatprep.subr.mxu0 0.0
    %1999 = vmatpush2.msra.mxu0 0.0
    %2000 = vmatprep.subr.mxu0 0.0
    %2001 = vmatpush2.msra.mxu0 0.0
    %2002 = vmatprep.subr.mxu0 0.0
    %2003 = vmatpush2.msra.mxu0 0.0
    %2004 = vmatprep.subr.mxu0 0.0
    %2005 = vmatpush2.msra.mxu0 0.0
    %2006 = vmatprep.subr.mxu0 0.0
    %2007 = vmatpush2.msra.mxu0 0.0
    %2008 = vmatprep.subr.mxu0 0.0
    %2009 = vmatpush2.msra.mxu0 0.0
    %2010 = vmatprep.subr.mxu0 0.0
    %2011 = vmatpush2.msra.mxu0 0.0
    %2012 = vmatprep.mubr.f32.mxu0 0.0
    %2013 = vmatmul.mubr.f32.gmra.mxu0 %v1944
    %v2014 = vpop.f32.mrf.mxu0
    %v2015 = vadd.f32 0.0, %v2014
    %v2016 = vpop.f32.mrf.mxu0
    %2017 = vmatprep.mubr.f32.mxu0 0.0
    %2018 = vmatmul.mubr.f32.gmra.mxu0 %v1946
    %v2019 = vpop.f32.mrf.mxu0
    %v2020 = vadd.f32 0.0, %v2019
    %v2021 = vpop.f32.mrf.mxu0
    %2022 = vdwg.mxu0
    %v2023 = vlaneseq
    %v2024 = vshrl.u32 %v2023, 7
    %v2025 = vsub.s32 0, %v2024
    %v2026 = vrot.slane %v342, %v2025
    %vm2027 = vcmp.eq.s32.totalorder %v733, %v2026
    %vm2028 = vcmp.eq.s32.totalorder %v734, %v2026
    %vm2029 = vcmp.eq.s32.totalorder %v735, %v2026
    %vm2030 = vcmp.eq.s32.totalorder %v736, %v2026
    %v2031 = vsel %vm2027, 1, 0
    %v2032 = vsel %vm2028, 1, 0
    %v2033 = vsel %vm2029, 1, 0
    %v2034 = vsel %vm2030, 1, 0
    %v2035 = vcvt.s32.f32 %v2031
    %v2036 = vcvt.s32.f32 %v2032
    %v2037 = vcvt.s32.f32 %v2033
    %v2038 = vcvt.s32.f32 %v2034
    %2039 = vmatprep.subr.mxu0 0.0
    %2040 = vmatpush1.msra.mxu0 0.0
    %2041 = vmatprep.subr.mxu0 0.0
    %2042 = vmatpush1.msra.mxu0 0.0
    %2043 = vmatprep.subr.mxu0 0.0
    %2044 = vmatpush1.msra.mxu0 0.0
    %2045 = vmatprep.subr.mxu0 0.0
    %2046 = vmatpush1.msra.mxu0 0.0
    %2047 = vmatprep.subr.mxu0 0.0
    %2048 = vmatpush1.msra.mxu0 0.0
    %2049 = vmatprep.subr.mxu0 0.0
    %2050 = vmatpush1.msra.mxu0 0.0
    %2051 = vmatprep.subr.mxu0 0.0
    %2052 = vmatpush1.msra.mxu0 0.0
    %2053 = vmatprep.subr.mxu0 0.0
    %2054 = vmatpush1.msra.mxu0 0.0
    %2055 = vmatprep.subr.mxu0 0.0
    %2056 = vmatpush1.msra.mxu0 0.0
    %2057 = vmatprep.subr.mxu0 0.0
    %2058 = vmatpush1.msra.mxu0 0.0
    %2059 = vmatprep.subr.mxu0 0.0
    %2060 = vmatpush1.msra.mxu0 0.0
    %2061 = vmatprep.subr.mxu0 0.0
    %2062 = vmatpush1.msra.mxu0 0.0
    %2063 = vmatprep.subr.mxu0 0.0
    %2064 = vmatpush1.msra.mxu0 %v2038
    %2065 = vmatprep.subr.mxu0 0.0
    %2066 = vmatpush1.msra.mxu0 %v2037
    %2067 = vmatprep.subr.mxu0 0.0
    %2068 = vmatpush1.msra.mxu0 %v2036
    %2069 = vmatprep.subr.mxu0 0.0
    %2070 = vmatpush1.msra.mxu0 %v2035
    %2071 = vmatprep.subr.mxu0 0.0
    %2072 = vmatpush2.msra.mxu0 0.0
    %2073 = vmatprep.subr.mxu0 0.0
    %2074 = vmatpush2.msra.mxu0 0.0
    %2075 = vmatprep.subr.mxu0 0.0
    %2076 = vmatpush2.msra.mxu0 0.0
    %2077 = vmatprep.subr.mxu0 0.0
    %2078 = vmatpush2.msra.mxu0 0.0
    %2079 = vmatprep.subr.mxu0 0.0
    %2080 = vmatpush2.msra.mxu0 0.0
    %2081 = vmatprep.subr.mxu0 0.0
    %2082 = vmatpush2.msra.mxu0 0.0
    %2083 = vmatprep.subr.mxu0 0.0
    %2084 = vmatpush2.msra.mxu0 0.0
    %2085 = vmatprep.subr.mxu0 0.0
    %2086 = vmatpush2.msra.mxu0 0.0
    %2087 = vmatprep.subr.mxu0 0.0
    %2088 = vmatpush2.msra.mxu0 0.0
    %2089 = vmatprep.subr.mxu0 0.0
    %2090 = vmatpush2.msra.mxu0 0.0
    %2091 = vmatprep.subr.mxu0 0.0
    %2092 = vmatpush2.msra.mxu0 0.0
    %2093 = vmatprep.subr.mxu0 0.0
    %2094 = vmatpush2.msra.mxu0 0.0
    %2095 = vmatprep.subr.mxu0 0.0
    %2096 = vmatpush2.msra.mxu0 0.0
    %2097 = vmatprep.subr.mxu0 0.0
    %2098 = vmatpush2.msra.mxu0 0.0
    %2099 = vmatprep.subr.mxu0 0.0
    %2100 = vmatpush2.msra.mxu0 0.0
    %2101 = vmatprep.subr.mxu0 0.0
    %2102 = vmatpush2.msra.mxu0 0.0
    %2103 = vmatprep.mubr.f32.mxu0 0.0
    %2104 = vmatmul.mubr.f32.gmra.mxu0 %v1944
    %v2105 = vpop.f32.mrf.mxu0
    %v2106 = vadd.f32 0.0, %v2105
    %v2107 = vpop.f32.mrf.mxu0
    %2108 = vmatprep.mubr.f32.mxu0 0.0
    %2109 = vmatmul.mubr.f32.gmra.mxu0 %v1946
    %v2110 = vpop.f32.mrf.mxu0
    %v2111 = vadd.f32 0.0, %v2110
    %v2112 = vpop.f32.mrf.mxu0
    %2113 = vdwg.mxu0
    %2116 = vrot.lane.b32.xlu0 %v2015, 32
    %v2117 = vpop.permute.xlu0 %2116
    %2118 = vrot.lane.b32.xlu0 %v2020, 32
    %v2119 = vpop.permute.xlu0 %2118
    %2124 = vrot.lane.b32.xlu0 %v2106, 32
    %v2125 = vpop.permute.xlu0 %2124
    %2126 = vrot.lane.b32.xlu0 %v2111, 32
    %v2127 = vpop.permute.xlu0 %2126
    %v2130 = vsel %vm1001, %v1825, %v2117
    %v2131 = vsel %vm1001, %v1830, %v2119
    %v2132 = vsel %vm1001, %v1916, %v2125
    %v2133 = vsel %vm1001, %v1921, %v2127
    %2135 = vset.pattern.permute.xlu0 0
    %2136 = vperm.xlu0 %2135, %v307
    %v2137 = vpop.permute.xlu0 %2136
    %2140 = vset.pattern.permute.xlu0 0
    %2141 = vperm.xlu0 %2140, %v308
    %v2142 = vpop.permute.xlu0 %2141
    %vm2144 = vcmask 392192
    %v2146 = vsel %vm2144, %v311, 0
    %v2149 = vsel %vm2144, %v312, 0
    %2151 = vmatprep.subr.mxu0 0.0
    %2152 = vmatpush1.msra.mxu0 0.0
    %2153 = vmatprep.subr.mxu0 0.0
    %2154 = vmatpush1.msra.mxu0 0.0
    %2155 = vmatprep.subr.mxu0 0.0
    %2156 = vmatpush1.msra.mxu0 0.0
    %2157 = vmatprep.subr.mxu0 0.0
    %2158 = vmatpush1.msra.mxu0 0.0
    %2159 = vmatprep.subr.mxu0 0.0
    %2160 = vmatpush1.msra.mxu0 0.0
    %2161 = vmatprep.subr.mxu0 0.0
    %2162 = vmatpush1.msra.mxu0 0.0
    %2163 = vmatprep.subr.mxu0 0.0
    %2164 = vmatpush1.msra.mxu0 0.0
    %2165 = vmatprep.subr.mxu0 0.0
    %2166 = vmatpush1.msra.mxu0 0.0
    %2167 = vmatprep.subr.mxu0 0.0
    %2168 = vmatpush1.msra.mxu0 0.0
    %2169 = vmatprep.subr.mxu0 0.0
    %2170 = vmatpush1.msra.mxu0 0.0
    %2171 = vmatprep.subr.mxu0 0.0
    %2172 = vmatpush1.msra.mxu0 %v2133
    %2173 = vmatprep.subr.mxu0 0.0
    %2174 = vmatpush1.msra.mxu0 %v2132
    %2175 = vmatprep.subr.mxu0 0.0
    %2176 = vmatpush1.msra.mxu0 %v2131
    %2177 = vmatprep.subr.mxu0 0.0
    %2178 = vmatpush1.msra.mxu0 %v2130
    %2179 = vmatprep.subr.mxu0 0.0
    %2180 = vmatpush1.msra.mxu0 %v1735
    %2181 = vmatprep.subr.mxu0 0.0
    %2182 = vmatpush1.msra.mxu0 %v1734
    %2183 = vmatprep.subr.mxu0 0.0
    %2184 = vmatpush2.msra.mxu0 0.0
    %2185 = vmatprep.subr.mxu0 0.0
    %2186 = vmatpush2.msra.mxu0 0.0
    %2187 = vmatprep.subr.mxu0 0.0
    %2188 = vmatpush2.msra.mxu0 0.0
    %2189 = vmatprep.subr.mxu0 0.0
    %2190 = vmatpush2.msra.mxu0 0.0
    %2191 = vmatprep.subr.mxu0 0.0
    %2192 = vmatpush2.msra.mxu0 0.0
    %2193 = vmatprep.subr.mxu0 0.0
    %2194 = vmatpush2.msra.mxu0 0.0
    %2195 = vmatprep.subr.mxu0 0.0
    %2196 = vmatpush2.msra.mxu0 0.0
    %2197 = vmatprep.subr.mxu0 0.0
    %2198 = vmatpush2.msra.mxu0 0.0
    %2199 = vmatprep.subr.mxu0 0.0
    %2200 = vmatpush2.msra.mxu0 0.0
    %2201 = vmatprep.subr.mxu0 0.0
    %2202 = vmatpush2.msra.mxu0 0.0
    %2203 = vmatprep.subr.mxu0 0.0
    %2204 = vmatpush2.msra.mxu0 0.0
    %2205 = vmatprep.subr.mxu0 0.0
    %2206 = vmatpush2.msra.mxu0 0.0
    %2207 = vmatprep.subr.mxu0 0.0
    %2208 = vmatpush2.msra.mxu0 0.0
    %2209 = vmatprep.subr.mxu0 0.0
    %2210 = vmatpush2.msra.mxu0 0.0
    %2211 = vmatprep.subr.mxu0 0.0
    %2212 = vmatpush2.msra.mxu0 0.0
    %2213 = vmatprep.subr.mxu0 0.0
    %2214 = vmatpush2.msra.mxu0 0.0
    %2215 = vmatprep.mubr.f32.mxu0 0.0
    %2216 = vmatmul.mubr.f32.gmra.mxu0 %v2146
    %v2217 = vpop.f32.mrf.mxu0
    %v2218 = vadd.f32 %v2137, %v2217
    %v2219 = vpop.f32.mrf.mxu0
    %2220 = vmatprep.mubr.f32.mxu0 0.0
    %2221 = vmatmul.mubr.f32.gmra.mxu0 %v2149
    %v2222 = vpop.f32.mrf.mxu0
    %v2223 = vadd.f32 %v2142, %v2222
    %v2224 = vpop.f32.mrf.mxu0
    %2225 = vdwg.mxu0
    %vm2226 = vcmp.ge.f32.partialorder %v2218, 0.0
    %vm2227 = vcmp.ge.f32.partialorder %v2223, 0.0
    %v2228 = vmul.f32 %v2218, 0.1
    %v2229 = vmul.f32 %v2223, 0.1
    %v2230 = vsel %vm2226, %v2218, %v2228
    %v2231 = vsel %vm2227, %v2223, %v2229
    %2234 = vrot.lane.b32.xlu0 %v2230, 1
    %v2235 = vpop.permute.xlu0 %2234
    %2236 = vrot.lane.b32.xlu0 %v2231, 1
    %v2237 = vpop.permute.xlu0 %2236
    %v2240 = vsel %vm772, 0.0, %v2235
    %v2241 = vsel %vm772, 0.0, %v2237
    %vm2242 = vcmask 269312
    %v2243 = vsel %vm2242, %v2240, 0.0
    %v2244 = vsel %vm2242, %v2241, 0.0
    %2247 = vrot.lane.b32.xlu0 %v2243, 127
    %v2248 = vpop.permute.xlu0 %2247
    %2249 = vrot.lane.b32.xlu0 %v2244, 127
    %v2250 = vpop.permute.xlu0 %2249
    %2253 = vrot.lane.b32.xlu0 %v2243, 126
    %v2254 = vpop.permute.xlu0 %2253
    %2255 = vrot.lane.b32.xlu0 %v2244, 126
    %v2256 = vpop.permute.xlu0 %2255
    %2259 = vrot.lane.b32.xlu0 %v2230, 97
    %v2260 = vpop.permute.xlu0 %2259
    %2261 = vrot.lane.b32.xlu0 %v2231, 97
    %v2262 = vpop.permute.xlu0 %2261
    %v2265 = vsel %vm772, 0.0, %v2260
    %v2266 = vsel %vm772, 0.0, %v2262
    %v2267 = vsel %vm2242, %v2265, 0.0
    %v2268 = vsel %vm2242, %v2266, 0.0
    %2271 = vrot.lane.b32.xlu0 %v2267, 127
    %v2272 = vpop.permute.xlu0 %2271
    %2273 = vrot.lane.b32.xlu0 %v2268, 127
    %v2274 = vpop.permute.xlu0 %2273
    %2275 = vrot.lane.b32.xlu0 %v2267, 126
    %v2276 = vpop.permute.xlu0 %2275
    %2277 = vrot.lane.b32.xlu0 %v2268, 126
    %v2278 = vpop.permute.xlu0 %2277
    %2279 = vrot.lane.b32.xlu0 %v2267, 32
    %v2280 = vpop.permute.xlu0 %2279
    %2281 = vrot.lane.b32.xlu0 %v2268, 32
    %v2282 = vpop.permute.xlu0 %2281
    %2283 = vrot.lane.b32.xlu0 %v2272, 32
    %v2284 = vpop.permute.xlu0 %2283
    %2285 = vrot.lane.b32.xlu0 %v2274, 32
    %v2286 = vpop.permute.xlu0 %2285
    %2287 = vrot.lane.b32.xlu0 %v2276, 32
    %v2288 = vpop.permute.xlu0 %2287
    %2289 = vrot.lane.b32.xlu0 %v2278, 32
    %v2290 = vpop.permute.xlu0 %2289
    %v2297 = vsel %vm1001, %v2243, %v2280
    %v2298 = vsel %vm1001, %v2244, %v2282
    %v2299 = vsel %vm1001, %v2248, %v2284
    %v2300 = vsel %vm1001, %v2250, %v2286
    %v2301 = vsel %vm1001, %v2254, %v2288
    %v2302 = vsel %vm1001, %v2256, %v2290
    %2304 = vset.pattern.permute.xlu0 0
    %2305 = vperm.xlu0 %2304, %v309
    %v2306 = vpop.permute.xlu0 %2305
    %2309 = vset.pattern.permute.xlu0 0
    %2310 = vperm.xlu0 %2309, %v310
    %v2311 = vpop.permute.xlu0 %2310
    %v2314 = vsel %vm2144, %v313, 0
    %v2317 = vsel %vm2144, %v314, 0
    %2319 = vmatprep.subr.mxu0 0.0
    %2320 = vmatpush1.msra.mxu0 0.0
    %2321 = vmatprep.subr.mxu0 0.0
    %2322 = vmatpush1.msra.mxu0 0.0
    %2323 = vmatprep.subr.mxu0 0.0
    %2324 = vmatpush1.msra.mxu0 0.0
    %2325 = vmatprep.subr.mxu0 0.0
    %2326 = vmatpush1.msra.mxu0 0.0
    %2327 = vmatprep.subr.mxu0 0.0
    %2328 = vmatpush1.msra.mxu0 0.0
    %2329 = vmatprep.subr.mxu0 0.0
    %2330 = vmatpush1.msra.mxu0 0.0
    %2331 = vmatprep.subr.mxu0 0.0
    %2332 = vmatpush1.msra.mxu0 0.0
    %2333 = vmatprep.subr.mxu0 0.0
    %2334 = vmatpush1.msra.mxu0 0.0
    %2335 = vmatprep.subr.mxu0 0.0
    %2336 = vmatpush1.msra.mxu0 0.0
    %2337 = vmatprep.subr.mxu0 0.0
    %2338 = vmatpush1.msra.mxu0 0.0
    %2339 = vmatprep.subr.mxu0 0.0
    %2340 = vmatpush1.msra.mxu0 %v2302
    %2341 = vmatprep.subr.mxu0 0.0
    %2342 = vmatpush1.msra.mxu0 %v2301
    %2343 = vmatprep.subr.mxu0 0.0
    %2344 = vmatpush1.msra.mxu0 %v2300
    %2345 = vmatprep.subr.mxu0 0.0
    %2346 = vmatpush1.msra.mxu0 %v2299
    %2347 = vmatprep.subr.mxu0 0.0
    %2348 = vmatpush1.msra.mxu0 %v2298
    %2349 = vmatprep.subr.mxu0 0.0
    %2350 = vmatpush1.msra.mxu0 %v2297
    %2351 = vmatprep.subr.mxu0 0.0
    %2352 = vmatpush2.msra.mxu0 0.0
    %2353 = vmatprep.subr.mxu0 0.0
    %2354 = vmatpush2.msra.mxu0 0.0
    %2355 = vmatprep.subr.mxu0 0.0
    %2356 = vmatpush2.msra.mxu0 0.0
    %2357 = vmatprep.subr.mxu0 0.0
    %2358 = vmatpush2.msra.mxu0 0.0
    %2359 = vmatprep.subr.mxu0 0.0
    %2360 = vmatpush2.msra.mxu0 0.0
    %2361 = vmatprep.subr.mxu0 0.0
    %2362 = vmatpush2.msra.mxu0 0.0
    %2363 = vmatprep.subr.mxu0 0.0
    %2364 = vmatpush2.msra.mxu0 0.0
    %2365 = vmatprep.subr.mxu0 0.0
    %2366 = vmatpush2.msra.mxu0 0.0
    %2367 = vmatprep.subr.mxu0 0.0
    %2368 = vmatpush2.msra.mxu0 0.0
    %2369 = vmatprep.subr.mxu0 0.0
    %2370 = vmatpush2.msra.mxu0 0.0
    %2371 = vmatprep.subr.mxu0 0.0
    %2372 = vmatpush2.msra.mxu0 0.0
    %2373 = vmatprep.subr.mxu0 0.0
    %2374 = vmatpush2.msra.mxu0 0.0
    %2375 = vmatprep.subr.mxu0 0.0
    %2376 = vmatpush2.msra.mxu0 0.0
    %2377 = vmatprep.subr.mxu0 0.0
    %2378 = vmatpush2.msra.mxu0 0.0
    %2379 = vmatprep.subr.mxu0 0.0
    %2380 = vmatpush2.msra.mxu0 0.0
    %2381 = vmatprep.subr.mxu0 0.0
    %2382 = vmatpush2.msra.mxu0 0.0
    %2383 = vmatprep.mubr.f32.mxu0 0.0
    %2384 = vmatmul.mubr.f32.gmra.mxu0 %v2314
    %v2385 = vpop.f32.mrf.mxu0
    %v2386 = vadd.f32 %v2306, %v2385
    %v2387 = vpop.f32.mrf.mxu0
    %2388 = vmatprep.mubr.f32.mxu0 0.0
    %2389 = vmatmul.mubr.f32.gmra.mxu0 %v2317
    %v2390 = vpop.f32.mrf.mxu0
    %v2391 = vadd.f32 %v2311, %v2390
    %v2392 = vpop.f32.mrf.mxu0
    %2393 = vdwg.mxu0
    %v2394 = vadd.f32 %v1728, %v2386
    %v2395 = vadd.f32 %v1729, %v2391
    %vm2396 = vcmp.ge.f32.partialorder %v2394, 0.0
    %vm2397 = vcmp.ge.f32.partialorder %v2395, 0.0
    %v2398 = vmul.f32 %v2394, 0.1
    %v2399 = vmul.f32 %v2395, 0.1
    %v2400 = vsel %vm2396, %v2394, %v2398
    %v2401 = vsel %vm2397, %v2395, %v2399
    %v2402 = vmul.u32 %v733, 2
    %v2403 = vmul.u32 %v734, 2
    %v2404 = vmul.u32 %v735, 2
    %v2405 = vmul.u32 %v736, 2
    %vm2406 = vcmp.eq.s32.totalorder %v742, %v2402
    %vm2407 = vcmp.eq.s32.totalorder %v742, %v2403
    %vm2408 = vcmp.eq.s32.totalorder %v742, %v2404
    %vm2409 = vcmp.eq.s32.totalorder %v742, %v2405
    %v2410 = vsel %vm2406, 1, 0
    %v2411 = vsel %vm2407, 1, 0
    %v2412 = vsel %vm2408, 1, 0
    %v2413 = vsel %vm2409, 1, 0
    %v2414 = vcvt.s32.f32 %v2410
    %v2415 = vcvt.s32.f32 %v2411
    %v2416 = vcvt.s32.f32 %v2412
    %v2417 = vcvt.s32.f32 %v2413
    %v2419 = vsel %vm1001, %v2400, 0
    %v2422 = vsel %vm1001, %v2401, 0
    %2424 = vmatprep.subr.mxu0 0.0
    %2425 = vmatpush1.msra.mxu0 0.0
    %2426 = vmatprep.subr.mxu0 0.0
    %2427 = vmatpush1.msra.mxu0 0.0
    %2428 = vmatprep.subr.mxu0 0.0
    %2429 = vmatpush1.msra.mxu0 0.0
    %2430 = vmatprep.subr.mxu0 0.0
    %2431 = vmatpush1.msra.mxu0 0.0
    %2432 = vmatprep.subr.mxu0 0.0
    %2433 = vmatpush1.msra.mxu0 0.0
    %2434 = vmatprep.subr.mxu0 0.0
    %2435 = vmatpush1.msra.mxu0 0.0
    %2436 = vmatprep.subr.mxu0 0.0
    %2437 = vmatpush1.msra.mxu0 0.0
    %2438 = vmatprep.subr.mxu0 0.0
    %2439 = vmatpush1.msra.mxu0 0.0
    %2440 = vmatprep.subr.mxu0 0.0
    %2441 = vmatpush1.msra.mxu0 0.0
    %2442 = vmatprep.subr.mxu0 0.0
    %2443 = vmatpush1.msra.mxu0 0.0
    %2444 = vmatprep.subr.mxu0 0.0
    %2445 = vmatpush1.msra.mxu0 0.0
    %2446 = vmatprep.subr.mxu0 0.0
    %2447 = vmatpush1.msra.mxu0 0.0
    %2448 = vmatprep.subr.mxu0 0.0
    %2449 = vmatpush1.msra.mxu0 %v2417
    %2450 = vmatprep.subr.mxu0 0.0
    %2451 = vmatpush1.msra.mxu0 %v2416
    %2452 = vmatprep.subr.mxu0 0.0
    %2453 = vmatpush1.msra.mxu0 %v2415
    %2454 = vmatprep.subr.mxu0 0.0
    %2455 = vmatpush1.msra.mxu0 %v2414
    %2456 = vmatprep.subr.mxu0 0.0
    %2457 = vmatpush2.msra.mxu0 0.0
    %2458 = vmatprep.subr.mxu0 0.0
    %2459 = vmatpush2.msra.mxu0 0.0
    %2460 = vmatprep.subr.mxu0 0.0
    %2461 = vmatpush2.msra.mxu0 0.0
    %2462 = vmatprep.subr.mxu0 0.0
    %2463 = vmatpush2.msra.mxu0 0.0
    %2464 = vmatprep.subr.mxu0 0.0
    %2465 = vmatpush2.msra.mxu0 0.0
    %2466 = vmatprep.subr.mxu0 0.0
    %2467 = vmatpush2.msra.mxu0 0.0
    %2468 = vmatprep.subr.mxu0 0.0
    %2469 = vmatpush2.msra.mxu0 0.0
    %2470 = vmatprep.subr.mxu0 0.0
    %2471 = vmatpush2.msra.mxu0 0.0
    %2472 = vmatprep.subr.mxu0 0.0
    %2473 = vmatpush2.msra.mxu0 0.0
    %2474 = vmatprep.subr.mxu0 0.0
    %2475 = vmatpush2.msra.mxu0 0.0
    %2476 = vmatprep.subr.mxu0 0.0
    %2477 = vmatpush2.msra.mxu0 0.0
    %2478 = vmatprep.subr.mxu0 0.0
    %2479 = vmatpush2.msra.mxu0 0.0
    %2480 = vmatprep.subr.mxu0 0.0
    %2481 = vmatpush2.msra.mxu0 0.0
    %2482 = vmatprep.subr.mxu0 0.0
    %2483 = vmatpush2.msra.mxu0 0.0
    %2484 = vmatprep.subr.mxu0 0.0
    %2485 = vmatpush2.msra.mxu0 0.0
    %2486 = vmatprep.subr.mxu0 0.0
    %2487 = vmatpush2.msra.mxu0 0.0
    %2488 = vmatprep.mubr.f32.mxu0 0.0
    %2489 = vmatmul.mubr.f32.gmra.mxu0 %v2419
    %v2490 = vpop.f32.mrf.mxu0
    %v2491 = vadd.f32 0.0, %v2490
    %v2492 = vpop.f32.mrf.mxu0
    %2493 = vmatprep.mubr.f32.mxu0 0.0
    %2494 = vmatmul.mubr.f32.gmra.mxu0 %v2422
    %v2495 = vpop.f32.mrf.mxu0
    %v2496 = vadd.f32 0.0, %v2495
    %v2497 = vpop.f32.mrf.mxu0
    %2498 = vdwg.mxu0
    %2501 = vrot.lane.b32.xlu0 %v2491, 2
    %v2502 = vpop.permute.xlu0 %2501
    %2503 = vrot.lane.b32.xlu0 %v2496, 2
    %v2504 = vpop.permute.xlu0 %2503
    %vm2507 = vcmask 15360
    %v2508 = vsel %vm2507, 0.0, %v2502
    %v2509 = vsel %vm2507, 0.0, %v2504
    %v2510 = vsel %vm774, %v2508, 0.0
    %v2511 = vsel %vm774, %v2509, 0.0
    %2514 = vrot.lane.b32.xlu0 %v2510, 127
    %v2515 = vpop.permute.xlu0 %2514
    %2516 = vrot.lane.b32.xlu0 %v2511, 127
    %v2517 = vpop.permute.xlu0 %2516
    %2520 = vrot.lane.b32.xlu0 %v2510, 126
    %v2521 = vpop.permute.xlu0 %2520
    %2522 = vrot.lane.b32.xlu0 %v2511, 126
    %v2523 = vpop.permute.xlu0 %2522
    %2526 = vrot.lane.b32.xlu0 %v2510, 125
    %v2527 = vpop.permute.xlu0 %2526
    %2528 = vrot.lane.b32.xlu0 %v2511, 125
    %v2529 = vpop.permute.xlu0 %2528
    %2532 = vrot.lane.b32.xlu0 %v2400, 96
    %v2533 = vpop.permute.xlu0 %2532
    %2534 = vrot.lane.b32.xlu0 %v2401, 96
    %v2535 = vpop.permute.xlu0 %2534
    %v2536 = vsel %vm1001, %v2533, 0
    %v2538 = vsel %vm1001, %v2535, 0
    %2540 = vmatprep.subr.mxu0 0.0
    %2541 = vmatpush1.msra.mxu0 0.0
    %2542 = vmatprep.subr.mxu0 0.0
    %2543 = vmatpush1.msra.mxu0 0.0
    %2544 = vmatprep.subr.mxu0 0.0
    %2545 = vmatpush1.msra.mxu0 0.0
    %2546 = vmatprep.subr.mxu0 0.0
    %2547 = vmatpush1.msra.mxu0 0.0
    %2548 = vmatprep.subr.mxu0 0.0
    %2549 = vmatpush1.msra.mxu0 0.0
    %2550 = vmatprep.subr.mxu0 0.0
    %2551 = vmatpush1.msra.mxu0 0.0
    %2552 = vmatprep.subr.mxu0 0.0
    %2553 = vmatpush1.msra.mxu0 0.0
    %2554 = vmatprep.subr.mxu0 0.0
    %2555 = vmatpush1.msra.mxu0 0.0
    %2556 = vmatprep.subr.mxu0 0.0
    %2557 = vmatpush1.msra.mxu0 0.0
    %2558 = vmatprep.subr.mxu0 0.0
    %2559 = vmatpush1.msra.mxu0 0.0
    %2560 = vmatprep.subr.mxu0 0.0
    %2561 = vmatpush1.msra.mxu0 0.0
    %2562 = vmatprep.subr.mxu0 0.0
    %2563 = vmatpush1.msra.mxu0 0.0
    %2564 = vmatprep.subr.mxu0 0.0
    %2565 = vmatpush1.msra.mxu0 %v2417
    %2566 = vmatprep.subr.mxu0 0.0
    %2567 = vmatpush1.msra.mxu0 %v2416
    %2568 = vmatprep.subr.mxu0 0.0
    %2569 = vmatpush1.msra.mxu0 %v2415
    %2570 = vmatprep.subr.mxu0 0.0
    %2571 = vmatpush1.msra.mxu0 %v2414
    %2572 = vmatprep.subr.mxu0 0.0
    %2573 = vmatpush2.msra.mxu0 0.0
    %2574 = vmatprep.subr.mxu0 0.0
    %2575 = vmatpush2.msra.mxu0 0.0
    %2576 = vmatprep.subr.mxu0 0.0
    %2577 = vmatpush2.msra.mxu0 0.0
    %2578 = vmatprep.subr.mxu0 0.0
    %2579 = vmatpush2.msra.mxu0 0.0
    %2580 = vmatprep.subr.mxu0 0.0
    %2581 = vmatpush2.msra.mxu0 0.0
    %2582 = vmatprep.subr.mxu0 0.0
    %2583 = vmatpush2.msra.mxu0 0.0
    %2584 = vmatprep.subr.mxu0 0.0
    %2585 = vmatpush2.msra.mxu0 0.0
    %2586 = vmatprep.subr.mxu0 0.0
    %2587 = vmatpush2.msra.mxu0 0.0
    %2588 = vmatprep.subr.mxu0 0.0
    %2589 = vmatpush2.msra.mxu0 0.0
    %2590 = vmatprep.subr.mxu0 0.0
    %2591 = vmatpush2.msra.mxu0 0.0
    %2592 = vmatprep.subr.mxu0 0.0
    %2593 = vmatpush2.msra.mxu0 0.0
    %2594 = vmatprep.subr.mxu0 0.0
    %2595 = vmatpush2.msra.mxu0 0.0
    %2596 = vmatprep.subr.mxu0 0.0
    %2597 = vmatpush2.msra.mxu0 0.0
    %2598 = vmatprep.subr.mxu0 0.0
    %2599 = vmatpush2.msra.mxu0 0.0
    %2600 = vmatprep.subr.mxu0 0.0
    %2601 = vmatpush2.msra.mxu0 0.0
    %2602 = vmatprep.subr.mxu0 0.0
    %2603 = vmatpush2.msra.mxu0 0.0
    %2604 = vmatprep.mubr.f32.mxu0 0.0
    %2605 = vmatmul.mubr.f32.gmra.mxu0 %v2536
    %v2606 = vpop.f32.mrf.mxu0
    %v2607 = vadd.f32 0.0, %v2606
    %v2608 = vpop.f32.mrf.mxu0
    %2609 = vmatprep.mubr.f32.mxu0 0.0
    %2610 = vmatmul.mubr.f32.gmra.mxu0 %v2538
    %v2611 = vpop.f32.mrf.mxu0
    %v2612 = vadd.f32 0.0, %v2611
    %v2613 = vpop.f32.mrf.mxu0
    %2614 = vdwg.mxu0
    %2617 = vrot.lane.b32.xlu0 %v2607, 2
    %v2618 = vpop.permute.xlu0 %2617
    %2619 = vrot.lane.b32.xlu0 %v2612, 2
    %v2620 = vpop.permute.xlu0 %2619
    %v2623 = vsel %vm2507, 0.0, %v2618
    %v2624 = vsel %vm2507, 0.0, %v2620
    %v2625 = vsel %vm774, %v2623, 0.0
    %v2626 = vsel %vm774, %v2624, 0.0
    %2629 = vrot.lane.b32.xlu0 %v2625, 127
    %v2630 = vpop.permute.xlu0 %2629
    %2631 = vrot.lane.b32.xlu0 %v2626, 127
    %v2632 = vpop.permute.xlu0 %2631
    %2633 = vrot.lane.b32.xlu0 %v2625, 126
    %v2634 = vpop.permute.xlu0 %2633
    %2635 = vrot.lane.b32.xlu0 %v2626, 126
    %v2636 = vpop.permute.xlu0 %2635
    %2637 = vrot.lane.b32.xlu0 %v2625, 125
    %v2638 = vpop.permute.xlu0 %2637
    %2639 = vrot.lane.b32.xlu0 %v2626, 125
    %v2640 = vpop.permute.xlu0 %2639
    %2641 = vrot.lane.b32.xlu0 %v2625, 64
    %v2642 = vpop.permute.xlu0 %2641
    %2643 = vrot.lane.b32.xlu0 %v2626, 64
    %v2644 = vpop.permute.xlu0 %2643
    %2645 = vrot.lane.b32.xlu0 %v2630, 64
    %v2646 = vpop.permute.xlu0 %2645
    %2647 = vrot.lane.b32.xlu0 %v2632, 64
    %v2648 = vpop.permute.xlu0 %2647
    %2649 = vrot.lane.b32.xlu0 %v2634, 64
    %v2650 = vpop.permute.xlu0 %2649
    %2651 = vrot.lane.b32.xlu0 %v2636, 64
    %v2652 = vpop.permute.xlu0 %2651
    %2653 = vrot.lane.b32.xlu0 %v2638, 64
    %v2654 = vpop.permute.xlu0 %2653
    %2655 = vrot.lane.b32.xlu0 %v2640, 64
    %v2656 = vpop.permute.xlu0 %2655
    %v2665 = vsel %vm371, %v2510, %v2642
    %v2666 = vsel %vm371, %v2511, %v2644
    %v2667 = vsel %vm371, %v2515, %v2646
    %v2668 = vsel %vm371, %v2517, %v2648
    %v2669 = vsel %vm371, %v2521, %v2650
    %v2670 = vsel %vm371, %v2523, %v2652
    %v2671 = vsel %vm371, %v2527, %v2654
    %v2672 = vsel %vm371, %v2529, %v2656
    %2674 = vset.pattern.permute.xlu0 0
    %2675 = vperm.xlu0 %2674, %v337
    %v2676 = vpop.permute.xlu0 %2675
    %v2679 = vsel %vm371, %v338, 0
    %2681 = vmatprep.subr.mxu0 0.0
    %2682 = vmatpush1.msra.mxu0 0.0
    %2683 = vmatprep.subr.mxu0 0.0
    %2684 = vmatpush1.msra.mxu0 0.0
    %2685 = vmatprep.subr.mxu0 0.0
    %2686 = vmatpush1.msra.mxu0 0.0
    %2687 = vmatprep.subr.mxu0 0.0
    %2688 = vmatpush1.msra.mxu0 0.0
    %2689 = vmatprep.subr.mxu0 0.0
    %2690 = vmatpush1.msra.mxu0 0.0
    %2691 = vmatprep.subr.mxu0 0.0
    %2692 = vmatpush1.msra.mxu0 0.0
    %2693 = vmatprep.subr.mxu0 0.0
    %2694 = vmatpush1.msra.mxu0 0.0
    %2695 = vmatprep.subr.mxu0 0.0
    %2696 = vmatpush1.msra.mxu0 0.0
    %2697 = vmatprep.subr.mxu0 0.0
    %2698 = vmatpush1.msra.mxu0 %v2672
    %2699 = vmatprep.subr.mxu0 0.0
    %2700 = vmatpush1.msra.mxu0 %v2671
    %2701 = vmatprep.subr.mxu0 0.0
    %2702 = vmatpush1.msra.mxu0 %v2670
    %2703 = vmatprep.subr.mxu0 0.0
    %2704 = vmatpush1.msra.mxu0 %v2669
    %2705 = vmatprep.subr.mxu0 0.0
    %2706 = vmatpush1.msra.mxu0 %v2668
    %2707 = vmatprep.subr.mxu0 0.0
    %2708 = vmatpush1.msra.mxu0 %v2667
    %2709 = vmatprep.subr.mxu0 0.0
    %2710 = vmatpush1.msra.mxu0 %v2666
    %2711 = vmatprep.subr.mxu0 0.0
    %2712 = vmatpush1.msra.mxu0 %v2665
    %2713 = vmatprep.subr.mxu0 0.0
    %2714 = vmatpush2.msra.mxu0 0.0
    %2715 = vmatprep.subr.mxu0 0.0
    %2716 = vmatpush2.msra.mxu0 0.0
    %2717 = vmatprep.subr.mxu0 0.0
    %2718 = vmatpush2.msra.mxu0 0.0
    %2719 = vmatprep.subr.mxu0 0.0
    %2720 = vmatpush2.msra.mxu0 0.0
    %2721 = vmatprep.subr.mxu0 0.0
    %2722 = vmatpush2.msra.mxu0 0.0
    %2723 = vmatprep.subr.mxu0 0.0
    %2724 = vmatpush2.msra.mxu0 0.0
    %2725 = vmatprep.subr.mxu0 0.0
    %2726 = vmatpush2.msra.mxu0 0.0
    %2727 = vmatprep.subr.mxu0 0.0
    %2728 = vmatpush2.msra.mxu0 0.0
    %2729 = vmatprep.subr.mxu0 0.0
    %2730 = vmatpush2.msra.mxu0 0.0
    %2731 = vmatprep.subr.mxu0 0.0
    %2732 = vmatpush2.msra.mxu0 0.0
    %2733 = vmatprep.subr.mxu0 0.0
    %2734 = vmatpush2.msra.mxu0 0.0
    %2735 = vmatprep.subr.mxu0 0.0
    %2736 = vmatpush2.msra.mxu0 0.0
    %2737 = vmatprep.subr.mxu0 0.0
    %2738 = vmatpush2.msra.mxu0 0.0
    %2739 = vmatprep.subr.mxu0 0.0
    %2740 = vmatpush2.msra.mxu0 0.0
    %2741 = vmatprep.subr.mxu0 0.0
    %2742 = vmatpush2.msra.mxu0 0.0
    %2743 = vmatprep.subr.mxu0 0.0
    %2744 = vmatpush2.msra.mxu0 0.0
    %2745 = vmatprep.mubr.f32.mxu0 0.0
    %2746 = vmatmul.mubr.f32.gmra.mxu0 %v2679
    %v2747 = vpop.f32.mrf.mxu0
    %v2748 = vadd.f32 %v2676, %v2747
    %v2749 = vpop.f32.mrf.mxu0
    %2750 = vdwg.mxu0
    %v2751 = vadd.f32 %v2748, %v729
    %vm2752 = vcmp.ge.f32.partialorder %v2751, 0.0
    %v2753 = vmul.f32 %v2751, 0.1
    %v2754 = vsel %vm2752, %v2751, %v2753
    %v2755 = vlaneseq
    %v2756 = vshrl.u32 %v2755, 7
    %v2757 = vsub.s32 0, %v2756
    %v2758 = vrot.slane %v343, %v2757
    %vm2759 = vcmp.eq.s32.totalorder %v733, %v2758
    %vm2760 = vcmp.eq.s32.totalorder %v734, %v2758
    %vm2761 = vcmp.eq.s32.totalorder %v735, %v2758
    %vm2762 = vcmp.eq.s32.totalorder %v736, %v2758
    %vm2763 = vcmp.eq.s32.totalorder %v737, %v2758
    %vm2764 = vcmp.eq.s32.totalorder %v738, %v2758
    %vm2765 = vcmp.eq.s32.totalorder %v739, %v2758
    %vm2766 = vcmp.eq.s32.totalorder %v740, %v2758
    %v2767 = vsel %vm2759, 1, 0
    %v2768 = vsel %vm2760, 1, 0
    %v2769 = vsel %vm2761, 1, 0
    %v2770 = vsel %vm2762, 1, 0
    %v2771 = vsel %vm2763, 1, 0
    %v2772 = vsel %vm2764, 1, 0
    %v2773 = vsel %vm2765, 1, 0
    %v2774 = vsel %vm2766, 1, 0
    %v2775 = vcvt.s32.f32 %v2767
    %v2776 = vcvt.s32.f32 %v2768
    %v2777 = vcvt.s32.f32 %v2769
    %v2778 = vcvt.s32.f32 %v2770
    %v2779 = vcvt.s32.f32 %v2771
    %v2780 = vcvt.s32.f32 %v2772
    %v2781 = vcvt.s32.f32 %v2773
    %v2782 = vcvt.s32.f32 %v2774
    %v2784 = vsel %vm371, %v2754, 0
    %2786 = vmatprep.subr.mxu0 0.0
    %2787 = vmatpush1.msra.mxu0 0.0
    %2788 = vmatprep.subr.mxu0 0.0
    %2789 = vmatpush1.msra.mxu0 0.0
    %2790 = vmatprep.subr.mxu0 0.0
    %2791 = vmatpush1.msra.mxu0 0.0
    %2792 = vmatprep.subr.mxu0 0.0
    %2793 = vmatpush1.msra.mxu0 0.0
    %2794 = vmatprep.subr.mxu0 0.0
    %2795 = vmatpush1.msra.mxu0 0.0
    %2796 = vmatprep.subr.mxu0 0.0
    %2797 = vmatpush1.msra.mxu0 0.0
    %2798 = vmatprep.subr.mxu0 0.0
    %2799 = vmatpush1.msra.mxu0 0.0
    %2800 = vmatprep.subr.mxu0 0.0
    %2801 = vmatpush1.msra.mxu0 0.0
    %2802 = vmatprep.subr.mxu0 0.0
    %2803 = vmatpush1.msra.mxu0 %v2782
    %2804 = vmatprep.subr.mxu0 0.0
    %2805 = vmatpush1.msra.mxu0 %v2781
    %2806 = vmatprep.subr.mxu0 0.0
    %2807 = vmatpush1.msra.mxu0 %v2780
    %2808 = vmatprep.subr.mxu0 0.0
    %2809 = vmatpush1.msra.mxu0 %v2779
    %2810 = vmatprep.subr.mxu0 0.0
    %2811 = vmatpush1.msra.mxu0 %v2778
    %2812 = vmatprep.subr.mxu0 0.0
    %2813 = vmatpush1.msra.mxu0 %v2777
    %2814 = vmatprep.subr.mxu0 0.0
    %2815 = vmatpush1.msra.mxu0 %v2776
    %2816 = vmatprep.subr.mxu0 0.0
    %2817 = vmatpush1.msra.mxu0 %v2775
    %2818 = vmatprep.subr.mxu0 0.0
    %2819 = vmatpush2.msra.mxu0 0.0
    %2820 = vmatprep.subr.mxu0 0.0
    %2821 = vmatpush2.msra.mxu0 0.0
    %2822 = vmatprep.subr.mxu0 0.0
    %2823 = vmatpush2.msra.mxu0 0.0
    %2824 = vmatprep.subr.mxu0 0.0
    %2825 = vmatpush2.msra.mxu0 0.0
    %2826 = vmatprep.subr.mxu0 0.0
    %2827 = vmatpush2.msra.mxu0 0.0
    %2828 = vmatprep.subr.mxu0 0.0
    %2829 = vmatpush2.msra.mxu0 0.0
    %2830 = vmatprep.subr.mxu0 0.0
    %2831 = vmatpush2.msra.mxu0 0.0
    %2832 = vmatprep.subr.mxu0 0.0
    %2833 = vmatpush2.msra.mxu0 0.0
    %2834 = vmatprep.subr.mxu0 0.0
    %2835 = vmatpush2.msra.mxu0 0.0
    %2836 = vmatprep.subr.mxu0 0.0
    %2837 = vmatpush2.msra.mxu0 0.0
    %2838 = vmatprep.subr.mxu0 0.0
    %2839 = vmatpush2.msra.mxu0 0.0
    %2840 = vmatprep.subr.mxu0 0.0
    %2841 = vmatpush2.msra.mxu0 0.0
    %2842 = vmatprep.subr.mxu0 0.0
    %2843 = vmatpush2.msra.mxu0 0.0
    %2844 = vmatprep.subr.mxu0 0.0
    %2845 = vmatpush2.msra.mxu0 0.0
    %2846 = vmatprep.subr.mxu0 0.0
    %2847 = vmatpush2.msra.mxu0 0.0
    %2848 = vmatprep.subr.mxu0 0.0
    %2849 = vmatpush2.msra.mxu0 0.0
    %2850 = vmatprep.mubr.f32.mxu0 0.0
    %2851 = vmatmul.mubr.f32.gmra.mxu0 %v2784
    %v2852 = vpop.f32.mrf.mxu0
    %v2853 = vadd.f32 0.0, %v2852
    %v2854 = vpop.f32.mrf.mxu0
    %2855 = vdwg.mxu0
    %v2856 = vlaneseq
    %v2857 = vshrl.u32 %v2856, 7
    %v2858 = vsub.s32 0, %v2857
    %v2859 = vrot.slane %v345, %v2858
    %vm2860 = vcmp.eq.s32.totalorder %v733, %v2859
    %vm2861 = vcmp.eq.s32.totalorder %v734, %v2859
    %vm2862 = vcmp.eq.s32.totalorder %v735, %v2859
    %vm2863 = vcmp.eq.s32.totalorder %v736, %v2859
    %vm2864 = vcmp.eq.s32.totalorder %v737, %v2859
    %vm2865 = vcmp.eq.s32.totalorder %v738, %v2859
    %vm2866 = vcmp.eq.s32.totalorder %v739, %v2859
    %vm2867 = vcmp.eq.s32.totalorder %v740, %v2859
    %v2868 = vsel %vm2860, 1, 0
    %v2869 = vsel %vm2861, 1, 0
    %v2870 = vsel %vm2862, 1, 0
    %v2871 = vsel %vm2863, 1, 0
    %v2872 = vsel %vm2864, 1, 0
    %v2873 = vsel %vm2865, 1, 0
    %v2874 = vsel %vm2866, 1, 0
    %v2875 = vsel %vm2867, 1, 0
    %v2876 = vcvt.s32.f32 %v2868
    %v2877 = vcvt.s32.f32 %v2869
    %v2878 = vcvt.s32.f32 %v2870
    %v2879 = vcvt.s32.f32 %v2871
    %v2880 = vcvt.s32.f32 %v2872
    %v2881 = vcvt.s32.f32 %v2873
    %v2882 = vcvt.s32.f32 %v2874
    %v2883 = vcvt.s32.f32 %v2875
    %2884 = vmatprep.subr.mxu0 0.0
    %2885 = vmatpush1.msra.mxu0 0.0
    %2886 = vmatprep.subr.mxu0 0.0
    %2887 = vmatpush1.msra.mxu0 0.0
    %2888 = vmatprep.subr.mxu0 0.0
    %2889 = vmatpush1.msra.mxu0 0.0
    %2890 = vmatprep.subr.mxu0 0.0
    %2891 = vmatpush1.msra.mxu0 0.0
    %2892 = vmatprep.subr.mxu0 0.0
    %2893 = vmatpush1.msra.mxu0 0.0
    %2894 = vmatprep.subr.mxu0 0.0
    %2895 = vmatpush1.msra.mxu0 0.0
    %2896 = vmatprep.subr.mxu0 0.0
    %2897 = vmatpush1.msra.mxu0 0.0
    %2898 = vmatprep.subr.mxu0 0.0
    %2899 = vmatpush1.msra.mxu0 0.0
    %2900 = vmatprep.subr.mxu0 0.0
    %2901 = vmatpush1.msra.mxu0 %v2883
    %2902 = vmatprep.subr.mxu0 0.0
    %2903 = vmatpush1.msra.mxu0 %v2882
    %2904 = vmatprep.subr.mxu0 0.0
    %2905 = vmatpush1.msra.mxu0 %v2881
    %2906 = vmatprep.subr.mxu0 0.0
    %2907 = vmatpush1.msra.mxu0 %v2880
    %2908 = vmatprep.subr.mxu0 0.0
    %2909 = vmatpush1.msra.mxu0 %v2879
    %2910 = vmatprep.subr.mxu0 0.0
    %2911 = vmatpush1.msra.mxu0 %v2878
    %2912 = vmatprep.subr.mxu0 0.0
    %2913 = vmatpush1.msra.mxu0 %v2877
    %2914 = vmatprep.subr.mxu0 0.0
    %2915 = vmatpush1.msra.mxu0 %v2876
    %2916 = vmatprep.subr.mxu0 0.0
    %2917 = vmatpush2.msra.mxu0 0.0
    %2918 = vmatprep.subr.mxu0 0.0
    %2919 = vmatpush2.msra.mxu0 0.0
    %2920 = vmatprep.subr.mxu0 0.0
    %2921 = vmatpush2.msra.mxu0 0.0
    %2922 = vmatprep.subr.mxu0 0.0
    %2923 = vmatpush2.msra.mxu0 0.0
    %2924 = vmatprep.subr.mxu0 0.0
    %2925 = vmatpush2.msra.mxu0 0.0
    %2926 = vmatprep.subr.mxu0 0.0
    %2927 = vmatpush2.msra.mxu0 0.0
    %2928 = vmatprep.subr.mxu0 0.0
    %2929 = vmatpush2.msra.mxu0 0.0
    %2930 = vmatprep.subr.mxu0 0.0
    %2931 = vmatpush2.msra.mxu0 0.0
    %2932 = vmatprep.subr.mxu0 0.0
    %2933 = vmatpush2.msra.mxu0 0.0
    %2934 = vmatprep.subr.mxu0 0.0
    %2935 = vmatpush2.msra.mxu0 0.0
    %2936 = vmatprep.subr.mxu0 0.0
    %2937 = vmatpush2.msra.mxu0 0.0
    %2938 = vmatprep.subr.mxu0 0.0
    %2939 = vmatpush2.msra.mxu0 0.0
    %2940 = vmatprep.subr.mxu0 0.0
    %2941 = vmatpush2.msra.mxu0 0.0
    %2942 = vmatprep.subr.mxu0 0.0
    %2943 = vmatpush2.msra.mxu0 0.0
    %2944 = vmatprep.subr.mxu0 0.0
    %2945 = vmatpush2.msra.mxu0 0.0
    %2946 = vmatprep.subr.mxu0 0.0
    %2947 = vmatpush2.msra.mxu0 0.0
    %2948 = vmatprep.mubr.f32.mxu0 0.0
    %2949 = vmatmul.mubr.f32.gmra.mxu0 %v2784
    %v2950 = vpop.f32.mrf.mxu0
    %v2951 = vadd.f32 0.0, %v2950
    %v2952 = vpop.f32.mrf.mxu0
    %2953 = vdwg.mxu0
    %v2954 = vlaneseq
    %v2955 = vshrl.u32 %v2954, 7
    %v2956 = vsub.s32 0, %v2955
    %v2957 = vrot.slane %v344, %v2956
    %vm2958 = vcmp.eq.s32.totalorder %v733, %v2957
    %vm2959 = vcmp.eq.s32.totalorder %v734, %v2957
    %vm2960 = vcmp.eq.s32.totalorder %v735, %v2957
    %vm2961 = vcmp.eq.s32.totalorder %v736, %v2957
    %vm2962 = vcmp.eq.s32.totalorder %v737, %v2957
    %vm2963 = vcmp.eq.s32.totalorder %v738, %v2957
    %vm2964 = vcmp.eq.s32.totalorder %v739, %v2957
    %vm2965 = vcmp.eq.s32.totalorder %v740, %v2957
    %v2966 = vsel %vm2958, 1, 0
    %v2967 = vsel %vm2959, 1, 0
    %v2968 = vsel %vm2960, 1, 0
    %v2969 = vsel %vm2961, 1, 0
    %v2970 = vsel %vm2962, 1, 0
    %v2971 = vsel %vm2963, 1, 0
    %v2972 = vsel %vm2964, 1, 0
    %v2973 = vsel %vm2965, 1, 0
    %v2974 = vcvt.s32.f32 %v2966
    %v2975 = vcvt.s32.f32 %v2967
    %v2976 = vcvt.s32.f32 %v2968
    %v2977 = vcvt.s32.f32 %v2969
    %v2978 = vcvt.s32.f32 %v2970
    %v2979 = vcvt.s32.f32 %v2971
    %v2980 = vcvt.s32.f32 %v2972
    %v2981 = vcvt.s32.f32 %v2973
    %2982 = vrot.lane.b32.xlu0 %v2754, 64
    %v2983 = vpop.permute.xlu0 %2982
    %v2984 = vsel %vm371, %v2983, 0
    %2986 = vmatprep.subr.mxu0 0.0
    %2987 = vmatpush1.msra.mxu0 0.0
    %2988 = vmatprep.subr.mxu0 0.0
    %2989 = vmatpush1.msra.mxu0 0.0
    %2990 = vmatprep.subr.mxu0 0.0
    %2991 = vmatpush1.msra.mxu0 0.0
    %2992 = vmatprep.subr.mxu0 0.0
    %2993 = vmatpush1.msra.mxu0 0.0
    %2994 = vmatprep.subr.mxu0 0.0
    %2995 = vmatpush1.msra.mxu0 0.0
    %2996 = vmatprep.subr.mxu0 0.0
    %2997 = vmatpush1.msra.mxu0 0.0
    %2998 = vmatprep.subr.mxu0 0.0
    %2999 = vmatpush1.msra.mxu0 0.0
    %3000 = vmatprep.subr.mxu0 0.0
    %3001 = vmatpush1.msra.mxu0 0.0
    %3002 = vmatprep.subr.mxu0 0.0
    %3003 = vmatpush1.msra.mxu0 %v2981
    %3004 = vmatprep.subr.mxu0 0.0
    %3005 = vmatpush1.msra.mxu0 %v2980
    %3006 = vmatprep.subr.mxu0 0.0
    %3007 = vmatpush1.msra.mxu0 %v2979
    %3008 = vmatprep.subr.mxu0 0.0
    %3009 = vmatpush1.msra.mxu0 %v2978
    %3010 = vmatprep.subr.mxu0 0.0
    %3011 = vmatpush1.msra.mxu0 %v2977
    %3012 = vmatprep.subr.mxu0 0.0
    %3013 = vmatpush1.msra.mxu0 %v2976
    %3014 = vmatprep.subr.mxu0 0.0
    %3015 = vmatpush1.msra.mxu0 %v2975
    %3016 = vmatprep.subr.mxu0 0.0
    %3017 = vmatpush1.msra.mxu0 %v2974
    %3018 = vmatprep.subr.mxu0 0.0
    %3019 = vmatpush2.msra.mxu0 0.0
    %3020 = vmatprep.subr.mxu0 0.0
    %3021 = vmatpush2.msra.mxu0 0.0
    %3022 = vmatprep.subr.mxu0 0.0
    %3023 = vmatpush2.msra.mxu0 0.0
    %3024 = vmatprep.subr.mxu0 0.0
    %3025 = vmatpush2.msra.mxu0 0.0
    %3026 = vmatprep.subr.mxu0 0.0
    %3027 = vmatpush2.msra.mxu0 0.0
    %3028 = vmatprep.subr.mxu0 0.0
    %3029 = vmatpush2.msra.mxu0 0.0
    %3030 = vmatprep.subr.mxu0 0.0
    %3031 = vmatpush2.msra.mxu0 0.0
    %3032 = vmatprep.subr.mxu0 0.0
    %3033 = vmatpush2.msra.mxu0 0.0
    %3034 = vmatprep.subr.mxu0 0.0
    %3035 = vmatpush2.msra.mxu0 0.0
    %3036 = vmatprep.subr.mxu0 0.0
    %3037 = vmatpush2.msra.mxu0 0.0
    %3038 = vmatprep.subr.mxu0 0.0
    %3039 = vmatpush2.msra.mxu0 0.0
    %3040 = vmatprep.subr.mxu0 0.0
    %3041 = vmatpush2.msra.mxu0 0.0
    %3042 = vmatprep.subr.mxu0 0.0
    %3043 = vmatpush2.msra.mxu0 0.0
    %3044 = vmatprep.subr.mxu0 0.0
    %3045 = vmatpush2.msra.mxu0 0.0
    %3046 = vmatprep.subr.mxu0 0.0
    %3047 = vmatpush2.msra.mxu0 0.0
    %3048 = vmatprep.subr.mxu0 0.0
    %3049 = vmatpush2.msra.mxu0 0.0
    %3050 = vmatprep.mubr.f32.mxu0 0.0
    %3051 = vmatmul.mubr.f32.gmra.mxu0 %v2984
    %v3052 = vpop.f32.mrf.mxu0
    %v3053 = vadd.f32 0.0, %v3052
    %v3054 = vpop.f32.mrf.mxu0
    %3055 = vdwg.mxu0
    %v3056 = vlaneseq
    %v3057 = vshrl.u32 %v3056, 7
    %v3058 = vsub.s32 0, %v3057
    %v3059 = vrot.slane %v346, %v3058
    %vm3060 = vcmp.eq.s32.totalorder %v733, %v3059
    %vm3061 = vcmp.eq.s32.totalorder %v734, %v3059
    %vm3062 = vcmp.eq.s32.totalorder %v735, %v3059
    %vm3063 = vcmp.eq.s32.totalorder %v736, %v3059
    %vm3064 = vcmp.eq.s32.totalorder %v737, %v3059
    %vm3065 = vcmp.eq.s32.totalorder %v738, %v3059
    %vm3066 = vcmp.eq.s32.totalorder %v739, %v3059
    %vm3067 = vcmp.eq.s32.totalorder %v740, %v3059
    %v3068 = vsel %vm3060, 1, 0
    %v3069 = vsel %vm3061, 1, 0
    %v3070 = vsel %vm3062, 1, 0
    %v3071 = vsel %vm3063, 1, 0
    %v3072 = vsel %vm3064, 1, 0
    %v3073 = vsel %vm3065, 1, 0
    %v3074 = vsel %vm3066, 1, 0
    %v3075 = vsel %vm3067, 1, 0
    %v3076 = vcvt.s32.f32 %v3068
    %v3077 = vcvt.s32.f32 %v3069
    %v3078 = vcvt.s32.f32 %v3070
    %v3079 = vcvt.s32.f32 %v3071
    %v3080 = vcvt.s32.f32 %v3072
    %v3081 = vcvt.s32.f32 %v3073
    %v3082 = vcvt.s32.f32 %v3074
    %v3083 = vcvt.s32.f32 %v3075
    %3084 = vmatprep.subr.mxu0 0.0
    %3085 = vmatpush1.msra.mxu0 0.0
    %3086 = vmatprep.subr.mxu0 0.0
    %3087 = vmatpush1.msra.mxu0 0.0
    %3088 = vmatprep.subr.mxu0 0.0
    %3089 = vmatpush1.msra.mxu0 0.0
    %3090 = vmatprep.subr.mxu0 0.0
    %3091 = vmatpush1.msra.mxu0 0.0
    %3092 = vmatprep.subr.mxu0 0.0
    %3093 = vmatpush1.msra.mxu0 0.0
    %3094 = vmatprep.subr.mxu0 0.0
    %3095 = vmatpush1.msra.mxu0 0.0
    %3096 = vmatprep.subr.mxu0 0.0
    %3097 = vmatpush1.msra.mxu0 0.0
    %3098 = vmatprep.subr.mxu0 0.0
    %3099 = vmatpush1.msra.mxu0 0.0
    %3100 = vmatprep.subr.mxu0 0.0
    %3101 = vmatpush1.msra.mxu0 %v3083
    %3102 = vmatprep.subr.mxu0 0.0
    %3103 = vmatpush1.msra.mxu0 %v3082
    %3104 = vmatprep.subr.mxu0 0.0
    %3105 = vmatpush1.msra.mxu0 %v3081
    %3106 = vmatprep.subr.mxu0 0.0
    %3107 = vmatpush1.msra.mxu0 %v3080
    %3108 = vmatprep.subr.mxu0 0.0
    %3109 = vmatpush1.msra.mxu0 %v3079
    %3110 = vmatprep.subr.mxu0 0.0
    %3111 = vmatpush1.msra.mxu0 %v3078
    %3112 = vmatprep.subr.mxu0 0.0
    %3113 = vmatpush1.msra.mxu0 %v3077
    %3114 = vmatprep.subr.mxu0 0.0
    %3115 = vmatpush1.msra.mxu0 %v3076
    %3116 = vmatprep.subr.mxu0 0.0
    %3117 = vmatpush2.msra.mxu0 0.0
    %3118 = vmatprep.subr.mxu0 0.0
    %3119 = vmatpush2.msra.mxu0 0.0
    %3120 = vmatprep.subr.mxu0 0.0
    %3121 = vmatpush2.msra.mxu0 0.0
    %3122 = vmatprep.subr.mxu0 0.0
    %3123 = vmatpush2.msra.mxu0 0.0
    %3124 = vmatprep.subr.mxu0 0.0
    %3125 = vmatpush2.msra.mxu0 0.0
    %3126 = vmatprep.subr.mxu0 0.0
    %3127 = vmatpush2.msra.mxu0 0.0
    %3128 = vmatprep.subr.mxu0 0.0
    %3129 = vmatpush2.msra.mxu0 0.0
    %3130 = vmatprep.subr.mxu0 0.0
    %3131 = vmatpush2.msra.mxu0 0.0
    %3132 = vmatprep.subr.mxu0 0.0
    %3133 = vmatpush2.msra.mxu0 0.0
    %3134 = vmatprep.subr.mxu0 0.0
    %3135 = vmatpush2.msra.mxu0 0.0
    %3136 = vmatprep.subr.mxu0 0.0
    %3137 = vmatpush2.msra.mxu0 0.0
    %3138 = vmatprep.subr.mxu0 0.0
    %3139 = vmatpush2.msra.mxu0 0.0
    %3140 = vmatprep.subr.mxu0 0.0
    %3141 = vmatpush2.msra.mxu0 0.0
    %3142 = vmatprep.subr.mxu0 0.0
    %3143 = vmatpush2.msra.mxu0 0.0
    %3144 = vmatprep.subr.mxu0 0.0
    %3145 = vmatpush2.msra.mxu0 0.0
    %3146 = vmatprep.subr.mxu0 0.0
    %3147 = vmatpush2.msra.mxu0 0.0
    %3148 = vmatprep.mubr.f32.mxu0 0.0
    %3149 = vmatmul.mubr.f32.gmra.mxu0 %v2984
    %v3150 = vpop.f32.mrf.mxu0
    %v3151 = vadd.f32 0.0, %v3150
    %v3152 = vpop.f32.mrf.mxu0
    %3153 = vdwg.mxu0
    %3155 = vrot.lane.b32.xlu0 %v3053, 64
    %v3156 = vpop.permute.xlu0 %3155
    %3159 = vrot.lane.b32.xlu0 %v3151, 64
    %v3160 = vpop.permute.xlu0 %3159
    %v3162 = vsel %vm371, %v2853, %v3156
    %v3163 = vsel %vm371, %v2951, %v3160
    %3165 = vset.pattern.permute.xlu0 0
    %3166 = vperm.xlu0 %3165, %v315
    %v3167 = vpop.permute.xlu0 %3166
    %vm3169 = vcmask 195584
    %v3171 = vsel %vm3169, %v317, 0
    %3173 = vmatprep.subr.mxu0 0.0
    %3174 = vmatpush1.msra.mxu0 0.0
    %3175 = vmatprep.subr.mxu0 0.0
    %3176 = vmatpush1.msra.mxu0 0.0
    %3177 = vmatprep.subr.mxu0 0.0
    %3178 = vmatpush1.msra.mxu0 0.0
    %3179 = vmatprep.subr.mxu0 0.0
    %3180 = vmatpush1.msra.mxu0 0.0
    %3181 = vmatprep.subr.mxu0 0.0
    %3182 = vmatpush1.msra.mxu0 0.0
    %3183 = vmatprep.subr.mxu0 0.0
    %3184 = vmatpush1.msra.mxu0 0.0
    %3185 = vmatprep.subr.mxu0 0.0
    %3186 = vmatpush1.msra.mxu0 0.0
    %3187 = vmatprep.subr.mxu0 0.0
    %3188 = vmatpush1.msra.mxu0 0.0
    %3189 = vmatprep.subr.mxu0 0.0
    %3190 = vmatpush1.msra.mxu0 0.0
    %3191 = vmatprep.subr.mxu0 0.0
    %3192 = vmatpush1.msra.mxu0 0.0
    %3193 = vmatprep.subr.mxu0 0.0
    %3194 = vmatpush1.msra.mxu0 0.0
    %3195 = vmatprep.subr.mxu0 0.0
    %3196 = vmatpush1.msra.mxu0 0.0
    %3197 = vmatprep.subr.mxu0 0.0
    %3198 = vmatpush1.msra.mxu0 0.0
    %3199 = vmatprep.subr.mxu0 0.0
    %3200 = vmatpush1.msra.mxu0 %v3163
    %3201 = vmatprep.subr.mxu0 0.0
    %3202 = vmatpush1.msra.mxu0 %v3162
    %3203 = vmatprep.subr.mxu0 0.0
    %3204 = vmatpush1.msra.mxu0 %v2754
    %3205 = vmatprep.subr.mxu0 0.0
    %3206 = vmatpush2.msra.mxu0 0.0
    %3207 = vmatprep.subr.mxu0 0.0
    %3208 = vmatpush2.msra.mxu0 0.0
    %3209 = vmatprep.subr.mxu0 0.0
    %3210 = vmatpush2.msra.mxu0 0.0
    %3211 = vmatprep.subr.mxu0 0.0
    %3212 = vmatpush2.msra.mxu0 0.0
    %3213 = vmatprep.subr.mxu0 0.0
    %3214 = vmatpush2.msra.mxu0 0.0
    %3215 = vmatprep.subr.mxu0 0.0
    %3216 = vmatpush2.msra.mxu0 0.0
    %3217 = vmatprep.subr.mxu0 0.0
    %3218 = vmatpush2.msra.mxu0 0.0
    %3219 = vmatprep.subr.mxu0 0.0
    %3220 = vmatpush2.msra.mxu0 0.0
    %3221 = vmatprep.subr.mxu0 0.0
    %3222 = vmatpush2.msra.mxu0 0.0
    %3223 = vmatprep.subr.mxu0 0.0
    %3224 = vmatpush2.msra.mxu0 0.0
    %3225 = vmatprep.subr.mxu0 0.0
    %3226 = vmatpush2.msra.mxu0 0.0
    %3227 = vmatprep.subr.mxu0 0.0
    %3228 = vmatpush2.msra.mxu0 0.0
    %3229 = vmatprep.subr.mxu0 0.0
    %3230 = vmatpush2.msra.mxu0 0.0
    %3231 = vmatprep.subr.mxu0 0.0
    %3232 = vmatpush2.msra.mxu0 0.0
    %3233 = vmatprep.subr.mxu0 0.0
    %3234 = vmatpush2.msra.mxu0 0.0
    %3235 = vmatprep.subr.mxu0 0.0
    %3236 = vmatpush2.msra.mxu0 0.0
    %3237 = vmatprep.mubr.f32.mxu0 0.0
    %3238 = vmatmul.mubr.f32.gmra.mxu0 %v3171
    %v3239 = vpop.f32.mrf.mxu0
    %v3240 = vadd.f32 %v3167, %v3239
    %v3241 = vpop.f32.mrf.mxu0
    %3242 = vdwg.mxu0
    %vm3243 = vcmp.ge.f32.partialorder %v3240, 0.0
    %v3244 = vmul.f32 %v3240, 0.1
    %v3245 = vsel %vm3243, %v3240, %v3244
    %3247 = vrot.lane.b32.xlu0 %v3245, 1
    %v3248 = vpop.permute.xlu0 %3247
    %v3250 = vsel %vm772, 0.0, %v3248
    %v3251 = vsel %vm774, %v3250, 0.0
    %3253 = vrot.lane.b32.xlu0 %v3251, 127
    %v3254 = vpop.permute.xlu0 %3253
    %3256 = vrot.lane.b32.xlu0 %v3251, 126
    %v3257 = vpop.permute.xlu0 %3256
    %3259 = vrot.lane.b32.xlu0 %v3245, 65
    %v3260 = vpop.permute.xlu0 %3259
    %v3262 = vsel %vm772, 0.0, %v3260
    %v3263 = vsel %vm774, %v3262, 0.0
    %3265 = vrot.lane.b32.xlu0 %v3263, 127
    %v3266 = vpop.permute.xlu0 %3265
    %3267 = vrot.lane.b32.xlu0 %v3263, 126
    %v3268 = vpop.permute.xlu0 %3267
    %3269 = vrot.lane.b32.xlu0 %v3263, 64
    %v3270 = vpop.permute.xlu0 %3269
    %3271 = vrot.lane.b32.xlu0 %v3266, 64
    %v3272 = vpop.permute.xlu0 %3271
    %3273 = vrot.lane.b32.xlu0 %v3268, 64
    %v3274 = vpop.permute.xlu0 %3273
    %v3278 = vsel %vm371, %v3251, %v3270
    %v3279 = vsel %vm371, %v3254, %v3272
    %v3280 = vsel %vm371, %v3257, %v3274
    %3282 = vset.pattern.permute.xlu0 0
    %3283 = vperm.xlu0 %3282, %v316
    %v3284 = vpop.permute.xlu0 %3283
    %v3287 = vsel %vm3169, %v318, 0
    %3289 = vmatprep.subr.mxu0 0.0
    %3290 = vmatpush1.msra.mxu0 0.0
    %3291 = vmatprep.subr.mxu0 0.0
    %3292 = vmatpush1.msra.mxu0 0.0
    %3293 = vmatprep.subr.mxu0 0.0
    %3294 = vmatpush1.msra.mxu0 0.0
    %3295 = vmatprep.subr.mxu0 0.0
    %3296 = vmatpush1.msra.mxu0 0.0
    %3297 = vmatprep.subr.mxu0 0.0
    %3298 = vmatpush1.msra.mxu0 0.0
    %3299 = vmatprep.subr.mxu0 0.0
    %3300 = vmatpush1.msra.mxu0 0.0
    %3301 = vmatprep.subr.mxu0 0.0
    %3302 = vmatpush1.msra.mxu0 0.0
    %3303 = vmatprep.subr.mxu0 0.0
    %3304 = vmatpush1.msra.mxu0 0.0
    %3305 = vmatprep.subr.mxu0 0.0
    %3306 = vmatpush1.msra.mxu0 0.0
    %3307 = vmatprep.subr.mxu0 0.0
    %3308 = vmatpush1.msra.mxu0 0.0
    %3309 = vmatprep.subr.mxu0 0.0
    %3310 = vmatpush1.msra.mxu0 0.0
    %3311 = vmatprep.subr.mxu0 0.0
    %3312 = vmatpush1.msra.mxu0 0.0
    %3313 = vmatprep.subr.mxu0 0.0
    %3314 = vmatpush1.msra.mxu0 0.0
    %3315 = vmatprep.subr.mxu0 0.0
    %3316 = vmatpush1.msra.mxu0 %v3280
    %3317 = vmatprep.subr.mxu0 0.0
    %3318 = vmatpush1.msra.mxu0 %v3279
    %3319 = vmatprep.subr.mxu0 0.0
    %3320 = vmatpush1.msra.mxu0 %v3278
    %3321 = vmatprep.subr.mxu0 0.0
    %3322 = vmatpush2.msra.mxu0 0.0
    %3323 = vmatprep.subr.mxu0 0.0
    %3324 = vmatpush2.msra.mxu0 0.0
    %3325 = vmatprep.subr.mxu0 0.0
    %3326 = vmatpush2.msra.mxu0 0.0
    %3327 = vmatprep.subr.mxu0 0.0
    %3328 = vmatpush2.msra.mxu0 0.0
    %3329 = vmatprep.subr.mxu0 0.0
    %3330 = vmatpush2.msra.mxu0 0.0
    %3331 = vmatprep.subr.mxu0 0.0
    %3332 = vmatpush2.msra.mxu0 0.0
    %3333 = vmatprep.subr.mxu0 0.0
    %3334 = vmatpush2.msra.mxu0 0.0
    %3335 = vmatprep.subr.mxu0 0.0
    %3336 = vmatpush2.msra.mxu0 0.0
    %3337 = vmatprep.subr.mxu0 0.0
    %3338 = vmatpush2.msra.mxu0 0.0
    %3339 = vmatprep.subr.mxu0 0.0
    %3340 = vmatpush2.msra.mxu0 0.0
    %3341 = vmatprep.subr.mxu0 0.0
    %3342 = vmatpush2.msra.mxu0 0.0
    %3343 = vmatprep.subr.mxu0 0.0
    %3344 = vmatpush2.msra.mxu0 0.0
    %3345 = vmatprep.subr.mxu0 0.0
    %3346 = vmatpush2.msra.mxu0 0.0
    %3347 = vmatprep.subr.mxu0 0.0
    %3348 = vmatpush2.msra.mxu0 0.0
    %3349 = vmatprep.subr.mxu0 0.0
    %3350 = vmatpush2.msra.mxu0 0.0
    %3351 = vmatprep.subr.mxu0 0.0
    %3352 = vmatpush2.msra.mxu0 0.0
    %3353 = vmatprep.mubr.f32.mxu0 0.0
    %3354 = vmatmul.mubr.f32.gmra.mxu0 %v3287
    %v3355 = vpop.f32.mrf.mxu0
    %v3356 = vadd.f32 %v3284, %v3355
    %v3357 = vpop.f32.mrf.mxu0
    %3358 = vdwg.mxu0
    %v3359 = vadd.f32 %v2751, %v3356
    %vm3360 = vcmp.ge.f32.partialorder %v3359, 0.0
    %v3361 = vmul.f32 %v3359, 0.1
    %v3362 = vsel %vm3360, %v3359, %v3361
    %v3363 = vlaneseq
    %v3364 = vshrl.u32 %v3363, 7
    %v3365 = vsub.s32 0, %v3364
    %v3366 = vrot.slane %v347, %v3365
    %vm3367 = vcmp.eq.s32.totalorder %v733, %v3366
    %vm3368 = vcmp.eq.s32.totalorder %v734, %v3366
    %vm3369 = vcmp.eq.s32.totalorder %v735, %v3366
    %vm3370 = vcmp.eq.s32.totalorder %v736, %v3366
    %vm3371 = vcmp.eq.s32.totalorder %v737, %v3366
    %vm3372 = vcmp.eq.s32.totalorder %v738, %v3366
    %vm3373 = vcmp.eq.s32.totalorder %v739, %v3366
    %vm3374 = vcmp.eq.s32.totalorder %v740, %v3366
    %v3375 = vsel %vm3367, 1, 0
    %v3376 = vsel %vm3368, 1, 0
    %v3377 = vsel %vm3369, 1, 0
    %v3378 = vsel %vm3370, 1, 0
    %v3379 = vsel %vm3371, 1, 0
    %v3380 = vsel %vm3372, 1, 0
    %v3381 = vsel %vm3373, 1, 0
    %v3382 = vsel %vm3374, 1, 0
    %v3383 = vcvt.s32.f32 %v3375
    %v3384 = vcvt.s32.f32 %v3376
    %v3385 = vcvt.s32.f32 %v3377
    %v3386 = vcvt.s32.f32 %v3378
    %v3387 = vcvt.s32.f32 %v3379
    %v3388 = vcvt.s32.f32 %v3380
    %v3389 = vcvt.s32.f32 %v3381
    %v3390 = vcvt.s32.f32 %v3382
    %v3392 = vsel %vm371, %v3362, 0
    %3394 = vmatprep.subr.mxu0 0.0
    %3395 = vmatpush1.msra.mxu0 0.0
    %3396 = vmatprep.subr.mxu0 0.0
    %3397 = vmatpush1.msra.mxu0 0.0
    %3398 = vmatprep.subr.mxu0 0.0
    %3399 = vmatpush1.msra.mxu0 0.0
    %3400 = vmatprep.subr.mxu0 0.0
    %3401 = vmatpush1.msra.mxu0 0.0
    %3402 = vmatprep.subr.mxu0 0.0
    %3403 = vmatpush1.msra.mxu0 0.0
    %3404 = vmatprep.subr.mxu0 0.0
    %3405 = vmatpush1.msra.mxu0 0.0
    %3406 = vmatprep.subr.mxu0 0.0
    %3407 = vmatpush1.msra.mxu0 0.0
    %3408 = vmatprep.subr.mxu0 0.0
    %3409 = vmatpush1.msra.mxu0 0.0
    %3410 = vmatprep.subr.mxu0 0.0
    %3411 = vmatpush1.msra.mxu0 %v3390
    %3412 = vmatprep.subr.mxu0 0.0
    %3413 = vmatpush1.msra.mxu0 %v3389
    %3414 = vmatprep.subr.mxu0 0.0
    %3415 = vmatpush1.msra.mxu0 %v3388
    %3416 = vmatprep.subr.mxu0 0.0
    %3417 = vmatpush1.msra.mxu0 %v3387
    %3418 = vmatprep.subr.mxu0 0.0
    %3419 = vmatpush1.msra.mxu0 %v3386
    %3420 = vmatprep.subr.mxu0 0.0
    %3421 = vmatpush1.msra.mxu0 %v3385
    %3422 = vmatprep.subr.mxu0 0.0
    %3423 = vmatpush1.msra.mxu0 %v3384
    %3424 = vmatprep.subr.mxu0 0.0
    %3425 = vmatpush1.msra.mxu0 %v3383
    %3426 = vmatprep.subr.mxu0 0.0
    %3427 = vmatpush2.msra.mxu0 0.0
    %3428 = vmatprep.subr.mxu0 0.0
    %3429 = vmatpush2.msra.mxu0 0.0
    %3430 = vmatprep.subr.mxu0 0.0
    %3431 = vmatpush2.msra.mxu0 0.0
    %3432 = vmatprep.subr.mxu0 0.0
    %3433 = vmatpush2.msra.mxu0 0.0
    %3434 = vmatprep.subr.mxu0 0.0
    %3435 = vmatpush2.msra.mxu0 0.0
    %3436 = vmatprep.subr.mxu0 0.0
    %3437 = vmatpush2.msra.mxu0 0.0
    %3438 = vmatprep.subr.mxu0 0.0
    %3439 = vmatpush2.msra.mxu0 0.0
    %3440 = vmatprep.subr.mxu0 0.0
    %3441 = vmatpush2.msra.mxu0 0.0
    %3442 = vmatprep.subr.mxu0 0.0
    %3443 = vmatpush2.msra.mxu0 0.0
    %3444 = vmatprep.subr.mxu0 0.0
    %3445 = vmatpush2.msra.mxu0 0.0
    %3446 = vmatprep.subr.mxu0 0.0
    %3447 = vmatpush2.msra.mxu0 0.0
    %3448 = vmatprep.subr.mxu0 0.0
    %3449 = vmatpush2.msra.mxu0 0.0
    %3450 = vmatprep.subr.mxu0 0.0
    %3451 = vmatpush2.msra.mxu0 0.0
    %3452 = vmatprep.subr.mxu0 0.0
    %3453 = vmatpush2.msra.mxu0 0.0
    %3454 = vmatprep.subr.mxu0 0.0
    %3455 = vmatpush2.msra.mxu0 0.0
    %3456 = vmatprep.subr.mxu0 0.0
    %3457 = vmatpush2.msra.mxu0 0.0
    %3458 = vmatprep.mubr.f32.mxu0 0.0
    %3459 = vmatmul.mubr.f32.gmra.mxu0 %v3392
    %v3460 = vpop.f32.mrf.mxu0
    %v3461 = vadd.f32 0.0, %v3460
    %v3462 = vpop.f32.mrf.mxu0
    %3463 = vdwg.mxu0
    %v3464 = vlaneseq
    %v3465 = vshrl.u32 %v3464, 7
    %v3466 = vsub.s32 0, %v3465
    %v3467 = vrot.slane %v349, %v3466
    %vm3468 = vcmp.eq.s32.totalorder %v733, %v3467
    %vm3469 = vcmp.eq.s32.totalorder %v734, %v3467
    %vm3470 = vcmp.eq.s32.totalorder %v735, %v3467
    %vm3471 = vcmp.eq.s32.totalorder %v736, %v3467
    %vm3472 = vcmp.eq.s32.totalorder %v737, %v3467
    %vm3473 = vcmp.eq.s32.totalorder %v738, %v3467
    %vm3474 = vcmp.eq.s32.totalorder %v739, %v3467
    %vm3475 = vcmp.eq.s32.totalorder %v740, %v3467
    %v3476 = vsel %vm3468, 1, 0
    %v3477 = vsel %vm3469, 1, 0
    %v3478 = vsel %vm3470, 1, 0
    %v3479 = vsel %vm3471, 1, 0
    %v3480 = vsel %vm3472, 1, 0
    %v3481 = vsel %vm3473, 1, 0
    %v3482 = vsel %vm3474, 1, 0
    %v3483 = vsel %vm3475, 1, 0
    %v3484 = vcvt.s32.f32 %v3476
    %v3485 = vcvt.s32.f32 %v3477
    %v3486 = vcvt.s32.f32 %v3478
    %v3487 = vcvt.s32.f32 %v3479
    %v3488 = vcvt.s32.f32 %v3480
    %v3489 = vcvt.s32.f32 %v3481
    %v3490 = vcvt.s32.f32 %v3482
    %v3491 = vcvt.s32.f32 %v3483
    %3492 = vmatprep.subr.mxu0 0.0
    %3493 = vmatpush1.msra.mxu0 0.0
    %3494 = vmatprep.subr.mxu0 0.0
    %3495 = vmatpush1.msra.mxu0 0.0
    %3496 = vmatprep.subr.mxu0 0.0
    %3497 = vmatpush1.msra.mxu0 0.0
    %3498 = vmatprep.subr.mxu0 0.0
    %3499 = vmatpush1.msra.mxu0 0.0
    %3500 = vmatprep.subr.mxu0 0.0
    %3501 = vmatpush1.msra.mxu0 0.0
    %3502 = vmatprep.subr.mxu0 0.0
    %3503 = vmatpush1.msra.mxu0 0.0
    %3504 = vmatprep.subr.mxu0 0.0
    %3505 = vmatpush1.msra.mxu0 0.0
    %3506 = vmatprep.subr.mxu0 0.0
    %3507 = vmatpush1.msra.mxu0 0.0
    %3508 = vmatprep.subr.mxu0 0.0
    %3509 = vmatpush1.msra.mxu0 %v3491
    %3510 = vmatprep.subr.mxu0 0.0
    %3511 = vmatpush1.msra.mxu0 %v3490
    %3512 = vmatprep.subr.mxu0 0.0
    %3513 = vmatpush1.msra.mxu0 %v3489
    %3514 = vmatprep.subr.mxu0 0.0
    %3515 = vmatpush1.msra.mxu0 %v3488
    %3516 = vmatprep.subr.mxu0 0.0
    %3517 = vmatpush1.msra.mxu0 %v3487
    %3518 = vmatprep.subr.mxu0 0.0
    %3519 = vmatpush1.msra.mxu0 %v3486
    %3520 = vmatprep.subr.mxu0 0.0
    %3521 = vmatpush1.msra.mxu0 %v3485
    %3522 = vmatprep.subr.mxu0 0.0
    %3523 = vmatpush1.msra.mxu0 %v3484
    %3524 = vmatprep.subr.mxu0 0.0
    %3525 = vmatpush2.msra.mxu0 0.0
    %3526 = vmatprep.subr.mxu0 0.0
    %3527 = vmatpush2.msra.mxu0 0.0
    %3528 = vmatprep.subr.mxu0 0.0
    %3529 = vmatpush2.msra.mxu0 0.0
    %3530 = vmatprep.subr.mxu0 0.0
    %3531 = vmatpush2.msra.mxu0 0.0
    %3532 = vmatprep.subr.mxu0 0.0
    %3533 = vmatpush2.msra.mxu0 0.0
    %3534 = vmatprep.subr.mxu0 0.0
    %3535 = vmatpush2.msra.mxu0 0.0
    %3536 = vmatprep.subr.mxu0 0.0
    %3537 = vmatpush2.msra.mxu0 0.0
    %3538 = vmatprep.subr.mxu0 0.0
    %3539 = vmatpush2.msra.mxu0 0.0
    %3540 = vmatprep.subr.mxu0 0.0
    %3541 = vmatpush2.msra.mxu0 0.0
    %3542 = vmatprep.subr.mxu0 0.0
    %3543 = vmatpush2.msra.mxu0 0.0
    %3544 = vmatprep.subr.mxu0 0.0
    %3545 = vmatpush2.msra.mxu0 0.0
    %3546 = vmatprep.subr.mxu0 0.0
    %3547 = vmatpush2.msra.mxu0 0.0
    %3548 = vmatprep.subr.mxu0 0.0
    %3549 = vmatpush2.msra.mxu0 0.0
    %3550 = vmatprep.subr.mxu0 0.0
    %3551 = vmatpush2.msra.mxu0 0.0
    %3552 = vmatprep.subr.mxu0 0.0
    %3553 = vmatpush2.msra.mxu0 0.0
    %3554 = vmatprep.subr.mxu0 0.0
    %3555 = vmatpush2.msra.mxu0 0.0
    %3556 = vmatprep.mubr.f32.mxu0 0.0
    %3557 = vmatmul.mubr.f32.gmra.mxu0 %v3392
    %v3558 = vpop.f32.mrf.mxu0
    %v3559 = vadd.f32 0.0, %v3558
    %v3560 = vpop.f32.mrf.mxu0
    %3561 = vdwg.mxu0
    %v3562 = vlaneseq
    %v3563 = vshrl.u32 %v3562, 7
    %v3564 = vsub.s32 0, %v3563
    %v3565 = vrot.slane %v348, %v3564
    %vm3566 = vcmp.eq.s32.totalorder %v733, %v3565
    %vm3567 = vcmp.eq.s32.totalorder %v734, %v3565
    %vm3568 = vcmp.eq.s32.totalorder %v735, %v3565
    %vm3569 = vcmp.eq.s32.totalorder %v736, %v3565
    %vm3570 = vcmp.eq.s32.totalorder %v737, %v3565
    %vm3571 = vcmp.eq.s32.totalorder %v738, %v3565
    %vm3572 = vcmp.eq.s32.totalorder %v739, %v3565
    %vm3573 = vcmp.eq.s32.totalorder %v740, %v3565
    %v3574 = vsel %vm3566, 1, 0
    %v3575 = vsel %vm3567, 1, 0
    %v3576 = vsel %vm3568, 1, 0
    %v3577 = vsel %vm3569, 1, 0
    %v3578 = vsel %vm3570, 1, 0
    %v3579 = vsel %vm3571, 1, 0
    %v3580 = vsel %vm3572, 1, 0
    %v3581 = vsel %vm3573, 1, 0
    %v3582 = vcvt.s32.f32 %v3574
    %v3583 = vcvt.s32.f32 %v3575
    %v3584 = vcvt.s32.f32 %v3576
    %v3585 = vcvt.s32.f32 %v3577
    %v3586 = vcvt.s32.f32 %v3578
    %v3587 = vcvt.s32.f32 %v3579
    %v3588 = vcvt.s32.f32 %v3580
    %v3589 = vcvt.s32.f32 %v3581
    %3590 = vrot.lane.b32.xlu0 %v3362, 64
    %v3591 = vpop.permute.xlu0 %3590
    %v3592 = vsel %vm371, %v3591, 0
    %3594 = vmatprep.subr.mxu0 0.0
    %3595 = vmatpush1.msra.mxu0 0.0
    %3596 = vmatprep.subr.mxu0 0.0
    %3597 = vmatpush1.msra.mxu0 0.0
    %3598 = vmatprep.subr.mxu0 0.0
    %3599 = vmatpush1.msra.mxu0 0.0
    %3600 = vmatprep.subr.mxu0 0.0
    %3601 = vmatpush1.msra.mxu0 0.0
    %3602 = vmatprep.subr.mxu0 0.0
    %3603 = vmatpush1.msra.mxu0 0.0
    %3604 = vmatprep.subr.mxu0 0.0
    %3605 = vmatpush1.msra.mxu0 0.0
    %3606 = vmatprep.subr.mxu0 0.0
    %3607 = vmatpush1.msra.mxu0 0.0
    %3608 = vmatprep.subr.mxu0 0.0
    %3609 = vmatpush1.msra.mxu0 0.0
    %3610 = vmatprep.subr.mxu0 0.0
    %3611 = vmatpush1.msra.mxu0 %v3589
    %3612 = vmatprep.subr.mxu0 0.0
    %3613 = vmatpush1.msra.mxu0 %v3588
    %3614 = vmatprep.subr.mxu0 0.0
    %3615 = vmatpush1.msra.mxu0 %v3587
    %3616 = vmatprep.subr.mxu0 0.0
    %3617 = vmatpush1.msra.mxu0 %v3586
    %3618 = vmatprep.subr.mxu0 0.0
    %3619 = vmatpush1.msra.mxu0 %v3585
    %3620 = vmatprep.subr.mxu0 0.0
    %3621 = vmatpush1.msra.mxu0 %v3584
    %3622 = vmatprep.subr.mxu0 0.0
    %3623 = vmatpush1.msra.mxu0 %v3583
    %3624 = vmatprep.subr.mxu0 0.0
    %3625 = vmatpush1.msra.mxu0 %v3582
    %3626 = vmatprep.subr.mxu0 0.0
    %3627 = vmatpush2.msra.mxu0 0.0
    %3628 = vmatprep.subr.mxu0 0.0
    %3629 = vmatpush2.msra.mxu0 0.0
    %3630 = vmatprep.subr.mxu0 0.0
    %3631 = vmatpush2.msra.mxu0 0.0
    %3632 = vmatprep.subr.mxu0 0.0
    %3633 = vmatpush2.msra.mxu0 0.0
    %3634 = vmatprep.subr.mxu0 0.0
    %3635 = vmatpush2.msra.mxu0 0.0
    %3636 = vmatprep.subr.mxu0 0.0
    %3637 = vmatpush2.msra.mxu0 0.0
    %3638 = vmatprep.subr.mxu0 0.0
    %3639 = vmatpush2.msra.mxu0 0.0
    %3640 = vmatprep.subr.mxu0 0.0
    %3641 = vmatpush2.msra.mxu0 0.0
    %3642 = vmatprep.subr.mxu0 0.0
    %3643 = vmatpush2.msra.mxu0 0.0
    %3644 = vmatprep.subr.mxu0 0.0
    %3645 = vmatpush2.msra.mxu0 0.0
    %3646 = vmatprep.subr.mxu0 0.0
    %3647 = vmatpush2.msra.mxu0 0.0
    %3648 = vmatprep.subr.mxu0 0.0
    %3649 = vmatpush2.msra.mxu0 0.0
    %3650 = vmatprep.subr.mxu0 0.0
    %3651 = vmatpush2.msra.mxu0 0.0
    %3652 = vmatprep.subr.mxu0 0.0
    %3653 = vmatpush2.msra.mxu0 0.0
    %3654 = vmatprep.subr.mxu0 0.0
    %3655 = vmatpush2.msra.mxu0 0.0
    %3656 = vmatprep.subr.mxu0 0.0
    %3657 = vmatpush2.msra.mxu0 0.0
    %3658 = vmatprep.mubr.f32.mxu0 0.0
    %3659 = vmatmul.mubr.f32.gmra.mxu0 %v3592
    %v3660 = vpop.f32.mrf.mxu0
    %v3661 = vadd.f32 0.0, %v3660
    %v3662 = vpop.f32.mrf.mxu0
    %3663 = vdwg.mxu0
    %v3664 = vlaneseq
    %v3665 = vshrl.u32 %v3664, 7
    %v3666 = vsub.s32 0, %v3665
    %v3667 = vrot.slane %v350, %v3666
    %vm3668 = vcmp.eq.s32.totalorder %v733, %v3667
    %vm3669 = vcmp.eq.s32.totalorder %v734, %v3667
    %vm3670 = vcmp.eq.s32.totalorder %v735, %v3667
    %vm3671 = vcmp.eq.s32.totalorder %v736, %v3667
    %vm3672 = vcmp.eq.s32.totalorder %v737, %v3667
    %vm3673 = vcmp.eq.s32.totalorder %v738, %v3667
    %vm3674 = vcmp.eq.s32.totalorder %v739, %v3667
    %vm3675 = vcmp.eq.s32.totalorder %v740, %v3667
    %v3676 = vsel %vm3668, 1, 0
    %v3677 = vsel %vm3669, 1, 0
    %v3678 = vsel %vm3670, 1, 0
    %v3679 = vsel %vm3671, 1, 0
    %v3680 = vsel %vm3672, 1, 0
    %v3681 = vsel %vm3673, 1, 0
    %v3682 = vsel %vm3674, 1, 0
    %v3683 = vsel %vm3675, 1, 0
    %v3684 = vcvt.s32.f32 %v3676
    %v3685 = vcvt.s32.f32 %v3677
    %v3686 = vcvt.s32.f32 %v3678
    %v3687 = vcvt.s32.f32 %v3679
    %v3688 = vcvt.s32.f32 %v3680
    %v3689 = vcvt.s32.f32 %v3681
    %v3690 = vcvt.s32.f32 %v3682
    %v3691 = vcvt.s32.f32 %v3683
    %3692 = vmatprep.subr.mxu0 0.0
    %3693 = vmatpush1.msra.mxu0 0.0
    %3694 = vmatprep.subr.mxu0 0.0
    %3695 = vmatpush1.msra.mxu0 0.0
    %3696 = vmatprep.subr.mxu0 0.0
    %3697 = vmatpush1.msra.mxu0 0.0
    %3698 = vmatprep.subr.mxu0 0.0
    %3699 = vmatpush1.msra.mxu0 0.0
    %3700 = vmatprep.subr.mxu0 0.0
    %3701 = vmatpush1.msra.mxu0 0.0
    %3702 = vmatprep.subr.mxu0 0.0
    %3703 = vmatpush1.msra.mxu0 0.0
    %3704 = vmatprep.subr.mxu0 0.0
    %3705 = vmatpush1.msra.mxu0 0.0
    %3706 = vmatprep.subr.mxu0 0.0
    %3707 = vmatpush1.msra.mxu0 0.0
    %3708 = vmatprep.subr.mxu0 0.0
    %3709 = vmatpush1.msra.mxu0 %v3691
    %3710 = vmatprep.subr.mxu0 0.0
    %3711 = vmatpush1.msra.mxu0 %v3690
    %3712 = vmatprep.subr.mxu0 0.0
    %3713 = vmatpush1.msra.mxu0 %v3689
    %3714 = vmatprep.subr.mxu0 0.0
    %3715 = vmatpush1.msra.mxu0 %v3688
    %3716 = vmatprep.subr.mxu0 0.0
    %3717 = vmatpush1.msra.mxu0 %v3687
    %3718 = vmatprep.subr.mxu0 0.0
    %3719 = vmatpush1.msra.mxu0 %v3686
    %3720 = vmatprep.subr.mxu0 0.0
    %3721 = vmatpush1.msra.mxu0 %v3685
    %3722 = vmatprep.subr.mxu0 0.0
    %3723 = vmatpush1.msra.mxu0 %v3684
    %3724 = vmatprep.subr.mxu0 0.0
    %3725 = vmatpush2.msra.mxu0 0.0
    %3726 = vmatprep.subr.mxu0 0.0
    %3727 = vmatpush2.msra.mxu0 0.0
    %3728 = vmatprep.subr.mxu0 0.0
    %3729 = vmatpush2.msra.mxu0 0.0
    %3730 = vmatprep.subr.mxu0 0.0
    %3731 = vmatpush2.msra.mxu0 0.0
    %3732 = vmatprep.subr.mxu0 0.0
    %3733 = vmatpush2.msra.mxu0 0.0
    %3734 = vmatprep.subr.mxu0 0.0
    %3735 = vmatpush2.msra.mxu0 0.0
    %3736 = vmatprep.subr.mxu0 0.0
    %3737 = vmatpush2.msra.mxu0 0.0
    %3738 = vmatprep.subr.mxu0 0.0
    %3739 = vmatpush2.msra.mxu0 0.0
    %3740 = vmatprep.subr.mxu0 0.0
    %3741 = vmatpush2.msra.mxu0 0.0
    %3742 = vmatprep.subr.mxu0 0.0
    %3743 = vmatpush2.msra.mxu0 0.0
    %3744 = vmatprep.subr.mxu0 0.0
    %3745 = vmatpush2.msra.mxu0 0.0
    %3746 = vmatprep.subr.mxu0 0.0
    %3747 = vmatpush2.msra.mxu0 0.0
    %3748 = vmatprep.subr.mxu0 0.0
    %3749 = vmatpush2.msra.mxu0 0.0
    %3750 = vmatprep.subr.mxu0 0.0
    %3751 = vmatpush2.msra.mxu0 0.0
    %3752 = vmatprep.subr.mxu0 0.0
    %3753 = vmatpush2.msra.mxu0 0.0
    %3754 = vmatprep.subr.mxu0 0.0
    %3755 = vmatpush2.msra.mxu0 0.0
    %3756 = vmatprep.mubr.f32.mxu0 0.0
    %3757 = vmatmul.mubr.f32.gmra.mxu0 %v3592
    %v3758 = vpop.f32.mrf.mxu0
    %v3759 = vadd.f32 0.0, %v3758
    %v3760 = vpop.f32.mrf.mxu0
    %3761 = vdwg.mxu0
    %3763 = vrot.lane.b32.xlu0 %v3661, 64
    %v3764 = vpop.permute.xlu0 %3763
    %3767 = vrot.lane.b32.xlu0 %v3759, 64
    %v3768 = vpop.permute.xlu0 %3767
    %v3770 = vsel %vm371, %v3461, %v3764
    %v3771 = vsel %vm371, %v3559, %v3768
    %3773 = vset.pattern.permute.xlu0 0
    %3774 = vperm.xlu0 %3773, %v319
    %v3775 = vpop.permute.xlu0 %3774
    %v3778 = vsel %vm3169, %v321, 0
    %3780 = vmatprep.subr.mxu0 0.0
    %3781 = vmatpush1.msra.mxu0 0.0
    %3782 = vmatprep.subr.mxu0 0.0
    %3783 = vmatpush1.msra.mxu0 0.0
    %3784 = vmatprep.subr.mxu0 0.0
    %3785 = vmatpush1.msra.mxu0 0.0
    %3786 = vmatprep.subr.mxu0 0.0
    %3787 = vmatpush1.msra.mxu0 0.0
    %3788 = vmatprep.subr.mxu0 0.0
    %3789 = vmatpush1.msra.mxu0 0.0
    %3790 = vmatprep.subr.mxu0 0.0
    %3791 = vmatpush1.msra.mxu0 0.0
    %3792 = vmatprep.subr.mxu0 0.0
    %3793 = vmatpush1.msra.mxu0 0.0
    %3794 = vmatprep.subr.mxu0 0.0
    %3795 = vmatpush1.msra.mxu0 0.0
    %3796 = vmatprep.subr.mxu0 0.0
    %3797 = vmatpush1.msra.mxu0 0.0
    %3798 = vmatprep.subr.mxu0 0.0
    %3799 = vmatpush1.msra.mxu0 0.0
    %3800 = vmatprep.subr.mxu0 0.0
    %3801 = vmatpush1.msra.mxu0 0.0
    %3802 = vmatprep.subr.mxu0 0.0
    %3803 = vmatpush1.msra.mxu0 0.0
    %3804 = vmatprep.subr.mxu0 0.0
    %3805 = vmatpush1.msra.mxu0 0.0
    %3806 = vmatprep.subr.mxu0 0.0
    %3807 = vmatpush1.msra.mxu0 %v3771
    %3808 = vmatprep.subr.mxu0 0.0
    %3809 = vmatpush1.msra.mxu0 %v3770
    %3810 = vmatprep.subr.mxu0 0.0
    %3811 = vmatpush1.msra.mxu0 %v3362
    %3812 = vmatprep.subr.mxu0 0.0
    %3813 = vmatpush2.msra.mxu0 0.0
    %3814 = vmatprep.subr.mxu0 0.0
    %3815 = vmatpush2.msra.mxu0 0.0
    %3816 = vmatprep.subr.mxu0 0.0
    %3817 = vmatpush2.msra.mxu0 0.0
    %3818 = vmatprep.subr.mxu0 0.0
    %3819 = vmatpush2.msra.mxu0 0.0
    %3820 = vmatprep.subr.mxu0 0.0
    %3821 = vmatpush2.msra.mxu0 0.0
    %3822 = vmatprep.subr.mxu0 0.0
    %3823 = vmatpush2.msra.mxu0 0.0
    %3824 = vmatprep.subr.mxu0 0.0
    %3825 = vmatpush2.msra.mxu0 0.0
    %3826 = vmatprep.subr.mxu0 0.0
    %3827 = vmatpush2.msra.mxu0 0.0
    %3828 = vmatprep.subr.mxu0 0.0
    %3829 = vmatpush2.msra.mxu0 0.0
    %3830 = vmatprep.subr.mxu0 0.0
    %3831 = vmatpush2.msra.mxu0 0.0
    %3832 = vmatprep.subr.mxu0 0.0
    %3833 = vmatpush2.msra.mxu0 0.0
    %3834 = vmatprep.subr.mxu0 0.0
    %3835 = vmatpush2.msra.mxu0 0.0
    %3836 = vmatprep.subr.mxu0 0.0
    %3837 = vmatpush2.msra.mxu0 0.0
    %3838 = vmatprep.subr.mxu0 0.0
    %3839 = vmatpush2.msra.mxu0 0.0
    %3840 = vmatprep.subr.mxu0 0.0
    %3841 = vmatpush2.msra.mxu0 0.0
    %3842 = vmatprep.subr.mxu0 0.0
    %3843 = vmatpush2.msra.mxu0 0.0
    %3844 = vmatprep.mubr.f32.mxu0 0.0
    %3845 = vmatmul.mubr.f32.gmra.mxu0 %v3778
    %v3846 = vpop.f32.mrf.mxu0
    %v3847 = vadd.f32 %v3775, %v3846
    %v3848 = vpop.f32.mrf.mxu0
    %3849 = vdwg.mxu0
    %vm3850 = vcmp.ge.f32.partialorder %v3847, 0.0
    %v3851 = vmul.f32 %v3847, 0.1
    %v3852 = vsel %vm3850, %v3847, %v3851
    %3854 = vrot.lane.b32.xlu0 %v3852, 1
    %v3855 = vpop.permute.xlu0 %3854
    %v3857 = vsel %vm772, 0.0, %v3855
    %v3858 = vsel %vm774, %v3857, 0.0
    %3860 = vrot.lane.b32.xlu0 %v3858, 127
    %v3861 = vpop.permute.xlu0 %3860
    %3863 = vrot.lane.b32.xlu0 %v3858, 126
    %v3864 = vpop.permute.xlu0 %3863
    %3866 = vrot.lane.b32.xlu0 %v3852, 65
    %v3867 = vpop.permute.xlu0 %3866
    %v3869 = vsel %vm772, 0.0, %v3867
    %v3870 = vsel %vm774, %v3869, 0.0
    %3872 = vrot.lane.b32.xlu0 %v3870, 127
    %v3873 = vpop.permute.xlu0 %3872
    %3874 = vrot.lane.b32.xlu0 %v3870, 126
    %v3875 = vpop.permute.xlu0 %3874
    %3876 = vrot.lane.b32.xlu0 %v3870, 64
    %v3877 = vpop.permute.xlu0 %3876
    %3878 = vrot.lane.b32.xlu0 %v3873, 64
    %v3879 = vpop.permute.xlu0 %3878
    %3880 = vrot.lane.b32.xlu0 %v3875, 64
    %v3881 = vpop.permute.xlu0 %3880
    %v3885 = vsel %vm371, %v3858, %v3877
    %v3886 = vsel %vm371, %v3861, %v3879
    %v3887 = vsel %vm371, %v3864, %v3881
    %3889 = vset.pattern.permute.xlu0 0
    %3890 = vperm.xlu0 %3889, %v320
    %v3891 = vpop.permute.xlu0 %3890
    %v3894 = vsel %vm3169, %v322, 0
    %3896 = vmatprep.subr.mxu0 0.0
    %3897 = vmatpush1.msra.mxu0 0.0
    %3898 = vmatprep.subr.mxu0 0.0
    %3899 = vmatpush1.msra.mxu0 0.0
    %3900 = vmatprep.subr.mxu0 0.0
    %3901 = vmatpush1.msra.mxu0 0.0
    %3902 = vmatprep.subr.mxu0 0.0
    %3903 = vmatpush1.msra.mxu0 0.0
    %3904 = vmatprep.subr.mxu0 0.0
    %3905 = vmatpush1.msra.mxu0 0.0
    %3906 = vmatprep.subr.mxu0 0.0
    %3907 = vmatpush1.msra.mxu0 0.0
    %3908 = vmatprep.subr.mxu0 0.0
    %3909 = vmatpush1.msra.mxu0 0.0
    %3910 = vmatprep.subr.mxu0 0.0
    %3911 = vmatpush1.msra.mxu0 0.0
    %3912 = vmatprep.subr.mxu0 0.0
    %3913 = vmatpush1.msra.mxu0 0.0
    %3914 = vmatprep.subr.mxu0 0.0
    %3915 = vmatpush1.msra.mxu0 0.0
    %3916 = vmatprep.subr.mxu0 0.0
    %3917 = vmatpush1.msra.mxu0 0.0
    %3918 = vmatprep.subr.mxu0 0.0
    %3919 = vmatpush1.msra.mxu0 0.0
    %3920 = vmatprep.subr.mxu0 0.0
    %3921 = vmatpush1.msra.mxu0 0.0
    %3922 = vmatprep.subr.mxu0 0.0
    %3923 = vmatpush1.msra.mxu0 %v3887
    %3924 = vmatprep.subr.mxu0 0.0
    %3925 = vmatpush1.msra.mxu0 %v3886
    %3926 = vmatprep.subr.mxu0 0.0
    %3927 = vmatpush1.msra.mxu0 %v3885
    %3928 = vmatprep.subr.mxu0 0.0
    %3929 = vmatpush2.msra.mxu0 0.0
    %3930 = vmatprep.subr.mxu0 0.0
    %3931 = vmatpush2.msra.mxu0 0.0
    %3932 = vmatprep.subr.mxu0 0.0
    %3933 = vmatpush2.msra.mxu0 0.0
    %3934 = vmatprep.subr.mxu0 0.0
    %3935 = vmatpush2.msra.mxu0 0.0
    %3936 = vmatprep.subr.mxu0 0.0
    %3937 = vmatpush2.msra.mxu0 0.0
    %3938 = vmatprep.subr.mxu0 0.0
    %3939 = vmatpush2.msra.mxu0 0.0
    %3940 = vmatprep.subr.mxu0 0.0
    %3941 = vmatpush2.msra.mxu0 0.0
    %3942 = vmatprep.subr.mxu0 0.0
    %3943 = vmatpush2.msra.mxu0 0.0
    %3944 = vmatprep.subr.mxu0 0.0
    %3945 = vmatpush2.msra.mxu0 0.0
    %3946 = vmatprep.subr.mxu0 0.0
    %3947 = vmatpush2.msra.mxu0 0.0
    %3948 = vmatprep.subr.mxu0 0.0
    %3949 = vmatpush2.msra.mxu0 0.0
    %3950 = vmatprep.subr.mxu0 0.0
    %3951 = vmatpush2.msra.mxu0 0.0
    %3952 = vmatprep.subr.mxu0 0.0
    %3953 = vmatpush2.msra.mxu0 0.0
    %3954 = vmatprep.subr.mxu0 0.0
    %3955 = vmatpush2.msra.mxu0 0.0
    %3956 = vmatprep.subr.mxu0 0.0
    %3957 = vmatpush2.msra.mxu0 0.0
    %3958 = vmatprep.subr.mxu0 0.0
    %3959 = vmatpush2.msra.mxu0 0.0
    %3960 = vmatprep.mubr.f32.mxu0 0.0
    %3961 = vmatmul.mubr.f32.gmra.mxu0 %v3894
    %v3962 = vpop.f32.mrf.mxu0
    %v3963 = vadd.f32 %v3891, %v3962
    %v3964 = vpop.f32.mrf.mxu0
    %3965 = vdwg.mxu0
    %v3966 = vadd.f32 %v3359, %v3963
    %vm3967 = vcmp.ge.f32.partialorder %v3966, 0.0
    %v3968 = vmul.f32 %v3966, 0.01
    %v3969 = vsel %vm3967, %v3966, %v3968
    %3971 = vrot.lane.b32.xlu0 %v3969, 3
    %v3972 = vpop.permute.xlu0 %3971
    %v3974 = vsel %vm377, 0.0, %v3972
    %v3975 = vsel %vm569, %v3974, 0.0
    %3977 = vrot.lane.b32.xlu0 %v3975, 127
    %v3978 = vpop.permute.xlu0 %3977
    %3980 = vrot.lane.b32.xlu0 %v3975, 126
    %v3981 = vpop.permute.xlu0 %3980
    %3983 = vrot.lane.b32.xlu0 %v3975, 125
    %v3984 = vpop.permute.xlu0 %3983
    %3986 = vrot.lane.b32.xlu0 %v3975, 124
    %v3987 = vpop.permute.xlu0 %3986
    %3989 = vrot.lane.b32.xlu0 %v3975, 123
    %v3990 = vpop.permute.xlu0 %3989
    %3992 = vrot.lane.b32.xlu0 %v3975, 122
    %v3993 = vpop.permute.xlu0 %3992
    %3995 = vrot.lane.b32.xlu0 %v3969, 67
    %v3996 = vpop.permute.xlu0 %3995
    %v3998 = vsel %vm377, 0.0, %v3996
    %v3999 = vsel %vm569, %v3998, 0.0
    %4001 = vrot.lane.b32.xlu0 %v3999, 127
    %v4002 = vpop.permute.xlu0 %4001
    %4003 = vrot.lane.b32.xlu0 %v3999, 126
    %v4004 = vpop.permute.xlu0 %4003
    %4005 = vrot.lane.b32.xlu0 %v3999, 125
    %v4006 = vpop.permute.xlu0 %4005
    %4007 = vrot.lane.b32.xlu0 %v3999, 124
    %v4008 = vpop.permute.xlu0 %4007
    %4009 = vrot.lane.b32.xlu0 %v3999, 123
    %v4010 = vpop.permute.xlu0 %4009
    %4011 = vrot.lane.b32.xlu0 %v3999, 122
    %v4012 = vpop.permute.xlu0 %4011
    %4013 = vrot.lane.b32.xlu0 %v3999, 64
    %v4014 = vpop.permute.xlu0 %4013
    %4015 = vrot.lane.b32.xlu0 %v4002, 64
    %v4016 = vpop.permute.xlu0 %4015
    %4017 = vrot.lane.b32.xlu0 %v4004, 64
    %v4018 = vpop.permute.xlu0 %4017
    %4019 = vrot.lane.b32.xlu0 %v4006, 64
    %v4020 = vpop.permute.xlu0 %4019
    %4021 = vrot.lane.b32.xlu0 %v4008, 64
    %v4022 = vpop.permute.xlu0 %4021
    %4023 = vrot.lane.b32.xlu0 %v4010, 64
    %v4024 = vpop.permute.xlu0 %4023
    %4025 = vrot.lane.b32.xlu0 %v4012, 64
    %v4026 = vpop.permute.xlu0 %4025
    %v4034 = vsel %vm371, %v3975, %v4014
    %v4035 = vsel %vm371, %v3978, %v4016
    %v4036 = vsel %vm371, %v3981, %v4018
    %v4037 = vsel %vm371, %v3984, %v4020
    %v4038 = vsel %vm371, %v3987, %v4022
    %v4039 = vsel %vm371, %v3990, %v4024
    %v4040 = vsel %vm371, %v3993, %v4026
    %4042 = vset.pattern.permute.xlu0 0
    %4043 = vperm.xlu0 %4042, %v329
    %v4044 = vpop.permute.xlu0 %4043
    %v4046 = vlaneseq
    %v4047 = vshrl.u32 %v4046, 7
    %v4048 = vsub.s32 0, %v4047
    %v4049 = vrot.slane %v4044, %v4048
    %v4051 = vsel %vm466, %v330, 0
    %4053 = vmatprep.subr.mxu0 0.0
    %4054 = vmatpush1.msra.mxu0 0.0
    %4055 = vmatprep.subr.mxu0 0.0
    %4056 = vmatpush1.msra.mxu0 0.0
    %4057 = vmatprep.subr.mxu0 0.0
    %4058 = vmatpush1.msra.mxu0 0.0
    %4059 = vmatprep.subr.mxu0 0.0
    %4060 = vmatpush1.msra.mxu0 0.0
    %4061 = vmatprep.subr.mxu0 0.0
    %4062 = vmatpush1.msra.mxu0 0.0
    %4063 = vmatprep.subr.mxu0 0.0
    %4064 = vmatpush1.msra.mxu0 0.0
    %4065 = vmatprep.subr.mxu0 0.0
    %4066 = vmatpush1.msra.mxu0 0.0
    %4067 = vmatprep.subr.mxu0 0.0
    %4068 = vmatpush1.msra.mxu0 0.0
    %4069 = vmatprep.subr.mxu0 0.0
    %4070 = vmatpush1.msra.mxu0 0.0
    %4071 = vmatprep.subr.mxu0 0.0
    %4072 = vmatpush1.msra.mxu0 %v4040
    %4073 = vmatprep.subr.mxu0 0.0
    %4074 = vmatpush1.msra.mxu0 %v4039
    %4075 = vmatprep.subr.mxu0 0.0
    %4076 = vmatpush1.msra.mxu0 %v4038
    %4077 = vmatprep.subr.mxu0 0.0
    %4078 = vmatpush1.msra.mxu0 %v4037
    %4079 = vmatprep.subr.mxu0 0.0
    %4080 = vmatpush1.msra.mxu0 %v4036
    %4081 = vmatprep.subr.mxu0 0.0
    %4082 = vmatpush1.msra.mxu0 %v4035
    %4083 = vmatprep.subr.mxu0 0.0
    %4084 = vmatpush1.msra.mxu0 %v4034
    %4085 = vmatprep.subr.mxu0 0.0
    %4086 = vmatpush2.msra.mxu0 0.0
    %4087 = vmatprep.subr.mxu0 0.0
    %4088 = vmatpush2.msra.mxu0 0.0
    %4089 = vmatprep.subr.mxu0 0.0
    %4090 = vmatpush2.msra.mxu0 0.0
    %4091 = vmatprep.subr.mxu0 0.0
    %4092 = vmatpush2.msra.mxu0 0.0
    %4093 = vmatprep.subr.mxu0 0.0
    %4094 = vmatpush2.msra.mxu0 0.0
    %4095 = vmatprep.subr.mxu0 0.0
    %4096 = vmatpush2.msra.mxu0 0.0
    %4097 = vmatprep.subr.mxu0 0.0
    %4098 = vmatpush2.msra.mxu0 0.0
    %4099 = vmatprep.subr.mxu0 0.0
    %4100 = vmatpush2.msra.mxu0 0.0
    %4101 = vmatprep.subr.mxu0 0.0
    %4102 = vmatpush2.msra.mxu0 0.0
    %4103 = vmatprep.subr.mxu0 0.0
    %4104 = vmatpush2.msra.mxu0 0.0
    %4105 = vmatprep.subr.mxu0 0.0
    %4106 = vmatpush2.msra.mxu0 0.0
    %4107 = vmatprep.subr.mxu0 0.0
    %4108 = vmatpush2.msra.mxu0 0.0
    %4109 = vmatprep.subr.mxu0 0.0
    %4110 = vmatpush2.msra.mxu0 0.0
    %4111 = vmatprep.subr.mxu0 0.0
    %4112 = vmatpush2.msra.mxu0 0.0
    %4113 = vmatprep.subr.mxu0 0.0
    %4114 = vmatpush2.msra.mxu0 0.0
    %4115 = vmatprep.subr.mxu0 0.0
    %4116 = vmatpush2.msra.mxu0 0.0
    %4117 = vmatprep.mubr.f32.mxu0 0.0
    %4118 = vmatmul.mubr.f32.gmra.mxu0 %v4051
    %v4119 = vpop.f32.mrf.mxu0
    %v4120 = vadd.f32 %v4049, %v4119
    %v4121 = vpop.f32.mrf.mxu0
    %4122 = vdwg.mxu0
    %4124 = vrot.lane.b32.xlu0 %v3966, 1
    %v4125 = vpop.permute.xlu0 %4124
    %v4127 = vsel %vm772, 0.0, %v4125
    %v4128 = vsel %vm774, %v4127, 0.0
    %4130 = vrot.lane.b32.xlu0 %v4128, 127
    %v4131 = vpop.permute.xlu0 %4130
    %4132 = vrot.lane.b32.xlu0 %v4128, 126
    %v4133 = vpop.permute.xlu0 %4132
    %4134 = vrot.lane.b32.xlu0 %v4128, 125
    %v4135 = vpop.permute.xlu0 %4134
    %v4136 = vsel %vm783, %v4128, 0
    %v4138 = vsel %vm783, %v4131, 0
    %v4140 = vsel %vm783, %v4133, 0
    %v4142 = vsel %vm783, %v4135, 0
    %4144 = vmatprep.subr.mxu0 0.0
    %4145 = vmatpush1.msra.mxu0 0.0
    %4146 = vmatprep.subr.mxu0 0.0
    %4147 = vmatpush1.msra.mxu0 0.0
    %4148 = vmatprep.subr.mxu0 0.0
    %4149 = vmatpush1.msra.mxu0 0.0
    %4150 = vmatprep.subr.mxu0 0.0
    %4151 = vmatpush1.msra.mxu0 0.0
    %4152 = vmatprep.subr.mxu0 0.0
    %4153 = vmatpush1.msra.mxu0 0.0
    %4154 = vmatprep.subr.mxu0 0.0
    %4155 = vmatpush1.msra.mxu0 0.0
    %4156 = vmatprep.subr.mxu0 0.0
    %4157 = vmatpush1.msra.mxu0 0.0
    %4158 = vmatprep.subr.mxu0 0.0
    %4159 = vmatpush1.msra.mxu0 0.0
    %4160 = vmatprep.subr.mxu0 0.0
    %4161 = vmatpush1.msra.mxu0 %v793
    %4162 = vmatprep.subr.mxu0 0.0
    %4163 = vmatpush1.msra.mxu0 %v766
    %4164 = vmatprep.subr.mxu0 0.0
    %4165 = vmatpush1.msra.mxu0 %v765
    %4166 = vmatprep.subr.mxu0 0.0
    %4167 = vmatpush1.msra.mxu0 %v764
    %4168 = vmatprep.subr.mxu0 0.0
    %4169 = vmatpush1.msra.mxu0 %v763
    %4170 = vmatprep.subr.mxu0 0.0
    %4171 = vmatpush1.msra.mxu0 %v762
    %4172 = vmatprep.subr.mxu0 0.0
    %4173 = vmatpush1.msra.mxu0 %v761
    %4174 = vmatprep.subr.mxu0 0.0
    %4175 = vmatpush1.msra.mxu0 %v760
    %4176 = vmatprep.subr.mxu0 0.0
    %4177 = vmatpush2.msra.mxu0 0.0
    %4178 = vmatprep.subr.mxu0 0.0
    %4179 = vmatpush2.msra.mxu0 0.0
    %4180 = vmatprep.subr.mxu0 0.0
    %4181 = vmatpush2.msra.mxu0 0.0
    %4182 = vmatprep.subr.mxu0 0.0
    %4183 = vmatpush2.msra.mxu0 0.0
    %4184 = vmatprep.subr.mxu0 0.0
    %4185 = vmatpush2.msra.mxu0 0.0
    %4186 = vmatprep.subr.mxu0 0.0
    %4187 = vmatpush2.msra.mxu0 0.0
    %4188 = vmatprep.subr.mxu0 0.0
    %4189 = vmatpush2.msra.mxu0 0.0
    %4190 = vmatprep.subr.mxu0 0.0
    %4191 = vmatpush2.msra.mxu0 0.0
    %4192 = vmatprep.subr.mxu0 0.0
    %4193 = vmatpush2.msra.mxu0 0.0
    %4194 = vmatprep.subr.mxu0 0.0
    %4195 = vmatpush2.msra.mxu0 0.0
    %4196 = vmatprep.subr.mxu0 0.0
    %4197 = vmatpush2.msra.mxu0 0.0
    %4198 = vmatprep.subr.mxu0 0.0
    %4199 = vmatpush2.msra.mxu0 0.0
    %4200 = vmatprep.subr.mxu0 0.0
    %4201 = vmatpush2.msra.mxu0 0.0
    %4202 = vmatprep.subr.mxu0 0.0
    %4203 = vmatpush2.msra.mxu0 0.0
    %4204 = vmatprep.subr.mxu0 0.0
    %4205 = vmatpush2.msra.mxu0 0.0
    %4206 = vmatprep.subr.mxu0 0.0
    %4207 = vmatpush2.msra.mxu0 0.0
    %4208 = vmatprep.mubr.f32.mxu0 0.0
    %4209 = vmatmul.mubr.f32.gmra.mxu0 %v4136
    %v4210 = vpop.f32.mrf.mxu0
    %v4211 = vadd.f32 0.0, %v4210
    %v4212 = vpop.f32.mrf.mxu0
    %4213 = vmatprep.mubr.f32.mxu0 0.0
    %4214 = vmatmul.mubr.f32.gmra.mxu0 %v4138
    %v4215 = vpop.f32.mrf.mxu0
    %v4216 = vadd.f32 0.0, %v4215
    %v4217 = vpop.f32.mrf.mxu0
    %4218 = vmatprep.mubr.f32.mxu0 0.0
    %4219 = vmatmul.mubr.f32.gmra.mxu0 %v4140
    %v4220 = vpop.f32.mrf.mxu0
    %v4221 = vadd.f32 0.0, %v4220
    %v4222 = vpop.f32.mrf.mxu0
    %4223 = vmatprep.mubr.f32.mxu0 0.0
    %4224 = vmatmul.mubr.f32.gmra.mxu0 %v4142
    %v4225 = vpop.f32.mrf.mxu0
    %v4226 = vadd.f32 0.0, %v4225
    %v4227 = vpop.f32.mrf.mxu0
    %4228 = vdwg.mxu0
    %4229 = vrot.lane.b32.xlu0 %v3966, 65
    %v4230 = vpop.permute.xlu0 %4229
    %v4232 = vsel %vm772, 0.0, %v4230
    %v4233 = vsel %vm774, %v4232, 0.0
    %4235 = vrot.lane.b32.xlu0 %v4233, 127
    %v4236 = vpop.permute.xlu0 %4235
    %4237 = vrot.lane.b32.xlu0 %v4233, 126
    %v4238 = vpop.permute.xlu0 %4237
    %4239 = vrot.lane.b32.xlu0 %v4233, 125
    %v4240 = vpop.permute.xlu0 %4239
    %v4241 = vsel %vm783, %v4233, 0
    %v4243 = vsel %vm783, %v4236, 0
    %v4245 = vsel %vm783, %v4238, 0
    %v4247 = vsel %vm783, %v4240, 0
    %4249 = vmatprep.subr.mxu0 0.0
    %4250 = vmatpush1.msra.mxu0 0.0
    %4251 = vmatprep.subr.mxu0 0.0
    %4252 = vmatpush1.msra.mxu0 0.0
    %4253 = vmatprep.subr.mxu0 0.0
    %4254 = vmatpush1.msra.mxu0 0.0
    %4255 = vmatprep.subr.mxu0 0.0
    %4256 = vmatpush1.msra.mxu0 0.0
    %4257 = vmatprep.subr.mxu0 0.0
    %4258 = vmatpush1.msra.mxu0 0.0
    %4259 = vmatprep.subr.mxu0 0.0
    %4260 = vmatpush1.msra.mxu0 0.0
    %4261 = vmatprep.subr.mxu0 0.0
    %4262 = vmatpush1.msra.mxu0 0.0
    %4263 = vmatprep.subr.mxu0 0.0
    %4264 = vmatpush1.msra.mxu0 0.0
    %4265 = vmatprep.subr.mxu0 0.0
    %4266 = vmatpush1.msra.mxu0 %v793
    %4267 = vmatprep.subr.mxu0 0.0
    %4268 = vmatpush1.msra.mxu0 %v766
    %4269 = vmatprep.subr.mxu0 0.0
    %4270 = vmatpush1.msra.mxu0 %v765
    %4271 = vmatprep.subr.mxu0 0.0
    %4272 = vmatpush1.msra.mxu0 %v764
    %4273 = vmatprep.subr.mxu0 0.0
    %4274 = vmatpush1.msra.mxu0 %v763
    %4275 = vmatprep.subr.mxu0 0.0
    %4276 = vmatpush1.msra.mxu0 %v762
    %4277 = vmatprep.subr.mxu0 0.0
    %4278 = vmatpush1.msra.mxu0 %v761
    %4279 = vmatprep.subr.mxu0 0.0
    %4280 = vmatpush1.msra.mxu0 %v760
    %4281 = vmatprep.subr.mxu0 0.0
    %4282 = vmatpush2.msra.mxu0 0.0
    %4283 = vmatprep.subr.mxu0 0.0
    %4284 = vmatpush2.msra.mxu0 0.0
    %4285 = vmatprep.subr.mxu0 0.0
    %4286 = vmatpush2.msra.mxu0 0.0
    %4287 = vmatprep.subr.mxu0 0.0
    %4288 = vmatpush2.msra.mxu0 0.0
    %4289 = vmatprep.subr.mxu0 0.0
    %4290 = vmatpush2.msra.mxu0 0.0
    %4291 = vmatprep.subr.mxu0 0.0
    %4292 = vmatpush2.msra.mxu0 0.0
    %4293 = vmatprep.subr.mxu0 0.0
    %4294 = vmatpush2.msra.mxu0 0.0
    %4295 = vmatprep.subr.mxu0 0.0
    %4296 = vmatpush2.msra.mxu0 0.0
    %4297 = vmatprep.subr.mxu0 0.0
    %4298 = vmatpush2.msra.mxu0 0.0
    %4299 = vmatprep.subr.mxu0 0.0
    %4300 = vmatpush2.msra.mxu0 0.0
    %4301 = vmatprep.subr.mxu0 0.0
    %4302 = vmatpush2.msra.mxu0 0.0
    %4303 = vmatprep.subr.mxu0 0.0
    %4304 = vmatpush2.msra.mxu0 0.0
    %4305 = vmatprep.subr.mxu0 0.0
    %4306 = vmatpush2.msra.mxu0 0.0
    %4307 = vmatprep.subr.mxu0 0.0
    %4308 = vmatpush2.msra.mxu0 0.0
    %4309 = vmatprep.subr.mxu0 0.0
    %4310 = vmatpush2.msra.mxu0 0.0
    %4311 = vmatprep.subr.mxu0 0.0
    %4312 = vmatpush2.msra.mxu0 0.0
    %4313 = vmatprep.mubr.f32.mxu0 0.0
    %4314 = vmatmul.mubr.f32.gmra.mxu0 %v4241
    %v4315 = vpop.f32.mrf.mxu0
    %v4316 = vadd.f32 0.0, %v4315
    %v4317 = vpop.f32.mrf.mxu0
    %4318 = vmatprep.mubr.f32.mxu0 0.0
    %4319 = vmatmul.mubr.f32.gmra.mxu0 %v4243
    %v4320 = vpop.f32.mrf.mxu0
    %v4321 = vadd.f32 0.0, %v4320
    %v4322 = vpop.f32.mrf.mxu0
    %4323 = vmatprep.mubr.f32.mxu0 0.0
    %4324 = vmatmul.mubr.f32.gmra.mxu0 %v4245
    %v4325 = vpop.f32.mrf.mxu0
    %v4326 = vadd.f32 0.0, %v4325
    %v4327 = vpop.f32.mrf.mxu0
    %4328 = vmatprep.mubr.f32.mxu0 0.0
    %4329 = vmatmul.mubr.f32.gmra.mxu0 %v4247
    %v4330 = vpop.f32.mrf.mxu0
    %v4331 = vadd.f32 0.0, %v4330
    %v4332 = vpop.f32.mrf.mxu0
    %4333 = vdwg.mxu0
    %4338 = vrot.lane.b32.xlu0 %v4316, 32
    %v4339 = vpop.permute.xlu0 %4338
    %4340 = vrot.lane.b32.xlu0 %v4321, 32
    %v4341 = vpop.permute.xlu0 %4340
    %4342 = vrot.lane.b32.xlu0 %v4326, 32
    %v4343 = vpop.permute.xlu0 %4342
    %4344 = vrot.lane.b32.xlu0 %v4331, 32
    %v4345 = vpop.permute.xlu0 %4344
    %v4350 = vsel %vm1001, %v4211, %v4339
    %v4351 = vsel %vm1001, %v4216, %v4341
    %v4352 = vsel %vm1001, %v4221, %v4343
    %v4353 = vsel %vm1001, %v4226, %v4345
    %4355 = vset.pattern.permute.xlu0 0
    %4356 = vperm.xlu0 %4355, %v285
    %v4357 = vpop.permute.xlu0 %4356
    %4360 = vset.pattern.permute.xlu0 0
    %4361 = vperm.xlu0 %4360, %v286
    %v4362 = vpop.permute.xlu0 %4361
    %v4365 = vsel %vm1001, %v287, 0
    %v4368 = vsel %vm1001, %v288, 0
    %4370 = vmatprep.subr.mxu0 0.0
    %4371 = vmatpush1.msra.mxu0 0.0
    %4372 = vmatprep.subr.mxu0 0.0
    %4373 = vmatpush1.msra.mxu0 0.0
    %4374 = vmatprep.subr.mxu0 0.0
    %4375 = vmatpush1.msra.mxu0 0.0
    %4376 = vmatprep.subr.mxu0 0.0
    %4377 = vmatpush1.msra.mxu0 0.0
    %4378 = vmatprep.subr.mxu0 0.0
    %4379 = vmatpush1.msra.mxu0 0.0
    %4380 = vmatprep.subr.mxu0 0.0
    %4381 = vmatpush1.msra.mxu0 0.0
    %4382 = vmatprep.subr.mxu0 0.0
    %4383 = vmatpush1.msra.mxu0 0.0
    %4384 = vmatprep.subr.mxu0 0.0
    %4385 = vmatpush1.msra.mxu0 0.0
    %4386 = vmatprep.subr.mxu0 0.0
    %4387 = vmatpush1.msra.mxu0 0.0
    %4388 = vmatprep.subr.mxu0 0.0
    %4389 = vmatpush1.msra.mxu0 0.0
    %4390 = vmatprep.subr.mxu0 0.0
    %4391 = vmatpush1.msra.mxu0 0.0
    %4392 = vmatprep.subr.mxu0 0.0
    %4393 = vmatpush1.msra.mxu0 0.0
    %4394 = vmatprep.subr.mxu0 0.0
    %4395 = vmatpush1.msra.mxu0 %v4353
    %4396 = vmatprep.subr.mxu0 0.0
    %4397 = vmatpush1.msra.mxu0 %v4352
    %4398 = vmatprep.subr.mxu0 0.0
    %4399 = vmatpush1.msra.mxu0 %v4351
    %4400 = vmatprep.subr.mxu0 0.0
    %4401 = vmatpush1.msra.mxu0 %v4350
    %4402 = vmatprep.subr.mxu0 0.0
    %4403 = vmatpush2.msra.mxu0 0.0
    %4404 = vmatprep.subr.mxu0 0.0
    %4405 = vmatpush2.msra.mxu0 0.0
    %4406 = vmatprep.subr.mxu0 0.0
    %4407 = vmatpush2.msra.mxu0 0.0
    %4408 = vmatprep.subr.mxu0 0.0
    %4409 = vmatpush2.msra.mxu0 0.0
    %4410 = vmatprep.subr.mxu0 0.0
    %4411 = vmatpush2.msra.mxu0 0.0
    %4412 = vmatprep.subr.mxu0 0.0
    %4413 = vmatpush2.msra.mxu0 0.0
    %4414 = vmatprep.subr.mxu0 0.0
    %4415 = vmatpush2.msra.mxu0 0.0
    %4416 = vmatprep.subr.mxu0 0.0
    %4417 = vmatpush2.msra.mxu0 0.0
    %4418 = vmatprep.subr.mxu0 0.0
    %4419 = vmatpush2.msra.mxu0 0.0
    %4420 = vmatprep.subr.mxu0 0.0
    %4421 = vmatpush2.msra.mxu0 0.0
    %4422 = vmatprep.subr.mxu0 0.0
    %4423 = vmatpush2.msra.mxu0 0.0
    %4424 = vmatprep.subr.mxu0 0.0
    %4425 = vmatpush2.msra.mxu0 0.0
    %4426 = vmatprep.subr.mxu0 0.0
    %4427 = vmatpush2.msra.mxu0 0.0
    %4428 = vmatprep.subr.mxu0 0.0
    %4429 = vmatpush2.msra.mxu0 0.0
    %4430 = vmatprep.subr.mxu0 0.0
    %4431 = vmatpush2.msra.mxu0 0.0
    %4432 = vmatprep.subr.mxu0 0.0
    %4433 = vmatpush2.msra.mxu0 0.0
    %4434 = vmatprep.mubr.f32.mxu0 0.0
    %4435 = vmatmul.mubr.f32.gmra.mxu0 %v4365
    %v4436 = vpop.f32.mrf.mxu0
    %v4437 = vadd.f32 %v4357, %v4436
    %v4438 = vpop.f32.mrf.mxu0
    %4439 = vmatprep.mubr.f32.mxu0 0.0
    %4440 = vmatmul.mubr.f32.gmra.mxu0 %v4368
    %v4441 = vpop.f32.mrf.mxu0
    %v4442 = vadd.f32 %v4362, %v4441
    %v4443 = vpop.f32.mrf.mxu0
    %4444 = vdwg.mxu0
    %vm4445 = vcmp.ge.f32.partialorder %v4437, 0.0
    %vm4446 = vcmp.ge.f32.partialorder %v4442, 0.0
    %v4447 = vmul.f32 %v4437, 0.1
    %v4448 = vmul.f32 %v4442, 0.1
    %v4449 = vsel %vm4445, %v4437, %v4447
    %v4450 = vsel %vm4446, %v4442, %v4448
    %4452 = vset.pattern.permute.xlu0 0
    %4453 = vperm.xlu0 %4452, %v291
    %v4454 = vpop.permute.xlu0 %4453
    %4457 = vset.pattern.permute.xlu0 0
    %4458 = vperm.xlu0 %4457, %v292
    %v4459 = vpop.permute.xlu0 %4458
    %4461 = vmatprep.subr.mxu0 0.0
    %4462 = vmatpush1.msra.mxu0 %v1626
    %4463 = vmatprep.subr.mxu0 0.0
    %4464 = vmatpush1.msra.mxu0 %v1625
    %4465 = vmatprep.subr.mxu0 0.0
    %4466 = vmatpush1.msra.mxu0 %v1624
    %4467 = vmatprep.subr.mxu0 0.0
    %4468 = vmatpush1.msra.mxu0 %v1623
    %4469 = vmatprep.subr.mxu0 0.0
    %4470 = vmatpush1.msra.mxu0 %v1622
    %4471 = vmatprep.subr.mxu0 0.0
    %4472 = vmatpush1.msra.mxu0 %v1621
    %4473 = vmatprep.subr.mxu0 0.0
    %4474 = vmatpush1.msra.mxu0 %v1620
    %4475 = vmatprep.subr.mxu0 0.0
    %4476 = vmatpush1.msra.mxu0 %v1619
    %4477 = vmatprep.subr.mxu0 0.0
    %4478 = vmatpush1.msra.mxu0 %v1618
    %4479 = vmatprep.subr.mxu0 0.0
    %4480 = vmatpush1.msra.mxu0 %v1617
    %4481 = vmatprep.subr.mxu0 0.0
    %4482 = vmatpush1.msra.mxu0 %v1616
    %4483 = vmatprep.subr.mxu0 0.0
    %4484 = vmatpush1.msra.mxu0 %v1615
    %4485 = vmatprep.subr.mxu0 0.0
    %4486 = vmatpush1.msra.mxu0 %v1614
    %4487 = vmatprep.subr.mxu0 0.0
    %4488 = vmatpush1.msra.mxu0 %v1613
    %4489 = vmatprep.subr.mxu0 0.0
    %4490 = vmatpush1.msra.mxu0 %v1612
    %4491 = vmatprep.subr.mxu0 0.0
    %4492 = vmatpush1.msra.mxu0 %v1611
    %4493 = vmatprep.subr.mxu0 0.0
    %4494 = vmatpush2.msra.mxu0 %v1642
    %4495 = vmatprep.subr.mxu0 0.0
    %4496 = vmatpush2.msra.mxu0 %v1641
    %4497 = vmatprep.subr.mxu0 0.0
    %4498 = vmatpush2.msra.mxu0 %v1640
    %4499 = vmatprep.subr.mxu0 0.0
    %4500 = vmatpush2.msra.mxu0 %v1639
    %4501 = vmatprep.subr.mxu0 0.0
    %4502 = vmatpush2.msra.mxu0 %v1638
    %4503 = vmatprep.subr.mxu0 0.0
    %4504 = vmatpush2.msra.mxu0 %v1637
    %4505 = vmatprep.subr.mxu0 0.0
    %4506 = vmatpush2.msra.mxu0 %v1636
    %4507 = vmatprep.subr.mxu0 0.0
    %4508 = vmatpush2.msra.mxu0 %v1635
    %4509 = vmatprep.subr.mxu0 0.0
    %4510 = vmatpush2.msra.mxu0 %v1634
    %4511 = vmatprep.subr.mxu0 0.0
    %4512 = vmatpush2.msra.mxu0 %v1633
    %4513 = vmatprep.subr.mxu0 0.0
    %4514 = vmatpush2.msra.mxu0 %v1632
    %4515 = vmatprep.subr.mxu0 0.0
    %4516 = vmatpush2.msra.mxu0 %v1631
    %4517 = vmatprep.subr.mxu0 0.0
    %4518 = vmatpush2.msra.mxu0 %v1630
    %4519 = vmatprep.subr.mxu0 0.0
    %4520 = vmatpush2.msra.mxu0 %v1629
    %4521 = vmatprep.subr.mxu0 0.0
    %4522 = vmatpush2.msra.mxu0 %v1628
    %4523 = vmatprep.subr.mxu0 0.0
    %4524 = vmatpush2.msra.mxu0 %v1627
    %4525 = vmatprep.mubr.f32.mxu0 %v294
    %4526 = vmatmul.mubr.f32.gmra.mxu0 %v293
    %v4527 = vpop.f32.mrf.mxu0
    %v4528 = vadd.f32 %v4454, %v4527
    %v4529 = vpop.f32.mrf.mxu0
    %4530 = vmatprep.mubr.f32.mxu0 %v296
    %4531 = vmatmul.mubr.f32.gmra.mxu0 %v295
    %v4532 = vpop.f32.mrf.mxu0
    %v4533 = vadd.f32 %v4459, %v4532
    %v4534 = vpop.f32.mrf.mxu0
    %4535 = vdwg.mxu0
    %v4536 = vadd.f32 %v4528, %v4449
    %v4537 = vadd.f32 %v4533, %v4450
    %vm4538 = vcmp.ge.f32.partialorder %v4536, 0.0
    %vm4539 = vcmp.ge.f32.partialorder %v4537, 0.0
    %v4540 = vmul.f32 %v4536, 0.1
    %v4541 = vmul.f32 %v4537, 0.1
    %v4542 = vsel %vm4538, %v4536, %v4540
    %v4543 = vsel %vm4539, %v4537, %v4541
    %4546 = vrot.lane.b32.xlu0 %v4542, 1
    %v4547 = vpop.permute.xlu0 %4546
    %4548 = vrot.lane.b32.xlu0 %v4543, 1
    %v4549 = vpop.permute.xlu0 %4548
    %v4552 = vsel %vm772, 0.0, %v4547
    %v4553 = vsel %vm772, 0.0, %v4549
    %v4554 = vsel %vm2242, %v4552, 0.0
    %v4555 = vsel %vm2242, %v4553, 0.0
    %4558 = vrot.lane.b32.xlu0 %v4554, 127
    %v4559 = vpop.permute.xlu0 %4558
    %4560 = vrot.lane.b32.xlu0 %v4555, 127
    %v4561 = vpop.permute.xlu0 %4560
    %4564 = vrot.lane.b32.xlu0 %v4554, 126
    %v4565 = vpop.permute.xlu0 %4564
    %4566 = vrot.lane.b32.xlu0 %v4555, 126
    %v4567 = vpop.permute.xlu0 %4566
    %4570 = vrot.lane.b32.xlu0 %v4542, 97
    %v4571 = vpop.permute.xlu0 %4570
    %4572 = vrot.lane.b32.xlu0 %v4543, 97
    %v4573 = vpop.permute.xlu0 %4572
    %v4576 = vsel %vm772, 0.0, %v4571
    %v4577 = vsel %vm772, 0.0, %v4573
    %v4578 = vsel %vm2242, %v4576, 0.0
    %v4579 = vsel %vm2242, %v4577, 0.0
    %4582 = vrot.lane.b32.xlu0 %v4578, 127
    %v4583 = vpop.permute.xlu0 %4582
    %4584 = vrot.lane.b32.xlu0 %v4579, 127
    %v4585 = vpop.permute.xlu0 %4584
    %4586 = vrot.lane.b32.xlu0 %v4578, 126
    %v4587 = vpop.permute.xlu0 %4586
    %4588 = vrot.lane.b32.xlu0 %v4579, 126
    %v4589 = vpop.permute.xlu0 %4588
    %4590 = vrot.lane.b32.xlu0 %v4578, 32
    %v4591 = vpop.permute.xlu0 %4590
    %4592 = vrot.lane.b32.xlu0 %v4579, 32
    %v4593 = vpop.permute.xlu0 %4592
    %4594 = vrot.lane.b32.xlu0 %v4583, 32
    %v4595 = vpop.permute.xlu0 %4594
    %4596 = vrot.lane.b32.xlu0 %v4585, 32
    %v4597 = vpop.permute.xlu0 %4596
    %4598 = vrot.lane.b32.xlu0 %v4587, 32
    %v4599 = vpop.permute.xlu0 %4598
    %4600 = vrot.lane.b32.xlu0 %v4589, 32
    %v4601 = vpop.permute.xlu0 %4600
    %v4608 = vsel %vm1001, %v4554, %v4591
    %v4609 = vsel %vm1001, %v4555, %v4593
    %v4610 = vsel %vm1001, %v4559, %v4595
    %v4611 = vsel %vm1001, %v4561, %v4597
    %v4612 = vsel %vm1001, %v4565, %v4599
    %v4613 = vsel %vm1001, %v4567, %v4601
    %4615 = vset.pattern.permute.xlu0 0
    %4616 = vperm.xlu0 %4615, %v261
    %v4617 = vpop.permute.xlu0 %4616
    %4620 = vset.pattern.permute.xlu0 0
    %4621 = vperm.xlu0 %4620, %v262
    %v4622 = vpop.permute.xlu0 %4621
    %v4625 = vsel %vm2144, %v263, 0
    %v4628 = vsel %vm2144, %v264, 0
    %4630 = vmatprep.subr.mxu0 0.0
    %4631 = vmatpush1.msra.mxu0 0.0
    %4632 = vmatprep.subr.mxu0 0.0
    %4633 = vmatpush1.msra.mxu0 0.0
    %4634 = vmatprep.subr.mxu0 0.0
    %4635 = vmatpush1.msra.mxu0 0.0
    %4636 = vmatprep.subr.mxu0 0.0
    %4637 = vmatpush1.msra.mxu0 0.0
    %4638 = vmatprep.subr.mxu0 0.0
    %4639 = vmatpush1.msra.mxu0 0.0
    %4640 = vmatprep.subr.mxu0 0.0
    %4641 = vmatpush1.msra.mxu0 0.0
    %4642 = vmatprep.subr.mxu0 0.0
    %4643 = vmatpush1.msra.mxu0 0.0
    %4644 = vmatprep.subr.mxu0 0.0
    %4645 = vmatpush1.msra.mxu0 0.0
    %4646 = vmatprep.subr.mxu0 0.0
    %4647 = vmatpush1.msra.mxu0 0.0
    %4648 = vmatprep.subr.mxu0 0.0
    %4649 = vmatpush1.msra.mxu0 0.0
    %4650 = vmatprep.subr.mxu0 0.0
    %4651 = vmatpush1.msra.mxu0 %v4613
    %4652 = vmatprep.subr.mxu0 0.0
    %4653 = vmatpush1.msra.mxu0 %v4612
    %4654 = vmatprep.subr.mxu0 0.0
    %4655 = vmatpush1.msra.mxu0 %v4611
    %4656 = vmatprep.subr.mxu0 0.0
    %4657 = vmatpush1.msra.mxu0 %v4610
    %4658 = vmatprep.subr.mxu0 0.0
    %4659 = vmatpush1.msra.mxu0 %v4609
    %4660 = vmatprep.subr.mxu0 0.0
    %4661 = vmatpush1.msra.mxu0 %v4608
    %4662 = vmatprep.subr.mxu0 0.0
    %4663 = vmatpush2.msra.mxu0 0.0
    %4664 = vmatprep.subr.mxu0 0.0
    %4665 = vmatpush2.msra.mxu0 0.0
    %4666 = vmatprep.subr.mxu0 0.0
    %4667 = vmatpush2.msra.mxu0 0.0
    %4668 = vmatprep.subr.mxu0 0.0
    %4669 = vmatpush2.msra.mxu0 0.0
    %4670 = vmatprep.subr.mxu0 0.0
    %4671 = vmatpush2.msra.mxu0 0.0
    %4672 = vmatprep.subr.mxu0 0.0
    %4673 = vmatpush2.msra.mxu0 0.0
    %4674 = vmatprep.subr.mxu0 0.0
    %4675 = vmatpush2.msra.mxu0 0.0
    %4676 = vmatprep.subr.mxu0 0.0
    %4677 = vmatpush2.msra.mxu0 0.0
    %4678 = vmatprep.subr.mxu0 0.0
    %4679 = vmatpush2.msra.mxu0 0.0
    %4680 = vmatprep.subr.mxu0 0.0
    %4681 = vmatpush2.msra.mxu0 0.0
    %4682 = vmatprep.subr.mxu0 0.0
    %4683 = vmatpush2.msra.mxu0 0.0
    %4684 = vmatprep.subr.mxu0 0.0
    %4685 = vmatpush2.msra.mxu0 0.0
    %4686 = vmatprep.subr.mxu0 0.0
    %4687 = vmatpush2.msra.mxu0 0.0
    %4688 = vmatprep.subr.mxu0 0.0
    %4689 = vmatpush2.msra.mxu0 0.0
    %4690 = vmatprep.subr.mxu0 0.0
    %4691 = vmatpush2.msra.mxu0 0.0
    %4692 = vmatprep.subr.mxu0 0.0
    %4693 = vmatpush2.msra.mxu0 0.0
    %4694 = vmatprep.mubr.f32.mxu0 0.0
    %4695 = vmatmul.mubr.f32.gmra.mxu0 %v4625
    %v4696 = vpop.f32.mrf.mxu0
    %v4697 = vadd.f32 %v4617, %v4696
    %v4698 = vpop.f32.mrf.mxu0
    %4699 = vmatprep.mubr.f32.mxu0 0.0
    %4700 = vmatmul.mubr.f32.gmra.mxu0 %v4628
    %v4701 = vpop.f32.mrf.mxu0
    %v4702 = vadd.f32 %v4622, %v4701
    %v4703 = vpop.f32.mrf.mxu0
    %4704 = vdwg.mxu0
    %v4705 = vadd.f32 %v4536, %v4697
    %v4706 = vadd.f32 %v4537, %v4702
    %vm4707 = vcmp.ge.f32.partialorder %v4705, 0.0
    %vm4708 = vcmp.ge.f32.partialorder %v4706, 0.0
    %v4709 = vmul.f32 %v4705, 0.1
    %v4710 = vmul.f32 %v4706, 0.1
    %v4711 = vsel %vm4707, %v4705, %v4709
    %v4712 = vsel %vm4708, %v4706, %v4710
    %4715 = vrot.lane.b32.xlu0 %v4711, 3
    %v4716 = vpop.permute.xlu0 %4715
    %4717 = vrot.lane.b32.xlu0 %v4712, 3
    %v4718 = vpop.permute.xlu0 %4717
    %v4721 = vsel %vm377, 0.0, %v4716
    %v4722 = vsel %vm377, 0.0, %v4718
    %vm4723 = vcmask 285696
    %v4724 = vsel %vm4723, %v4721, 0.0
    %v4725 = vsel %vm4723, %v4722, 0.0
    %4728 = vrot.lane.b32.xlu0 %v4724, 125
    %v4729 = vpop.permute.xlu0 %4728
    %4730 = vrot.lane.b32.xlu0 %v4725, 125
    %v4731 = vpop.permute.xlu0 %4730
    %4734 = vrot.lane.b32.xlu0 %v4724, 122
    %v4735 = vpop.permute.xlu0 %4734
    %4736 = vrot.lane.b32.xlu0 %v4725, 122
    %v4737 = vpop.permute.xlu0 %4736
    %4740 = vrot.lane.b32.xlu0 %v4711, 99
    %v4741 = vpop.permute.xlu0 %4740
    %4742 = vrot.lane.b32.xlu0 %v4712, 99
    %v4743 = vpop.permute.xlu0 %4742
    %v4746 = vsel %vm377, 0.0, %v4741
    %v4747 = vsel %vm377, 0.0, %v4743
    %v4748 = vsel %vm4723, %v4746, 0.0
    %v4749 = vsel %vm4723, %v4747, 0.0
    %4752 = vrot.lane.b32.xlu0 %v4748, 125
    %v4753 = vpop.permute.xlu0 %4752
    %4754 = vrot.lane.b32.xlu0 %v4749, 125
    %v4755 = vpop.permute.xlu0 %4754
    %4756 = vrot.lane.b32.xlu0 %v4748, 122
    %v4757 = vpop.permute.xlu0 %4756
    %4758 = vrot.lane.b32.xlu0 %v4749, 122
    %v4759 = vpop.permute.xlu0 %4758
    %4760 = vrot.lane.b32.xlu0 %v4748, 32
    %v4761 = vpop.permute.xlu0 %4760
    %4762 = vrot.lane.b32.xlu0 %v4749, 32
    %v4763 = vpop.permute.xlu0 %4762
    %4764 = vrot.lane.b32.xlu0 %v4753, 32
    %v4765 = vpop.permute.xlu0 %4764
    %4766 = vrot.lane.b32.xlu0 %v4755, 32
    %v4767 = vpop.permute.xlu0 %4766
    %4768 = vrot.lane.b32.xlu0 %v4757, 32
    %v4769 = vpop.permute.xlu0 %4768
    %4770 = vrot.lane.b32.xlu0 %v4759, 32
    %v4771 = vpop.permute.xlu0 %4770
    %v4778 = vsel %vm1001, %v4724, %v4761
    %v4779 = vsel %vm1001, %v4725, %v4763
    %v4780 = vsel %vm1001, %v4729, %v4765
    %v4781 = vsel %vm1001, %v4731, %v4767
    %v4782 = vsel %vm1001, %v4735, %v4769
    %v4783 = vsel %vm1001, %v4737, %v4771
    %4785 = vset.pattern.permute.xlu0 0
    %4786 = vperm.xlu0 %4785, %v265
    %v4787 = vpop.permute.xlu0 %4786
    %4790 = vset.pattern.permute.xlu0 0
    %4791 = vperm.xlu0 %4790, %v266
    %v4792 = vpop.permute.xlu0 %4791
    %v4795 = vsel %vm2144, %v267, 0
    %v4798 = vsel %vm2144, %v268, 0
    %4800 = vmatprep.subr.mxu0 0.0
    %4801 = vmatpush1.msra.mxu0 0.0
    %4802 = vmatprep.subr.mxu0 0.0
    %4803 = vmatpush1.msra.mxu0 0.0
    %4804 = vmatprep.subr.mxu0 0.0
    %4805 = vmatpush1.msra.mxu0 0.0
    %4806 = vmatprep.subr.mxu0 0.0
    %4807 = vmatpush1.msra.mxu0 0.0
    %4808 = vmatprep.subr.mxu0 0.0
    %4809 = vmatpush1.msra.mxu0 0.0
    %4810 = vmatprep.subr.mxu0 0.0
    %4811 = vmatpush1.msra.mxu0 0.0
    %4812 = vmatprep.subr.mxu0 0.0
    %4813 = vmatpush1.msra.mxu0 0.0
    %4814 = vmatprep.subr.mxu0 0.0
    %4815 = vmatpush1.msra.mxu0 0.0
    %4816 = vmatprep.subr.mxu0 0.0
    %4817 = vmatpush1.msra.mxu0 0.0
    %4818 = vmatprep.subr.mxu0 0.0
    %4819 = vmatpush1.msra.mxu0 0.0
    %4820 = vmatprep.subr.mxu0 0.0
    %4821 = vmatpush1.msra.mxu0 %v4783
    %4822 = vmatprep.subr.mxu0 0.0
    %4823 = vmatpush1.msra.mxu0 %v4782
    %4824 = vmatprep.subr.mxu0 0.0
    %4825 = vmatpush1.msra.mxu0 %v4781
    %4826 = vmatprep.subr.mxu0 0.0
    %4827 = vmatpush1.msra.mxu0 %v4780
    %4828 = vmatprep.subr.mxu0 0.0
    %4829 = vmatpush1.msra.mxu0 %v4779
    %4830 = vmatprep.subr.mxu0 0.0
    %4831 = vmatpush1.msra.mxu0 %v4778
    %4832 = vmatprep.subr.mxu0 0.0
    %4833 = vmatpush2.msra.mxu0 0.0
    %4834 = vmatprep.subr.mxu0 0.0
    %4835 = vmatpush2.msra.mxu0 0.0
    %4836 = vmatprep.subr.mxu0 0.0
    %4837 = vmatpush2.msra.mxu0 0.0
    %4838 = vmatprep.subr.mxu0 0.0
    %4839 = vmatpush2.msra.mxu0 0.0
    %4840 = vmatprep.subr.mxu0 0.0
    %4841 = vmatpush2.msra.mxu0 0.0
    %4842 = vmatprep.subr.mxu0 0.0
    %4843 = vmatpush2.msra.mxu0 0.0
    %4844 = vmatprep.subr.mxu0 0.0
    %4845 = vmatpush2.msra.mxu0 0.0
    %4846 = vmatprep.subr.mxu0 0.0
    %4847 = vmatpush2.msra.mxu0 0.0
    %4848 = vmatprep.subr.mxu0 0.0
    %4849 = vmatpush2.msra.mxu0 0.0
    %4850 = vmatprep.subr.mxu0 0.0
    %4851 = vmatpush2.msra.mxu0 0.0
    %4852 = vmatprep.subr.mxu0 0.0
    %4853 = vmatpush2.msra.mxu0 0.0
    %4854 = vmatprep.subr.mxu0 0.0
    %4855 = vmatpush2.msra.mxu0 0.0
    %4856 = vmatprep.subr.mxu0 0.0
    %4857 = vmatpush2.msra.mxu0 0.0
    %4858 = vmatprep.subr.mxu0 0.0
    %4859 = vmatpush2.msra.mxu0 0.0
    %4860 = vmatprep.subr.mxu0 0.0
    %4861 = vmatpush2.msra.mxu0 0.0
    %4862 = vmatprep.subr.mxu0 0.0
    %4863 = vmatpush2.msra.mxu0 0.0
    %4864 = vmatprep.mubr.f32.mxu0 0.0
    %4865 = vmatmul.mubr.f32.gmra.mxu0 %v4795
    %v4866 = vpop.f32.mrf.mxu0
    %v4867 = vadd.f32 %v4787, %v4866
    %v4868 = vpop.f32.mrf.mxu0
    %4869 = vmatprep.mubr.f32.mxu0 0.0
    %4870 = vmatmul.mubr.f32.gmra.mxu0 %v4798
    %v4871 = vpop.f32.mrf.mxu0
    %v4872 = vadd.f32 %v4792, %v4871
    %v4873 = vpop.f32.mrf.mxu0
    %4874 = vdwg.mxu0
    %v4875 = vadd.f32 %v4705, %v4867
    %v4876 = vadd.f32 %v4706, %v4872
    %4877 = vrot.lane.b32.xlu0 %v4542, 2
    %v4878 = vpop.permute.xlu0 %4877
    %4879 = vrot.lane.b32.xlu0 %v4543, 2
    %v4880 = vpop.permute.xlu0 %4879
    %v4883 = vsel %vm2507, 0.0, %v4878
    %v4884 = vsel %vm2507, 0.0, %v4880
    %v4885 = vsel %vm1237, %v4883, 0.0
    %v4886 = vsel %vm1237, %v4884, 0.0
    %4889 = vrot.lane.b32.xlu0 %v4885, 127
    %v4890 = vpop.permute.xlu0 %4889
    %4891 = vrot.lane.b32.xlu0 %v4886, 127
    %v4892 = vpop.permute.xlu0 %4891
    %4895 = vrot.lane.b32.xlu0 %v4885, 126
    %v4896 = vpop.permute.xlu0 %4895
    %4897 = vrot.lane.b32.xlu0 %v4886, 126
    %v4898 = vpop.permute.xlu0 %4897
    %4901 = vrot.lane.b32.xlu0 %v4885, 125
    %v4902 = vpop.permute.xlu0 %4901
    %4903 = vrot.lane.b32.xlu0 %v4886, 125
    %v4904 = vpop.permute.xlu0 %4903
    %4907 = vrot.lane.b32.xlu0 %v4885, 124
    %v4908 = vpop.permute.xlu0 %4907
    %4909 = vrot.lane.b32.xlu0 %v4886, 124
    %v4910 = vpop.permute.xlu0 %4909
    %4913 = vrot.lane.b32.xlu0 %v4542, 98
    %v4914 = vpop.permute.xlu0 %4913
    %4915 = vrot.lane.b32.xlu0 %v4543, 98
    %v4916 = vpop.permute.xlu0 %4915
    %v4919 = vsel %vm2507, 0.0, %v4914
    %v4920 = vsel %vm2507, 0.0, %v4916
    %v4921 = vsel %vm1237, %v4919, 0.0
    %v4922 = vsel %vm1237, %v4920, 0.0
    %4925 = vrot.lane.b32.xlu0 %v4921, 127
    %v4926 = vpop.permute.xlu0 %4925
    %4927 = vrot.lane.b32.xlu0 %v4922, 127
    %v4928 = vpop.permute.xlu0 %4927
    %4929 = vrot.lane.b32.xlu0 %v4921, 126
    %v4930 = vpop.permute.xlu0 %4929
    %4931 = vrot.lane.b32.xlu0 %v4922, 126
    %v4932 = vpop.permute.xlu0 %4931
    %4933 = vrot.lane.b32.xlu0 %v4921, 125
    %v4934 = vpop.permute.xlu0 %4933
    %4935 = vrot.lane.b32.xlu0 %v4922, 125
    %v4936 = vpop.permute.xlu0 %4935
    %4937 = vrot.lane.b32.xlu0 %v4921, 124
    %v4938 = vpop.permute.xlu0 %4937
    %4939 = vrot.lane.b32.xlu0 %v4922, 124
    %v4940 = vpop.permute.xlu0 %4939
    %4941 = vrot.lane.b32.xlu0 %v4921, 32
    %v4942 = vpop.permute.xlu0 %4941
    %4943 = vrot.lane.b32.xlu0 %v4922, 32
    %v4944 = vpop.permute.xlu0 %4943
    %4945 = vrot.lane.b32.xlu0 %v4926, 32
    %v4946 = vpop.permute.xlu0 %4945
    %4947 = vrot.lane.b32.xlu0 %v4928, 32
    %v4948 = vpop.permute.xlu0 %4947
    %4949 = vrot.lane.b32.xlu0 %v4930, 32
    %v4950 = vpop.permute.xlu0 %4949
    %4951 = vrot.lane.b32.xlu0 %v4932, 32
    %v4952 = vpop.permute.xlu0 %4951
    %4953 = vrot.lane.b32.xlu0 %v4934, 32
    %v4954 = vpop.permute.xlu0 %4953
    %4955 = vrot.lane.b32.xlu0 %v4936, 32
    %v4956 = vpop.permute.xlu0 %4955
    %4957 = vrot.lane.b32.xlu0 %v4938, 32
    %v4958 = vpop.permute.xlu0 %4957
    %4959 = vrot.lane.b32.xlu0 %v4940, 32
    %v4960 = vpop.permute.xlu0 %4959
    %v4971 = vsel %vm1001, %v4885, %v4942
    %v4972 = vsel %vm1001, %v4886, %v4944
    %v4973 = vsel %vm1001, %v4890, %v4946
    %v4974 = vsel %vm1001, %v4892, %v4948
    %v4975 = vsel %vm1001, %v4896, %v4950
    %v4976 = vsel %vm1001, %v4898, %v4952
    %v4977 = vsel %vm1001, %v4902, %v4954
    %v4978 = vsel %vm1001, %v4904, %v4956
    %v4979 = vsel %vm1001, %v4908, %v4958
    %v4980 = vsel %vm1001, %v4910, %v4960
    %4982 = vset.pattern.permute.xlu0 0
    %4983 = vperm.xlu0 %4982, %v269
    %v4984 = vpop.permute.xlu0 %4983
    %4987 = vset.pattern.permute.xlu0 0
    %4988 = vperm.xlu0 %4987, %v270
    %v4989 = vpop.permute.xlu0 %4988
    %vm4991 = vcmask 654336
    %v4993 = vsel %vm4991, %v271, 0
    %v4996 = vsel %vm4991, %v272, 0
    %4998 = vmatprep.subr.mxu0 0.0
    %4999 = vmatpush1.msra.mxu0 0.0
    %5000 = vmatprep.subr.mxu0 0.0
    %5001 = vmatpush1.msra.mxu0 0.0
    %5002 = vmatprep.subr.mxu0 0.0
    %5003 = vmatpush1.msra.mxu0 0.0
    %5004 = vmatprep.subr.mxu0 0.0
    %5005 = vmatpush1.msra.mxu0 0.0
    %5006 = vmatprep.subr.mxu0 0.0
    %5007 = vmatpush1.msra.mxu0 0.0
    %5008 = vmatprep.subr.mxu0 0.0
    %5009 = vmatpush1.msra.mxu0 0.0
    %5010 = vmatprep.subr.mxu0 0.0
    %5011 = vmatpush1.msra.mxu0 %v4980
    %5012 = vmatprep.subr.mxu0 0.0
    %5013 = vmatpush1.msra.mxu0 %v4979
    %5014 = vmatprep.subr.mxu0 0.0
    %5015 = vmatpush1.msra.mxu0 %v4978
    %5016 = vmatprep.subr.mxu0 0.0
    %5017 = vmatpush1.msra.mxu0 %v4977
    %5018 = vmatprep.subr.mxu0 0.0
    %5019 = vmatpush1.msra.mxu0 %v4976
    %5020 = vmatprep.subr.mxu0 0.0
    %5021 = vmatpush1.msra.mxu0 %v4975
    %5022 = vmatprep.subr.mxu0 0.0
    %5023 = vmatpush1.msra.mxu0 %v4974
    %5024 = vmatprep.subr.mxu0 0.0
    %5025 = vmatpush1.msra.mxu0 %v4973
    %5026 = vmatprep.subr.mxu0 0.0
    %5027 = vmatpush1.msra.mxu0 %v4972
    %5028 = vmatprep.subr.mxu0 0.0
    %5029 = vmatpush1.msra.mxu0 %v4971
    %5030 = vmatprep.subr.mxu0 0.0
    %5031 = vmatpush2.msra.mxu0 0.0
    %5032 = vmatprep.subr.mxu0 0.0
    %5033 = vmatpush2.msra.mxu0 0.0
    %5034 = vmatprep.subr.mxu0 0.0
    %5035 = vmatpush2.msra.mxu0 0.0
    %5036 = vmatprep.subr.mxu0 0.0
    %5037 = vmatpush2.msra.mxu0 0.0
    %5038 = vmatprep.subr.mxu0 0.0
    %5039 = vmatpush2.msra.mxu0 0.0
    %5040 = vmatprep.subr.mxu0 0.0
    %5041 = vmatpush2.msra.mxu0 0.0
    %5042 = vmatprep.subr.mxu0 0.0
    %5043 = vmatpush2.msra.mxu0 0.0
    %5044 = vmatprep.subr.mxu0 0.0
    %5045 = vmatpush2.msra.mxu0 0.0
    %5046 = vmatprep.subr.mxu0 0.0
    %5047 = vmatpush2.msra.mxu0 0.0
    %5048 = vmatprep.subr.mxu0 0.0
    %5049 = vmatpush2.msra.mxu0 0.0
    %5050 = vmatprep.subr.mxu0 0.0
    %5051 = vmatpush2.msra.mxu0 0.0
    %5052 = vmatprep.subr.mxu0 0.0
    %5053 = vmatpush2.msra.mxu0 0.0
    %5054 = vmatprep.subr.mxu0 0.0
    %5055 = vmatpush2.msra.mxu0 0.0
    %5056 = vmatprep.subr.mxu0 0.0
    %5057 = vmatpush2.msra.mxu0 0.0
    %5058 = vmatprep.subr.mxu0 0.0
    %5059 = vmatpush2.msra.mxu0 0.0
    %5060 = vmatprep.subr.mxu0 0.0
    %5061 = vmatpush2.msra.mxu0 0.0
    %5062 = vmatprep.mubr.f32.mxu0 0.0
    %5063 = vmatmul.mubr.f32.gmra.mxu0 %v4993
    %v5064 = vpop.f32.mrf.mxu0
    %v5065 = vadd.f32 %v4984, %v5064
    %v5066 = vpop.f32.mrf.mxu0
    %5067 = vmatprep.mubr.f32.mxu0 0.0
    %5068 = vmatmul.mubr.f32.gmra.mxu0 %v4996
    %v5069 = vpop.f32.mrf.mxu0
    %v5070 = vadd.f32 %v4989, %v5069
    %v5071 = vpop.f32.mrf.mxu0
    %5072 = vdwg.mxu0
    %v5073 = vadd.f32 %v4536, %v5065
    %v5074 = vadd.f32 %v4537, %v5070
    %vm5075 = vcmp.ge.f32.partialorder %v5073, 0.0
    %vm5076 = vcmp.ge.f32.partialorder %v5074, 0.0
    %v5077 = vmul.f32 %v5073, 0.1
    %v5078 = vmul.f32 %v5074, 0.1
    %v5079 = vsel %vm5075, %v5073, %v5077
    %v5080 = vsel %vm5076, %v5074, %v5078
    %5083 = vrot.lane.b32.xlu0 %v5079, 6
    %v5084 = vpop.permute.xlu0 %5083
    %5085 = vrot.lane.b32.xlu0 %v5080, 6
    %v5086 = vpop.permute.xlu0 %5085
    %vm5089 = vcmask 48128
    %v5090 = vsel %vm5089, 0.0, %v5084
    %v5091 = vsel %vm5089, 0.0, %v5086
    %vm5092 = vcmask 310272
    %v5093 = vsel %vm5092, %v5090, 0.0
    %v5094 = vsel %vm5092, %v5091, 0.0
    %5097 = vrot.lane.b32.xlu0 %v5093, 125
    %v5098 = vpop.permute.xlu0 %5097
    %5099 = vrot.lane.b32.xlu0 %v5094, 125
    %v5100 = vpop.permute.xlu0 %5099
    %5103 = vrot.lane.b32.xlu0 %v5093, 122
    %v5104 = vpop.permute.xlu0 %5103
    %5105 = vrot.lane.b32.xlu0 %v5094, 122
    %v5106 = vpop.permute.xlu0 %5105
    %5109 = vrot.lane.b32.xlu0 %v5093, 119
    %v5110 = vpop.permute.xlu0 %5109
    %5111 = vrot.lane.b32.xlu0 %v5094, 119
    %v5112 = vpop.permute.xlu0 %5111
    %5115 = vrot.lane.b32.xlu0 %v5093, 116
    %v5116 = vpop.permute.xlu0 %5115
    %5117 = vrot.lane.b32.xlu0 %v5094, 116
    %v5118 = vpop.permute.xlu0 %5117
    %5121 = vrot.lane.b32.xlu0 %v5079, 102
    %v5122 = vpop.permute.xlu0 %5121
    %5123 = vrot.lane.b32.xlu0 %v5080, 102
    %v5124 = vpop.permute.xlu0 %5123
    %v5127 = vsel %vm5089, 0.0, %v5122
    %v5128 = vsel %vm5089, 0.0, %v5124
    %v5129 = vsel %vm5092, %v5127, 0.0
    %v5130 = vsel %vm5092, %v5128, 0.0
    %5133 = vrot.lane.b32.xlu0 %v5129, 125
    %v5134 = vpop.permute.xlu0 %5133
    %5135 = vrot.lane.b32.xlu0 %v5130, 125
    %v5136 = vpop.permute.xlu0 %5135
    %5137 = vrot.lane.b32.xlu0 %v5129, 122
    %v5138 = vpop.permute.xlu0 %5137
    %5139 = vrot.lane.b32.xlu0 %v5130, 122
    %v5140 = vpop.permute.xlu0 %5139
    %5141 = vrot.lane.b32.xlu0 %v5129, 119
    %v5142 = vpop.permute.xlu0 %5141
    %5143 = vrot.lane.b32.xlu0 %v5130, 119
    %v5144 = vpop.permute.xlu0 %5143
    %5145 = vrot.lane.b32.xlu0 %v5129, 116
    %v5146 = vpop.permute.xlu0 %5145
    %5147 = vrot.lane.b32.xlu0 %v5130, 116
    %v5148 = vpop.permute.xlu0 %5147
    %5149 = vrot.lane.b32.xlu0 %v5129, 32
    %v5150 = vpop.permute.xlu0 %5149
    %5151 = vrot.lane.b32.xlu0 %v5130, 32
    %v5152 = vpop.permute.xlu0 %5151
    %5153 = vrot.lane.b32.xlu0 %v5134, 32
    %v5154 = vpop.permute.xlu0 %5153
    %5155 = vrot.lane.b32.xlu0 %v5136, 32
    %v5156 = vpop.permute.xlu0 %5155
    %5157 = vrot.lane.b32.xlu0 %v5138, 32
    %v5158 = vpop.permute.xlu0 %5157
    %5159 = vrot.lane.b32.xlu0 %v5140, 32
    %v5160 = vpop.permute.xlu0 %5159
    %5161 = vrot.lane.b32.xlu0 %v5142, 32
    %v5162 = vpop.permute.xlu0 %5161
    %5163 = vrot.lane.b32.xlu0 %v5144, 32
    %v5164 = vpop.permute.xlu0 %5163
    %5165 = vrot.lane.b32.xlu0 %v5146, 32
    %v5166 = vpop.permute.xlu0 %5165
    %5167 = vrot.lane.b32.xlu0 %v5148, 32
    %v5168 = vpop.permute.xlu0 %5167
    %v5179 = vsel %vm1001, %v5093, %v5150
    %v5180 = vsel %vm1001, %v5094, %v5152
    %v5181 = vsel %vm1001, %v5098, %v5154
    %v5182 = vsel %vm1001, %v5100, %v5156
    %v5183 = vsel %vm1001, %v5104, %v5158
    %v5184 = vsel %vm1001, %v5106, %v5160
    %v5185 = vsel %vm1001, %v5110, %v5162
    %v5186 = vsel %vm1001, %v5112, %v5164
    %v5187 = vsel %vm1001, %v5116, %v5166
    %v5188 = vsel %vm1001, %v5118, %v5168
    %5190 = vset.pattern.permute.xlu0 0
    %5191 = vperm.xlu0 %5190, %v273
    %v5192 = vpop.permute.xlu0 %5191
    %5195 = vset.pattern.permute.xlu0 0
    %5196 = vperm.xlu0 %5195, %v274
    %v5197 = vpop.permute.xlu0 %5196
    %v5200 = vsel %vm4991, %v275, 0
    %v5203 = vsel %vm4991, %v276, 0
    %5205 = vmatprep.subr.mxu0 0.0
    %5206 = vmatpush1.msra.mxu0 0.0
    %5207 = vmatprep.subr.mxu0 0.0
    %5208 = vmatpush1.msra.mxu0 0.0
    %5209 = vmatprep.subr.mxu0 0.0
    %5210 = vmatpush1.msra.mxu0 0.0
    %5211 = vmatprep.subr.mxu0 0.0
    %5212 = vmatpush1.msra.mxu0 0.0
    %5213 = vmatprep.subr.mxu0 0.0
    %5214 = vmatpush1.msra.mxu0 0.0
    %5215 = vmatprep.subr.mxu0 0.0
    %5216 = vmatpush1.msra.mxu0 0.0
    %5217 = vmatprep.subr.mxu0 0.0
    %5218 = vmatpush1.msra.mxu0 %v5188
    %5219 = vmatprep.subr.mxu0 0.0
    %5220 = vmatpush1.msra.mxu0 %v5187
    %5221 = vmatprep.subr.mxu0 0.0
    %5222 = vmatpush1.msra.mxu0 %v5186
    %5223 = vmatprep.subr.mxu0 0.0
    %5224 = vmatpush1.msra.mxu0 %v5185
    %5225 = vmatprep.subr.mxu0 0.0
    %5226 = vmatpush1.msra.mxu0 %v5184
    %5227 = vmatprep.subr.mxu0 0.0
    %5228 = vmatpush1.msra.mxu0 %v5183
    %5229 = vmatprep.subr.mxu0 0.0
    %5230 = vmatpush1.msra.mxu0 %v5182
    %5231 = vmatprep.subr.mxu0 0.0
    %5232 = vmatpush1.msra.mxu0 %v5181
    %5233 = vmatprep.subr.mxu0 0.0
    %5234 = vmatpush1.msra.mxu0 %v5180
    %5235 = vmatprep.subr.mxu0 0.0
    %5236 = vmatpush1.msra.mxu0 %v5179
    %5237 = vmatprep.subr.mxu0 0.0
    %5238 = vmatpush2.msra.mxu0 0.0
    %5239 = vmatprep.subr.mxu0 0.0
    %5240 = vmatpush2.msra.mxu0 0.0
    %5241 = vmatprep.subr.mxu0 0.0
    %5242 = vmatpush2.msra.mxu0 0.0
    %5243 = vmatprep.subr.mxu0 0.0
    %5244 = vmatpush2.msra.mxu0 0.0
    %5245 = vmatprep.subr.mxu0 0.0
    %5246 = vmatpush2.msra.mxu0 0.0
    %5247 = vmatprep.subr.mxu0 0.0
    %5248 = vmatpush2.msra.mxu0 0.0
    %5249 = vmatprep.subr.mxu0 0.0
    %5250 = vmatpush2.msra.mxu0 0.0
    %5251 = vmatprep.subr.mxu0 0.0
    %5252 = vmatpush2.msra.mxu0 0.0
    %5253 = vmatprep.subr.mxu0 0.0
    %5254 = vmatpush2.msra.mxu0 0.0
    %5255 = vmatprep.subr.mxu0 0.0
    %5256 = vmatpush2.msra.mxu0 0.0
    %5257 = vmatprep.subr.mxu0 0.0
    %5258 = vmatpush2.msra.mxu0 0.0
    %5259 = vmatprep.subr.mxu0 0.0
    %5260 = vmatpush2.msra.mxu0 0.0
    %5261 = vmatprep.subr.mxu0 0.0
    %5262 = vmatpush2.msra.mxu0 0.0
    %5263 = vmatprep.subr.mxu0 0.0
    %5264 = vmatpush2.msra.mxu0 0.0
    %5265 = vmatprep.subr.mxu0 0.0
    %5266 = vmatpush2.msra.mxu0 0.0
    %5267 = vmatprep.subr.mxu0 0.0
    %5268 = vmatpush2.msra.mxu0 0.0
    %5269 = vmatprep.mubr.f32.mxu0 0.0
    %5270 = vmatmul.mubr.f32.gmra.mxu0 %v5200
    %v5271 = vpop.f32.mrf.mxu0
    %v5272 = vadd.f32 %v5192, %v5271
    %v5273 = vpop.f32.mrf.mxu0
    %5274 = vmatprep.mubr.f32.mxu0 0.0
    %5275 = vmatmul.mubr.f32.gmra.mxu0 %v5203
    %v5276 = vpop.f32.mrf.mxu0
    %v5277 = vadd.f32 %v5197, %v5276
    %v5278 = vpop.f32.mrf.mxu0
    %5279 = vdwg.mxu0
    %v5280 = vadd.f32 %v5073, %v5272
    %v5281 = vadd.f32 %v5074, %v5277
    %v5282 = vadd.f32 %v4875, %v5280
    %v5283 = vadd.f32 %v4876, %v5281
    %v5284 = vmul.f32 %v5282, 0.5
    %v5285 = vmul.f32 %v5283, 0.5
    %vm5286 = vcmp.ge.f32.partialorder %v5284, 0.0
    %vm5287 = vcmp.ge.f32.partialorder %v5285, 0.0
    %v5288 = vmul.f32 %v5284, 0.1
    %v5289 = vmul.f32 %v5285, 0.1
    %v5290 = vsel %vm5286, %v5284, %v5288
    %v5291 = vsel %vm5287, %v5285, %v5289
    %v5293 = vsel %vm1001, %v5290, 0
    %v5296 = vsel %vm1001, %v5291, 0
    %5298 = vmatprep.subr.mxu0 0.0
    %5299 = vmatpush1.msra.mxu0 0.0
    %5300 = vmatprep.subr.mxu0 0.0
    %5301 = vmatpush1.msra.mxu0 0.0
    %5302 = vmatprep.subr.mxu0 0.0
    %5303 = vmatpush1.msra.mxu0 0.0
    %5304 = vmatprep.subr.mxu0 0.0
    %5305 = vmatpush1.msra.mxu0 0.0
    %5306 = vmatprep.subr.mxu0 0.0
    %5307 = vmatpush1.msra.mxu0 0.0
    %5308 = vmatprep.subr.mxu0 0.0
    %5309 = vmatpush1.msra.mxu0 0.0
    %5310 = vmatprep.subr.mxu0 0.0
    %5311 = vmatpush1.msra.mxu0 0.0
    %5312 = vmatprep.subr.mxu0 0.0
    %5313 = vmatpush1.msra.mxu0 0.0
    %5314 = vmatprep.subr.mxu0 0.0
    %5315 = vmatpush1.msra.mxu0 0.0
    %5316 = vmatprep.subr.mxu0 0.0
    %5317 = vmatpush1.msra.mxu0 0.0
    %5318 = vmatprep.subr.mxu0 0.0
    %5319 = vmatpush1.msra.mxu0 0.0
    %5320 = vmatprep.subr.mxu0 0.0
    %5321 = vmatpush1.msra.mxu0 0.0
    %5322 = vmatprep.subr.mxu0 0.0
    %5323 = vmatpush1.msra.mxu0 %v2417
    %5324 = vmatprep.subr.mxu0 0.0
    %5325 = vmatpush1.msra.mxu0 %v2416
    %5326 = vmatprep.subr.mxu0 0.0
    %5327 = vmatpush1.msra.mxu0 %v2415
    %5328 = vmatprep.subr.mxu0 0.0
    %5329 = vmatpush1.msra.mxu0 %v2414
    %5330 = vmatprep.subr.mxu0 0.0
    %5331 = vmatpush2.msra.mxu0 0.0
    %5332 = vmatprep.subr.mxu0 0.0
    %5333 = vmatpush2.msra.mxu0 0.0
    %5334 = vmatprep.subr.mxu0 0.0
    %5335 = vmatpush2.msra.mxu0 0.0
    %5336 = vmatprep.subr.mxu0 0.0
    %5337 = vmatpush2.msra.mxu0 0.0
    %5338 = vmatprep.subr.mxu0 0.0
    %5339 = vmatpush2.msra.mxu0 0.0
    %5340 = vmatprep.subr.mxu0 0.0
    %5341 = vmatpush2.msra.mxu0 0.0
    %5342 = vmatprep.subr.mxu0 0.0
    %5343 = vmatpush2.msra.mxu0 0.0
    %5344 = vmatprep.subr.mxu0 0.0
    %5345 = vmatpush2.msra.mxu0 0.0
    %5346 = vmatprep.subr.mxu0 0.0
    %5347 = vmatpush2.msra.mxu0 0.0
    %5348 = vmatprep.subr.mxu0 0.0
    %5349 = vmatpush2.msra.mxu0 0.0
    %5350 = vmatprep.subr.mxu0 0.0
    %5351 = vmatpush2.msra.mxu0 0.0
    %5352 = vmatprep.subr.mxu0 0.0
    %5353 = vmatpush2.msra.mxu0 0.0
    %5354 = vmatprep.subr.mxu0 0.0
    %5355 = vmatpush2.msra.mxu0 0.0
    %5356 = vmatprep.subr.mxu0 0.0
    %5357 = vmatpush2.msra.mxu0 0.0
    %5358 = vmatprep.subr.mxu0 0.0
    %5359 = vmatpush2.msra.mxu0 0.0
    %5360 = vmatprep.subr.mxu0 0.0
    %5361 = vmatpush2.msra.mxu0 0.0
    %5362 = vmatprep.mubr.f32.mxu0 0.0
    %5363 = vmatmul.mubr.f32.gmra.mxu0 %v5293
    %v5364 = vpop.f32.mrf.mxu0
    %v5365 = vadd.f32 0.0, %v5364
    %v5366 = vpop.f32.mrf.mxu0
    %5367 = vmatprep.mubr.f32.mxu0 0.0
    %5368 = vmatmul.mubr.f32.gmra.mxu0 %v5296
    %v5369 = vpop.f32.mrf.mxu0
    %v5370 = vadd.f32 0.0, %v5369
    %v5371 = vpop.f32.mrf.mxu0
    %5372 = vdwg.mxu0
    %5375 = vrot.lane.b32.xlu0 %v5365, 2
    %v5376 = vpop.permute.xlu0 %5375
    %5377 = vrot.lane.b32.xlu0 %v5370, 2
    %v5378 = vpop.permute.xlu0 %5377
    %v5381 = vsel %vm2507, 0.0, %v5376
    %v5382 = vsel %vm2507, 0.0, %v5378
    %v5383 = vsel %vm774, %v5381, 0.0
    %v5384 = vsel %vm774, %v5382, 0.0
    %5387 = vrot.lane.b32.xlu0 %v5383, 127
    %v5388 = vpop.permute.xlu0 %5387
    %5389 = vrot.lane.b32.xlu0 %v5384, 127
    %v5390 = vpop.permute.xlu0 %5389
    %5393 = vrot.lane.b32.xlu0 %v5383, 126
    %v5394 = vpop.permute.xlu0 %5393
    %5395 = vrot.lane.b32.xlu0 %v5384, 126
    %v5396 = vpop.permute.xlu0 %5395
    %5399 = vrot.lane.b32.xlu0 %v5383, 125
    %v5400 = vpop.permute.xlu0 %5399
    %5401 = vrot.lane.b32.xlu0 %v5384, 125
    %v5402 = vpop.permute.xlu0 %5401
    %5405 = vrot.lane.b32.xlu0 %v5290, 96
    %v5406 = vpop.permute.xlu0 %5405
    %5407 = vrot.lane.b32.xlu0 %v5291, 96
    %v5408 = vpop.permute.xlu0 %5407
    %v5409 = vsel %vm1001, %v5406, 0
    %v5411 = vsel %vm1001, %v5408, 0
    %5413 = vmatprep.subr.mxu0 0.0
    %5414 = vmatpush1.msra.mxu0 0.0
    %5415 = vmatprep.subr.mxu0 0.0
    %5416 = vmatpush1.msra.mxu0 0.0
    %5417 = vmatprep.subr.mxu0 0.0
    %5418 = vmatpush1.msra.mxu0 0.0
    %5419 = vmatprep.subr.mxu0 0.0
    %5420 = vmatpush1.msra.mxu0 0.0
    %5421 = vmatprep.subr.mxu0 0.0
    %5422 = vmatpush1.msra.mxu0 0.0
    %5423 = vmatprep.subr.mxu0 0.0
    %5424 = vmatpush1.msra.mxu0 0.0
    %5425 = vmatprep.subr.mxu0 0.0
    %5426 = vmatpush1.msra.mxu0 0.0
    %5427 = vmatprep.subr.mxu0 0.0
    %5428 = vmatpush1.msra.mxu0 0.0
    %5429 = vmatprep.subr.mxu0 0.0
    %5430 = vmatpush1.msra.mxu0 0.0
    %5431 = vmatprep.subr.mxu0 0.0
    %5432 = vmatpush1.msra.mxu0 0.0
    %5433 = vmatprep.subr.mxu0 0.0
    %5434 = vmatpush1.msra.mxu0 0.0
    %5435 = vmatprep.subr.mxu0 0.0
    %5436 = vmatpush1.msra.mxu0 0.0
    %5437 = vmatprep.subr.mxu0 0.0
    %5438 = vmatpush1.msra.mxu0 %v2417
    %5439 = vmatprep.subr.mxu0 0.0
    %5440 = vmatpush1.msra.mxu0 %v2416
    %5441 = vmatprep.subr.mxu0 0.0
    %5442 = vmatpush1.msra.mxu0 %v2415
    %5443 = vmatprep.subr.mxu0 0.0
    %5444 = vmatpush1.msra.mxu0 %v2414
    %5445 = vmatprep.subr.mxu0 0.0
    %5446 = vmatpush2.msra.mxu0 0.0
    %5447 = vmatprep.subr.mxu0 0.0
    %5448 = vmatpush2.msra.mxu0 0.0
    %5449 = vmatprep.subr.mxu0 0.0
    %5450 = vmatpush2.msra.mxu0 0.0
    %5451 = vmatprep.subr.mxu0 0.0
    %5452 = vmatpush2.msra.mxu0 0.0
    %5453 = vmatprep.subr.mxu0 0.0
    %5454 = vmatpush2.msra.mxu0 0.0
    %5455 = vmatprep.subr.mxu0 0.0
    %5456 = vmatpush2.msra.mxu0 0.0
    %5457 = vmatprep.subr.mxu0 0.0
    %5458 = vmatpush2.msra.mxu0 0.0
    %5459 = vmatprep.subr.mxu0 0.0
    %5460 = vmatpush2.msra.mxu0 0.0
    %5461 = vmatprep.subr.mxu0 0.0
    %5462 = vmatpush2.msra.mxu0 0.0
    %5463 = vmatprep.subr.mxu0 0.0
    %5464 = vmatpush2.msra.mxu0 0.0
    %5465 = vmatprep.subr.mxu0 0.0
    %5466 = vmatpush2.msra.mxu0 0.0
    %5467 = vmatprep.subr.mxu0 0.0
    %5468 = vmatpush2.msra.mxu0 0.0
    %5469 = vmatprep.subr.mxu0 0.0
    %5470 = vmatpush2.msra.mxu0 0.0
    %5471 = vmatprep.subr.mxu0 0.0
    %5472 = vmatpush2.msra.mxu0 0.0
    %5473 = vmatprep.subr.mxu0 0.0
    %5474 = vmatpush2.msra.mxu0 0.0
    %5475 = vmatprep.subr.mxu0 0.0
    %5476 = vmatpush2.msra.mxu0 0.0
    %5477 = vmatprep.mubr.f32.mxu0 0.0
    %5478 = vmatmul.mubr.f32.gmra.mxu0 %v5409
    %v5479 = vpop.f32.mrf.mxu0
    %v5480 = vadd.f32 0.0, %v5479
    %v5481 = vpop.f32.mrf.mxu0
    %5482 = vmatprep.mubr.f32.mxu0 0.0
    %5483 = vmatmul.mubr.f32.gmra.mxu0 %v5411
    %v5484 = vpop.f32.mrf.mxu0
    %v5485 = vadd.f32 0.0, %v5484
    %v5486 = vpop.f32.mrf.mxu0
    %5487 = vdwg.mxu0
    %5490 = vrot.lane.b32.xlu0 %v5480, 2
    %v5491 = vpop.permute.xlu0 %5490
    %5492 = vrot.lane.b32.xlu0 %v5485, 2
    %v5493 = vpop.permute.xlu0 %5492
    %v5496 = vsel %vm2507, 0.0, %v5491
    %v5497 = vsel %vm2507, 0.0, %v5493
    %v5498 = vsel %vm774, %v5496, 0.0
    %v5499 = vsel %vm774, %v5497, 0.0
    %5502 = vrot.lane.b32.xlu0 %v5498, 127
    %v5503 = vpop.permute.xlu0 %5502
    %5504 = vrot.lane.b32.xlu0 %v5499, 127
    %v5505 = vpop.permute.xlu0 %5504
    %5506 = vrot.lane.b32.xlu0 %v5498, 126
    %v5507 = vpop.permute.xlu0 %5506
    %5508 = vrot.lane.b32.xlu0 %v5499, 126
    %v5509 = vpop.permute.xlu0 %5508
    %5510 = vrot.lane.b32.xlu0 %v5498, 125
    %v5511 = vpop.permute.xlu0 %5510
    %5512 = vrot.lane.b32.xlu0 %v5499, 125
    %v5513 = vpop.permute.xlu0 %5512
    %5514 = vrot.lane.b32.xlu0 %v5498, 64
    %v5515 = vpop.permute.xlu0 %5514
    %5516 = vrot.lane.b32.xlu0 %v5499, 64
    %v5517 = vpop.permute.xlu0 %5516
    %5518 = vrot.lane.b32.xlu0 %v5503, 64
    %v5519 = vpop.permute.xlu0 %5518
    %5520 = vrot.lane.b32.xlu0 %v5505, 64
    %v5521 = vpop.permute.xlu0 %5520
    %5522 = vrot.lane.b32.xlu0 %v5507, 64
    %v5523 = vpop.permute.xlu0 %5522
    %5524 = vrot.lane.b32.xlu0 %v5509, 64
    %v5525 = vpop.permute.xlu0 %5524
    %5526 = vrot.lane.b32.xlu0 %v5511, 64
    %v5527 = vpop.permute.xlu0 %5526
    %5528 = vrot.lane.b32.xlu0 %v5513, 64
    %v5529 = vpop.permute.xlu0 %5528
    %v5538 = vsel %vm371, %v5383, %v5515
    %v5539 = vsel %vm371, %v5384, %v5517
    %v5540 = vsel %vm371, %v5388, %v5519
    %v5541 = vsel %vm371, %v5390, %v5521
    %v5542 = vsel %vm371, %v5394, %v5523
    %v5543 = vsel %vm371, %v5396, %v5525
    %v5544 = vsel %vm371, %v5400, %v5527
    %v5545 = vsel %vm371, %v5402, %v5529
    %5547 = vset.pattern.permute.xlu0 0
    %5548 = vperm.xlu0 %5547, %v297
    %v5549 = vpop.permute.xlu0 %5548
    %v5552 = vsel %vm371, %v298, 0
    %5554 = vmatprep.subr.mxu0 0.0
    %5555 = vmatpush1.msra.mxu0 0.0
    %5556 = vmatprep.subr.mxu0 0.0
    %5557 = vmatpush1.msra.mxu0 0.0
    %5558 = vmatprep.subr.mxu0 0.0
    %5559 = vmatpush1.msra.mxu0 0.0
    %5560 = vmatprep.subr.mxu0 0.0
    %5561 = vmatpush1.msra.mxu0 0.0
    %5562 = vmatprep.subr.mxu0 0.0
    %5563 = vmatpush1.msra.mxu0 0.0
    %5564 = vmatprep.subr.mxu0 0.0
    %5565 = vmatpush1.msra.mxu0 0.0
    %5566 = vmatprep.subr.mxu0 0.0
    %5567 = vmatpush1.msra.mxu0 0.0
    %5568 = vmatprep.subr.mxu0 0.0
    %5569 = vmatpush1.msra.mxu0 0.0
    %5570 = vmatprep.subr.mxu0 0.0
    %5571 = vmatpush1.msra.mxu0 %v5545
    %5572 = vmatprep.subr.mxu0 0.0
    %5573 = vmatpush1.msra.mxu0 %v5544
    %5574 = vmatprep.subr.mxu0 0.0
    %5575 = vmatpush1.msra.mxu0 %v5543
    %5576 = vmatprep.subr.mxu0 0.0
    %5577 = vmatpush1.msra.mxu0 %v5542
    %5578 = vmatprep.subr.mxu0 0.0
    %5579 = vmatpush1.msra.mxu0 %v5541
    %5580 = vmatprep.subr.mxu0 0.0
    %5581 = vmatpush1.msra.mxu0 %v5540
    %5582 = vmatprep.subr.mxu0 0.0
    %5583 = vmatpush1.msra.mxu0 %v5539
    %5584 = vmatprep.subr.mxu0 0.0
    %5585 = vmatpush1.msra.mxu0 %v5538
    %5586 = vmatprep.subr.mxu0 0.0
    %5587 = vmatpush2.msra.mxu0 0.0
    %5588 = vmatprep.subr.mxu0 0.0
    %5589 = vmatpush2.msra.mxu0 0.0
    %5590 = vmatprep.subr.mxu0 0.0
    %5591 = vmatpush2.msra.mxu0 0.0
    %5592 = vmatprep.subr.mxu0 0.0
    %5593 = vmatpush2.msra.mxu0 0.0
    %5594 = vmatprep.subr.mxu0 0.0
    %5595 = vmatpush2.msra.mxu0 0.0
    %5596 = vmatprep.subr.mxu0 0.0
    %5597 = vmatpush2.msra.mxu0 0.0
    %5598 = vmatprep.subr.mxu0 0.0
    %5599 = vmatpush2.msra.mxu0 0.0
    %5600 = vmatprep.subr.mxu0 0.0
    %5601 = vmatpush2.msra.mxu0 0.0
    %5602 = vmatprep.subr.mxu0 0.0
    %5603 = vmatpush2.msra.mxu0 0.0
    %5604 = vmatprep.subr.mxu0 0.0
    %5605 = vmatpush2.msra.mxu0 0.0
    %5606 = vmatprep.subr.mxu0 0.0
    %5607 = vmatpush2.msra.mxu0 0.0
    %5608 = vmatprep.subr.mxu0 0.0
    %5609 = vmatpush2.msra.mxu0 0.0
    %5610 = vmatprep.subr.mxu0 0.0
    %5611 = vmatpush2.msra.mxu0 0.0
    %5612 = vmatprep.subr.mxu0 0.0
    %5613 = vmatpush2.msra.mxu0 0.0
    %5614 = vmatprep.subr.mxu0 0.0
    %5615 = vmatpush2.msra.mxu0 0.0
    %5616 = vmatprep.subr.mxu0 0.0
    %5617 = vmatpush2.msra.mxu0 0.0
    %5618 = vmatprep.mubr.f32.mxu0 0.0
    %5619 = vmatmul.mubr.f32.gmra.mxu0 %v5552
    %v5620 = vpop.f32.mrf.mxu0
    %v5621 = vadd.f32 %v5549, %v5620
    %v5622 = vpop.f32.mrf.mxu0
    %5623 = vdwg.mxu0
    %v5624 = vadd.f32 %v5621, %v3966
    %vm5625 = vcmp.ge.f32.partialorder %v5624, 0.0
    %v5626 = vmul.f32 %v5624, 0.1
    %v5627 = vsel %vm5625, %v5624, %v5626
    %5629 = vrot.lane.b32.xlu0 %v5627, 1
    %v5630 = vpop.permute.xlu0 %5629
    %v5632 = vsel %vm772, 0.0, %v5630
    %v5633 = vsel %vm774, %v5632, 0.0
    %5635 = vrot.lane.b32.xlu0 %v5633, 127
    %v5636 = vpop.permute.xlu0 %5635
    %5638 = vrot.lane.b32.xlu0 %v5633, 126
    %v5639 = vpop.permute.xlu0 %5638
    %5641 = vrot.lane.b32.xlu0 %v5627, 65
    %v5642 = vpop.permute.xlu0 %5641
    %v5644 = vsel %vm772, 0.0, %v5642
    %v5645 = vsel %vm774, %v5644, 0.0
    %5647 = vrot.lane.b32.xlu0 %v5645, 127
    %v5648 = vpop.permute.xlu0 %5647
    %5649 = vrot.lane.b32.xlu0 %v5645, 126
    %v5650 = vpop.permute.xlu0 %5649
    %5651 = vrot.lane.b32.xlu0 %v5645, 64
    %v5652 = vpop.permute.xlu0 %5651
    %5653 = vrot.lane.b32.xlu0 %v5648, 64
    %v5654 = vpop.permute.xlu0 %5653
    %5655 = vrot.lane.b32.xlu0 %v5650, 64
    %v5656 = vpop.permute.xlu0 %5655
    %v5660 = vsel %vm371, %v5633, %v5652
    %v5661 = vsel %vm371, %v5636, %v5654
    %v5662 = vsel %vm371, %v5639, %v5656
    %5664 = vset.pattern.permute.xlu0 0
    %5665 = vperm.xlu0 %5664, %v277
    %v5666 = vpop.permute.xlu0 %5665
    %v5669 = vsel %vm3169, %v278, 0
    %5671 = vmatprep.subr.mxu0 0.0
    %5672 = vmatpush1.msra.mxu0 0.0
    %5673 = vmatprep.subr.mxu0 0.0
    %5674 = vmatpush1.msra.mxu0 0.0
    %5675 = vmatprep.subr.mxu0 0.0
    %5676 = vmatpush1.msra.mxu0 0.0
    %5677 = vmatprep.subr.mxu0 0.0
    %5678 = vmatpush1.msra.mxu0 0.0
    %5679 = vmatprep.subr.mxu0 0.0
    %5680 = vmatpush1.msra.mxu0 0.0
    %5681 = vmatprep.subr.mxu0 0.0
    %5682 = vmatpush1.msra.mxu0 0.0
    %5683 = vmatprep.subr.mxu0 0.0
    %5684 = vmatpush1.msra.mxu0 0.0
    %5685 = vmatprep.subr.mxu0 0.0
    %5686 = vmatpush1.msra.mxu0 0.0
    %5687 = vmatprep.subr.mxu0 0.0
    %5688 = vmatpush1.msra.mxu0 0.0
    %5689 = vmatprep.subr.mxu0 0.0
    %5690 = vmatpush1.msra.mxu0 0.0
    %5691 = vmatprep.subr.mxu0 0.0
    %5692 = vmatpush1.msra.mxu0 0.0
    %5693 = vmatprep.subr.mxu0 0.0
    %5694 = vmatpush1.msra.mxu0 0.0
    %5695 = vmatprep.subr.mxu0 0.0
    %5696 = vmatpush1.msra.mxu0 0.0
    %5697 = vmatprep.subr.mxu0 0.0
    %5698 = vmatpush1.msra.mxu0 %v5662
    %5699 = vmatprep.subr.mxu0 0.0
    %5700 = vmatpush1.msra.mxu0 %v5661
    %5701 = vmatprep.subr.mxu0 0.0
    %5702 = vmatpush1.msra.mxu0 %v5660
    %5703 = vmatprep.subr.mxu0 0.0
    %5704 = vmatpush2.msra.mxu0 0.0
    %5705 = vmatprep.subr.mxu0 0.0
    %5706 = vmatpush2.msra.mxu0 0.0
    %5707 = vmatprep.subr.mxu0 0.0
    %5708 = vmatpush2.msra.mxu0 0.0
    %5709 = vmatprep.subr.mxu0 0.0
    %5710 = vmatpush2.msra.mxu0 0.0
    %5711 = vmatprep.subr.mxu0 0.0
    %5712 = vmatpush2.msra.mxu0 0.0
    %5713 = vmatprep.subr.mxu0 0.0
    %5714 = vmatpush2.msra.mxu0 0.0
    %5715 = vmatprep.subr.mxu0 0.0
    %5716 = vmatpush2.msra.mxu0 0.0
    %5717 = vmatprep.subr.mxu0 0.0
    %5718 = vmatpush2.msra.mxu0 0.0
    %5719 = vmatprep.subr.mxu0 0.0
    %5720 = vmatpush2.msra.mxu0 0.0
    %5721 = vmatprep.subr.mxu0 0.0
    %5722 = vmatpush2.msra.mxu0 0.0
    %5723 = vmatprep.subr.mxu0 0.0
    %5724 = vmatpush2.msra.mxu0 0.0
    %5725 = vmatprep.subr.mxu0 0.0
    %5726 = vmatpush2.msra.mxu0 0.0
    %5727 = vmatprep.subr.mxu0 0.0
    %5728 = vmatpush2.msra.mxu0 0.0
    %5729 = vmatprep.subr.mxu0 0.0
    %5730 = vmatpush2.msra.mxu0 0.0
    %5731 = vmatprep.subr.mxu0 0.0
    %5732 = vmatpush2.msra.mxu0 0.0
    %5733 = vmatprep.subr.mxu0 0.0
    %5734 = vmatpush2.msra.mxu0 0.0
    %5735 = vmatprep.mubr.f32.mxu0 0.0
    %5736 = vmatmul.mubr.f32.gmra.mxu0 %v5669
    %v5737 = vpop.f32.mrf.mxu0
    %v5738 = vadd.f32 %v5666, %v5737
    %v5739 = vpop.f32.mrf.mxu0
    %5740 = vdwg.mxu0
    %v5741 = vadd.f32 %v5624, %v5738
    %vm5742 = vcmp.ge.f32.partialorder %v5741, 0.0
    %v5743 = vmul.f32 %v5741, 0.1
    %v5744 = vsel %vm5742, %v5741, %v5743
    %5746 = vrot.lane.b32.xlu0 %v5744, 3
    %v5747 = vpop.permute.xlu0 %5746
    %v5749 = vsel %vm377, 0.0, %v5747
    %v5750 = vsel %vm569, %v5749, 0.0
    %5752 = vrot.lane.b32.xlu0 %v5750, 125
    %v5753 = vpop.permute.xlu0 %5752
    %5755 = vrot.lane.b32.xlu0 %v5750, 122
    %v5756 = vpop.permute.xlu0 %5755
    %5758 = vrot.lane.b32.xlu0 %v5744, 67
    %v5759 = vpop.permute.xlu0 %5758
    %v5761 = vsel %vm377, 0.0, %v5759
    %v5762 = vsel %vm569, %v5761, 0.0
    %5764 = vrot.lane.b32.xlu0 %v5762, 125
    %v5765 = vpop.permute.xlu0 %5764
    %5766 = vrot.lane.b32.xlu0 %v5762, 122
    %v5767 = vpop.permute.xlu0 %5766
    %5768 = vrot.lane.b32.xlu0 %v5762, 64
    %v5769 = vpop.permute.xlu0 %5768
    %5770 = vrot.lane.b32.xlu0 %v5765, 64
    %v5771 = vpop.permute.xlu0 %5770
    %5772 = vrot.lane.b32.xlu0 %v5767, 64
    %v5773 = vpop.permute.xlu0 %5772
    %v5777 = vsel %vm371, %v5750, %v5769
    %v5778 = vsel %vm371, %v5753, %v5771
    %v5779 = vsel %vm371, %v5756, %v5773
    %5781 = vset.pattern.permute.xlu0 0
    %5782 = vperm.xlu0 %5781, %v279
    %v5783 = vpop.permute.xlu0 %5782
    %v5786 = vsel %vm3169, %v280, 0
    %5788 = vmatprep.subr.mxu0 0.0
    %5789 = vmatpush1.msra.mxu0 0.0
    %5790 = vmatprep.subr.mxu0 0.0
    %5791 = vmatpush1.msra.mxu0 0.0
    %5792 = vmatprep.subr.mxu0 0.0
    %5793 = vmatpush1.msra.mxu0 0.0
    %5794 = vmatprep.subr.mxu0 0.0
    %5795 = vmatpush1.msra.mxu0 0.0
    %5796 = vmatprep.subr.mxu0 0.0
    %5797 = vmatpush1.msra.mxu0 0.0
    %5798 = vmatprep.subr.mxu0 0.0
    %5799 = vmatpush1.msra.mxu0 0.0
    %5800 = vmatprep.subr.mxu0 0.0
    %5801 = vmatpush1.msra.mxu0 0.0
    %5802 = vmatprep.subr.mxu0 0.0
    %5803 = vmatpush1.msra.mxu0 0.0
    %5804 = vmatprep.subr.mxu0 0.0
    %5805 = vmatpush1.msra.mxu0 0.0
    %5806 = vmatprep.subr.mxu0 0.0
    %5807 = vmatpush1.msra.mxu0 0.0
    %5808 = vmatprep.subr.mxu0 0.0
    %5809 = vmatpush1.msra.mxu0 0.0
    %5810 = vmatprep.subr.mxu0 0.0
    %5811 = vmatpush1.msra.mxu0 0.0
    %5812 = vmatprep.subr.mxu0 0.0
    %5813 = vmatpush1.msra.mxu0 0.0
    %5814 = vmatprep.subr.mxu0 0.0
    %5815 = vmatpush1.msra.mxu0 %v5779
    %5816 = vmatprep.subr.mxu0 0.0
    %5817 = vmatpush1.msra.mxu0 %v5778
    %5818 = vmatprep.subr.mxu0 0.0
    %5819 = vmatpush1.msra.mxu0 %v5777
    %5820 = vmatprep.subr.mxu0 0.0
    %5821 = vmatpush2.msra.mxu0 0.0
    %5822 = vmatprep.subr.mxu0 0.0
    %5823 = vmatpush2.msra.mxu0 0.0
    %5824 = vmatprep.subr.mxu0 0.0
    %5825 = vmatpush2.msra.mxu0 0.0
    %5826 = vmatprep.subr.mxu0 0.0
    %5827 = vmatpush2.msra.mxu0 0.0
    %5828 = vmatprep.subr.mxu0 0.0
    %5829 = vmatpush2.msra.mxu0 0.0
    %5830 = vmatprep.subr.mxu0 0.0
    %5831 = vmatpush2.msra.mxu0 0.0
    %5832 = vmatprep.subr.mxu0 0.0
    %5833 = vmatpush2.msra.mxu0 0.0
    %5834 = vmatprep.subr.mxu0 0.0
    %5835 = vmatpush2.msra.mxu0 0.0
    %5836 = vmatprep.subr.mxu0 0.0
    %5837 = vmatpush2.msra.mxu0 0.0
    %5838 = vmatprep.subr.mxu0 0.0
    %5839 = vmatpush2.msra.mxu0 0.0
    %5840 = vmatprep.subr.mxu0 0.0
    %5841 = vmatpush2.msra.mxu0 0.0
    %5842 = vmatprep.subr.mxu0 0.0
    %5843 = vmatpush2.msra.mxu0 0.0
    %5844 = vmatprep.subr.mxu0 0.0
    %5845 = vmatpush2.msra.mxu0 0.0
    %5846 = vmatprep.subr.mxu0 0.0
    %5847 = vmatpush2.msra.mxu0 0.0
    %5848 = vmatprep.subr.mxu0 0.0
    %5849 = vmatpush2.msra.mxu0 0.0
    %5850 = vmatprep.subr.mxu0 0.0
    %5851 = vmatpush2.msra.mxu0 0.0
    %5852 = vmatprep.mubr.f32.mxu0 0.0
    %5853 = vmatmul.mubr.f32.gmra.mxu0 %v5786
    %v5854 = vpop.f32.mrf.mxu0
    %v5855 = vadd.f32 %v5783, %v5854
    %v5856 = vpop.f32.mrf.mxu0
    %5857 = vdwg.mxu0
    %v5858 = vadd.f32 %v5741, %v5855
    %5859 = vrot.lane.b32.xlu0 %v5627, 2
    %v5860 = vpop.permute.xlu0 %5859
    %v5862 = vsel %vm2507, 0.0, %v5860
    %vm5863 = vcmask 539648
    %v5864 = vsel %vm5863, %v5862, 0.0
    %5866 = vrot.lane.b32.xlu0 %v5864, 127
    %v5867 = vpop.permute.xlu0 %5866
    %5869 = vrot.lane.b32.xlu0 %v5864, 126
    %v5870 = vpop.permute.xlu0 %5869
    %5872 = vrot.lane.b32.xlu0 %v5864, 125
    %v5873 = vpop.permute.xlu0 %5872
    %5875 = vrot.lane.b32.xlu0 %v5864, 124
    %v5876 = vpop.permute.xlu0 %5875
    %5878 = vrot.lane.b32.xlu0 %v5627, 66
    %v5879 = vpop.permute.xlu0 %5878
    %v5881 = vsel %vm2507, 0.0, %v5879
    %v5882 = vsel %vm5863, %v5881, 0.0
    %5884 = vrot.lane.b32.xlu0 %v5882, 127
    %v5885 = vpop.permute.xlu0 %5884
    %5886 = vrot.lane.b32.xlu0 %v5882, 126
    %v5887 = vpop.permute.xlu0 %5886
    %5888 = vrot.lane.b32.xlu0 %v5882, 125
    %v5889 = vpop.permute.xlu0 %5888
    %5890 = vrot.lane.b32.xlu0 %v5882, 124
    %v5891 = vpop.permute.xlu0 %5890
    %5892 = vrot.lane.b32.xlu0 %v5882, 64
    %v5893 = vpop.permute.xlu0 %5892
    %5894 = vrot.lane.b32.xlu0 %v5885, 64
    %v5895 = vpop.permute.xlu0 %5894
    %5896 = vrot.lane.b32.xlu0 %v5887, 64
    %v5897 = vpop.permute.xlu0 %5896
    %5898 = vrot.lane.b32.xlu0 %v5889, 64
    %v5899 = vpop.permute.xlu0 %5898
    %5900 = vrot.lane.b32.xlu0 %v5891, 64
    %v5901 = vpop.permute.xlu0 %5900
    %v5907 = vsel %vm371, %v5864, %v5893
    %v5908 = vsel %vm371, %v5867, %v5895
    %v5909 = vsel %vm371, %v5870, %v5897
    %v5910 = vsel %vm371, %v5873, %v5899
    %v5911 = vsel %vm371, %v5876, %v5901
    %5913 = vset.pattern.permute.xlu0 0
    %5914 = vperm.xlu0 %5913, %v281
    %v5915 = vpop.permute.xlu0 %5914
    %vm5917 = vcmask 326656
    %v5919 = vsel %vm5917, %v282, 0
    %5921 = vmatprep.subr.mxu0 0.0
    %5922 = vmatpush1.msra.mxu0 0.0
    %5923 = vmatprep.subr.mxu0 0.0
    %5924 = vmatpush1.msra.mxu0 0.0
    %5925 = vmatprep.subr.mxu0 0.0
    %5926 = vmatpush1.msra.mxu0 0.0
    %5927 = vmatprep.subr.mxu0 0.0
    %5928 = vmatpush1.msra.mxu0 0.0
    %5929 = vmatprep.subr.mxu0 0.0
    %5930 = vmatpush1.msra.mxu0 0.0
    %5931 = vmatprep.subr.mxu0 0.0
    %5932 = vmatpush1.msra.mxu0 0.0
    %5933 = vmatprep.subr.mxu0 0.0
    %5934 = vmatpush1.msra.mxu0 0.0
    %5935 = vmatprep.subr.mxu0 0.0
    %5936 = vmatpush1.msra.mxu0 0.0
    %5937 = vmatprep.subr.mxu0 0.0
    %5938 = vmatpush1.msra.mxu0 0.0
    %5939 = vmatprep.subr.mxu0 0.0
    %5940 = vmatpush1.msra.mxu0 0.0
    %5941 = vmatprep.subr.mxu0 0.0
    %5942 = vmatpush1.msra.mxu0 0.0
    %5943 = vmatprep.subr.mxu0 0.0
    %5944 = vmatpush1.msra.mxu0 %v5911
    %5945 = vmatprep.subr.mxu0 0.0
    %5946 = vmatpush1.msra.mxu0 %v5910
    %5947 = vmatprep.subr.mxu0 0.0
    %5948 = vmatpush1.msra.mxu0 %v5909
    %5949 = vmatprep.subr.mxu0 0.0
    %5950 = vmatpush1.msra.mxu0 %v5908
    %5951 = vmatprep.subr.mxu0 0.0
    %5952 = vmatpush1.msra.mxu0 %v5907
    %5953 = vmatprep.subr.mxu0 0.0
    %5954 = vmatpush2.msra.mxu0 0.0
    %5955 = vmatprep.subr.mxu0 0.0
    %5956 = vmatpush2.msra.mxu0 0.0
    %5957 = vmatprep.subr.mxu0 0.0
    %5958 = vmatpush2.msra.mxu0 0.0
    %5959 = vmatprep.subr.mxu0 0.0
    %5960 = vmatpush2.msra.mxu0 0.0
    %5961 = vmatprep.subr.mxu0 0.0
    %5962 = vmatpush2.msra.mxu0 0.0
    %5963 = vmatprep.subr.mxu0 0.0
    %5964 = vmatpush2.msra.mxu0 0.0
    %5965 = vmatprep.subr.mxu0 0.0
    %5966 = vmatpush2.msra.mxu0 0.0
    %5967 = vmatprep.subr.mxu0 0.0
    %5968 = vmatpush2.msra.mxu0 0.0
    %5969 = vmatprep.subr.mxu0 0.0
    %5970 = vmatpush2.msra.mxu0 0.0
    %5971 = vmatprep.subr.mxu0 0.0
    %5972 = vmatpush2.msra.mxu0 0.0
    %5973 = vmatprep.subr.mxu0 0.0
    %5974 = vmatpush2.msra.mxu0 0.0
    %5975 = vmatprep.subr.mxu0 0.0
    %5976 = vmatpush2.msra.mxu0 0.0
    %5977 = vmatprep.subr.mxu0 0.0
    %5978 = vmatpush2.msra.mxu0 0.0
    %5979 = vmatprep.subr.mxu0 0.0
    %5980 = vmatpush2.msra.mxu0 0.0
    %5981 = vmatprep.subr.mxu0 0.0
    %5982 = vmatpush2.msra.mxu0 0.0
    %5983 = vmatprep.subr.mxu0 0.0
    %5984 = vmatpush2.msra.mxu0 0.0
    %5985 = vmatprep.mubr.f32.mxu0 0.0
    %5986 = vmatmul.mubr.f32.gmra.mxu0 %v5919
    %v5987 = vpop.f32.mrf.mxu0
    %v5988 = vadd.f32 %v5915, %v5987
    %v5989 = vpop.f32.mrf.mxu0
    %5990 = vdwg.mxu0
    %v5991 = vadd.f32 %v5624, %v5988
    %vm5992 = vcmp.ge.f32.partialorder %v5991, 0.0
    %v5993 = vmul.f32 %v5991, 0.1
    %v5994 = vsel %vm5992, %v5991, %v5993
    %5996 = vrot.lane.b32.xlu0 %v5994, 6
    %v5997 = vpop.permute.xlu0 %5996
    %v5999 = vsel %vm5089, 0.0, %v5997
    %vm6000 = vcmask 572416
    %v6001 = vsel %vm6000, %v5999, 0.0
    %6003 = vrot.lane.b32.xlu0 %v6001, 125
    %v6004 = vpop.permute.xlu0 %6003
    %6006 = vrot.lane.b32.xlu0 %v6001, 122
    %v6007 = vpop.permute.xlu0 %6006
    %6009 = vrot.lane.b32.xlu0 %v6001, 119
    %v6010 = vpop.permute.xlu0 %6009
    %6012 = vrot.lane.b32.xlu0 %v6001, 116
    %v6013 = vpop.permute.xlu0 %6012
    %6015 = vrot.lane.b32.xlu0 %v5994, 70
    %v6016 = vpop.permute.xlu0 %6015
    %v6018 = vsel %vm5089, 0.0, %v6016
    %v6019 = vsel %vm6000, %v6018, 0.0
    %6021 = vrot.lane.b32.xlu0 %v6019, 125
    %v6022 = vpop.permute.xlu0 %6021
    %6023 = vrot.lane.b32.xlu0 %v6019, 122
    %v6024 = vpop.permute.xlu0 %6023
    %6025 = vrot.lane.b32.xlu0 %v6019, 119
    %v6026 = vpop.permute.xlu0 %6025
    %6027 = vrot.lane.b32.xlu0 %v6019, 116
    %v6028 = vpop.permute.xlu0 %6027
    %6029 = vrot.lane.b32.xlu0 %v6019, 64
    %v6030 = vpop.permute.xlu0 %6029
    %6031 = vrot.lane.b32.xlu0 %v6022, 64
    %v6032 = vpop.permute.xlu0 %6031
    %6033 = vrot.lane.b32.xlu0 %v6024, 64
    %v6034 = vpop.permute.xlu0 %6033
    %6035 = vrot.lane.b32.xlu0 %v6026, 64
    %v6036 = vpop.permute.xlu0 %6035
    %6037 = vrot.lane.b32.xlu0 %v6028, 64
    %v6038 = vpop.permute.xlu0 %6037
    %v6044 = vsel %vm371, %v6001, %v6030
    %v6045 = vsel %vm371, %v6004, %v6032
    %v6046 = vsel %vm371, %v6007, %v6034
    %v6047 = vsel %vm371, %v6010, %v6036
    %v6048 = vsel %vm371, %v6013, %v6038
    %6050 = vset.pattern.permute.xlu0 0
    %6051 = vperm.xlu0 %6050, %v283
    %v6052 = vpop.permute.xlu0 %6051
    %v6055 = vsel %vm5917, %v284, 0
    %6057 = vmatprep.subr.mxu0 0.0
    %6058 = vmatpush1.msra.mxu0 0.0
    %6059 = vmatprep.subr.mxu0 0.0
    %6060 = vmatpush1.msra.mxu0 0.0
    %6061 = vmatprep.subr.mxu0 0.0
    %6062 = vmatpush1.msra.mxu0 0.0
    %6063 = vmatprep.subr.mxu0 0.0
    %6064 = vmatpush1.msra.mxu0 0.0
    %6065 = vmatprep.subr.mxu0 0.0
    %6066 = vmatpush1.msra.mxu0 0.0
    %6067 = vmatprep.subr.mxu0 0.0
    %6068 = vmatpush1.msra.mxu0 0.0
    %6069 = vmatprep.subr.mxu0 0.0
    %6070 = vmatpush1.msra.mxu0 0.0
    %6071 = vmatprep.subr.mxu0 0.0
    %6072 = vmatpush1.msra.mxu0 0.0
    %6073 = vmatprep.subr.mxu0 0.0
    %6074 = vmatpush1.msra.mxu0 0.0
    %6075 = vmatprep.subr.mxu0 0.0
    %6076 = vmatpush1.msra.mxu0 0.0
    %6077 = vmatprep.subr.mxu0 0.0
    %6078 = vmatpush1.msra.mxu0 0.0
    %6079 = vmatprep.subr.mxu0 0.0
    %6080 = vmatpush1.msra.mxu0 %v6048
    %6081 = vmatprep.subr.mxu0 0.0
    %6082 = vmatpush1.msra.mxu0 %v6047
    %6083 = vmatprep.subr.mxu0 0.0
    %6084 = vmatpush1.msra.mxu0 %v6046
    %6085 = vmatprep.subr.mxu0 0.0
    %6086 = vmatpush1.msra.mxu0 %v6045
    %6087 = vmatprep.subr.mxu0 0.0
    %6088 = vmatpush1.msra.mxu0 %v6044
    %6089 = vmatprep.subr.mxu0 0.0
    %6090 = vmatpush2.msra.mxu0 0.0
    %6091 = vmatprep.subr.mxu0 0.0
    %6092 = vmatpush2.msra.mxu0 0.0
    %6093 = vmatprep.subr.mxu0 0.0
    %6094 = vmatpush2.msra.mxu0 0.0
    %6095 = vmatprep.subr.mxu0 0.0
    %6096 = vmatpush2.msra.mxu0 0.0
    %6097 = vmatprep.subr.mxu0 0.0
    %6098 = vmatpush2.msra.mxu0 0.0
    %6099 = vmatprep.subr.mxu0 0.0
    %6100 = vmatpush2.msra.mxu0 0.0
    %6101 = vmatprep.subr.mxu0 0.0
    %6102 = vmatpush2.msra.mxu0 0.0
    %6103 = vmatprep.subr.mxu0 0.0
    %6104 = vmatpush2.msra.mxu0 0.0
    %6105 = vmatprep.subr.mxu0 0.0
    %6106 = vmatpush2.msra.mxu0 0.0
    %6107 = vmatprep.subr.mxu0 0.0
    %6108 = vmatpush2.msra.mxu0 0.0
    %6109 = vmatprep.subr.mxu0 0.0
    %6110 = vmatpush2.msra.mxu0 0.0
    %6111 = vmatprep.subr.mxu0 0.0
    %6112 = vmatpush2.msra.mxu0 0.0
    %6113 = vmatprep.subr.mxu0 0.0
    %6114 = vmatpush2.msra.mxu0 0.0
    %6115 = vmatprep.subr.mxu0 0.0
    %6116 = vmatpush2.msra.mxu0 0.0
    %6117 = vmatprep.subr.mxu0 0.0
    %6118 = vmatpush2.msra.mxu0 0.0
    %6119 = vmatprep.subr.mxu0 0.0
    %6120 = vmatpush2.msra.mxu0 0.0
    %6121 = vmatprep.mubr.f32.mxu0 0.0
    %6122 = vmatmul.mubr.f32.gmra.mxu0 %v6055
    %v6123 = vpop.f32.mrf.mxu0
    %v6124 = vadd.f32 %v6052, %v6123
    %v6125 = vpop.f32.mrf.mxu0
    %6126 = vdwg.mxu0
    %v6127 = vadd.f32 %v5991, %v6124
    %v6128 = vadd.f32 %v5858, %v6127
    %v6129 = vmul.f32 %v6128, 0.5
    %vm6130 = vcmp.ge.f32.partialorder %v6129, 0.0
    %v6131 = vmul.f32 %v6129, 0.01
    %v6132 = vsel %vm6130, %v6129, %v6131
    %6134 = vrot.lane.b32.xlu0 %v6132, 3
    %v6135 = vpop.permute.xlu0 %6134
    %v6137 = vsel %vm377, 0.0, %v6135
    %v6138 = vsel %vm569, %v6137, 0.0
    %6140 = vrot.lane.b32.xlu0 %v6138, 127
    %v6141 = vpop.permute.xlu0 %6140
    %6143 = vrot.lane.b32.xlu0 %v6138, 126
    %v6144 = vpop.permute.xlu0 %6143
    %6146 = vrot.lane.b32.xlu0 %v6138, 125
    %v6147 = vpop.permute.xlu0 %6146
    %6149 = vrot.lane.b32.xlu0 %v6138, 124
    %v6150 = vpop.permute.xlu0 %6149
    %6152 = vrot.lane.b32.xlu0 %v6138, 123
    %v6153 = vpop.permute.xlu0 %6152
    %6155 = vrot.lane.b32.xlu0 %v6138, 122
    %v6156 = vpop.permute.xlu0 %6155
    %6158 = vrot.lane.b32.xlu0 %v6132, 67
    %v6159 = vpop.permute.xlu0 %6158
    %v6161 = vsel %vm377, 0.0, %v6159
    %v6162 = vsel %vm569, %v6161, 0.0
    %6164 = vrot.lane.b32.xlu0 %v6162, 127
    %v6165 = vpop.permute.xlu0 %6164
    %6166 = vrot.lane.b32.xlu0 %v6162, 126
    %v6167 = vpop.permute.xlu0 %6166
    %6168 = vrot.lane.b32.xlu0 %v6162, 125
    %v6169 = vpop.permute.xlu0 %6168
    %6170 = vrot.lane.b32.xlu0 %v6162, 124
    %v6171 = vpop.permute.xlu0 %6170
    %6172 = vrot.lane.b32.xlu0 %v6162, 123
    %v6173 = vpop.permute.xlu0 %6172
    %6174 = vrot.lane.b32.xlu0 %v6162, 122
    %v6175 = vpop.permute.xlu0 %6174
    %6176 = vrot.lane.b32.xlu0 %v6162, 64
    %v6177 = vpop.permute.xlu0 %6176
    %6178 = vrot.lane.b32.xlu0 %v6165, 64
    %v6179 = vpop.permute.xlu0 %6178
    %6180 = vrot.lane.b32.xlu0 %v6167, 64
    %v6181 = vpop.permute.xlu0 %6180
    %6182 = vrot.lane.b32.xlu0 %v6169, 64
    %v6183 = vpop.permute.xlu0 %6182
    %6184 = vrot.lane.b32.xlu0 %v6171, 64
    %v6185 = vpop.permute.xlu0 %6184
    %6186 = vrot.lane.b32.xlu0 %v6173, 64
    %v6187 = vpop.permute.xlu0 %6186
    %6188 = vrot.lane.b32.xlu0 %v6175, 64
    %v6189 = vpop.permute.xlu0 %6188
    %v6197 = vsel %vm371, %v6138, %v6177
    %v6198 = vsel %vm371, %v6141, %v6179
    %v6199 = vsel %vm371, %v6144, %v6181
    %v6200 = vsel %vm371, %v6147, %v6183
    %v6201 = vsel %vm371, %v6150, %v6185
    %v6202 = vsel %vm371, %v6153, %v6187
    %v6203 = vsel %vm371, %v6156, %v6189
    %6205 = vset.pattern.permute.xlu0 0
    %6206 = vperm.xlu0 %6205, %v289
    %v6207 = vpop.permute.xlu0 %6206
    %v6209 = vlaneseq
    %v6210 = vshrl.u32 %v6209, 7
    %v6211 = vsub.s32 0, %v6210
    %v6212 = vrot.slane %v6207, %v6211
    %v6214 = vsel %vm466, %v290, 0
    %6216 = vmatprep.subr.mxu0 0.0
    %6217 = vmatpush1.msra.mxu0 0.0
    %6218 = vmatprep.subr.mxu0 0.0
    %6219 = vmatpush1.msra.mxu0 0.0
    %6220 = vmatprep.subr.mxu0 0.0
    %6221 = vmatpush1.msra.mxu0 0.0
    %6222 = vmatprep.subr.mxu0 0.0
    %6223 = vmatpush1.msra.mxu0 0.0
    %6224 = vmatprep.subr.mxu0 0.0
    %6225 = vmatpush1.msra.mxu0 0.0
    %6226 = vmatprep.subr.mxu0 0.0
    %6227 = vmatpush1.msra.mxu0 0.0
    %6228 = vmatprep.subr.mxu0 0.0
    %6229 = vmatpush1.msra.mxu0 0.0
    %6230 = vmatprep.subr.mxu0 0.0
    %6231 = vmatpush1.msra.mxu0 0.0
    %6232 = vmatprep.subr.mxu0 0.0
    %6233 = vmatpush1.msra.mxu0 0.0
    %6234 = vmatprep.subr.mxu0 0.0
    %6235 = vmatpush1.msra.mxu0 %v6203
    %6236 = vmatprep.subr.mxu0 0.0
    %6237 = vmatpush1.msra.mxu0 %v6202
    %6238 = vmatprep.subr.mxu0 0.0
    %6239 = vmatpush1.msra.mxu0 %v6201
    %6240 = vmatprep.subr.mxu0 0.0
    %6241 = vmatpush1.msra.mxu0 %v6200
    %6242 = vmatprep.subr.mxu0 0.0
    %6243 = vmatpush1.msra.mxu0 %v6199
    %6244 = vmatprep.subr.mxu0 0.0
    %6245 = vmatpush1.msra.mxu0 %v6198
    %6246 = vmatprep.subr.mxu0 0.0
    %6247 = vmatpush1.msra.mxu0 %v6197
    %6248 = vmatprep.subr.mxu0 0.0
    %6249 = vmatpush2.msra.mxu0 0.0
    %6250 = vmatprep.subr.mxu0 0.0
    %6251 = vmatpush2.msra.mxu0 0.0
    %6252 = vmatprep.subr.mxu0 0.0
    %6253 = vmatpush2.msra.mxu0 0.0
    %6254 = vmatprep.subr.mxu0 0.0
    %6255 = vmatpush2.msra.mxu0 0.0
    %6256 = vmatprep.subr.mxu0 0.0
    %6257 = vmatpush2.msra.mxu0 0.0
    %6258 = vmatprep.subr.mxu0 0.0
    %6259 = vmatpush2.msra.mxu0 0.0
    %6260 = vmatprep.subr.mxu0 0.0
    %6261 = vmatpush2.msra.mxu0 0.0
    %6262 = vmatprep.subr.mxu0 0.0
    %6263 = vmatpush2.msra.mxu0 0.0
    %6264 = vmatprep.subr.mxu0 0.0
    %6265 = vmatpush2.msra.mxu0 0.0
    %6266 = vmatprep.subr.mxu0 0.0
    %6267 = vmatpush2.msra.mxu0 0.0
    %6268 = vmatprep.subr.mxu0 0.0
    %6269 = vmatpush2.msra.mxu0 0.0
    %6270 = vmatprep.subr.mxu0 0.0
    %6271 = vmatpush2.msra.mxu0 0.0
    %6272 = vmatprep.subr.mxu0 0.0
    %6273 = vmatpush2.msra.mxu0 0.0
    %6274 = vmatprep.subr.mxu0 0.0
    %6275 = vmatpush2.msra.mxu0 0.0
    %6276 = vmatprep.subr.mxu0 0.0
    %6277 = vmatpush2.msra.mxu0 0.0
    %6278 = vmatprep.subr.mxu0 0.0
    %6279 = vmatpush2.msra.mxu0 0.0
    %6280 = vmatprep.mubr.f32.mxu0 0.0
    %6281 = vmatmul.mubr.f32.gmra.mxu0 %v6214
    %v6282 = vpop.f32.mrf.mxu0
    %v6283 = vadd.f32 %v6212, %v6282
    %v6284 = vpop.f32.mrf.mxu0
    %6285 = vdwg.mxu0
    %v6286 = vtanh.pop %v6283
    %6287 = vst [vmem:[%s113] sm:$0x1] %v6286
    %6288 = vst [vmem:[%s115] sm:$0x1] %v4120
    // Predicated region
    $region234: #{_lambda_.1} parent=1 // pred_check
      _
    $region235: #{_lambda_.1} parent=1 // pred_check_branch
      %6290 = sbr.rel (0) target = $region237
    $region236: #{_lambda_.1} parent=1 // pred_region
      _
    $region237: #{_lambda_.1} parent=1 // pred_fallthru
      _
    // Predicated region
    $region238: #{_lambda_.1} parent=1 // pred_check
      _
    $region239: #{_lambda_.1} parent=1 // pred_check_branch
      %6292 = sbr.rel (0) target = $region241
    $region240: #{_lambda_.1} parent=1 // pred_region
      _
    $region241: #{_lambda_.1} parent=1 // pred_fallthru
      _
    // Predicated region
    $region242: #{_lambda_.1} parent=1 // pred_check
      _
    $region243: #{_lambda_.1} parent=1 // pred_check_branch
      %6294 = sbr.rel (0) target = $region245
    $region244: #{_lambda_.1} parent=1 // pred_region
      _
    $region245: #{_lambda_.1} parent=1 // pred_fallthru
      _
    // Predicated region
    $region246: #{_lambda_.1} parent=1 // pred_check
      _
    $region247: #{_lambda_.1} parent=1 // pred_check_branch
      %6296 = sbr.rel (0) target = $region249
    $region248: #{_lambda_.1} parent=1 // pred_region
      _
    $region249: #{_lambda_.1} parent=1 // pred_fallthru
      _
    %6297 = vsyncpa [#allocation5], 1
    %6298 = vsyncpa [#allocation7], 1

</llo_original>
